<compile_context>
chip_gen: v7x
topology: tpu7x:2x2x1
jax: 0.10.0
libtpu: 0.0.40
codegen_flags: <defaults>
</compile_context>

<pallas_src>
import jax
import jax.numpy as jnp
from jax.experimental import pallas as pl
from jax.experimental.pallas import tpu as pltpu


# ----------------------------- kernel helpers ------------------------------

def _sigmoid(x):
    # sigmoid via one EUP tanh instead of exp + precise divide.
    return 0.5 * (jnp.tanh(0.5 * x) + 1.0)


def _dw3x3(t, pad_ref, w9, b1):
    # Depthwise 3x3 conv (padding=1) through the zero-bordered VMEM scratch.
    # t: (H, W, lanes) f32 interior; pad_ref: (H+2, W+16, LT) with interior at
    # rows 1..H, cols 8..8+W-1 (aligned store).  Border strips stay zero.
    # w9: (9, lanes) taps (row = dy*3+dx); b1: (1, lanes).
    H, W, lanes = t.shape
    pad_ref[1:H + 1, 8:8 + W, 0:lanes] = t
    acc = None
    for dy in range(3):
        for dx in range(3):
            tap = pad_ref[dy:dy + H, 7 + dx:7 + dx + W, 0:lanes]
            term = tap * w9[dy * 3 + dx:dy * 3 + dx + 1].reshape(1, 1, lanes)
            acc = term if acc is None else acc + term
    return acc + b1.reshape(1, 1, lanes)


# --------------------------------- kernel -----------------------------------

def cas_kernel(x_ref, vec_ref, wqkv_ref, wgc_ref, out_ref, pad_ref):
    G, H, W, L = x_ref.shape
    L2 = 2 * L
    HW = H * W

    # Zero only the border strips (aligned stores). The interior is fully
    # overwritten by every _dw3x3 call; nothing ever writes the border, but it
    # must be re-zeroed every step so each TensorCore's private scratch is
    # valid under megacore sharding of the "parallel" batch axis.
    zcol = jnp.zeros((H + 2, 8, L2), jnp.float32)
    pad_ref[:, 0:8, :] = zcol
    pad_ref[:, W + 8:W + 16, :] = zcol
    zrow = jnp.zeros((1, W, L2), jnp.float32)
    pad_ref[0:1, 8:W + 8, :] = zrow
    pad_ref[H + 1:H + 2, 8:W + 8, :] = zrow

    # Per-lane parameters (tiny; loaded once per grid step, reused for G images).
    qk_w9 = vec_ref[0:9, :]                                 # (9, 2L)
    qk_b = vec_ref[9:10, :]                                 # (1, 2L)
    bn_s = vec_ref[10:11, :].reshape(1, 1, L2)
    bn_sh = vec_ref[11:12, :].reshape(1, 1, L2)
    dwc_w9 = vec_ref[12:21, 0:L]
    dwc_b = vec_ref[21:22, 0:L]
    pj_w9 = vec_ref[22:31, 0:L]
    pj_b = vec_ref[31:32, 0:L]

    for g in range(G):                                      # static unrolled loop
        xf = x_ref[g].reshape(HW, L)                        # bf16 (HW, L)

        # Fused qkv 1x1 conv: bf16 MXU dot against block-diag (L, 3L), f32 acc.
        qkv = jnp.dot(xf, wqkv_ref[...],
                      preferred_element_type=jnp.float32)   # (HW, 3L) f32
        qk = qkv[:, 0:L2].reshape(H, W, L2)                 # [q | k] on 2L lanes
        v = qkv[:, L2:3 * L].reshape(H, W, L)

        # SpatialOperation on q and k fused on one 2L-lane tile:
        #   x * sigmoid(1x1conv(relu(bn(dwconv3x3(x)))))
        h = _dw3x3(qk, pad_ref, qk_w9, qk_b)
        h = jnp.maximum(h * bn_s + bn_sh, 0.0)
        logits = jnp.dot(h.reshape(HW, L2).astype(jnp.bfloat16),
                         wgc_ref[:, 0:L2],
                         preferred_element_type=jnp.float32)
        qk = qk * _sigmoid(logits).reshape(H, W, L2)

        # ChannelOperation on q and k fused: x * sigmoid(1x1conv(gap(x)))
        pooled = jnp.mean(qk.reshape(HW, L2), axis=0, keepdims=True)
        s = jnp.dot(pooled.astype(jnp.bfloat16), wgc_ref[:, L2:2 * L2],
                    preferred_element_type=jnp.float32)
        qk = qk * _sigmoid(s).reshape(1, 1, L2)

        # out = proj(dwc(q + k) * v)
        qpk = qk[:, :, 0:L] + qk[:, :, L:L2]
        fused = _dw3x3(qpk, pad_ref, dwc_w9, dwc_b) * v
        out = _dw3x3(fused, pad_ref, pj_w9, pj_b)
        out_ref[g] = out.astype(out_ref.dtype)


# ------------------------------ wrapper (glue) -------------------------------

def cas_forward(x_nchw, p, Bt=None, G=None):
    B, C, H, W = x_nchw.shape

    # How many images share the 128-lane axis.
    if Bt is None:
        Bt = max(1, 128 // C) if C < 128 else 1
        Bt = min(Bt, B)
        while B % Bt:
            Bt -= 1
    nb = B // Bt
    L = Bt * C
    L2 = 2 * L

    # How many lane-groups per grid step: amortize per-step overhead, keep the
    # grid length >= 2 (feed both v7x TensorCores), stay inside a conservative
    # VMEM budget (v7x has only 64 MiB physical VMEM).
    if G is None:
        in_b = H * W * L * 2                     # bf16 input tile
        out_b = H * W * L * 4                    # f32 output tile
        pad_b = (H + 2) * (W + 16) * L2 * 4
        slab_b = 2 * (32 * L2 * 4 + L * 3 * L * 2 + L2 * 4 * L * 2)
        budget = 24 * 1024 * 1024
        G = 1
        for g in range(1, min(nb, 16) + 1):
            if nb % g:
                continue
            if nb >= 2 and nb // g < 2:
                continue
            if 2 * g * (in_b + out_b) + pad_b + slab_b > budget:
                continue
            G = g
    grid_len = nb // G

    # NCHW -> (nb, H, W, Bt*C), lane = b_in_group*C + c.  bf16: the input is
    # only consumed by the bf16 qkv matmul, so this halves the input DMA.
    x = jnp.transpose(x_nchw, (0, 2, 3, 1))
    x = x.reshape(nb, Bt, H, W, C).transpose(0, 2, 3, 1, 4).reshape(nb, H, W, L)
    x = x.astype(jnp.bfloat16)

    eps = 1e-5

    def fold_bn(g_, b_, m_, v_):
        s = g_ / jnp.sqrt(v_ + eps)
        return s, b_ - m_ * s

    def dw9(wd):                                  # (C,1,3,3) -> (9, C)
        return jnp.transpose(wd[:, 0], (1, 2, 0)).reshape(9, C)

    def tile_vec(v1):                             # (C,) -> (L,)
        return jnp.tile(v1, Bt)

    def tile_rows(m9):                            # (9, C) -> (9, L)
        return jnp.tile(m9, (1, Bt))

    def bd(block):                                # (C, D) -> block-diag (L, Bt*D)
        Cc, D = block.shape
        eye = jnp.eye(Bt, dtype=block.dtype)
        return (eye[:, None, :, None] * block[None, :, None, :]).reshape(Bt * Cc, Bt * D)

    def diag2(a, b):                              # (L,L),(L,L) -> (2L,2L)
        z = jnp.zeros_like(a)
        return jnp.concatenate(
            [jnp.concatenate([a, z], axis=1), jnp.concatenate([z, b], axis=1)], axis=0)

    def cat_qk(aq, ak):
        return jnp.concatenate([aq, ak], axis=-1)

    def pad_to_2l(a):
        return jnp.concatenate([a, jnp.zeros_like(a)], axis=-1)

    sq_bn_s, sq_bn_sh = fold_bn(p['sq_bn_g'], p['sq_bn_b'], p['sq_bn_m'], p['sq_bn_v'])
    sk_bn_s, sk_bn_sh = fold_bn(p['sk_bn_g'], p['sk_bn_b'], p['sk_bn_m'], p['sk_bn_v'])

    # ---- per-lane vector slab (32, 2L), f32 (elementwise stays f32) ----
    vec_slab = jnp.concatenate([
        cat_qk(tile_rows(dw9(p['sq_dw_w'])), tile_rows(dw9(p['sk_dw_w']))),   # 0..8
        cat_qk(tile_vec(p['sq_dw_b']), tile_vec(p['sk_dw_b']))[None],         # 9
        cat_qk(tile_vec(sq_bn_s), tile_vec(sk_bn_s))[None],                   # 10
        cat_qk(tile_vec(sq_bn_sh), tile_vec(sk_bn_sh))[None],                 # 11
        pad_to_2l(tile_rows(dw9(p['dwc_w']))),                                # 12..20
        pad_to_2l(tile_vec(p['dwc_b'])[None]),                                # 21
        pad_to_2l(tile_rows(dw9(p['proj_w']))),                               # 22..30
        pad_to_2l(tile_vec(p['proj_b'])[None]),                               # 31
    ], axis=0).astype(jnp.float32)

    # ---- MXU weight slabs (bf16 operands; accumulation stays f32) ----
    wqkv = p['w_qkv'][:, :, 0, 0]                  # (3C, C), PyTorch OI
    wq_bd = bd(jnp.transpose(wqkv[0:C]))
    wk_bd = bd(jnp.transpose(wqkv[C:2 * C]))
    wv_bd = bd(jnp.transpose(wqkv[2 * C:3 * C]))
    mat_qkv = jnp.concatenate([wq_bd, wk_bd, wv_bd], axis=1).astype(jnp.bfloat16)  # (L, 3L)

    gq_bd = bd(jnp.broadcast_to(p['sq_pw_w'][0, :, 0, 0][:, None], (C, C)))
    gk_bd = bd(jnp.broadcast_to(p['sk_pw_w'][0, :, 0, 0][:, None], (C, C)))
    cq_bd = bd(jnp.transpose(p['cq_w'][:, :, 0, 0]))
    ck_bd = bd(jnp.transpose(p['ck_w'][:, :, 0, 0]))
    mat_gc = jnp.concatenate([diag2(gq_bd, gk_bd), diag2(cq_bd, ck_bd)],
                             axis=1).astype(jnp.bfloat16)                          # (2L, 4L)

    out_nb = pl.pallas_call(
        cas_kernel,
        out_shape=jax.ShapeDtypeStruct((nb, H, W, L), jnp.float32),
        grid_spec=pltpu.PrefetchScalarGridSpec(
            num_scalar_prefetch=0,
            grid=(grid_len,),
            in_specs=[
                pl.BlockSpec((G, H, W, L), lambda n: (n, 0, 0, 0)),
                pl.BlockSpec((32, L2), lambda n: (0, 0)),
                pl.BlockSpec((L, 3 * L), lambda n: (0, 0)),
                pl.BlockSpec((L2, 4 * L), lambda n: (0, 0)),
            ],
            out_specs=pl.BlockSpec((G, H, W, L), lambda n: (n, 0, 0, 0)),
            scratch_shapes=[pltpu.VMEM((H + 2, W + 16, L2), jnp.float32)],
        ),
        compiler_params=pltpu.CompilerParams(
            dimension_semantics=("parallel",),
            vmem_limit_bytes=48 * 1024 * 1024,
        ),
    )(x, vec_slab, mat_qkv, mat_gc)

    # (nb, H, W, Bt*C) -> NCHW
    out = out_nb.reshape(nb, H, W, Bt, C).transpose(0, 3, 4, 1, 2).reshape(B, C, H, W)
    return out


# ------------------------- deterministic parameters --------------------------

def init_params(key, C):
    ks = jax.random.split(key, 24)

    def n(i, shape, s=0.1):
        return s * jax.random.normal(ks[i], shape, jnp.float32)

    return dict(
        w_qkv=n(0, (3 * C, C, 1, 1)),
        # oper_q : SpatialOperation
        sq_dw_w=n(1, (C, 1, 3, 3)), sq_dw_b=n(2, (C,)),
        sq_bn_g=1.0 + n(3, (C,)), sq_bn_b=n(4, (C,)),
        sq_bn_m=n(5, (C,)), sq_bn_v=1.0 + 0.1 * jnp.abs(jax.random.normal(ks[6], (C,))),
        sq_pw_w=n(7, (1, C, 1, 1)),
        # oper_q : ChannelOperation
        cq_w=n(8, (C, C, 1, 1)),
        # oper_k : SpatialOperation
        sk_dw_w=n(9, (C, 1, 3, 3)), sk_dw_b=n(10, (C,)),
        sk_bn_g=1.0 + n(11, (C,)), sk_bn_b=n(12, (C,)),
        sk_bn_m=n(13, (C,)), sk_bn_v=1.0 + 0.1 * jnp.abs(jax.random.normal(ks[14], (C,))),
        sk_pw_w=n(15, (1, C, 1, 1)),
        # oper_k : ChannelOperation
        ck_w=n(16, (C, C, 1, 1)),
        # dwc / proj depthwise convs (bias=True default)
        dwc_w=n(17, (C, 1, 3, 3)), dwc_b=n(18, (C,)),
        proj_w=n(19, (C, 1, 3, 3)), proj_b=n(20, (C,)),
    )


# ------------------------------ plain-JAX reference ---------------------------

def _conv_nchw(x, w, b=None, padding=0, groups=1):
    out = jax.lax.conv_general_dilated(
        x, w, (1, 1), [(padding, padding), (padding, padding)],
        dimension_numbers=('NCHW', 'OIHW', 'NCHW'),
        feature_group_count=groups,
        precision=jax.lax.Precision.HIGHEST)
    if b is not None:
        out = out + b[None, :, None, None]
    return out


def ref_cas(x, p):
    C = x.shape[1]
    eps = 1e-5
    qkv = _conv_nchw(x, p['w_qkv'])
    q, k, v = jnp.split(qkv, 3, axis=1)

    def spatial(t, dw_w, dw_b, g, bt, m, var, pw):
        h = _conv_nchw(t, dw_w, dw_b, padding=1, groups=C)
        h = (h - m[None, :, None, None]) / jnp.sqrt(var[None, :, None, None] + eps)
        h = h * g[None, :, None, None] + bt[None, :, None, None]
        h = jnp.maximum(h, 0.0)
        a = _conv_nchw(h, pw)
        return t * (1.0 / (1.0 + jnp.exp(-a)))

    def channel(t, w):
        pooled = jnp.mean(t, axis=(2, 3), keepdims=True)
        s = _conv_nchw(pooled, w)
        return t * (1.0 / (1.0 + jnp.exp(-s)))

    q = channel(spatial(q, p['sq_dw_w'], p['sq_dw_b'], p['sq_bn_g'], p['sq_bn_b'],
                        p['sq_bn_m'], p['sq_bn_v'], p['sq_pw_w']), p['cq_w'])
    k = channel(spatial(k, p['sk_dw_w'], p['sk_dw_b'], p['sk_bn_g'], p['sk_bn_b'],
                        p['sk_bn_m'], p['sk_bn_v'], p['sk_pw_w']), p['ck_w'])
    fused = _conv_nchw(q + k, p['dwc_w'], p['dwc_b'], padding=1, groups=C)
    return _conv_nchw(fused * v, p['proj_w'], p['proj_b'], padding=1, groups=C)


# ----------------------------------- main -------------------------------------

if __name__ == "__main__":
    B, C, H, W = 8, 32, 16, 16
    key = jax.random.PRNGKey(0)
    kx, kp = jax.random.split(key)
    x = jax.random.normal(kx, (B, C, H, W), jnp.float32)   # NCHW, like PyTorch
    params = init_params(kp, C)

    out = jax.block_until_ready(cas_forward(x, params))
    assert out.shape == (B, C, H, W)

    ref = jax.block_until_ready(ref_cas(x, params))
    err = float(jnp.max(jnp.abs(out - ref)))
    # bf16 MXU operands (qkv / spatial-gate / channel-gate 1x1 convs) bound the
    # error; all elementwise math and accumulation stay f32.
    assert err < 1e-2, f"max abs err {err}"

    print("KERNEL_OK")
</pallas_src>

<mosaic_0001>
module attributes {stable_mosaic.version = 11 : i64} {
  func.func @cas_kernel(%arg0: i32, %arg1: memref<1x16x16x128xbf16, #tpu.memory_space<vmem>>, %arg2: memref<32x256xf32, #tpu.memory_space<vmem>>, %arg3: memref<128x384xbf16, #tpu.memory_space<vmem>>, %arg4: memref<256x512xbf16, #tpu.memory_space<vmem>>, %arg5: memref<1x16x16x128xf32, #tpu.memory_space<vmem>>, %arg6: memref<18x32x256xf32, #tpu.memory_space<vmem>>) attributes {dimension_semantics = [#tpu.dimension_semantics<parallel>], iteration_bounds = array<i64: 2>, scalar_prefetch = 0 : i64, scratch_operands = 1 : i64, tpu.core_type = #tpu.core_type<tc>, window_params = [{transform_indices = @transform_0, window_bounds = array<i64: 1, 16, 16, 128>}, {pipeline_mode = #tpu.pipeline_mode<synchronous>, transform_indices = @transform_1, window_bounds = array<i64: 32, 256>}, {pipeline_mode = #tpu.pipeline_mode<synchronous>, transform_indices = @transform_2, window_bounds = array<i64: 128, 384>}, {pipeline_mode = #tpu.pipeline_mode<synchronous>, transform_indices = @transform_3, window_bounds = array<i64: 256, 512>}, {transform_indices = @transform_4, window_bounds = array<i64: 1, 16, 16, 128>}]} {
    %cst = arith.constant 0.000000e+00 : f32
    %0 = vector.broadcast %cst : f32 to vector<18x8x256xf32>
    %c0 = arith.constant 0 : index
    %c0_0 = arith.constant 0 : index
    %c0_1 = arith.constant 0 : index
    %1 = vector.load %arg6[%c0, %c0_0, %c0_1] : memref<18x32x256xf32, #tpu.memory_space<vmem>>, vector<18x8x256xf32>
    tpu.vector_store %arg6[%c0, %c0_0, %c0_1], %0 {strides = array<i32>} : memref<18x32x256xf32, #tpu.memory_space<vmem>>, vector<18x8x256xf32>,
    %c0_2 = arith.constant 0 : index
    %c24 = arith.constant 24 : index
    %c0_3 = arith.constant 0 : index
    %2 = vector.load %arg6[%c0_2, %c24, %c0_3] : memref<18x32x256xf32, #tpu.memory_space<vmem>>, vector<18x8x256xf32>
    tpu.vector_store %arg6[%c0_2, %c24, %c0_3], %0 {strides = array<i32>} : memref<18x32x256xf32, #tpu.memory_space<vmem>>, vector<18x8x256xf32>,
    %cst_4 = arith.constant 0.000000e+00 : f32
    %3 = vector.broadcast %cst_4 : f32 to vector<1x16x256xf32>
    %c0_5 = arith.constant 0 : index
    %c8 = arith.constant 8 : index
    %c0_6 = arith.constant 0 : index
    %4 = vector.load %arg6[%c0_5, %c8, %c0_6] : memref<18x32x256xf32, #tpu.memory_space<vmem>>, vector<1x16x256xf32>
    tpu.vector_store %arg6[%c0_5, %c8, %c0_6], %3 {strides = array<i32>} : memref<18x32x256xf32, #tpu.memory_space<vmem>>, vector<1x16x256xf32>,
    %c17 = arith.constant 17 : index
    %c8_7 = arith.constant 8 : index
    %c0_8 = arith.constant 0 : index
    %5 = vector.load %arg6[%c17, %c8_7, %c0_8] : memref<18x32x256xf32, #tpu.memory_space<vmem>>, vector<1x16x256xf32>
    tpu.vector_store %arg6[%c17, %c8_7, %c0_8], %3 {strides = array<i32>} : memref<18x32x256xf32, #tpu.memory_space<vmem>>, vector<1x16x256xf32>,
    %c0_9 = arith.constant 0 : index
    %c0_10 = arith.constant 0 : index
    %6 = vector.load %arg2[%c0_9, %c0_10] : memref<32x256xf32, #tpu.memory_space<vmem>>, vector<9x256xf32>
    %c9 = arith.constant 9 : index
    %c0_11 = arith.constant 0 : index
    %7 = vector.load %arg2[%c9, %c0_11] : memref<32x256xf32, #tpu.memory_space<vmem>>, vector<1x256xf32>
    %c10 = arith.constant 10 : index
    %c0_12 = arith.constant 0 : index
    %8 = vector.load %arg2[%c10, %c0_12] : memref<32x256xf32, #tpu.memory_space<vmem>>, vector<1x256xf32>
    %9 = vector.shape_cast %8 : vector<1x256xf32> to vector<1x1x256xf32>
    %c11 = arith.constant 11 : index
    %c0_13 = arith.constant 0 : index
    %10 = vector.load %arg2[%c11, %c0_13] : memref<32x256xf32, #tpu.memory_space<vmem>>, vector<1x256xf32>
    %11 = vector.shape_cast %10 : vector<1x256xf32> to vector<1x1x256xf32>
    %c12 = arith.constant 12 : index
    %c0_14 = arith.constant 0 : index
    %12 = vector.load %arg2[%c12, %c0_14] : memref<32x256xf32, #tpu.memory_space<vmem>>, vector<9x128xf32>
    %c21 = arith.constant 21 : index
    %c0_15 = arith.constant 0 : index
    %13 = vector.load %arg2[%c21, %c0_15] : memref<32x256xf32, #tpu.memory_space<vmem>>, vector<1x128xf32>
    %c22 = arith.constant 22 : index
    %c0_16 = arith.constant 0 : index
    %14 = vector.load %arg2[%c22, %c0_16] : memref<32x256xf32, #tpu.memory_space<vmem>>, vector<9x128xf32>
    %c31 = arith.constant 31 : index
    %c0_17 = arith.constant 0 : index
    %15 = vector.load %arg2[%c31, %c0_17] : memref<32x256xf32, #tpu.memory_space<vmem>>, vector<1x128xf32>
    %c0_18 = arith.constant 0 : index
    %c0_19 = arith.constant 0 : index
    %c0_20 = arith.constant 0 : index
    %c0_21 = arith.constant 0 : index
    %16 = vector.load %arg1[%c0_18, %c0_19, %c0_20, %c0_21] : memref<1x16x16x128xbf16, #tpu.memory_space<vmem>>, vector<1x16x16x128xbf16>
    %17 = vector.shape_cast %16 : vector<1x16x16x128xbf16> to vector<16x16x128xbf16>
    %18 = vector.shape_cast %17 : vector<16x16x128xbf16> to vector<256x128xbf16>
    %c0_22 = arith.constant 0 : index
    %c0_23 = arith.constant 0 : index
    %19 = vector.load %arg3[%c0_22, %c0_23] : memref<128x384xbf16, #tpu.memory_space<vmem>>, vector<128x384xbf16>
    %cst_24 = arith.constant dense<0.000000e+00> : vector<256x384xf32>
    %20 = tpu.matmul %18, %19, %cst_24 {dimension_numbers = #tpu.dot_dimension_numbers<[1], [0], [0], [1], [0, 0, 1, 1], [], []>} : vector<256x128xbf16>, vector<128x384xbf16>, vector<256x384xf32> -> vector<256x384xf32>
    %21 = vector.extract_strided_slice %20 {offsets = [0, 0], sizes = [256, 256], strides = [1, 1]} : vector<256x384xf32> to vector<256x256xf32>
    %22 = vector.shape_cast %21 : vector<256x256xf32> to vector<16x16x256xf32>
    %23 = vector.extract_strided_slice %20 {offsets = [0, 256], sizes = [256, 128], strides = [1, 1]} : vector<256x384xf32> to vector<256x128xf32>
    %24 = vector.shape_cast %23 : vector<256x128xf32> to vector<16x16x128xf32>
    %c1 = arith.constant 1 : index
    %c8_25 = arith.constant 8 : index
    %c0_26 = arith.constant 0 : index
    %25 = vector.load %arg6[%c1, %c8_25, %c0_26] : memref<18x32x256xf32, #tpu.memory_space<vmem>>, vector<16x16x256xf32>
    tpu.vector_store %arg6[%c1, %c8_25, %c0_26], %22 {strides = array<i32>} : memref<18x32x256xf32, #tpu.memory_space<vmem>>, vector<16x16x256xf32>,
    %c0_27 = arith.constant 0 : index
    %c7 = arith.constant 7 : index
    %c0_28 = arith.constant 0 : index
    %26 = vector.load %arg6[%c0_27, %c7, %c0_28] : memref<18x32x256xf32, #tpu.memory_space<vmem>>, vector<16x16x256xf32>
    %27 = vector.extract_strided_slice %6 {offsets = [0, 0], sizes = [1, 256], strides = [1, 1]} : vector<9x256xf32> to vector<1x256xf32>
    %28 = vector.shape_cast %27 : vector<1x256xf32> to vector<1x1x256xf32>
    %29 = vector.broadcast %28 : vector<1x1x256xf32> to vector<16x16x256xf32>
    %30 = arith.mulf %26, %29 : vector<16x16x256xf32>
    %c0_29 = arith.constant 0 : index
    %c8_30 = arith.constant 8 : index
    %c0_31 = arith.constant 0 : index
    %31 = vector.load %arg6[%c0_29, %c8_30, %c0_31] : memref<18x32x256xf32, #tpu.memory_space<vmem>>, vector<16x16x256xf32>
    %32 = vector.extract_strided_slice %6 {offsets = [1, 0], sizes = [1, 256], strides = [1, 1]} : vector<9x256xf32> to vector<1x256xf32>
    %33 = vector.shape_cast %32 : vector<1x256xf32> to vector<1x1x256xf32>
    %34 = vector.broadcast %33 : vector<1x1x256xf32> to vector<16x16x256xf32>
    %35 = arith.mulf %31, %34 : vector<16x16x256xf32>
    %36 = arith.addf %30, %35 : vector<16x16x256xf32>
    %c0_32 = arith.constant 0 : index
    %c9_33 = arith.constant 9 : index
    %c0_34 = arith.constant 0 : index
    %37 = vector.load %arg6[%c0_32, %c9_33, %c0_34] : memref<18x32x256xf32, #tpu.memory_space<vmem>>, vector<16x16x256xf32>
    %38 = vector.extract_strided_slice %6 {offsets = [2, 0], sizes = [1, 256], strides = [1, 1]} : vector<9x256xf32> to vector<1x256xf32>
    %39 = vector.shape_cast %38 : vector<1x256xf32> to vector<1x1x256xf32>
    %40 = vector.broadcast %39 : vector<1x1x256xf32> to vector<16x16x256xf32>
    %41 = arith.mulf %37, %40 : vector<16x16x256xf32>
    %42 = arith.addf %36, %41 : vector<16x16x256xf32>
    %c1_35 = arith.constant 1 : index
    %c7_36 = arith.constant 7 : index
    %c0_37 = arith.constant 0 : index
    %43 = vector.load %arg6[%c1_35, %c7_36, %c0_37] : memref<18x32x256xf32, #tpu.memory_space<vmem>>, vector<16x16x256xf32>
    %44 = vector.extract_strided_slice %6 {offsets = [3, 0], sizes = [1, 256], strides = [1, 1]} : vector<9x256xf32> to vector<1x256xf32>
    %45 = vector.shape_cast %44 : vector<1x256xf32> to vector<1x1x256xf32>
    %46 = vector.broadcast %45 : vector<1x1x256xf32> to vector<16x16x256xf32>
    %47 = arith.mulf %43, %46 : vector<16x16x256xf32>
    %48 = arith.addf %42, %47 : vector<16x16x256xf32>
    %c1_38 = arith.constant 1 : index
    %c8_39 = arith.constant 8 : index
    %c0_40 = arith.constant 0 : index
    %49 = vector.load %arg6[%c1_38, %c8_39, %c0_40] : memref<18x32x256xf32, #tpu.memory_space<vmem>>, vector<16x16x256xf32>
    %50 = vector.extract_strided_slice %6 {offsets = [4, 0], sizes = [1, 256], strides = [1, 1]} : vector<9x256xf32> to vector<1x256xf32>
    %51 = vector.shape_cast %50 : vector<1x256xf32> to vector<1x1x256xf32>
    %52 = vector.broadcast %51 : vector<1x1x256xf32> to vector<16x16x256xf32>
    %53 = arith.mulf %49, %52 : vector<16x16x256xf32>
    %54 = arith.addf %48, %53 : vector<16x16x256xf32>
    %c1_41 = arith.constant 1 : index
    %c9_42 = arith.constant 9 : index
    %c0_43 = arith.constant 0 : index
    %55 = vector.load %arg6[%c1_41, %c9_42, %c0_43] : memref<18x32x256xf32, #tpu.memory_space<vmem>>, vector<16x16x256xf32>
    %56 = vector.extract_strided_slice %6 {offsets = [5, 0], sizes = [1, 256], strides = [1, 1]} : vector<9x256xf32> to vector<1x256xf32>
    %57 = vector.shape_cast %56 : vector<1x256xf32> to vector<1x1x256xf32>
    %58 = vector.broadcast %57 : vector<1x1x256xf32> to vector<16x16x256xf32>
    %59 = arith.mulf %55, %58 : vector<16x16x256xf32>
    %60 = arith.addf %54, %59 : vector<16x16x256xf32>
    %c2 = arith.constant 2 : index
    %c7_44 = arith.constant 7 : index
    %c0_45 = arith.constant 0 : index
    %61 = vector.load %arg6[%c2, %c7_44, %c0_45] : memref<18x32x256xf32, #tpu.memory_space<vmem>>, vector<16x16x256xf32>
    %62 = vector.extract_strided_slice %6 {offsets = [6, 0], sizes = [1, 256], strides = [1, 1]} : vector<9x256xf32> to vector<1x256xf32>
    %63 = vector.shape_cast %62 : vector<1x256xf32> to vector<1x1x256xf32>
    %64 = vector.broadcast %63 : vector<1x1x256xf32> to vector<16x16x256xf32>
    %65 = arith.mulf %61, %64 : vector<16x16x256xf32>
    %66 = arith.addf %60, %65 : vector<16x16x256xf32>
    %c2_46 = arith.constant 2 : index
    %c8_47 = arith.constant 8 : index
    %c0_48 = arith.constant 0 : index
    %67 = vector.load %arg6[%c2_46, %c8_47, %c0_48] : memref<18x32x256xf32, #tpu.memory_space<vmem>>, vector<16x16x256xf32>
    %68 = vector.extract_strided_slice %6 {offsets = [7, 0], sizes = [1, 256], strides = [1, 1]} : vector<9x256xf32> to vector<1x256xf32>
    %69 = vector.shape_cast %68 : vector<1x256xf32> to vector<1x1x256xf32>
    %70 = vector.broadcast %69 : vector<1x1x256xf32> to vector<16x16x256xf32>
    %71 = arith.mulf %67, %70 : vector<16x16x256xf32>
    %72 = arith.addf %66, %71 : vector<16x16x256xf32>
    %c2_49 = arith.constant 2 : index
    %c9_50 = arith.constant 9 : index
    %c0_51 = arith.constant 0 : index
    %73 = vector.load %arg6[%c2_49, %c9_50, %c0_51] : memref<18x32x256xf32, #tpu.memory_space<vmem>>, vector<16x16x256xf32>
    %74 = vector.extract_strided_slice %6 {offsets = [8, 0], sizes = [1, 256], strides = [1, 1]} : vector<9x256xf32> to vector<1x256xf32>
    %75 = vector.shape_cast %74 : vector<1x256xf32> to vector<1x1x256xf32>
    %76 = vector.broadcast %75 : vector<1x1x256xf32> to vector<16x16x256xf32>
    %77 = arith.mulf %73, %76 : vector<16x16x256xf32>
    %78 = arith.addf %72, %77 : vector<16x16x256xf32>
    %79 = vector.shape_cast %7 : vector<1x256xf32> to vector<1x1x256xf32>
    %80 = vector.broadcast %79 : vector<1x1x256xf32> to vector<16x16x256xf32>
    %81 = arith.addf %78, %80 : vector<16x16x256xf32>
    %82 = vector.broadcast %9 : vector<1x1x256xf32> to vector<16x16x256xf32>
    %83 = arith.mulf %81, %82 : vector<16x16x256xf32>
    %84 = vector.broadcast %11 : vector<1x1x256xf32> to vector<16x16x256xf32>
    %85 = arith.addf %83, %84 : vector<16x16x256xf32>
    %cst_52 = arith.constant 0.000000e+00 : f32
    %86 = vector.broadcast %cst_52 : f32 to vector<16x16x256xf32>
    %87 = arith.maximumf %85, %86 : vector<16x16x256xf32>
    %88 = vector.shape_cast %87 : vector<16x16x256xf32> to vector<256x256xf32>
    %89 = arith.truncf %88 : vector<256x256xf32> to vector<256x256xbf16>
    %c0_53 = arith.constant 0 : index
    %c0_54 = arith.constant 0 : index
    %90 = vector.load %arg4[%c0_53, %c0_54] : memref<256x512xbf16, #tpu.memory_space<vmem>>, vector<256x256xbf16>
    %cst_55 = arith.constant dense<0.000000e+00> : vector<256x256xf32>
    %91 = tpu.matmul %89, %90, %cst_55 {dimension_numbers = #tpu.dot_dimension_numbers<[1], [0], [0], [1], [0, 0, 1, 1], [], []>} : vector<256x256xbf16>, vector<256x256xbf16>, vector<256x256xf32> -> vector<256x256xf32>
    %cst_56 = arith.constant 5.000000e-01 : f32
    %92 = vector.broadcast %cst_56 : f32 to vector<256x256xf32>
    %93 = arith.mulf %92, %91 : vector<256x256xf32>
    %94 = math.tanh %93 : vector<256x256xf32>
    %cst_57 = arith.constant 1.000000e+00 : f32
    %95 = vector.broadcast %cst_57 : f32 to vector<256x256xf32>
    %96 = arith.addf %94, %95 : vector<256x256xf32>
    %cst_58 = arith.constant 5.000000e-01 : f32
    %97 = vector.broadcast %cst_58 : f32 to vector<256x256xf32>
    %98 = arith.mulf %97, %96 : vector<256x256xf32>
    %99 = vector.shape_cast %98 : vector<256x256xf32> to vector<16x16x256xf32>
    %100 = arith.mulf %22, %99 : vector<16x16x256xf32>
    %101 = vector.shape_cast %100 : vector<16x16x256xf32> to vector<256x256xf32>
    %cst_59 = arith.constant dense<0.000000e+00> : vector<256xf32>
    %102 = vector.multi_reduction <add>, %101, %cst_59 [0] : vector<256x256xf32> to vector<256xf32>
    %103 = vector.shape_cast %102 : vector<256xf32> to vector<1x256xf32>
    %cst_60 = arith.constant 2.560000e+02 : f32
    %104 = vector.broadcast %cst_60 : f32 to vector<1x256xf32>
    %105 = arith.divf %103, %104 : vector<1x256xf32>
    %106 = arith.truncf %105 : vector<1x256xf32> to vector<1x256xbf16>
    %c0_61 = arith.constant 0 : index
    %c256 = arith.constant 256 : index
    %107 = vector.load %arg4[%c0_61, %c256] : memref<256x512xbf16, #tpu.memory_space<vmem>>, vector<256x256xbf16>
    %cst_62 = arith.constant dense<0.000000e+00> : vector<1x256xf32>
    %108 = tpu.matmul %106, %107, %cst_62 {dimension_numbers = #tpu.dot_dimension_numbers<[1], [0], [0], [1], [0, 0, 1, 1], [], []>} : vector<1x256xbf16>, vector<256x256xbf16>, vector<1x256xf32> -> vector<1x256xf32>
    %cst_63 = arith.constant 5.000000e-01 : f32
    %109 = vector.broadcast %cst_63 : f32 to vector<1x256xf32>
    %110 = arith.mulf %109, %108 : vector<1x256xf32>
    %111 = math.tanh %110 : vector<1x256xf32>
    %cst_64 = arith.constant 1.000000e+00 : f32
    %112 = vector.broadcast %cst_64 : f32 to vector<1x256xf32>
    %113 = arith.addf %111, %112 : vector<1x256xf32>
    %cst_65 = arith.constant 5.000000e-01 : f32
    %114 = vector.broadcast %cst_65 : f32 to vector<1x256xf32>
    %115 = arith.mulf %114, %113 : vector<1x256xf32>
    %116 = vector.shape_cast %115 : vector<1x256xf32> to vector<1x1x256xf32>
    %117 = vector.broadcast %116 : vector<1x1x256xf32> to vector<16x16x256xf32>
    %118 = arith.mulf %100, %117 : vector<16x16x256xf32>
    %119 = vector.extract_strided_slice %118 {offsets = [0, 0, 0], sizes = [16, 16, 128], strides = [1, 1, 1]} : vector<16x16x256xf32> to vector<16x16x128xf32>
    %120 = vector.extract_strided_slice %118 {offsets = [0, 0, 128], sizes = [16, 16, 128], strides = [1, 1, 1]} : vector<16x16x256xf32> to vector<16x16x128xf32>
    %121 = arith.addf %119, %120 : vector<16x16x128xf32>
    %c1_66 = arith.constant 1 : index
    %c8_67 = arith.constant 8 : index
    %c0_68 = arith.constant 0 : index
    %122 = vector.load %arg6[%c1_66, %c8_67, %c0_68] : memref<18x32x256xf32, #tpu.memory_space<vmem>>, vector<16x16x128xf32>
    tpu.vector_store %arg6[%c1_66, %c8_67, %c0_68], %121 {strides = array<i32>} : memref<18x32x256xf32, #tpu.memory_space<vmem>>, vector<16x16x128xf32>,
    %c0_69 = arith.constant 0 : index
    %c7_70 = arith.constant 7 : index
    %c0_71 = arith.constant 0 : index
    %123 = vector.load %arg6[%c0_69, %c7_70, %c0_71] : memref<18x32x256xf32, #tpu.memory_space<vmem>>, vector<16x16x128xf32>
    %124 = vector.extract_strided_slice %12 {offsets = [0, 0], sizes = [1, 128], strides = [1, 1]} : vector<9x128xf32> to vector<1x128xf32>
    %125 = vector.shape_cast %124 : vector<1x128xf32> to vector<1x1x128xf32>
    %126 = vector.broadcast %125 : vector<1x1x128xf32> to vector<16x16x128xf32>
    %127 = arith.mulf %123, %126 : vector<16x16x128xf32>
    %c0_72 = arith.constant 0 : index
    %c8_73 = arith.constant 8 : index
    %c0_74 = arith.constant 0 : index
    %128 = vector.load %arg6[%c0_72, %c8_73, %c0_74] : memref<18x32x256xf32, #tpu.memory_space<vmem>>, vector<16x16x128xf32>
    %129 = vector.extract_strided_slice %12 {offsets = [1, 0], sizes = [1, 128], strides = [1, 1]} : vector<9x128xf32> to vector<1x128xf32>
    %130 = vector.shape_cast %129 : vector<1x128xf32> to vector<1x1x128xf32>
    %131 = vector.broadcast %130 : vector<1x1x128xf32> to vector<16x16x128xf32>
    %132 = arith.mulf %128, %131 : vector<16x16x128xf32>
    %133 = arith.addf %127, %132 : vector<16x16x128xf32>
    %c0_75 = arith.constant 0 : index
    %c9_76 = arith.constant 9 : index
    %c0_77 = arith.constant 0 : index
    %134 = vector.load %arg6[%c0_75, %c9_76, %c0_77] : memref<18x32x256xf32, #tpu.memory_space<vmem>>, vector<16x16x128xf32>
    %135 = vector.extract_strided_slice %12 {offsets = [2, 0], sizes = [1, 128], strides = [1, 1]} : vector<9x128xf32> to vector<1x128xf32>
    %136 = vector.shape_cast %135 : vector<1x128xf32> to vector<1x1x128xf32>
    %137 = vector.broadcast %136 : vector<1x1x128xf32> to vector<16x16x128xf32>
    %138 = arith.mulf %134, %137 : vector<16x16x128xf32>
    %139 = arith.addf %133, %138 : vector<16x16x128xf32>
    %c1_78 = arith.constant 1 : index
    %c7_79 = arith.constant 7 : index
    %c0_80 = arith.constant 0 : index
    %140 = vector.load %arg6[%c1_78, %c7_79, %c0_80] : memref<18x32x256xf32, #tpu.memory_space<vmem>>, vector<16x16x128xf32>
    %141 = vector.extract_strided_slice %12 {offsets = [3, 0], sizes = [1, 128], strides = [1, 1]} : vector<9x128xf32> to vector<1x128xf32>
    %142 = vector.shape_cast %141 : vector<1x128xf32> to vector<1x1x128xf32>
    %143 = vector.broadcast %142 : vector<1x1x128xf32> to vector<16x16x128xf32>
    %144 = arith.mulf %140, %143 : vector<16x16x128xf32>
    %145 = arith.addf %139, %144 : vector<16x16x128xf32>
    %c1_81 = arith.constant 1 : index
    %c8_82 = arith.constant 8 : index
    %c0_83 = arith.constant 0 : index
    %146 = vector.load %arg6[%c1_81, %c8_82, %c0_83] : memref<18x32x256xf32, #tpu.memory_space<vmem>>, vector<16x16x128xf32>
    %147 = vector.extract_strided_slice %12 {offsets = [4, 0], sizes = [1, 128], strides = [1, 1]} : vector<9x128xf32> to vector<1x128xf32>
    %148 = vector.shape_cast %147 : vector<1x128xf32> to vector<1x1x128xf32>
    %149 = vector.broadcast %148 : vector<1x1x128xf32> to vector<16x16x128xf32>
    %150 = arith.mulf %146, %149 : vector<16x16x128xf32>
    %151 = arith.addf %145, %150 : vector<16x16x128xf32>
    %c1_84 = arith.constant 1 : index
    %c9_85 = arith.constant 9 : index
    %c0_86 = arith.constant 0 : index
    %152 = vector.load %arg6[%c1_84, %c9_85, %c0_86] : memref<18x32x256xf32, #tpu.memory_space<vmem>>, vector<16x16x128xf32>
    %153 = vector.extract_strided_slice %12 {offsets = [5, 0], sizes = [1, 128], strides = [1, 1]} : vector<9x128xf32> to vector<1x128xf32>
    %154 = vector.shape_cast %153 : vector<1x128xf32> to vector<1x1x128xf32>
    %155 = vector.broadcast %154 : vector<1x1x128xf32> to vector<16x16x128xf32>
    %156 = arith.mulf %152, %155 : vector<16x16x128xf32>
    %157 = arith.addf %151, %156 : vector<16x16x128xf32>
    %c2_87 = arith.constant 2 : index
    %c7_88 = arith.constant 7 : index
    %c0_89 = arith.constant 0 : index
    %158 = vector.load %arg6[%c2_87, %c7_88, %c0_89] : memref<18x32x256xf32, #tpu.memory_space<vmem>>, vector<16x16x128xf32>
    %159 = vector.extract_strided_slice %12 {offsets = [6, 0], sizes = [1, 128], strides = [1, 1]} : vector<9x128xf32> to vector<1x128xf32>
    %160 = vector.shape_cast %159 : vector<1x128xf32> to vector<1x1x128xf32>
    %161 = vector.broadcast %160 : vector<1x1x128xf32> to vector<16x16x128xf32>
    %162 = arith.mulf %158, %161 : vector<16x16x128xf32>
    %163 = arith.addf %157, %162 : vector<16x16x128xf32>
    %c2_90 = arith.constant 2 : index
    %c8_91 = arith.constant 8 : index
    %c0_92 = arith.constant 0 : index
    %164 = vector.load %arg6[%c2_90, %c8_91, %c0_92] : memref<18x32x256xf32, #tpu.memory_space<vmem>>, vector<16x16x128xf32>
    %165 = vector.extract_strided_slice %12 {offsets = [7, 0], sizes = [1, 128], strides = [1, 1]} : vector<9x128xf32> to vector<1x128xf32>
    %166 = vector.shape_cast %165 : vector<1x128xf32> to vector<1x1x128xf32>
    %167 = vector.broadcast %166 : vector<1x1x128xf32> to vector<16x16x128xf32>
    %168 = arith.mulf %164, %167 : vector<16x16x128xf32>
    %169 = arith.addf %163, %168 : vector<16x16x128xf32>
    %c2_93 = arith.constant 2 : index
    %c9_94 = arith.constant 9 : index
    %c0_95 = arith.constant 0 : index
    %170 = vector.load %arg6[%c2_93, %c9_94, %c0_95] : memref<18x32x256xf32, #tpu.memory_space<vmem>>, vector<16x16x128xf32>
    %171 = vector.extract_strided_slice %12 {offsets = [8, 0], sizes = [1, 128], strides = [1, 1]} : vector<9x128xf32> to vector<1x128xf32>
    %172 = vector.shape_cast %171 : vector<1x128xf32> to vector<1x1x128xf32>
    %173 = vector.broadcast %172 : vector<1x1x128xf32> to vector<16x16x128xf32>
    %174 = arith.mulf %170, %173 : vector<16x16x128xf32>
    %175 = arith.addf %169, %174 : vector<16x16x128xf32>
    %176 = vector.shape_cast %13 : vector<1x128xf32> to vector<1x1x128xf32>
    %177 = vector.broadcast %176 : vector<1x1x128xf32> to vector<16x16x128xf32>
    %178 = arith.addf %175, %177 : vector<16x16x128xf32>
    %179 = arith.mulf %178, %24 : vector<16x16x128xf32>
    %c1_96 = arith.constant 1 : index
    %c8_97 = arith.constant 8 : index
    %c0_98 = arith.constant 0 : index
    %180 = vector.load %arg6[%c1_96, %c8_97, %c0_98] : memref<18x32x256xf32, #tpu.memory_space<vmem>>, vector<16x16x128xf32>
    tpu.vector_store %arg6[%c1_96, %c8_97, %c0_98], %179 {strides = array<i32>} : memref<18x32x256xf32, #tpu.memory_space<vmem>>, vector<16x16x128xf32>,
    %c0_99 = arith.constant 0 : index
    %c7_100 = arith.constant 7 : index
    %c0_101 = arith.constant 0 : index
    %181 = vector.load %arg6[%c0_99, %c7_100, %c0_101] : memref<18x32x256xf32, #tpu.memory_space<vmem>>, vector<16x16x128xf32>
    %182 = vector.extract_strided_slice %14 {offsets = [0, 0], sizes = [1, 128], strides = [1, 1]} : vector<9x128xf32> to vector<1x128xf32>
    %183 = vector.shape_cast %182 : vector<1x128xf32> to vector<1x1x128xf32>
    %184 = vector.broadcast %183 : vector<1x1x128xf32> to vector<16x16x128xf32>
    %185 = arith.mulf %181, %184 : vector<16x16x128xf32>
    %c0_102 = arith.constant 0 : index
    %c8_103 = arith.constant 8 : index
    %c0_104 = arith.constant 0 : index
    %186 = vector.load %arg6[%c0_102, %c8_103, %c0_104] : memref<18x32x256xf32, #tpu.memory_space<vmem>>, vector<16x16x128xf32>
    %187 = vector.extract_strided_slice %14 {offsets = [1, 0], sizes = [1, 128], strides = [1, 1]} : vector<9x128xf32> to vector<1x128xf32>
    %188 = vector.shape_cast %187 : vector<1x128xf32> to vector<1x1x128xf32>
    %189 = vector.broadcast %188 : vector<1x1x128xf32> to vector<16x16x128xf32>
    %190 = arith.mulf %186, %189 : vector<16x16x128xf32>
    %191 = arith.addf %185, %190 : vector<16x16x128xf32>
    %c0_105 = arith.constant 0 : index
    %c9_106 = arith.constant 9 : index
    %c0_107 = arith.constant 0 : index
    %192 = vector.load %arg6[%c0_105, %c9_106, %c0_107] : memref<18x32x256xf32, #tpu.memory_space<vmem>>, vector<16x16x128xf32>
    %193 = vector.extract_strided_slice %14 {offsets = [2, 0], sizes = [1, 128], strides = [1, 1]} : vector<9x128xf32> to vector<1x128xf32>
    %194 = vector.shape_cast %193 : vector<1x128xf32> to vector<1x1x128xf32>
    %195 = vector.broadcast %194 : vector<1x1x128xf32> to vector<16x16x128xf32>
    %196 = arith.mulf %192, %195 : vector<16x16x128xf32>
    %197 = arith.addf %191, %196 : vector<16x16x128xf32>
    %c1_108 = arith.constant 1 : index
    %c7_109 = arith.constant 7 : index
    %c0_110 = arith.constant 0 : index
    %198 = vector.load %arg6[%c1_108, %c7_109, %c0_110] : memref<18x32x256xf32, #tpu.memory_space<vmem>>, vector<16x16x128xf32>
    %199 = vector.extract_strided_slice %14 {offsets = [3, 0], sizes = [1, 128], strides = [1, 1]} : vector<9x128xf32> to vector<1x128xf32>
    %200 = vector.shape_cast %199 : vector<1x128xf32> to vector<1x1x128xf32>
    %201 = vector.broadcast %200 : vector<1x1x128xf32> to vector<16x16x128xf32>
    %202 = arith.mulf %198, %201 : vector<16x16x128xf32>
    %203 = arith.addf %197, %202 : vector<16x16x128xf32>
    %c1_111 = arith.constant 1 : index
    %c8_112 = arith.constant 8 : index
    %c0_113 = arith.constant 0 : index
    %204 = vector.load %arg6[%c1_111, %c8_112, %c0_113] : memref<18x32x256xf32, #tpu.memory_space<vmem>>, vector<16x16x128xf32>
    %205 = vector.extract_strided_slice %14 {offsets = [4, 0], sizes = [1, 128], strides = [1, 1]} : vector<9x128xf32> to vector<1x128xf32>
    %206 = vector.shape_cast %205 : vector<1x128xf32> to vector<1x1x128xf32>
    %207 = vector.broadcast %206 : vector<1x1x128xf32> to vector<16x16x128xf32>
    %208 = arith.mulf %204, %207 : vector<16x16x128xf32>
    %209 = arith.addf %203, %208 : vector<16x16x128xf32>
    %c1_114 = arith.constant 1 : index
    %c9_115 = arith.constant 9 : index
    %c0_116 = arith.constant 0 : index
    %210 = vector.load %arg6[%c1_114, %c9_115, %c0_116] : memref<18x32x256xf32, #tpu.memory_space<vmem>>, vector<16x16x128xf32>
    %211 = vector.extract_strided_slice %14 {offsets = [5, 0], sizes = [1, 128], strides = [1, 1]} : vector<9x128xf32> to vector<1x128xf32>
    %212 = vector.shape_cast %211 : vector<1x128xf32> to vector<1x1x128xf32>
    %213 = vector.broadcast %212 : vector<1x1x128xf32> to vector<16x16x128xf32>
    %214 = arith.mulf %210, %213 : vector<16x16x128xf32>
    %215 = arith.addf %209, %214 : vector<16x16x128xf32>
    %c2_117 = arith.constant 2 : index
    %c7_118 = arith.constant 7 : index
    %c0_119 = arith.constant 0 : index
    %216 = vector.load %arg6[%c2_117, %c7_118, %c0_119] : memref<18x32x256xf32, #tpu.memory_space<vmem>>, vector<16x16x128xf32>
    %217 = vector.extract_strided_slice %14 {offsets = [6, 0], sizes = [1, 128], strides = [1, 1]} : vector<9x128xf32> to vector<1x128xf32>
    %218 = vector.shape_cast %217 : vector<1x128xf32> to vector<1x1x128xf32>
    %219 = vector.broadcast %218 : vector<1x1x128xf32> to vector<16x16x128xf32>
    %220 = arith.mulf %216, %219 : vector<16x16x128xf32>
    %221 = arith.addf %215, %220 : vector<16x16x128xf32>
    %c2_120 = arith.constant 2 : index
    %c8_121 = arith.constant 8 : index
    %c0_122 = arith.constant 0 : index
    %222 = vector.load %arg6[%c2_120, %c8_121, %c0_122] : memref<18x32x256xf32, #tpu.memory_space<vmem>>, vector<16x16x128xf32>
    %223 = vector.extract_strided_slice %14 {offsets = [7, 0], sizes = [1, 128], strides = [1, 1]} : vector<9x128xf32> to vector<1x128xf32>
    %224 = vector.shape_cast %223 : vector<1x128xf32> to vector<1x1x128xf32>
    %225 = vector.broadcast %224 : vector<1x1x128xf32> to vector<16x16x128xf32>
    %226 = arith.mulf %222, %225 : vector<16x16x128xf32>
    %227 = arith.addf %221, %226 : vector<16x16x128xf32>
    %c2_123 = arith.constant 2 : index
    %c9_124 = arith.constant 9 : index
    %c0_125 = arith.constant 0 : index
    %228 = vector.load %arg6[%c2_123, %c9_124, %c0_125] : memref<18x32x256xf32, #tpu.memory_space<vmem>>, vector<16x16x128xf32>
    %229 = vector.extract_strided_slice %14 {offsets = [8, 0], sizes = [1, 128], strides = [1, 1]} : vector<9x128xf32> to vector<1x128xf32>
    %230 = vector.shape_cast %229 : vector<1x128xf32> to vector<1x1x128xf32>
    %231 = vector.broadcast %230 : vector<1x1x128xf32> to vector<16x16x128xf32>
    %232 = arith.mulf %228, %231 : vector<16x16x128xf32>
    %233 = arith.addf %227, %232 : vector<16x16x128xf32>
    %234 = vector.shape_cast %15 : vector<1x128xf32> to vector<1x1x128xf32>
    %235 = vector.broadcast %234 : vector<1x1x128xf32> to vector<16x16x128xf32>
    %236 = arith.addf %233, %235 : vector<16x16x128xf32>
    %c0_126 = arith.constant 0 : index
    %c0_127 = arith.constant 0 : index
    %c0_128 = arith.constant 0 : index
    %c0_129 = arith.constant 0 : index
    %237 = vector.load %arg5[%c0_126, %c0_127, %c0_128, %c0_129] : memref<1x16x16x128xf32, #tpu.memory_space<vmem>>, vector<1x16x16x128xf32>
    %238 = vector.shape_cast %237 : vector<1x16x16x128xf32> to vector<16x16x128xf32>
    %239 = vector.shape_cast %236 : vector<16x16x128xf32> to vector<1x16x16x128xf32>
    tpu.vector_store %arg5[%c0_126, %c0_127, %c0_128, %c0_129], %239 {strides = array<i32>} : memref<1x16x16x128xf32, #tpu.memory_space<vmem>>, vector<1x16x16x128xf32>,
    return
  }
  func.func @transform_0(%arg0: i32) -> (i32, i32, i32, i32) {
    %c0_i32 = arith.constant 0 : i32
    %c0_i32_0 = arith.constant 0 : i32
    %c0_i32_1 = arith.constant 0 : i32
    %c0_i32_2 = arith.constant 0 : i32
    return %arg0, %c0_i32, %c0_i32_0, %c0_i32_1 : i32, i32, i32, i32
  }
  func.func @transform_1(%arg0: i32) -> (i32, i32) {
    %c0_i32 = arith.constant 0 : i32
    %c0_i32_0 = arith.constant 0 : i32
    %c0_i32_1 = arith.constant 0 : i32
    return %c0_i32, %c0_i32_0 : i32, i32
  }
  func.func @transform_2(%arg0: i32) -> (i32, i32) {
    %c0_i32 = arith.constant 0 : i32
    %c0_i32_0 = arith.constant 0 : i32
    %c0_i32_1 = arith.constant 0 : i32
    return %c0_i32, %c0_i32_0 : i32, i32
  }
  func.func @transform_3(%arg0: i32) -> (i32, i32) {
    %c0_i32 = arith.constant 0 : i32
    %c0_i32_0 = arith.constant 0 : i32
    %c0_i32_1 = arith.constant 0 : i32
    return %c0_i32, %c0_i32_0 : i32, i32
  }
  func.func @transform_4(%arg0: i32) -> (i32, i32, i32, i32) {
    %c0_i32 = arith.constant 0 : i32
    %c0_i32_0 = arith.constant 0 : i32
    %c0_i32_1 = arith.constant 0 : i32
    %c0_i32_2 = arith.constant 0 : i32
    return %arg0, %c0_i32, %c0_i32_0, %c0_i32_1 : i32, i32, i32, i32
  }
}

</mosaic_0001>

<llo_original>
// kernel: tpu_custom_call.1
$region0: #{tpu_custom_call.1}
  #allocation0 [shape = 'u32[]', space=smem, size = 0x4, offset = 0x4, fixed_abs, tag = 'smem constant byte address 0x4 - core index']
  #allocation1 [shape = 'u32[144,128]{1,0:T(1,128)}', space=vmem, size = 0x12000, scoped, tag = 'internal scratch']
  #allocation2 [shape = 'f32[18,32,256]{2,1,0:T(8,128)}', space=vmem, size = 0x90000, scoped, tag = 'scratch operand']
  %s0 = inlined_call_operand.hbm [shape: bf16[2,16,16,128], index: 0, kind: input, shape index: {}]
  %s1 = inlined_call_operand.hbm [shape: f32[32,256], index: 1, kind: input, shape index: {}]
  %s2 = inlined_call_operand.hbm [shape: bf16[128,384], index: 2, kind: input, shape index: {}]
  %s3 = inlined_call_operand.hbm [shape: bf16[256,512], index: 3, kind: input, shape index: {}]
  %s4 = inlined_call_operand.hbm [shape: f32[2,16,16,128], index: 4, kind: output, shape index: {}]
  %s5 = sld [smem:[#allocation0]]
  $region65: #{tpu_custom_call.1} parent=0
    _
  %s7 = ssub.s32 1, %s5
  %s8 = scalar_select 0, %s7, %s5
  $region1: #{tpu_custom_call.1} parent=0
    #allocation3 [shape = 'u8[131072]{0}', space=vmem, size = 0x20000, scoped, tag = 'input window, operand 0']
    #allocation4 [shape = 's32[2]{0}', space=sflag, size = 0x8, scoped, tag = 'scoped memory for tpu_custom_call.1']
    #allocation5 [shape = 's32[2]{0}', space=sflag, size = 0x8, scoped, tag = 'scoped memory for tpu_custom_call.1']
    #allocation6 [shape = 'u8[32768]{0}', space=vmem, size = 0x8000, scoped, tag = 'input window, operand 1, single buffered']
    #allocation7 [shape = 's32[1]{0}', space=sflag, size = 0x4, scoped, tag = 'scoped memory for tpu_custom_call.1']
    #allocation8 [shape = 'u8[98304]{0}', space=vmem, size = 0x18000, scoped, tag = 'input window, operand 2, single buffered']
    #allocation9 [shape = 'u8[262144]{0}', space=vmem, size = 0x40000, scoped, tag = 'input window, operand 3, single buffered']
    #allocation10 [shape = 's32[1]{0}', space=sflag, size = 0x4, scoped, tag = 'scoped memory for tpu_custom_call.1']
    #allocation11 [shape = 'u8[262144]{0}', space=vmem, size = 0x40000, scoped, tag = 'output window, operand 0']
    %9 = vsyncpa [#allocation4], 0
    %s10 = scalar_lea.sflag [#allocation4], 1
    %11 = vsyncpa %s10, 0
    %12 = vsyncpa [#allocation7], 0
    %13 = vsyncpa [#allocation10], 0
    %14 = vsyncpa [#allocation5], 0
    %s15 = scalar_lea.sflag [#allocation5], 1
    %16 = vsyncpa %s15, 0
    loop: start=0, step=1, limit=4
    $region2: #{tpu_custom_call.1} parent=1 // loop_pre_header
      _
    $region3: #{tpu_custom_call.1} parent=1 // loop_header
      %s18 = sphi 0, %s22
      %p19 = scmp.ge.s32.totalorder %s18, 4
      %s28 = sphi 0, %s30
      %s31 = sphi 0, %s28
      %s32 = sphi 0, %s31
      %s48 = sphi 0, %s32
      %s52 = sphi 0, %s52
      %s54 = sphi 0, %s52
      %s55 = sphi 0, %s54
      %s69 = sphi 0, %s55
      %s73 = sphi 0, %s73
      %s75 = sphi 0, %s73
      %s76 = sphi 0, %s75
      %s90 = sphi 0, %s76
      %s94 = sphi 0, %s94
      %s96 = sphi 0, %s94
      %s97 = sphi 0, %s96
      %s111 = sphi 0, %s97
      %s117 = sphi 0, %s119
      %s120 = sphi 0, %s117
      %s121 = sphi 0, %s120
      %s137 = sphi 0, %s121
    $region4: #{tpu_custom_call.1} parent=1 // loop_header_branch
      %21 = sbr.rel (%p19) target = $region8
    $region5: #{tpu_custom_call.1} parent=1 // loop_body
      %s23 = ssub.s32 %s18, 1
      %s24 = ssub.s32 %s18, 2
      %s25 = sadd.s32 %s18, 1
      %s26 = ssub.s32 %s18, %s25
      %p27 = scmp.eq.s32.totalorder %s26, 0
      %s29 = sadd.s32 %s28, 1
      %s30 = scalar_select %p27, %s28, %s29
      %p33 = pneg %p27
      %p34 = scmp.eq.s32.totalorder %s18, 1
      %p35 = por %p33, %p34
      %p36 = scmp.ne.s32.totalorder %s28, %s31
      %p37 = scmp.eq.s32.totalorder %s18, 0
      %p38 = por %p36, %p37
      %p39 = scmp.ne.s32.totalorder %s28, %s31
      %p40 = scmp.eq.s32.totalorder %s23, 1
      %p41 = por %p39, %p40
      %p42 = scmp.ne.s32.totalorder %s31, %s32
      %p43 = scmp.eq.s32.totalorder %s23, 0
      %p44 = por %p42, %p43
      %p45 = scmp.ne.s32.totalorder %s31, %s32
      %p46 = scmp.eq.s32.totalorder %s24, 1
      %p47 = por %p45, %p46
      %p49 = scmp.ne.s32.totalorder %s32, %s48
      %p50 = scmp.eq.s32.totalorder %s24, 0
      %p51 = por %p49, %p50
      %s53 = sadd.s32 %s52, 1
      %p56 = scmp.eq.s32.totalorder %s18, 1
      %p57 = scmp.ne.s32.totalorder %s52, %s54
      %p58 = scmp.eq.s32.totalorder %s18, 0
      %p59 = por %p57, %p58
      %p60 = scmp.ne.s32.totalorder %s52, %s54
      %p61 = scmp.eq.s32.totalorder %s23, 1
      %p62 = por %p60, %p61
      %p63 = scmp.ne.s32.totalorder %s54, %s55
      %p64 = scmp.eq.s32.totalorder %s23, 0
      %p65 = por %p63, %p64
      %p66 = scmp.ne.s32.totalorder %s54, %s55
      %p67 = scmp.eq.s32.totalorder %s24, 1
      %p68 = por %p66, %p67
      %p70 = scmp.ne.s32.totalorder %s55, %s69
      %p71 = scmp.eq.s32.totalorder %s24, 0
      %p72 = por %p70, %p71
      %s74 = sadd.s32 %s73, 1
      %p77 = scmp.eq.s32.totalorder %s18, 1
      %p78 = scmp.ne.s32.totalorder %s73, %s75
      %p79 = scmp.eq.s32.totalorder %s18, 0
      %p80 = por %p78, %p79
      %p81 = scmp.ne.s32.totalorder %s73, %s75
      %p82 = scmp.eq.s32.totalorder %s23, 1
      %p83 = por %p81, %p82
      %p84 = scmp.ne.s32.totalorder %s75, %s76
      %p85 = scmp.eq.s32.totalorder %s23, 0
      %p86 = por %p84, %p85
      %p87 = scmp.ne.s32.totalorder %s75, %s76
      %p88 = scmp.eq.s32.totalorder %s24, 1
      %p89 = por %p87, %p88
      %p91 = scmp.ne.s32.totalorder %s76, %s90
      %p92 = scmp.eq.s32.totalorder %s24, 0
      %p93 = por %p91, %p92
      %s95 = sadd.s32 %s94, 1
      %p98 = scmp.eq.s32.totalorder %s18, 1
      %p99 = scmp.ne.s32.totalorder %s94, %s96
      %p100 = scmp.eq.s32.totalorder %s18, 0
      %p101 = por %p99, %p100
      %p102 = scmp.ne.s32.totalorder %s94, %s96
      %p103 = scmp.eq.s32.totalorder %s23, 1
      %p104 = por %p102, %p103
      %p105 = scmp.ne.s32.totalorder %s96, %s97
      %p106 = scmp.eq.s32.totalorder %s23, 0
      %p107 = por %p105, %p106
      %p108 = scmp.ne.s32.totalorder %s96, %s97
      %p109 = scmp.eq.s32.totalorder %s24, 1
      %p110 = por %p108, %p109
      %p112 = scmp.ne.s32.totalorder %s97, %s111
      %p113 = scmp.eq.s32.totalorder %s24, 0
      %p114 = por %p112, %p113
      %s115 = ssub.s32 %s18, %s25
      %p116 = scmp.eq.s32.totalorder %s115, 0
      %s118 = sadd.s32 %s117, 1
      %s119 = scalar_select %p116, %s117, %s118
      %p122 = pneg %p116
      %p123 = scmp.eq.s32.totalorder %s18, 1
      %p124 = por %p122, %p123
      %p125 = scmp.ne.s32.totalorder %s117, %s120
      %p126 = scmp.eq.s32.totalorder %s18, 0
      %p127 = por %p125, %p126
      %p128 = scmp.ne.s32.totalorder %s117, %s120
      %p129 = scmp.eq.s32.totalorder %s23, 1
      %p130 = por %p128, %p129
      %p131 = scmp.ne.s32.totalorder %s120, %s121
      %p132 = scmp.eq.s32.totalorder %s23, 0
      %p133 = por %p131, %p132
      %p134 = scmp.ne.s32.totalorder %s120, %s121
      %p135 = scmp.eq.s32.totalorder %s24, 1
      %p136 = por %p134, %p135
      %p138 = scmp.ne.s32.totalorder %s121, %s137
      %p139 = scmp.eq.s32.totalorder %s24, 0
      %p140 = por %p138, %p139
      %p141 = scmp.le.s32.totalorder 1, %s18
      %p142 = scmp.lt.s32.totalorder %s18, 3
      %p143 = pnand %p141, %p142
      %p144 = pneg %p143
      // Predicated region
      $region9: #{tpu_custom_call.1} parent=5 // pred_check
        _
      $region10: #{tpu_custom_call.1} parent=5 // pred_check_branch
        %146 = sbr.rel (%p143) target = $region12
      $region11: #{tpu_custom_call.1} parent=5 // pred_region
        %s147 = ssub.s32 %s18, 1
        // Predicated region
        $region13: #{tpu_custom_call.1} parent=11 // pred_check
          %p148 = pneg %p65
        $region14: #{tpu_custom_call.1} parent=11 // pred_check_branch
          %150 = sbr.rel (%p148) target = $region16
        $region15: #{tpu_custom_call.1} parent=11 // pred_region
          %s152 = ssub.s32 1024, 1024
          %153 = vsyncadd [#allocation7], %s152
          %s154 = sshll.u32 [#allocation6], 4
          %s155 = int_to_ptr.vmem [resolvable:$true] %s154
          %160 = dma.hbm_to_vmem [thread:$0]  %s1, 1024, %s155, [#allocation7], 256, 256, 16
        $region16: #{tpu_custom_call.1} parent=11 // pred_fallthru
          _
        // Predicated region
        $region17: #{tpu_custom_call.1} parent=11 // pred_check
          %p161 = pneg %p86
        $region18: #{tpu_custom_call.1} parent=11 // pred_check_branch
          %163 = sbr.rel (%p161) target = $region20
        $region19: #{tpu_custom_call.1} parent=11 // pred_region
          %s165 = ssub.s32 3072, 3072
          %166 = vsyncadd [#allocation7], %s165
          %s167 = sshll.u32 [#allocation8], 4
          %s168 = int_to_ptr.vmem [resolvable:$true] %s167
          %173 = dma.hbm_to_vmem [thread:$0]  %s2, 3072, %s168, [#allocation7], 192, 192, 12
        $region20: #{tpu_custom_call.1} parent=11 // pred_fallthru
          _
        // Predicated region
        $region21: #{tpu_custom_call.1} parent=11 // pred_check
          %p174 = pneg %p107
        $region22: #{tpu_custom_call.1} parent=11 // pred_check_branch
          %176 = sbr.rel (%p174) target = $region24
        $region23: #{tpu_custom_call.1} parent=11 // pred_region
          %s178 = ssub.s32 8192, 8192
          %179 = vsyncadd [#allocation10], %s178
          %s180 = sshll.u32 [#allocation9], 4
          %s181 = int_to_ptr.vmem [resolvable:$true] %s180
          %186 = dma.hbm_to_vmem [thread:$0]  %s3, 8192, %s181, [#allocation10], 256, 256, 16
        $region24: #{tpu_custom_call.1} parent=11 // pred_fallthru
          _
      $region12: #{tpu_custom_call.1} parent=5 // pred_fallthru
        _
      %p187 = scmp.lt.s32.totalorder %s18, 2
      // Predicated region
      $region25: #{tpu_custom_call.1} parent=5 // pred_check
        %p188 = pneg %p187
      $region26: #{tpu_custom_call.1} parent=5 // pred_check_branch
        %190 = sbr.rel (%p188) target = $region28
      $region27: #{tpu_custom_call.1} parent=5 // pred_region
        // Predicated region
        $region29: #{tpu_custom_call.1} parent=27 // pred_check
          %p191 = pneg %p38
        $region30: #{tpu_custom_call.1} parent=27 // pred_check_branch
          %193 = sbr.rel (%p191) target = $region32
        $region31: #{tpu_custom_call.1} parent=27 // pred_region
          %s194 = sand.u32 %s28, 1
          %s195 = scalar_lea.sflag [#allocation4], %s194
          %s196 = sand.u32 %s28, 1
          %s197 = smul.addr %s196, 128
          %s198 = scalar_lea.vmem [#allocation3], %s197
          %s200 = ssub.s32 2048, 2048
          %201 = vsyncadd %s195, %s200
          %s202 = smul.addr %s18, 32
          %s203 = smul.addr %s202, 64
          %s204 = scalar_lea.hbm %s0, %s203
          %s205 = sshll.u32 %s198, 4
          %s206 = int_to_ptr.vmem [resolvable:$true] %s205
          %211 = dma.hbm_to_vmem [thread:$0]  %s204, 2048, %s206, %s195, 64, 64, 4
        $region32: #{tpu_custom_call.1} parent=27 // pred_fallthru
          _
      $region28: #{tpu_custom_call.1} parent=5 // pred_fallthru
        _
      %p212 = scmp.le.s32.totalorder 1, %s18
      %p213 = scmp.lt.s32.totalorder %s18, 3
      %p214 = pnand %p212, %p213
      %p215 = pneg %p214
      // Predicated region
      $region33: #{tpu_custom_call.1} parent=5 // pred_check
        _
      $region34: #{tpu_custom_call.1} parent=5 // pred_check_branch
        %217 = sbr.rel (%p214) target = $region36
      $region35: #{tpu_custom_call.1} parent=5 // pred_region
        %s218 = ssub.s32 %s18, 1
        %s219 = sand.u32 %s31, 1
        %s220 = scalar_lea.sflag [#allocation4], %s219
        %s221 = sand.u32 %s31, 1
        %s222 = smul.addr %s221, 128
        %s223 = scalar_lea.vmem [#allocation3], %s222
        // Predicated region
        $region37: #{tpu_custom_call.1} parent=35 // pred_check
          %p224 = pneg %p44
        $region38: #{tpu_custom_call.1} parent=35 // pred_check_branch
          %226 = sbr.rel (%p224) target = $region40
        $region39: #{tpu_custom_call.1} parent=35 // pred_region
          %227 = dma.done %s220, 2048
        $region40: #{tpu_custom_call.1} parent=35 // pred_fallthru
          _
        // Predicated region
        $region41: #{tpu_custom_call.1} parent=35 // pred_check
          %p228 = pneg %p65
        $region42: #{tpu_custom_call.1} parent=35 // pred_check_branch
          %230 = sbr.rel (%p228) target = $region44
        $region43: #{tpu_custom_call.1} parent=35 // pred_region
          %231 = dma.done [#allocation7], 1024
        $region44: #{tpu_custom_call.1} parent=35 // pred_fallthru
          _
        // Predicated region
        $region45: #{tpu_custom_call.1} parent=35 // pred_check
          %p232 = pneg %p86
        $region46: #{tpu_custom_call.1} parent=35 // pred_check_branch
          %234 = sbr.rel (%p232) target = $region48
        $region47: #{tpu_custom_call.1} parent=35 // pred_region
          %235 = dma.done [#allocation7], 3072
        $region48: #{tpu_custom_call.1} parent=35 // pred_fallthru
          _
        // Predicated region
        $region49: #{tpu_custom_call.1} parent=35 // pred_check
          %p236 = pneg %p107
        $region50: #{tpu_custom_call.1} parent=35 // pred_check_branch
          %238 = sbr.rel (%p236) target = $region52
        $region51: #{tpu_custom_call.1} parent=35 // pred_region
          %239 = dma.done [#allocation10], 8192
        $region52: #{tpu_custom_call.1} parent=35 // pred_fallthru
          _
        %s240 = sand.u32 %s31, 1
        %s241 = scalar_lea.sflag [#allocation4], %s240
        %s242 = sand.u32 %s31, 1
        %s243 = smul.addr %s242, 128
        %s244 = scalar_lea.vmem [#allocation3], %s243
        %p245 = pneg %p44
        %p246 = pneg %p41
        %p247 = pneg %p65
        %p248 = pneg %p62
        %p249 = pneg %p86
        %p250 = pneg %p83
        %p251 = pneg %p107
        %p252 = pneg %p104
        %p253 = pneg %p133
        %p254 = pneg %p130
        %s255 = sand.u32 %s120, 1
        %s256 = scalar_lea.sflag [#allocation5], %s255
        %s257 = sand.u32 %s120, 1
        %s258 = smul.addr %s257, 256
        %s259 = scalar_lea.vmem [#allocation11], %s258
        %261 = vst [vmem:[#allocation2] sm:$0xff] 0.0
        %262 = vst [vmem:[#allocation2 + $0x8] sm:$0xff] 0.0
        %263 = vst [vmem:[#allocation2 + $0x40] sm:$0xff] 0.0
        %264 = vst [vmem:[#allocation2 + $0x48] sm:$0xff] 0.0
        %265 = vst [vmem:[#allocation2 + $0x80] sm:$0xff] 0.0
        %266 = vst [vmem:[#allocation2 + $0x88] sm:$0xff] 0.0
        %267 = vst [vmem:[#allocation2 + $0xc0] sm:$0xff] 0.0
        %268 = vst [vmem:[#allocation2 + $0xc8] sm:$0xff] 0.0
        %269 = vst [vmem:[#allocation2 + $0x100] sm:$0xff] 0.0
        %270 = vst [vmem:[#allocation2 + $0x108] sm:$0xff] 0.0
        %271 = vst [vmem:[#allocation2 + $0x140] sm:$0xff] 0.0
        %272 = vst [vmem:[#allocation2 + $0x148] sm:$0xff] 0.0
        %273 = vst [vmem:[#allocation2 + $0x180] sm:$0xff] 0.0
        %274 = vst [vmem:[#allocation2 + $0x188] sm:$0xff] 0.0
        %275 = vst [vmem:[#allocation2 + $0x1c0] sm:$0xff] 0.0
        %276 = vst [vmem:[#allocation2 + $0x1c8] sm:$0xff] 0.0
        %277 = vst [vmem:[#allocation2 + $0x200] sm:$0xff] 0.0
        %278 = vst [vmem:[#allocation2 + $0x208] sm:$0xff] 0.0
        %279 = vst [vmem:[#allocation2 + $0x240] sm:$0xff] 0.0
        %280 = vst [vmem:[#allocation2 + $0x248] sm:$0xff] 0.0
        %281 = vst [vmem:[#allocation2 + $0x280] sm:$0xff] 0.0
        %282 = vst [vmem:[#allocation2 + $0x288] sm:$0xff] 0.0
        %283 = vst [vmem:[#allocation2 + $0x2c0] sm:$0xff] 0.0
        %284 = vst [vmem:[#allocation2 + $0x2c8] sm:$0xff] 0.0
        %285 = vst [vmem:[#allocation2 + $0x300] sm:$0xff] 0.0
        %286 = vst [vmem:[#allocation2 + $0x308] sm:$0xff] 0.0
        %287 = vst [vmem:[#allocation2 + $0x340] sm:$0xff] 0.0
        %288 = vst [vmem:[#allocation2 + $0x348] sm:$0xff] 0.0
        %289 = vst [vmem:[#allocation2 + $0x380] sm:$0xff] 0.0
        %290 = vst [vmem:[#allocation2 + $0x388] sm:$0xff] 0.0
        %291 = vst [vmem:[#allocation2 + $0x3c0] sm:$0xff] 0.0
        %292 = vst [vmem:[#allocation2 + $0x3c8] sm:$0xff] 0.0
        %293 = vst [vmem:[#allocation2 + $0x400] sm:$0xff] 0.0
        %294 = vst [vmem:[#allocation2 + $0x408] sm:$0xff] 0.0
        %295 = vst [vmem:[#allocation2 + $0x440] sm:$0xff] 0.0
        %296 = vst [vmem:[#allocation2 + $0x448] sm:$0xff] 0.0
        %297 = vst [vmem:[#allocation2 + $0x30] sm:$0xff] 0.0
        %298 = vst [vmem:[#allocation2 + $0x38] sm:$0xff] 0.0
        %299 = vst [vmem:[#allocation2 + $0x70] sm:$0xff] 0.0
        %300 = vst [vmem:[#allocation2 + $0x78] sm:$0xff] 0.0
        %301 = vst [vmem:[#allocation2 + $0xb0] sm:$0xff] 0.0
        %302 = vst [vmem:[#allocation2 + $0xb8] sm:$0xff] 0.0
        %303 = vst [vmem:[#allocation2 + $0xf0] sm:$0xff] 0.0
        %304 = vst [vmem:[#allocation2 + $0xf8] sm:$0xff] 0.0
        %305 = vst [vmem:[#allocation2 + $0x130] sm:$0xff] 0.0
        %306 = vst [vmem:[#allocation2 + $0x138] sm:$0xff] 0.0
        %307 = vst [vmem:[#allocation2 + $0x170] sm:$0xff] 0.0
        %308 = vst [vmem:[#allocation2 + $0x178] sm:$0xff] 0.0
        %309 = vst [vmem:[#allocation2 + $0x1b0] sm:$0xff] 0.0
        %310 = vst [vmem:[#allocation2 + $0x1b8] sm:$0xff] 0.0
        %311 = vst [vmem:[#allocation2 + $0x1f0] sm:$0xff] 0.0
        %312 = vst [vmem:[#allocation2 + $0x1f8] sm:$0xff] 0.0
        %313 = vst [vmem:[#allocation2 + $0x230] sm:$0xff] 0.0
        %314 = vst [vmem:[#allocation2 + $0x238] sm:$0xff] 0.0
        %315 = vst [vmem:[#allocation2 + $0x270] sm:$0xff] 0.0
        %316 = vst [vmem:[#allocation2 + $0x278] sm:$0xff] 0.0
        %317 = vst [vmem:[#allocation2 + $0x2b0] sm:$0xff] 0.0
        %318 = vst [vmem:[#allocation2 + $0x2b8] sm:$0xff] 0.0
        %319 = vst [vmem:[#allocation2 + $0x2f0] sm:$0xff] 0.0
        %320 = vst [vmem:[#allocation2 + $0x2f8] sm:$0xff] 0.0
        %321 = vst [vmem:[#allocation2 + $0x330] sm:$0xff] 0.0
        %322 = vst [vmem:[#allocation2 + $0x338] sm:$0xff] 0.0
        %323 = vst [vmem:[#allocation2 + $0x370] sm:$0xff] 0.0
        %324 = vst [vmem:[#allocation2 + $0x378] sm:$0xff] 0.0
        %325 = vst [vmem:[#allocation2 + $0x3b0] sm:$0xff] 0.0
        %326 = vst [vmem:[#allocation2 + $0x3b8] sm:$0xff] 0.0
        %327 = vst [vmem:[#allocation2 + $0x3f0] sm:$0xff] 0.0
        %328 = vst [vmem:[#allocation2 + $0x3f8] sm:$0xff] 0.0
        %329 = vst [vmem:[#allocation2 + $0x430] sm:$0xff] 0.0
        %330 = vst [vmem:[#allocation2 + $0x438] sm:$0xff] 0.0
        %331 = vst [vmem:[#allocation2 + $0x470] sm:$0xff] 0.0
        %332 = vst [vmem:[#allocation2 + $0x478] sm:$0xff] 0.0
        %333 = vst [vmem:[#allocation2 + $0x10] sm:$0xff] 0.0
        %334 = vst [vmem:[#allocation2 + $0x18] sm:$0xff] 0.0
        %335 = vst [vmem:[#allocation2 + $0x20] sm:$0xff] 0.0
        %336 = vst [vmem:[#allocation2 + $0x28] sm:$0xff] 0.0
        %s337 = scalar_lea.vmem [#allocation2], 1088
        %338 = vst [vmem:[%s337 + $0x10] sm:$0xff] 0.0
        %339 = vst [vmem:[%s337 + $0x18] sm:$0xff] 0.0
        %340 = vst [vmem:[%s337 + $0x20] sm:$0xff] 0.0
        %341 = vst [vmem:[%s337 + $0x28] sm:$0xff] 0.0
        %v342 = vld [vmem:[#allocation6] sm:$0xff]
        %v343 = vld [vmem:[#allocation6 + $0x8] sm:$0xff]
        %v344 = vld [vmem:[#allocation6 + $0x10] sm:$0x1]
        %v345 = vld [vmem:[#allocation6 + $0x18] sm:$0x1]
        %s346 = scalar_lea.vmem [#allocation6], 17
        %v347 = vld [vmem:[%s346] ss:$8 sm:$0x3]
        %s348 = scalar_lea.vmem [#allocation6], 18
        %v349 = vld [vmem:[%s348] ss:$8 sm:$0x3]
        %s350 = scalar_lea.vmem [#allocation6], 19
        %v351 = vld [vmem:[%s350] ss:$8 sm:$0x3]
        %v352 = vld [vmem:[#allocation6 + $0x10] sm:$0xf0]
        %v353 = vld [vmem:[#allocation6 + $0x20] sm:$0x1f]
        %v354 = vld [vmem:[#allocation6 + $0x25] ss:$0 sm:$0xff]
        %v355 = vld [vmem:[#allocation6 + $0x20] sm:$0xc0]
        %v356 = vld [vmem:[#allocation6 + $0x30] sm:$0x7f]
        %v357 = vld [vmem:[#allocation6 + $0x37] ss:$0 sm:$0xff]
        %v358 = vld [vmem:[%s223] sm:$0xf]
        %v359 = vld [vmem:[%s223 + $0x4] sm:$0xf]
        %v360 = vld [vmem:[%s223 + $0x8] sm:$0xf]
        %v361 = vld [vmem:[%s223 + $0xc] sm:$0xf]
        %v362 = vld [vmem:[%s223 + $0x10] sm:$0xf]
        %v363 = vld [vmem:[%s223 + $0x14] sm:$0xf]
        %v364 = vld [vmem:[%s223 + $0x18] sm:$0xf]
        %v365 = vld [vmem:[%s223 + $0x1c] sm:$0xf]
        %v366 = vld [vmem:[%s223 + $0x20] sm:$0xf]
        %v367 = vld [vmem:[%s223 + $0x24] sm:$0xf]
        %v368 = vld [vmem:[%s223 + $0x28] sm:$0xf]
        %v369 = vld [vmem:[%s223 + $0x2c] sm:$0xf]
        %v370 = vld [vmem:[%s223 + $0x30] sm:$0xf]
        %v371 = vld [vmem:[%s223 + $0x34] sm:$0xf]
        %v372 = vld [vmem:[%s223 + $0x38] sm:$0xf]
        %v373 = vld [vmem:[%s223 + $0x3c] sm:$0xf]
        %v374 = vld [vmem:[%s223 + $0x40] sm:$0xf]
        %v375 = vld [vmem:[%s223 + $0x44] sm:$0xf]
        %v376 = vld [vmem:[%s223 + $0x48] sm:$0xf]
        %v377 = vld [vmem:[%s223 + $0x4c] sm:$0xf]
        %v378 = vld [vmem:[%s223 + $0x50] sm:$0xf]
        %v379 = vld [vmem:[%s223 + $0x54] sm:$0xf]
        %v380 = vld [vmem:[%s223 + $0x58] sm:$0xf]
        %v381 = vld [vmem:[%s223 + $0x5c] sm:$0xf]
        %v382 = vld [vmem:[%s223 + $0x60] sm:$0xf]
        %v383 = vld [vmem:[%s223 + $0x64] sm:$0xf]
        %v384 = vld [vmem:[%s223 + $0x68] sm:$0xf]
        %v385 = vld [vmem:[%s223 + $0x6c] sm:$0xf]
        %v386 = vld [vmem:[%s223 + $0x70] sm:$0xf]
        %v387 = vld [vmem:[%s223 + $0x74] sm:$0xf]
        %v388 = vld [vmem:[%s223 + $0x78] sm:$0xf]
        %v389 = vld [vmem:[%s223 + $0x7c] sm:$0xf]
        %v390 = vld [vmem:[#allocation8] sm:$0xff]
        %v391 = vld [vmem:[#allocation8 + $0x8] sm:$0xf]
        %v392 = vld [vmem:[#allocation8 + $0xc] sm:$0xff]
        %v393 = vld [vmem:[#allocation8 + $0x14] sm:$0xf]
        %v394 = vld [vmem:[#allocation8 + $0x18] sm:$0xff]
        %v395 = vld [vmem:[#allocation8 + $0x20] sm:$0xf]
        %v396 = vld [vmem:[#allocation8 + $0x24] sm:$0xff]
        %v397 = vld [vmem:[#allocation8 + $0x2c] sm:$0xf]
        %v398 = vld [vmem:[#allocation8 + $0x30] sm:$0xff]
        %v399 = vld [vmem:[#allocation8 + $0x38] sm:$0xf]
        %v400 = vld [vmem:[#allocation8 + $0x3c] sm:$0xff]
        %v401 = vld [vmem:[#allocation8 + $0x44] sm:$0xf]
        %v402 = vld [vmem:[#allocation8 + $0x48] sm:$0xff]
        %v403 = vld [vmem:[#allocation8 + $0x50] sm:$0xf]
        %v404 = vld [vmem:[#allocation8 + $0x54] sm:$0xff]
        %v405 = vld [vmem:[#allocation8 + $0x5c] sm:$0xf]
        %v406 = vld [vmem:[#allocation8 + $0x60] sm:$0xff]
        %v407 = vld [vmem:[#allocation8 + $0x68] sm:$0xf]
        %v408 = vld [vmem:[#allocation8 + $0x6c] sm:$0xff]
        %v409 = vld [vmem:[#allocation8 + $0x74] sm:$0xf]
        %v410 = vld [vmem:[#allocation8 + $0x78] sm:$0xff]
        %v411 = vld [vmem:[#allocation8 + $0x80] sm:$0xf]
        %v412 = vld [vmem:[#allocation8 + $0x84] sm:$0xff]
        %v413 = vld [vmem:[#allocation8 + $0x8c] sm:$0xf]
        %v414 = vld [vmem:[#allocation8 + $0x90] sm:$0xff]
        %v415 = vld [vmem:[#allocation8 + $0x98] sm:$0xf]
        %v416 = vld [vmem:[#allocation8 + $0x9c] sm:$0xff]
        %v417 = vld [vmem:[#allocation8 + $0xa4] sm:$0xf]
        %v418 = vld [vmem:[#allocation8 + $0xa8] sm:$0xff]
        %v419 = vld [vmem:[#allocation8 + $0xb0] sm:$0xf]
        %v420 = vld [vmem:[#allocation8 + $0xb4] sm:$0xff]
        %v421 = vld [vmem:[#allocation8 + $0xbc] sm:$0xf]
        %v454 = vunpack.c.l.b16 %v358
        %v455 = vunpack.c.l.b16 %v359
        %v456 = vunpack.c.l.b16 %v360
        %v457 = vunpack.c.l.b16 %v361
        %v458 = vunpack.c.l.b16 %v362
        %v459 = vunpack.c.l.b16 %v363
        %v460 = vunpack.c.l.b16 %v364
        %v461 = vunpack.c.l.b16 %v365
        %v462 = vunpack.c.l.b16 %v366
        %v463 = vunpack.c.l.b16 %v367
        %v464 = vunpack.c.l.b16 %v368
        %v465 = vunpack.c.l.b16 %v369
        %v466 = vunpack.c.l.b16 %v370
        %v467 = vunpack.c.l.b16 %v371
        %v468 = vunpack.c.l.b16 %v372
        %v469 = vunpack.c.l.b16 %v373
        %v470 = vunpack.c.l.b16 %v374
        %v471 = vunpack.c.l.b16 %v375
        %v472 = vunpack.c.l.b16 %v376
        %v473 = vunpack.c.l.b16 %v377
        %v474 = vunpack.c.l.b16 %v378
        %v475 = vunpack.c.l.b16 %v379
        %v476 = vunpack.c.l.b16 %v380
        %v477 = vunpack.c.l.b16 %v381
        %v478 = vunpack.c.l.b16 %v382
        %v479 = vunpack.c.l.b16 %v383
        %v480 = vunpack.c.l.b16 %v384
        %v481 = vunpack.c.l.b16 %v385
        %v482 = vunpack.c.l.b16 %v386
        %v483 = vunpack.c.l.b16 %v387
        %v484 = vunpack.c.l.b16 %v388
        %v485 = vunpack.c.l.b16 %v389
        %v486 = vpack.c.b16 %v455, %v454
        %v487 = vpack.c.b16 %v457, %v456
        %v488 = vpack.c.b16 %v459, %v458
        %v489 = vpack.c.b16 %v461, %v460
        %v490 = vpack.c.b16 %v463, %v462
        %v491 = vpack.c.b16 %v465, %v464
        %v492 = vpack.c.b16 %v467, %v466
        %v493 = vpack.c.b16 %v469, %v468
        %v494 = vpack.c.b16 %v471, %v470
        %v495 = vpack.c.b16 %v473, %v472
        %v496 = vpack.c.b16 %v475, %v474
        %v497 = vpack.c.b16 %v477, %v476
        %v498 = vpack.c.b16 %v479, %v478
        %v499 = vpack.c.b16 %v481, %v480
        %v500 = vpack.c.b16 %v483, %v482
        %v501 = vpack.c.b16 %v485, %v484
        %v550 = vunpack.c.l.b16 %v390
        %v551 = vunpack.c.h.b16 %v390
        %v552 = vunpack.c.l.b16 %v391
        %v553 = vunpack.c.l.b16 %v392
        %v554 = vunpack.c.h.b16 %v392
        %v555 = vunpack.c.l.b16 %v393
        %v556 = vunpack.c.l.b16 %v394
        %v557 = vunpack.c.h.b16 %v394
        %v558 = vunpack.c.l.b16 %v395
        %v559 = vunpack.c.l.b16 %v396
        %v560 = vunpack.c.h.b16 %v396
        %v561 = vunpack.c.l.b16 %v397
        %v562 = vunpack.c.l.b16 %v398
        %v563 = vunpack.c.h.b16 %v398
        %v564 = vunpack.c.l.b16 %v399
        %v565 = vunpack.c.l.b16 %v400
        %v566 = vunpack.c.h.b16 %v400
        %v567 = vunpack.c.l.b16 %v401
        %v568 = vunpack.c.l.b16 %v402
        %v569 = vunpack.c.h.b16 %v402
        %v570 = vunpack.c.l.b16 %v403
        %v571 = vunpack.c.l.b16 %v404
        %v572 = vunpack.c.h.b16 %v404
        %v573 = vunpack.c.l.b16 %v405
        %v574 = vunpack.c.l.b16 %v406
        %v575 = vunpack.c.h.b16 %v406
        %v576 = vunpack.c.l.b16 %v407
        %v577 = vunpack.c.l.b16 %v408
        %v578 = vunpack.c.h.b16 %v408
        %v579 = vunpack.c.l.b16 %v409
        %v580 = vunpack.c.l.b16 %v410
        %v581 = vunpack.c.h.b16 %v410
        %v582 = vunpack.c.l.b16 %v411
        %v583 = vunpack.c.l.b16 %v412
        %v584 = vunpack.c.h.b16 %v412
        %v585 = vunpack.c.l.b16 %v413
        %v586 = vunpack.c.l.b16 %v414
        %v587 = vunpack.c.h.b16 %v414
        %v588 = vunpack.c.l.b16 %v415
        %v589 = vunpack.c.l.b16 %v416
        %v590 = vunpack.c.h.b16 %v416
        %v591 = vunpack.c.l.b16 %v417
        %v592 = vunpack.c.l.b16 %v418
        %v593 = vunpack.c.h.b16 %v418
        %v594 = vunpack.c.l.b16 %v419
        %v595 = vunpack.c.l.b16 %v420
        %v596 = vunpack.c.h.b16 %v420
        %v597 = vunpack.c.l.b16 %v421
        %v598 = vpack.c.b16 %v553, %v550
        %v599 = vpack.c.b16 %v554, %v551
        %v600 = vpack.c.b16 %v555, %v552
        %v601 = vpack.c.b16 %v559, %v556
        %v602 = vpack.c.b16 %v560, %v557
        %v603 = vpack.c.b16 %v561, %v558
        %v604 = vpack.c.b16 %v565, %v562
        %v605 = vpack.c.b16 %v566, %v563
        %v606 = vpack.c.b16 %v567, %v564
        %v607 = vpack.c.b16 %v571, %v568
        %v608 = vpack.c.b16 %v572, %v569
        %v609 = vpack.c.b16 %v573, %v570
        %v610 = vpack.c.b16 %v577, %v574
        %v611 = vpack.c.b16 %v578, %v575
        %v612 = vpack.c.b16 %v579, %v576
        %v613 = vpack.c.b16 %v583, %v580
        %v614 = vpack.c.b16 %v584, %v581
        %v615 = vpack.c.b16 %v585, %v582
        %v616 = vpack.c.b16 %v589, %v586
        %v617 = vpack.c.b16 %v590, %v587
        %v618 = vpack.c.b16 %v591, %v588
        %v619 = vpack.c.b16 %v595, %v592
        %v620 = vpack.c.b16 %v596, %v593
        %v621 = vpack.c.b16 %v597, %v594
        %646 = vmatprep.subr.bf16.mxu0 %v599
        %647 = vmatpush1.bf16.msra.mxu0 %v598
        %648 = vmatprep.subr.bf16.mxu0 %v602
        %649 = vmatpush1.bf16.msra.mxu0 %v601
        %650 = vmatprep.subr.bf16.mxu0 %v605
        %651 = vmatpush1.bf16.msra.mxu0 %v604
        %652 = vmatprep.subr.bf16.mxu0 %v608
        %653 = vmatpush1.bf16.msra.mxu0 %v607
        %654 = vmatprep.subr.bf16.mxu0 %v611
        %655 = vmatpush1.bf16.msra.mxu0 %v610
        %656 = vmatprep.subr.bf16.mxu0 %v614
        %657 = vmatpush1.bf16.msra.mxu0 %v613
        %658 = vmatprep.subr.bf16.mxu0 %v617
        %659 = vmatpush1.bf16.msra.mxu0 %v616
        %660 = vmatprep.subr.bf16.mxu0 %v620
        %661 = vmatpush1.bf16.msra.mxu0 %v619
        %662 = vmatprep.subr.bf16.mxu0 0
        %663 = vmatpush1.bf16.msra.mxu0 0
        %664 = vmatprep.subr.bf16.mxu0 0
        %665 = vmatpush1.bf16.msra.mxu0 0
        %666 = vmatprep.subr.bf16.mxu0 0
        %667 = vmatpush1.bf16.msra.mxu0 0
        %668 = vmatprep.subr.bf16.mxu0 0
        %669 = vmatpush1.bf16.msra.mxu0 0
        %670 = vmatprep.subr.bf16.mxu0 0
        %671 = vmatpush1.bf16.msra.mxu0 0
        %672 = vmatprep.subr.bf16.mxu0 0
        %673 = vmatpush1.bf16.msra.mxu0 0
        %674 = vmatprep.subr.bf16.mxu0 0
        %675 = vmatpush1.bf16.msra.mxu0 0
        %676 = vmatprep.subr.bf16.mxu0 0
        %677 = vmatpush1.bf16.msra.mxu0 0
        %678 = vmatprep.mubr.bf16.mxu0 0
        %679 = vmatmul.mubr.bf16.gmra.mrb[0].mxu0 %v486
        %v680 = vpop.f32.mrb[0].mxu0
        %v681 = vadd.f32 0.0, %v680
        %v682 = vpop.f32.mrb[0].mxu0
        %v683 = vadd.f32 0.0, %v682
        %v684 = vpop.f32.mrb[0].mxu0
        %v685 = vadd.f32 0.0, %v684
        %v686 = vpop.f32.mrb[0].mxu0
        %v687 = vadd.f32 0.0, %v686
        %688 = vmatprep.mubr.bf16.mxu0 0
        %689 = vmatmul.mubr.bf16.gmra.mrb[0].mxu0 %v487
        %v690 = vpop.f32.mrb[0].mxu0
        %v691 = vadd.f32 0.0, %v690
        %v692 = vpop.f32.mrb[0].mxu0
        %v693 = vadd.f32 0.0, %v692
        %v694 = vpop.f32.mrb[0].mxu0
        %v695 = vadd.f32 0.0, %v694
        %v696 = vpop.f32.mrb[0].mxu0
        %v697 = vadd.f32 0.0, %v696
        %698 = vmatprep.mubr.bf16.mxu0 0
        %699 = vmatmul.mubr.bf16.gmra.mrb[0].mxu0 %v488
        %v700 = vpop.f32.mrb[0].mxu0
        %v701 = vadd.f32 0.0, %v700
        %v702 = vpop.f32.mrb[0].mxu0
        %v703 = vadd.f32 0.0, %v702
        %v704 = vpop.f32.mrb[0].mxu0
        %v705 = vadd.f32 0.0, %v704
        %v706 = vpop.f32.mrb[0].mxu0
        %v707 = vadd.f32 0.0, %v706
        %708 = vmatprep.mubr.bf16.mxu0 0
        %709 = vmatmul.mubr.bf16.gmra.mrb[0].mxu0 %v489
        %v710 = vpop.f32.mrb[0].mxu0
        %v711 = vadd.f32 0.0, %v710
        %v712 = vpop.f32.mrb[0].mxu0
        %v713 = vadd.f32 0.0, %v712
        %v714 = vpop.f32.mrb[0].mxu0
        %v715 = vadd.f32 0.0, %v714
        %v716 = vpop.f32.mrb[0].mxu0
        %v717 = vadd.f32 0.0, %v716
        %718 = vmatprep.mubr.bf16.mxu0 0
        %719 = vmatmul.mubr.bf16.gmra.mrb[0].mxu0 %v490
        %v720 = vpop.f32.mrb[0].mxu0
        %v721 = vadd.f32 0.0, %v720
        %v722 = vpop.f32.mrb[0].mxu0
        %v723 = vadd.f32 0.0, %v722
        %v724 = vpop.f32.mrb[0].mxu0
        %v725 = vadd.f32 0.0, %v724
        %v726 = vpop.f32.mrb[0].mxu0
        %v727 = vadd.f32 0.0, %v726
        %728 = vmatprep.mubr.bf16.mxu0 0
        %729 = vmatmul.mubr.bf16.gmra.mrb[0].mxu0 %v491
        %v730 = vpop.f32.mrb[0].mxu0
        %v731 = vadd.f32 0.0, %v730
        %v732 = vpop.f32.mrb[0].mxu0
        %v733 = vadd.f32 0.0, %v732
        %v734 = vpop.f32.mrb[0].mxu0
        %v735 = vadd.f32 0.0, %v734
        %v736 = vpop.f32.mrb[0].mxu0
        %v737 = vadd.f32 0.0, %v736
        %738 = vmatprep.mubr.bf16.mxu0 0
        %739 = vmatmul.mubr.bf16.gmra.mrb[0].mxu0 %v492
        %v740 = vpop.f32.mrb[0].mxu0
        %v741 = vadd.f32 0.0, %v740
        %v742 = vpop.f32.mrb[0].mxu0
        %v743 = vadd.f32 0.0, %v742
        %v744 = vpop.f32.mrb[0].mxu0
        %v745 = vadd.f32 0.0, %v744
        %v746 = vpop.f32.mrb[0].mxu0
        %v747 = vadd.f32 0.0, %v746
        %748 = vmatprep.mubr.bf16.mxu0 0
        %749 = vmatmul.mubr.bf16.gmra.mrb[0].mxu0 %v493
        %v750 = vpop.f32.mrb[0].mxu0
        %v751 = vadd.f32 0.0, %v750
        %v752 = vpop.f32.mrb[0].mxu0
        %v753 = vadd.f32 0.0, %v752
        %v754 = vpop.f32.mrb[0].mxu0
        %v755 = vadd.f32 0.0, %v754
        %v756 = vpop.f32.mrb[0].mxu0
        %v757 = vadd.f32 0.0, %v756
        %758 = vmatprep.mubr.bf16.mxu0 0
        %759 = vmatmul.mubr.bf16.gmra.mrb[0].mxu0 %v494
        %v760 = vpop.f32.mrb[0].mxu0
        %v761 = vadd.f32 0.0, %v760
        %v762 = vpop.f32.mrb[0].mxu0
        %v763 = vadd.f32 0.0, %v762
        %v764 = vpop.f32.mrb[0].mxu0
        %v765 = vadd.f32 0.0, %v764
        %v766 = vpop.f32.mrb[0].mxu0
        %v767 = vadd.f32 0.0, %v766
        %768 = vmatprep.mubr.bf16.mxu0 0
        %769 = vmatmul.mubr.bf16.gmra.mrb[0].mxu0 %v495
        %v770 = vpop.f32.mrb[0].mxu0
        %v771 = vadd.f32 0.0, %v770
        %v772 = vpop.f32.mrb[0].mxu0
        %v773 = vadd.f32 0.0, %v772
        %v774 = vpop.f32.mrb[0].mxu0
        %v775 = vadd.f32 0.0, %v774
        %v776 = vpop.f32.mrb[0].mxu0
        %v777 = vadd.f32 0.0, %v776
        %778 = vmatprep.mubr.bf16.mxu0 0
        %779 = vmatmul.mubr.bf16.gmra.mrb[0].mxu0 %v496
        %v780 = vpop.f32.mrb[0].mxu0
        %v781 = vadd.f32 0.0, %v780
        %v782 = vpop.f32.mrb[0].mxu0
        %v783 = vadd.f32 0.0, %v782
        %v784 = vpop.f32.mrb[0].mxu0
        %v785 = vadd.f32 0.0, %v784
        %v786 = vpop.f32.mrb[0].mxu0
        %v787 = vadd.f32 0.0, %v786
        %788 = vmatprep.mubr.bf16.mxu0 0
        %789 = vmatmul.mubr.bf16.gmra.mrb[0].mxu0 %v497
        %v790 = vpop.f32.mrb[0].mxu0
        %v791 = vadd.f32 0.0, %v790
        %v792 = vpop.f32.mrb[0].mxu0
        %v793 = vadd.f32 0.0, %v792
        %v794 = vpop.f32.mrb[0].mxu0
        %v795 = vadd.f32 0.0, %v794
        %v796 = vpop.f32.mrb[0].mxu0
        %v797 = vadd.f32 0.0, %v796
        %798 = vmatprep.mubr.bf16.mxu0 0
        %799 = vmatmul.mubr.bf16.gmra.mrb[0].mxu0 %v498
        %v800 = vpop.f32.mrb[0].mxu0
        %v801 = vadd.f32 0.0, %v800
        %v802 = vpop.f32.mrb[0].mxu0
        %v803 = vadd.f32 0.0, %v802
        %v804 = vpop.f32.mrb[0].mxu0
        %v805 = vadd.f32 0.0, %v804
        %v806 = vpop.f32.mrb[0].mxu0
        %v807 = vadd.f32 0.0, %v806
        %808 = vmatprep.mubr.bf16.mxu0 0
        %809 = vmatmul.mubr.bf16.gmra.mrb[0].mxu0 %v499
        %v810 = vpop.f32.mrb[0].mxu0
        %v811 = vadd.f32 0.0, %v810
        %v812 = vpop.f32.mrb[0].mxu0
        %v813 = vadd.f32 0.0, %v812
        %v814 = vpop.f32.mrb[0].mxu0
        %v815 = vadd.f32 0.0, %v814
        %v816 = vpop.f32.mrb[0].mxu0
        %v817 = vadd.f32 0.0, %v816
        %818 = vmatprep.mubr.bf16.mxu0 0
        %819 = vmatmul.mubr.bf16.gmra.mrb[0].mxu0 %v500
        %v820 = vpop.f32.mrb[0].mxu0
        %v821 = vadd.f32 0.0, %v820
        %v822 = vpop.f32.mrb[0].mxu0
        %v823 = vadd.f32 0.0, %v822
        %v824 = vpop.f32.mrb[0].mxu0
        %v825 = vadd.f32 0.0, %v824
        %v826 = vpop.f32.mrb[0].mxu0
        %v827 = vadd.f32 0.0, %v826
        %828 = vmatprep.mubr.bf16.mxu0 0
        %829 = vmatmul.mubr.bf16.gmra.mrb[0].mxu0 %v501
        %v830 = vpop.f32.mrb[0].mxu0
        %v831 = vadd.f32 0.0, %v830
        %v832 = vpop.f32.mrb[0].mxu0
        %v833 = vadd.f32 0.0, %v832
        %v834 = vpop.f32.mrb[0].mxu0
        %v835 = vadd.f32 0.0, %v834
        %v836 = vpop.f32.mrb[0].mxu0
        %v837 = vadd.f32 0.0, %v836
        %838 = vdwg.mxu0
        %839 = vmatprep.subr.bf16.mxu0 0
        %840 = vmatpush1.bf16.msra.mxu0 %v600
        %841 = vmatprep.subr.bf16.mxu0 0
        %842 = vmatpush1.bf16.msra.mxu0 %v603
        %843 = vmatprep.subr.bf16.mxu0 0
        %844 = vmatpush1.bf16.msra.mxu0 %v606
        %845 = vmatprep.subr.bf16.mxu0 0
        %846 = vmatpush1.bf16.msra.mxu0 %v609
        %847 = vmatprep.subr.bf16.mxu0 0
        %848 = vmatpush1.bf16.msra.mxu0 %v612
        %849 = vmatprep.subr.bf16.mxu0 0
        %850 = vmatpush1.bf16.msra.mxu0 %v615
        %851 = vmatprep.subr.bf16.mxu0 0
        %852 = vmatpush1.bf16.msra.mxu0 %v618
        %853 = vmatprep.subr.bf16.mxu0 0
        %854 = vmatpush1.bf16.msra.mxu0 %v621
        %855 = vmatprep.subr.bf16.mxu0 0
        %856 = vmatpush1.bf16.msra.mxu0 0
        %857 = vmatprep.subr.bf16.mxu0 0
        %858 = vmatpush1.bf16.msra.mxu0 0
        %859 = vmatprep.subr.bf16.mxu0 0
        %860 = vmatpush1.bf16.msra.mxu0 0
        %861 = vmatprep.subr.bf16.mxu0 0
        %862 = vmatpush1.bf16.msra.mxu0 0
        %863 = vmatprep.subr.bf16.mxu0 0
        %864 = vmatpush1.bf16.msra.mxu0 0
        %865 = vmatprep.subr.bf16.mxu0 0
        %866 = vmatpush1.bf16.msra.mxu0 0
        %867 = vmatprep.subr.bf16.mxu0 0
        %868 = vmatpush1.bf16.msra.mxu0 0
        %869 = vmatprep.subr.bf16.mxu0 0
        %870 = vmatpush1.bf16.msra.mxu0 0
        %871 = vmatprep.mubr.bf16.mxu0 0
        %872 = vmatmul.mubr.bf16.gmra.mrb[0].mxu0 %v486
        %v873 = vpop.f32.mrb[0].mxu0
        %v874 = vadd.f32 0.0, %v873
        %v875 = vpop.f32.mrb[0].mxu0
        %v876 = vpop.f32.mrb[0].mxu0
        %v877 = vadd.f32 0.0, %v876
        %v878 = vpop.f32.mrb[0].mxu0
        %879 = vmatprep.mubr.bf16.mxu0 0
        %880 = vmatmul.mubr.bf16.gmra.mrb[0].mxu0 %v487
        %v881 = vpop.f32.mrb[0].mxu0
        %v882 = vadd.f32 0.0, %v881
        %v883 = vpop.f32.mrb[0].mxu0
        %v884 = vpop.f32.mrb[0].mxu0
        %v885 = vadd.f32 0.0, %v884
        %v886 = vpop.f32.mrb[0].mxu0
        %887 = vmatprep.mubr.bf16.mxu0 0
        %888 = vmatmul.mubr.bf16.gmra.mrb[0].mxu0 %v488
        %v889 = vpop.f32.mrb[0].mxu0
        %v890 = vadd.f32 0.0, %v889
        %v891 = vpop.f32.mrb[0].mxu0
        %v892 = vpop.f32.mrb[0].mxu0
        %v893 = vadd.f32 0.0, %v892
        %v894 = vpop.f32.mrb[0].mxu0
        %895 = vmatprep.mubr.bf16.mxu0 0
        %896 = vmatmul.mubr.bf16.gmra.mrb[0].mxu0 %v489
        %v897 = vpop.f32.mrb[0].mxu0
        %v898 = vadd.f32 0.0, %v897
        %v899 = vpop.f32.mrb[0].mxu0
        %v900 = vpop.f32.mrb[0].mxu0
        %v901 = vadd.f32 0.0, %v900
        %v902 = vpop.f32.mrb[0].mxu0
        %903 = vmatprep.mubr.bf16.mxu0 0
        %904 = vmatmul.mubr.bf16.gmra.mrb[0].mxu0 %v490
        %v905 = vpop.f32.mrb[0].mxu0
        %v906 = vadd.f32 0.0, %v905
        %v907 = vpop.f32.mrb[0].mxu0
        %v908 = vpop.f32.mrb[0].mxu0
        %v909 = vadd.f32 0.0, %v908
        %v910 = vpop.f32.mrb[0].mxu0
        %911 = vmatprep.mubr.bf16.mxu0 0
        %912 = vmatmul.mubr.bf16.gmra.mrb[0].mxu0 %v491
        %v913 = vpop.f32.mrb[0].mxu0
        %v914 = vadd.f32 0.0, %v913
        %v915 = vpop.f32.mrb[0].mxu0
        %v916 = vpop.f32.mrb[0].mxu0
        %v917 = vadd.f32 0.0, %v916
        %v918 = vpop.f32.mrb[0].mxu0
        %919 = vmatprep.mubr.bf16.mxu0 0
        %920 = vmatmul.mubr.bf16.gmra.mrb[0].mxu0 %v492
        %v921 = vpop.f32.mrb[0].mxu0
        %v922 = vadd.f32 0.0, %v921
        %v923 = vpop.f32.mrb[0].mxu0
        %v924 = vpop.f32.mrb[0].mxu0
        %v925 = vadd.f32 0.0, %v924
        %v926 = vpop.f32.mrb[0].mxu0
        %927 = vmatprep.mubr.bf16.mxu0 0
        %928 = vmatmul.mubr.bf16.gmra.mrb[0].mxu0 %v493
        %v929 = vpop.f32.mrb[0].mxu0
        %v930 = vadd.f32 0.0, %v929
        %v931 = vpop.f32.mrb[0].mxu0
        %v932 = vpop.f32.mrb[0].mxu0
        %v933 = vadd.f32 0.0, %v932
        %v934 = vpop.f32.mrb[0].mxu0
        %935 = vmatprep.mubr.bf16.mxu0 0
        %936 = vmatmul.mubr.bf16.gmra.mrb[0].mxu0 %v494
        %v937 = vpop.f32.mrb[0].mxu0
        %v938 = vadd.f32 0.0, %v937
        %v939 = vpop.f32.mrb[0].mxu0
        %v940 = vpop.f32.mrb[0].mxu0
        %v941 = vadd.f32 0.0, %v940
        %v942 = vpop.f32.mrb[0].mxu0
        %943 = vmatprep.mubr.bf16.mxu0 0
        %944 = vmatmul.mubr.bf16.gmra.mrb[0].mxu0 %v495
        %v945 = vpop.f32.mrb[0].mxu0
        %v946 = vadd.f32 0.0, %v945
        %v947 = vpop.f32.mrb[0].mxu0
        %v948 = vpop.f32.mrb[0].mxu0
        %v949 = vadd.f32 0.0, %v948
        %v950 = vpop.f32.mrb[0].mxu0
        %951 = vmatprep.mubr.bf16.mxu0 0
        %952 = vmatmul.mubr.bf16.gmra.mrb[0].mxu0 %v496
        %v953 = vpop.f32.mrb[0].mxu0
        %v954 = vadd.f32 0.0, %v953
        %v955 = vpop.f32.mrb[0].mxu0
        %v956 = vpop.f32.mrb[0].mxu0
        %v957 = vadd.f32 0.0, %v956
        %v958 = vpop.f32.mrb[0].mxu0
        %959 = vmatprep.mubr.bf16.mxu0 0
        %960 = vmatmul.mubr.bf16.gmra.mrb[0].mxu0 %v497
        %v961 = vpop.f32.mrb[0].mxu0
        %v962 = vadd.f32 0.0, %v961
        %v963 = vpop.f32.mrb[0].mxu0
        %v964 = vpop.f32.mrb[0].mxu0
        %v965 = vadd.f32 0.0, %v964
        %v966 = vpop.f32.mrb[0].mxu0
        %967 = vmatprep.mubr.bf16.mxu0 0
        %968 = vmatmul.mubr.bf16.gmra.mrb[0].mxu0 %v498
        %v969 = vpop.f32.mrb[0].mxu0
        %v970 = vadd.f32 0.0, %v969
        %v971 = vpop.f32.mrb[0].mxu0
        %v972 = vpop.f32.mrb[0].mxu0
        %v973 = vadd.f32 0.0, %v972
        %v974 = vpop.f32.mrb[0].mxu0
        %975 = vmatprep.mubr.bf16.mxu0 0
        %976 = vmatmul.mubr.bf16.gmra.mrb[0].mxu0 %v499
        %v977 = vpop.f32.mrb[0].mxu0
        %v978 = vadd.f32 0.0, %v977
        %v979 = vpop.f32.mrb[0].mxu0
        %v980 = vpop.f32.mrb[0].mxu0
        %v981 = vadd.f32 0.0, %v980
        %v982 = vpop.f32.mrb[0].mxu0
        %983 = vmatprep.mubr.bf16.mxu0 0
        %984 = vmatmul.mubr.bf16.gmra.mrb[0].mxu0 %v500
        %v985 = vpop.f32.mrb[0].mxu0
        %v986 = vadd.f32 0.0, %v985
        %v987 = vpop.f32.mrb[0].mxu0
        %v988 = vpop.f32.mrb[0].mxu0
        %v989 = vadd.f32 0.0, %v988
        %v990 = vpop.f32.mrb[0].mxu0
        %991 = vmatprep.mubr.bf16.mxu0 0
        %992 = vmatmul.mubr.bf16.gmra.mrb[0].mxu0 %v501
        %v993 = vpop.f32.mrb[0].mxu0
        %v994 = vadd.f32 0.0, %v993
        %v995 = vpop.f32.mrb[0].mxu0
        %v996 = vpop.f32.mrb[0].mxu0
        %v997 = vadd.f32 0.0, %v996
        %v998 = vpop.f32.mrb[0].mxu0
        %999 = vdwg.mxu0
        %s1000 = scalar_lea.vmem [#allocation2], 64
        %1001 = vst [vmem:[%s1000 + $0x10] sm:$0xff] %v681
        %1002 = vst [vmem:[%s1000 + $0x18] sm:$0xff] %v683
        %1003 = vst [vmem:[%s1000 + $0x20] sm:$0xff] %v685
        %1004 = vst [vmem:[%s1000 + $0x28] sm:$0xff] %v687
        %1005 = vst [vmem:[%s1000 + $0x50] sm:$0xff] %v691
        %1006 = vst [vmem:[%s1000 + $0x58] sm:$0xff] %v693
        %1007 = vst [vmem:[%s1000 + $0x60] sm:$0xff] %v695
        %1008 = vst [vmem:[%s1000 + $0x68] sm:$0xff] %v697
        %1009 = vst [vmem:[%s1000 + $0x90] sm:$0xff] %v701
        %1010 = vst [vmem:[%s1000 + $0x98] sm:$0xff] %v703
        %1011 = vst [vmem:[%s1000 + $0xa0] sm:$0xff] %v705
        %1012 = vst [vmem:[%s1000 + $0xa8] sm:$0xff] %v707
        %1013 = vst [vmem:[%s1000 + $0xd0] sm:$0xff] %v711
        %1014 = vst [vmem:[%s1000 + $0xd8] sm:$0xff] %v713
        %1015 = vst [vmem:[%s1000 + $0xe0] sm:$0xff] %v715
        %1016 = vst [vmem:[%s1000 + $0xe8] sm:$0xff] %v717
        %1017 = vst [vmem:[%s1000 + $0x110] sm:$0xff] %v721
        %1018 = vst [vmem:[%s1000 + $0x118] sm:$0xff] %v723
        %1019 = vst [vmem:[%s1000 + $0x120] sm:$0xff] %v725
        %1020 = vst [vmem:[%s1000 + $0x128] sm:$0xff] %v727
        %1021 = vst [vmem:[%s1000 + $0x150] sm:$0xff] %v731
        %1022 = vst [vmem:[%s1000 + $0x158] sm:$0xff] %v733
        %1023 = vst [vmem:[%s1000 + $0x160] sm:$0xff] %v735
        %1024 = vst [vmem:[%s1000 + $0x168] sm:$0xff] %v737
        %1025 = vst [vmem:[%s1000 + $0x190] sm:$0xff] %v741
        %1026 = vst [vmem:[%s1000 + $0x198] sm:$0xff] %v743
        %1027 = vst [vmem:[%s1000 + $0x1a0] sm:$0xff] %v745
        %1028 = vst [vmem:[%s1000 + $0x1a8] sm:$0xff] %v747
        %1029 = vst [vmem:[%s1000 + $0x1d0] sm:$0xff] %v751
        %1030 = vst [vmem:[%s1000 + $0x1d8] sm:$0xff] %v753
        %1031 = vst [vmem:[%s1000 + $0x1e0] sm:$0xff] %v755
        %1032 = vst [vmem:[%s1000 + $0x1e8] sm:$0xff] %v757
        %1033 = vst [vmem:[%s1000 + $0x210] sm:$0xff] %v761
        %1034 = vst [vmem:[%s1000 + $0x218] sm:$0xff] %v763
        %1035 = vst [vmem:[%s1000 + $0x220] sm:$0xff] %v765
        %1036 = vst [vmem:[%s1000 + $0x228] sm:$0xff] %v767
        %1037 = vst [vmem:[%s1000 + $0x250] sm:$0xff] %v771
        %1038 = vst [vmem:[%s1000 + $0x258] sm:$0xff] %v773
        %1039 = vst [vmem:[%s1000 + $0x260] sm:$0xff] %v775
        %1040 = vst [vmem:[%s1000 + $0x268] sm:$0xff] %v777
        %1041 = vst [vmem:[%s1000 + $0x290] sm:$0xff] %v781
        %1042 = vst [vmem:[%s1000 + $0x298] sm:$0xff] %v783
        %1043 = vst [vmem:[%s1000 + $0x2a0] sm:$0xff] %v785
        %1044 = vst [vmem:[%s1000 + $0x2a8] sm:$0xff] %v787
        %1045 = vst [vmem:[%s1000 + $0x2d0] sm:$0xff] %v791
        %1046 = vst [vmem:[%s1000 + $0x2d8] sm:$0xff] %v793
        %1047 = vst [vmem:[%s1000 + $0x2e0] sm:$0xff] %v795
        %1048 = vst [vmem:[%s1000 + $0x2e8] sm:$0xff] %v797
        %1049 = vst [vmem:[%s1000 + $0x310] sm:$0xff] %v801
        %1050 = vst [vmem:[%s1000 + $0x318] sm:$0xff] %v803
        %1051 = vst [vmem:[%s1000 + $0x320] sm:$0xff] %v805
        %1052 = vst [vmem:[%s1000 + $0x328] sm:$0xff] %v807
        %1053 = vst [vmem:[%s1000 + $0x350] sm:$0xff] %v811
        %1054 = vst [vmem:[%s1000 + $0x358] sm:$0xff] %v813
        %1055 = vst [vmem:[%s1000 + $0x360] sm:$0xff] %v815
        %1056 = vst [vmem:[%s1000 + $0x368] sm:$0xff] %v817
        %1057 = vst [vmem:[%s1000 + $0x390] sm:$0xff] %v821
        %1058 = vst [vmem:[%s1000 + $0x398] sm:$0xff] %v823
        %1059 = vst [vmem:[%s1000 + $0x3a0] sm:$0xff] %v825
        %1060 = vst [vmem:[%s1000 + $0x3a8] sm:$0xff] %v827
        %1061 = vst [vmem:[%s1000 + $0x3d0] sm:$0xff] %v831
        %1062 = vst [vmem:[%s1000 + $0x3d8] sm:$0xff] %v833
        %1063 = vst [vmem:[%s1000 + $0x3e0] sm:$0xff] %v835
        %1064 = vst [vmem:[%s1000 + $0x3e8] sm:$0xff] %v837
        %v1065 = vld [vmem:[#allocation2] sm:$0x80]
        %v1066 = vld [vmem:[#allocation2 + $0x8] sm:$0x80]
        %v1067 = vld [vmem:[#allocation2 + $0x10] sm:$0xff]
        %v1068 = vld [vmem:[#allocation2 + $0x18] sm:$0xff]
        %v1069 = vld [vmem:[#allocation2 + $0x20] sm:$0x7f]
        %v1070 = vld [vmem:[#allocation2 + $0x28] sm:$0x7f]
        %v1071 = vld [vmem:[#allocation2 + $0x40] sm:$0x80]
        %v1072 = vld [vmem:[#allocation2 + $0x48] sm:$0x80]
        %v1073 = vld [vmem:[#allocation2 + $0x50] sm:$0xff]
        %v1074 = vld [vmem:[#allocation2 + $0x58] sm:$0xff]
        %v1075 = vld [vmem:[#allocation2 + $0x60] sm:$0x7f]
        %v1076 = vld [vmem:[#allocation2 + $0x68] sm:$0x7f]
        %v1077 = vld [vmem:[#allocation2 + $0x80] sm:$0x80]
        %v1078 = vld [vmem:[#allocation2 + $0x88] sm:$0x80]
        %v1079 = vld [vmem:[#allocation2 + $0x90] sm:$0xff]
        %v1080 = vld [vmem:[#allocation2 + $0x98] sm:$0xff]
        %v1081 = vld [vmem:[#allocation2 + $0xa0] sm:$0x7f]
        %v1082 = vld [vmem:[#allocation2 + $0xa8] sm:$0x7f]
        %v1083 = vld [vmem:[#allocation2 + $0xc0] sm:$0x80]
        %v1084 = vld [vmem:[#allocation2 + $0xc8] sm:$0x80]
        %v1085 = vld [vmem:[#allocation2 + $0xd0] sm:$0xff]
        %v1086 = vld [vmem:[#allocation2 + $0xd8] sm:$0xff]
        %v1087 = vld [vmem:[#allocation2 + $0xe0] sm:$0x7f]
        %v1088 = vld [vmem:[#allocation2 + $0xe8] sm:$0x7f]
        %v1089 = vld [vmem:[#allocation2 + $0x100] sm:$0x80]
        %v1090 = vld [vmem:[#allocation2 + $0x108] sm:$0x80]
        %v1091 = vld [vmem:[#allocation2 + $0x110] sm:$0xff]
        %v1092 = vld [vmem:[#allocation2 + $0x118] sm:$0xff]
        %v1093 = vld [vmem:[#allocation2 + $0x120] sm:$0x7f]
        %v1094 = vld [vmem:[#allocation2 + $0x128] sm:$0x7f]
        %v1095 = vld [vmem:[#allocation2 + $0x140] sm:$0x80]
        %v1096 = vld [vmem:[#allocation2 + $0x148] sm:$0x80]
        %v1097 = vld [vmem:[#allocation2 + $0x150] sm:$0xff]
        %v1098 = vld [vmem:[#allocation2 + $0x158] sm:$0xff]
        %v1099 = vld [vmem:[#allocation2 + $0x160] sm:$0x7f]
        %v1100 = vld [vmem:[#allocation2 + $0x168] sm:$0x7f]
        %v1101 = vld [vmem:[#allocation2 + $0x180] sm:$0x80]
        %v1102 = vld [vmem:[#allocation2 + $0x188] sm:$0x80]
        %v1103 = vld [vmem:[#allocation2 + $0x190] sm:$0xff]
        %v1104 = vld [vmem:[#allocation2 + $0x198] sm:$0xff]
        %v1105 = vld [vmem:[#allocation2 + $0x1a0] sm:$0x7f]
        %v1106 = vld [vmem:[#allocation2 + $0x1a8] sm:$0x7f]
        %v1107 = vld [vmem:[#allocation2 + $0x1c0] sm:$0x80]
        %v1108 = vld [vmem:[#allocation2 + $0x1c8] sm:$0x80]
        %v1109 = vld [vmem:[#allocation2 + $0x1d0] sm:$0xff]
        %v1110 = vld [vmem:[#allocation2 + $0x1d8] sm:$0xff]
        %v1111 = vld [vmem:[#allocation2 + $0x1e0] sm:$0x7f]
        %v1112 = vld [vmem:[#allocation2 + $0x1e8] sm:$0x7f]
        %v1113 = vld [vmem:[#allocation2 + $0x200] sm:$0x80]
        %v1114 = vld [vmem:[#allocation2 + $0x208] sm:$0x80]
        %v1115 = vld [vmem:[#allocation2 + $0x210] sm:$0xff]
        %v1116 = vld [vmem:[#allocation2 + $0x218] sm:$0xff]
        %v1117 = vld [vmem:[#allocation2 + $0x220] sm:$0x7f]
        %v1118 = vld [vmem:[#allocation2 + $0x228] sm:$0x7f]
        %v1119 = vld [vmem:[#allocation2 + $0x240] sm:$0x80]
        %v1120 = vld [vmem:[#allocation2 + $0x248] sm:$0x80]
        %v1121 = vld [vmem:[#allocation2 + $0x250] sm:$0xff]
        %v1122 = vld [vmem:[#allocation2 + $0x258] sm:$0xff]
        %v1123 = vld [vmem:[#allocation2 + $0x260] sm:$0x7f]
        %v1124 = vld [vmem:[#allocation2 + $0x268] sm:$0x7f]
        %v1125 = vld [vmem:[#allocation2 + $0x280] sm:$0x80]
        %v1126 = vld [vmem:[#allocation2 + $0x288] sm:$0x80]
        %v1127 = vld [vmem:[#allocation2 + $0x290] sm:$0xff]
        %v1128 = vld [vmem:[#allocation2 + $0x298] sm:$0xff]
        %v1129 = vld [vmem:[#allocation2 + $0x2a0] sm:$0x7f]
        %v1130 = vld [vmem:[#allocation2 + $0x2a8] sm:$0x7f]
        %v1131 = vld [vmem:[#allocation2 + $0x2c0] sm:$0x80]
        %v1132 = vld [vmem:[#allocation2 + $0x2c8] sm:$0x80]
        %v1133 = vld [vmem:[#allocation2 + $0x2d0] sm:$0xff]
        %v1134 = vld [vmem:[#allocation2 + $0x2d8] sm:$0xff]
        %v1135 = vld [vmem:[#allocation2 + $0x2e0] sm:$0x7f]
        %v1136 = vld [vmem:[#allocation2 + $0x2e8] sm:$0x7f]
        %v1137 = vld [vmem:[#allocation2 + $0x300] sm:$0x80]
        %v1138 = vld [vmem:[#allocation2 + $0x308] sm:$0x80]
        %v1139 = vld [vmem:[#allocation2 + $0x310] sm:$0xff]
        %v1140 = vld [vmem:[#allocation2 + $0x318] sm:$0xff]
        %v1141 = vld [vmem:[#allocation2 + $0x320] sm:$0x7f]
        %v1142 = vld [vmem:[#allocation2 + $0x328] sm:$0x7f]
        %v1143 = vld [vmem:[#allocation2 + $0x340] sm:$0x80]
        %v1144 = vld [vmem:[#allocation2 + $0x348] sm:$0x80]
        %v1145 = vld [vmem:[#allocation2 + $0x350] sm:$0xff]
        %v1146 = vld [vmem:[#allocation2 + $0x358] sm:$0xff]
        %v1147 = vld [vmem:[#allocation2 + $0x360] sm:$0x7f]
        %v1148 = vld [vmem:[#allocation2 + $0x368] sm:$0x7f]
        %v1149 = vld [vmem:[#allocation2 + $0x380] sm:$0x80]
        %v1150 = vld [vmem:[#allocation2 + $0x388] sm:$0x80]
        %v1151 = vld [vmem:[#allocation2 + $0x390] sm:$0xff]
        %v1152 = vld [vmem:[#allocation2 + $0x398] sm:$0xff]
        %v1153 = vld [vmem:[#allocation2 + $0x3a0] sm:$0x7f]
        %v1154 = vld [vmem:[#allocation2 + $0x3a8] sm:$0x7f]
        %v1155 = vld [vmem:[#allocation2 + $0x3c0] sm:$0x80]
        %v1156 = vld [vmem:[#allocation2 + $0x3c8] sm:$0x80]
        %v1157 = vld [vmem:[#allocation2 + $0x3d0] sm:$0xff]
        %v1158 = vld [vmem:[#allocation2 + $0x3d8] sm:$0xff]
        %v1159 = vld [vmem:[#allocation2 + $0x3e0] sm:$0x7f]
        %v1160 = vld [vmem:[#allocation2 + $0x3e8] sm:$0x7f]
        %v1161 = vlaneseq
        %v1162 = vshrl.u32 %v1161, 7
        %v1163 = vsub.s32 0, %v1162
        %v1164 = vrot.slane %v342, %v1163
        %v1165 = vlaneseq
        %v1166 = vshrl.u32 %v1165, 7
        %v1167 = vsub.s32 0, %v1166
        %v1168 = vrot.slane %v343, %v1167
        %v1169 = vmul.f32 %v1065, %v1164
        %v1170 = vmul.f32 %v1066, %v1168
        %v1171 = vmul.f32 %v1067, %v1164
        %v1172 = vmul.f32 %v1068, %v1168
        %v1173 = vmul.f32 %v1069, %v1164
        %v1174 = vmul.f32 %v1070, %v1168
        %v1175 = vmul.f32 %v1071, %v1164
        %v1176 = vmul.f32 %v1072, %v1168
        %v1177 = vmul.f32 %v1073, %v1164
        %v1178 = vmul.f32 %v1074, %v1168
        %v1179 = vmul.f32 %v1075, %v1164
        %v1180 = vmul.f32 %v1076, %v1168
        %v1181 = vmul.f32 %v1077, %v1164
        %v1182 = vmul.f32 %v1078, %v1168
        %v1183 = vmul.f32 %v1079, %v1164
        %v1184 = vmul.f32 %v1080, %v1168
        %v1185 = vmul.f32 %v1081, %v1164
        %v1186 = vmul.f32 %v1082, %v1168
        %v1187 = vmul.f32 %v1083, %v1164
        %v1188 = vmul.f32 %v1084, %v1168
        %v1189 = vmul.f32 %v1085, %v1164
        %v1190 = vmul.f32 %v1086, %v1168
        %v1191 = vmul.f32 %v1087, %v1164
        %v1192 = vmul.f32 %v1088, %v1168
        %v1193 = vmul.f32 %v1089, %v1164
        %v1194 = vmul.f32 %v1090, %v1168
        %v1195 = vmul.f32 %v1091, %v1164
        %v1196 = vmul.f32 %v1092, %v1168
        %v1197 = vmul.f32 %v1093, %v1164
        %v1198 = vmul.f32 %v1094, %v1168
        %v1199 = vmul.f32 %v1095, %v1164
        %v1200 = vmul.f32 %v1096, %v1168
        %v1201 = vmul.f32 %v1097, %v1164
        %v1202 = vmul.f32 %v1098, %v1168
        %v1203 = vmul.f32 %v1099, %v1164
        %v1204 = vmul.f32 %v1100, %v1168
        %v1205 = vmul.f32 %v1101, %v1164
        %v1206 = vmul.f32 %v1102, %v1168
        %v1207 = vmul.f32 %v1103, %v1164
        %v1208 = vmul.f32 %v1104, %v1168
        %v1209 = vmul.f32 %v1105, %v1164
        %v1210 = vmul.f32 %v1106, %v1168
        %v1211 = vmul.f32 %v1107, %v1164
        %v1212 = vmul.f32 %v1108, %v1168
        %v1213 = vmul.f32 %v1109, %v1164
        %v1214 = vmul.f32 %v1110, %v1168
        %v1215 = vmul.f32 %v1111, %v1164
        %v1216 = vmul.f32 %v1112, %v1168
        %v1217 = vmul.f32 %v1113, %v1164
        %v1218 = vmul.f32 %v1114, %v1168
        %v1219 = vmul.f32 %v1115, %v1164
        %v1220 = vmul.f32 %v1116, %v1168
        %v1221 = vmul.f32 %v1117, %v1164
        %v1222 = vmul.f32 %v1118, %v1168
        %v1223 = vmul.f32 %v1119, %v1164
        %v1224 = vmul.f32 %v1120, %v1168
        %v1225 = vmul.f32 %v1121, %v1164
        %v1226 = vmul.f32 %v1122, %v1168
        %v1227 = vmul.f32 %v1123, %v1164
        %v1228 = vmul.f32 %v1124, %v1168
        %v1229 = vmul.f32 %v1125, %v1164
        %v1230 = vmul.f32 %v1126, %v1168
        %v1231 = vmul.f32 %v1127, %v1164
        %v1232 = vmul.f32 %v1128, %v1168
        %v1233 = vmul.f32 %v1129, %v1164
        %v1234 = vmul.f32 %v1130, %v1168
        %v1235 = vmul.f32 %v1131, %v1164
        %v1236 = vmul.f32 %v1132, %v1168
        %v1237 = vmul.f32 %v1133, %v1164
        %v1238 = vmul.f32 %v1134, %v1168
        %v1239 = vmul.f32 %v1135, %v1164
        %v1240 = vmul.f32 %v1136, %v1168
        %v1241 = vmul.f32 %v1137, %v1164
        %v1242 = vmul.f32 %v1138, %v1168
        %v1243 = vmul.f32 %v1139, %v1164
        %v1244 = vmul.f32 %v1140, %v1168
        %v1245 = vmul.f32 %v1141, %v1164
        %v1246 = vmul.f32 %v1142, %v1168
        %v1247 = vmul.f32 %v1143, %v1164
        %v1248 = vmul.f32 %v1144, %v1168
        %v1249 = vmul.f32 %v1145, %v1164
        %v1250 = vmul.f32 %v1146, %v1168
        %v1251 = vmul.f32 %v1147, %v1164
        %v1252 = vmul.f32 %v1148, %v1168
        %v1253 = vmul.f32 %v1149, %v1164
        %v1254 = vmul.f32 %v1150, %v1168
        %v1255 = vmul.f32 %v1151, %v1164
        %v1256 = vmul.f32 %v1152, %v1168
        %v1257 = vmul.f32 %v1153, %v1164
        %v1258 = vmul.f32 %v1154, %v1168
        %v1259 = vmul.f32 %v1155, %v1164
        %v1260 = vmul.f32 %v1156, %v1168
        %v1261 = vmul.f32 %v1157, %v1164
        %v1262 = vmul.f32 %v1158, %v1168
        %v1263 = vmul.f32 %v1159, %v1164
        %v1264 = vmul.f32 %v1160, %v1168
        %v1265 = vld [vmem:[#allocation2 + $0x20] sm:$0xff]
        %v1266 = vld [vmem:[#allocation2 + $0x28] sm:$0xff]
        %v1267 = vld [vmem:[#allocation2 + $0x60] sm:$0xff]
        %v1268 = vld [vmem:[#allocation2 + $0x68] sm:$0xff]
        %v1269 = vld [vmem:[#allocation2 + $0xa0] sm:$0xff]
        %v1270 = vld [vmem:[#allocation2 + $0xa8] sm:$0xff]
        %v1271 = vld [vmem:[#allocation2 + $0xe0] sm:$0xff]
        %v1272 = vld [vmem:[#allocation2 + $0xe8] sm:$0xff]
        %v1273 = vld [vmem:[#allocation2 + $0x120] sm:$0xff]
        %v1274 = vld [vmem:[#allocation2 + $0x128] sm:$0xff]
        %v1275 = vld [vmem:[#allocation2 + $0x160] sm:$0xff]
        %v1276 = vld [vmem:[#allocation2 + $0x168] sm:$0xff]
        %v1277 = vld [vmem:[#allocation2 + $0x1a0] sm:$0xff]
        %v1278 = vld [vmem:[#allocation2 + $0x1a8] sm:$0xff]
        %v1279 = vld [vmem:[#allocation2 + $0x1e0] sm:$0xff]
        %v1280 = vld [vmem:[#allocation2 + $0x1e8] sm:$0xff]
        %v1281 = vld [vmem:[#allocation2 + $0x220] sm:$0xff]
        %v1282 = vld [vmem:[#allocation2 + $0x228] sm:$0xff]
        %v1283 = vld [vmem:[#allocation2 + $0x260] sm:$0xff]
        %v1284 = vld [vmem:[#allocation2 + $0x268] sm:$0xff]
        %v1285 = vld [vmem:[#allocation2 + $0x2a0] sm:$0xff]
        %v1286 = vld [vmem:[#allocation2 + $0x2a8] sm:$0xff]
        %v1287 = vld [vmem:[#allocation2 + $0x2e0] sm:$0xff]
        %v1288 = vld [vmem:[#allocation2 + $0x2e8] sm:$0xff]
        %v1289 = vld [vmem:[#allocation2 + $0x320] sm:$0xff]
        %v1290 = vld [vmem:[#allocation2 + $0x328] sm:$0xff]
        %v1291 = vld [vmem:[#allocation2 + $0x360] sm:$0xff]
        %v1292 = vld [vmem:[#allocation2 + $0x368] sm:$0xff]
        %v1293 = vld [vmem:[#allocation2 + $0x3a0] sm:$0xff]
        %v1294 = vld [vmem:[#allocation2 + $0x3a8] sm:$0xff]
        %v1295 = vld [vmem:[#allocation2 + $0x3e0] sm:$0xff]
        %v1296 = vld [vmem:[#allocation2 + $0x3e8] sm:$0xff]
        %v1297 = vlaneseq
        %v1298 = vshrl.u32 %v1297, 7
        %v1299 = vsub.s32 1, %v1298
        %v1300 = vrot.slane %v342, %v1299
        %v1301 = vlaneseq
        %v1302 = vshrl.u32 %v1301, 7
        %v1303 = vsub.s32 1, %v1302
        %v1304 = vrot.slane %v343, %v1303
        %v1305 = vmul.f32 %v1067, %v1300
        %v1306 = vmul.f32 %v1068, %v1304
        %v1307 = vmul.f32 %v1265, %v1300
        %v1308 = vmul.f32 %v1266, %v1304
        %v1309 = vmul.f32 %v1073, %v1300
        %v1310 = vmul.f32 %v1074, %v1304
        %v1311 = vmul.f32 %v1267, %v1300
        %v1312 = vmul.f32 %v1268, %v1304
        %v1313 = vmul.f32 %v1079, %v1300
        %v1314 = vmul.f32 %v1080, %v1304
        %v1315 = vmul.f32 %v1269, %v1300
        %v1316 = vmul.f32 %v1270, %v1304
        %v1317 = vmul.f32 %v1085, %v1300
        %v1318 = vmul.f32 %v1086, %v1304
        %v1319 = vmul.f32 %v1271, %v1300
        %v1320 = vmul.f32 %v1272, %v1304
        %v1321 = vmul.f32 %v1091, %v1300
        %v1322 = vmul.f32 %v1092, %v1304
        %v1323 = vmul.f32 %v1273, %v1300
        %v1324 = vmul.f32 %v1274, %v1304
        %v1325 = vmul.f32 %v1097, %v1300
        %v1326 = vmul.f32 %v1098, %v1304
        %v1327 = vmul.f32 %v1275, %v1300
        %v1328 = vmul.f32 %v1276, %v1304
        %v1329 = vmul.f32 %v1103, %v1300
        %v1330 = vmul.f32 %v1104, %v1304
        %v1331 = vmul.f32 %v1277, %v1300
        %v1332 = vmul.f32 %v1278, %v1304
        %v1333 = vmul.f32 %v1109, %v1300
        %v1334 = vmul.f32 %v1110, %v1304
        %v1335 = vmul.f32 %v1279, %v1300
        %v1336 = vmul.f32 %v1280, %v1304
        %v1337 = vmul.f32 %v1115, %v1300
        %v1338 = vmul.f32 %v1116, %v1304
        %v1339 = vmul.f32 %v1281, %v1300
        %v1340 = vmul.f32 %v1282, %v1304
        %v1341 = vmul.f32 %v1121, %v1300
        %v1342 = vmul.f32 %v1122, %v1304
        %v1343 = vmul.f32 %v1283, %v1300
        %v1344 = vmul.f32 %v1284, %v1304
        %v1345 = vmul.f32 %v1127, %v1300
        %v1346 = vmul.f32 %v1128, %v1304
        %v1347 = vmul.f32 %v1285, %v1300
        %v1348 = vmul.f32 %v1286, %v1304
        %v1349 = vmul.f32 %v1133, %v1300
        %v1350 = vmul.f32 %v1134, %v1304
        %v1351 = vmul.f32 %v1287, %v1300
        %v1352 = vmul.f32 %v1288, %v1304
        %v1353 = vmul.f32 %v1139, %v1300
        %v1354 = vmul.f32 %v1140, %v1304
        %v1355 = vmul.f32 %v1289, %v1300
        %v1356 = vmul.f32 %v1290, %v1304
        %v1357 = vmul.f32 %v1145, %v1300
        %v1358 = vmul.f32 %v1146, %v1304
        %v1359 = vmul.f32 %v1291, %v1300
        %v1360 = vmul.f32 %v1292, %v1304
        %v1361 = vmul.f32 %v1151, %v1300
        %v1362 = vmul.f32 %v1152, %v1304
        %v1363 = vmul.f32 %v1293, %v1300
        %v1364 = vmul.f32 %v1294, %v1304
        %v1365 = vmul.f32 %v1157, %v1300
        %v1366 = vmul.f32 %v1158, %v1304
        %v1367 = vmul.f32 %v1295, %v1300
        %v1368 = vmul.f32 %v1296, %v1304
        %vm1433 = vcmask 1046528
        %v1434 = vrot.slane %v1305, 1
        %v1435 = vrot.slane %v1306, 1
        %v1436 = vrot.slane %v1307, 1
        %v1437 = vsel %vm1433, %v1434, %v1436
        %v1438 = vrot.slane %v1308, 1
        %v1439 = vsel %vm1433, %v1435, %v1438
        %v1440 = vrot.slane %v1309, 1
        %v1441 = vrot.slane %v1310, 1
        %v1442 = vrot.slane %v1311, 1
        %v1443 = vsel %vm1433, %v1440, %v1442
        %v1444 = vrot.slane %v1312, 1
        %v1445 = vsel %vm1433, %v1441, %v1444
        %v1446 = vrot.slane %v1313, 1
        %v1447 = vrot.slane %v1314, 1
        %v1448 = vrot.slane %v1315, 1
        %v1449 = vsel %vm1433, %v1446, %v1448
        %v1450 = vrot.slane %v1316, 1
        %v1451 = vsel %vm1433, %v1447, %v1450
        %v1452 = vrot.slane %v1317, 1
        %v1453 = vrot.slane %v1318, 1
        %v1454 = vrot.slane %v1319, 1
        %v1455 = vsel %vm1433, %v1452, %v1454
        %v1456 = vrot.slane %v1320, 1
        %v1457 = vsel %vm1433, %v1453, %v1456
        %v1458 = vrot.slane %v1321, 1
        %v1459 = vrot.slane %v1322, 1
        %v1460 = vrot.slane %v1323, 1
        %v1461 = vsel %vm1433, %v1458, %v1460
        %v1462 = vrot.slane %v1324, 1
        %v1463 = vsel %vm1433, %v1459, %v1462
        %v1464 = vrot.slane %v1325, 1
        %v1465 = vrot.slane %v1326, 1
        %v1466 = vrot.slane %v1327, 1
        %v1467 = vsel %vm1433, %v1464, %v1466
        %v1468 = vrot.slane %v1328, 1
        %v1469 = vsel %vm1433, %v1465, %v1468
        %v1470 = vrot.slane %v1329, 1
        %v1471 = vrot.slane %v1330, 1
        %v1472 = vrot.slane %v1331, 1
        %v1473 = vsel %vm1433, %v1470, %v1472
        %v1474 = vrot.slane %v1332, 1
        %v1475 = vsel %vm1433, %v1471, %v1474
        %v1476 = vrot.slane %v1333, 1
        %v1477 = vrot.slane %v1334, 1
        %v1478 = vrot.slane %v1335, 1
        %v1479 = vsel %vm1433, %v1476, %v1478
        %v1480 = vrot.slane %v1336, 1
        %v1481 = vsel %vm1433, %v1477, %v1480
        %v1482 = vrot.slane %v1337, 1
        %v1483 = vrot.slane %v1338, 1
        %v1484 = vrot.slane %v1339, 1
        %v1485 = vsel %vm1433, %v1482, %v1484
        %v1486 = vrot.slane %v1340, 1
        %v1487 = vsel %vm1433, %v1483, %v1486
        %v1488 = vrot.slane %v1341, 1
        %v1489 = vrot.slane %v1342, 1
        %v1490 = vrot.slane %v1343, 1
        %v1491 = vsel %vm1433, %v1488, %v1490
        %v1492 = vrot.slane %v1344, 1
        %v1493 = vsel %vm1433, %v1489, %v1492
        %v1494 = vrot.slane %v1345, 1
        %v1495 = vrot.slane %v1346, 1
        %v1496 = vrot.slane %v1347, 1
        %v1497 = vsel %vm1433, %v1494, %v1496
        %v1498 = vrot.slane %v1348, 1
        %v1499 = vsel %vm1433, %v1495, %v1498
        %v1500 = vrot.slane %v1349, 1
        %v1501 = vrot.slane %v1350, 1
        %v1502 = vrot.slane %v1351, 1
        %v1503 = vsel %vm1433, %v1500, %v1502
        %v1504 = vrot.slane %v1352, 1
        %v1505 = vsel %vm1433, %v1501, %v1504
        %v1506 = vrot.slane %v1353, 1
        %v1507 = vrot.slane %v1354, 1
        %v1508 = vrot.slane %v1355, 1
        %v1509 = vsel %vm1433, %v1506, %v1508
        %v1510 = vrot.slane %v1356, 1
        %v1511 = vsel %vm1433, %v1507, %v1510
        %v1512 = vrot.slane %v1357, 1
        %v1513 = vrot.slane %v1358, 1
        %v1514 = vrot.slane %v1359, 1
        %v1515 = vsel %vm1433, %v1512, %v1514
        %v1516 = vrot.slane %v1360, 1
        %v1517 = vsel %vm1433, %v1513, %v1516
        %v1518 = vrot.slane %v1361, 1
        %v1519 = vrot.slane %v1362, 1
        %v1520 = vrot.slane %v1363, 1
        %v1521 = vsel %vm1433, %v1518, %v1520
        %v1522 = vrot.slane %v1364, 1
        %v1523 = vsel %vm1433, %v1519, %v1522
        %v1524 = vrot.slane %v1365, 1
        %v1525 = vrot.slane %v1366, 1
        %v1526 = vrot.slane %v1367, 1
        %v1527 = vsel %vm1433, %v1524, %v1526
        %v1528 = vrot.slane %v1368, 1
        %v1529 = vsel %vm1433, %v1525, %v1528
        %v1626 = vadd.f32 %v1169, %v1434
        %v1627 = vadd.f32 %v1170, %v1435
        %v1628 = vadd.f32 %v1171, %v1437
        %v1629 = vadd.f32 %v1172, %v1439
        %v1630 = vadd.f32 %v1173, %v1436
        %v1631 = vadd.f32 %v1174, %v1438
        %v1632 = vadd.f32 %v1175, %v1440
        %v1633 = vadd.f32 %v1176, %v1441
        %v1634 = vadd.f32 %v1177, %v1443
        %v1635 = vadd.f32 %v1178, %v1445
        %v1636 = vadd.f32 %v1179, %v1442
        %v1637 = vadd.f32 %v1180, %v1444
        %v1638 = vadd.f32 %v1181, %v1446
        %v1639 = vadd.f32 %v1182, %v1447
        %v1640 = vadd.f32 %v1183, %v1449
        %v1641 = vadd.f32 %v1184, %v1451
        %v1642 = vadd.f32 %v1185, %v1448
        %v1643 = vadd.f32 %v1186, %v1450
        %v1644 = vadd.f32 %v1187, %v1452
        %v1645 = vadd.f32 %v1188, %v1453
        %v1646 = vadd.f32 %v1189, %v1455
        %v1647 = vadd.f32 %v1190, %v1457
        %v1648 = vadd.f32 %v1191, %v1454
        %v1649 = vadd.f32 %v1192, %v1456
        %v1650 = vadd.f32 %v1193, %v1458
        %v1651 = vadd.f32 %v1194, %v1459
        %v1652 = vadd.f32 %v1195, %v1461
        %v1653 = vadd.f32 %v1196, %v1463
        %v1654 = vadd.f32 %v1197, %v1460
        %v1655 = vadd.f32 %v1198, %v1462
        %v1656 = vadd.f32 %v1199, %v1464
        %v1657 = vadd.f32 %v1200, %v1465
        %v1658 = vadd.f32 %v1201, %v1467
        %v1659 = vadd.f32 %v1202, %v1469
        %v1660 = vadd.f32 %v1203, %v1466
        %v1661 = vadd.f32 %v1204, %v1468
        %v1662 = vadd.f32 %v1205, %v1470
        %v1663 = vadd.f32 %v1206, %v1471
        %v1664 = vadd.f32 %v1207, %v1473
        %v1665 = vadd.f32 %v1208, %v1475
        %v1666 = vadd.f32 %v1209, %v1472
        %v1667 = vadd.f32 %v1210, %v1474
        %v1668 = vadd.f32 %v1211, %v1476
        %v1669 = vadd.f32 %v1212, %v1477
        %v1670 = vadd.f32 %v1213, %v1479
        %v1671 = vadd.f32 %v1214, %v1481
        %v1672 = vadd.f32 %v1215, %v1478
        %v1673 = vadd.f32 %v1216, %v1480
        %v1674 = vadd.f32 %v1217, %v1482
        %v1675 = vadd.f32 %v1218, %v1483
        %v1676 = vadd.f32 %v1219, %v1485
        %v1677 = vadd.f32 %v1220, %v1487
        %v1678 = vadd.f32 %v1221, %v1484
        %v1679 = vadd.f32 %v1222, %v1486
        %v1680 = vadd.f32 %v1223, %v1488
        %v1681 = vadd.f32 %v1224, %v1489
        %v1682 = vadd.f32 %v1225, %v1491
        %v1683 = vadd.f32 %v1226, %v1493
        %v1684 = vadd.f32 %v1227, %v1490
        %v1685 = vadd.f32 %v1228, %v1492
        %v1686 = vadd.f32 %v1229, %v1494
        %v1687 = vadd.f32 %v1230, %v1495
        %v1688 = vadd.f32 %v1231, %v1497
        %v1689 = vadd.f32 %v1232, %v1499
        %v1690 = vadd.f32 %v1233, %v1496
        %v1691 = vadd.f32 %v1234, %v1498
        %v1692 = vadd.f32 %v1235, %v1500
        %v1693 = vadd.f32 %v1236, %v1501
        %v1694 = vadd.f32 %v1237, %v1503
        %v1695 = vadd.f32 %v1238, %v1505
        %v1696 = vadd.f32 %v1239, %v1502
        %v1697 = vadd.f32 %v1240, %v1504
        %v1698 = vadd.f32 %v1241, %v1506
        %v1699 = vadd.f32 %v1242, %v1507
        %v1700 = vadd.f32 %v1243, %v1509
        %v1701 = vadd.f32 %v1244, %v1511
        %v1702 = vadd.f32 %v1245, %v1508
        %v1703 = vadd.f32 %v1246, %v1510
        %v1704 = vadd.f32 %v1247, %v1512
        %v1705 = vadd.f32 %v1248, %v1513
        %v1706 = vadd.f32 %v1249, %v1515
        %v1707 = vadd.f32 %v1250, %v1517
        %v1708 = vadd.f32 %v1251, %v1514
        %v1709 = vadd.f32 %v1252, %v1516
        %v1710 = vadd.f32 %v1253, %v1518
        %v1711 = vadd.f32 %v1254, %v1519
        %v1712 = vadd.f32 %v1255, %v1521
        %v1713 = vadd.f32 %v1256, %v1523
        %v1714 = vadd.f32 %v1257, %v1520
        %v1715 = vadd.f32 %v1258, %v1522
        %v1716 = vadd.f32 %v1259, %v1524
        %v1717 = vadd.f32 %v1260, %v1525
        %v1718 = vadd.f32 %v1261, %v1527
        %v1719 = vadd.f32 %v1262, %v1529
        %v1720 = vadd.f32 %v1263, %v1526
        %v1721 = vadd.f32 %v1264, %v1528
        %v1722 = vld [vmem:[#allocation2 + $0x10] sm:$0xfe]
        %v1723 = vld [vmem:[#allocation2 + $0x18] sm:$0xfe]
        %v1724 = vld [vmem:[#allocation2 + $0x30] sm:$0x1]
        %v1725 = vld [vmem:[#allocation2 + $0x38] sm:$0x1]
        %v1726 = vld [vmem:[#allocation2 + $0x50] sm:$0xfe]
        %v1727 = vld [vmem:[#allocation2 + $0x58] sm:$0xfe]
        %v1728 = vld [vmem:[#allocation2 + $0x70] sm:$0x1]
        %v1729 = vld [vmem:[#allocation2 + $0x78] sm:$0x1]
        %v1730 = vld [vmem:[#allocation2 + $0x90] sm:$0xfe]
        %v1731 = vld [vmem:[#allocation2 + $0x98] sm:$0xfe]
        %v1732 = vld [vmem:[#allocation2 + $0xb0] sm:$0x1]
        %v1733 = vld [vmem:[#allocation2 + $0xb8] sm:$0x1]
        %v1734 = vld [vmem:[#allocation2 + $0xd0] sm:$0xfe]
        %v1735 = vld [vmem:[#allocation2 + $0xd8] sm:$0xfe]
        %v1736 = vld [vmem:[#allocation2 + $0xf0] sm:$0x1]
        %v1737 = vld [vmem:[#allocation2 + $0xf8] sm:$0x1]
        %v1738 = vld [vmem:[#allocation2 + $0x110] sm:$0xfe]
        %v1739 = vld [vmem:[#allocation2 + $0x118] sm:$0xfe]
        %v1740 = vld [vmem:[#allocation2 + $0x130] sm:$0x1]
        %v1741 = vld [vmem:[#allocation2 + $0x138] sm:$0x1]
        %v1742 = vld [vmem:[#allocation2 + $0x150] sm:$0xfe]
        %v1743 = vld [vmem:[#allocation2 + $0x158] sm:$0xfe]
        %v1744 = vld [vmem:[#allocation2 + $0x170] sm:$0x1]
        %v1745 = vld [vmem:[#allocation2 + $0x178] sm:$0x1]
        %v1746 = vld [vmem:[#allocation2 + $0x190] sm:$0xfe]
        %v1747 = vld [vmem:[#allocation2 + $0x198] sm:$0xfe]
        %v1748 = vld [vmem:[#allocation2 + $0x1b0] sm:$0x1]
        %v1749 = vld [vmem:[#allocation2 + $0x1b8] sm:$0x1]
        %v1750 = vld [vmem:[#allocation2 + $0x1d0] sm:$0xfe]
        %v1751 = vld [vmem:[#allocation2 + $0x1d8] sm:$0xfe]
        %v1752 = vld [vmem:[#allocation2 + $0x1f0] sm:$0x1]
        %v1753 = vld [vmem:[#allocation2 + $0x1f8] sm:$0x1]
        %v1754 = vld [vmem:[#allocation2 + $0x210] sm:$0xfe]
        %v1755 = vld [vmem:[#allocation2 + $0x218] sm:$0xfe]
        %v1756 = vld [vmem:[#allocation2 + $0x230] sm:$0x1]
        %v1757 = vld [vmem:[#allocation2 + $0x238] sm:$0x1]
        %v1758 = vld [vmem:[#allocation2 + $0x250] sm:$0xfe]
        %v1759 = vld [vmem:[#allocation2 + $0x258] sm:$0xfe]
        %v1760 = vld [vmem:[#allocation2 + $0x270] sm:$0x1]
        %v1761 = vld [vmem:[#allocation2 + $0x278] sm:$0x1]
        %v1762 = vld [vmem:[#allocation2 + $0x290] sm:$0xfe]
        %v1763 = vld [vmem:[#allocation2 + $0x298] sm:$0xfe]
        %v1764 = vld [vmem:[#allocation2 + $0x2b0] sm:$0x1]
        %v1765 = vld [vmem:[#allocation2 + $0x2b8] sm:$0x1]
        %v1766 = vld [vmem:[#allocation2 + $0x2d0] sm:$0xfe]
        %v1767 = vld [vmem:[#allocation2 + $0x2d8] sm:$0xfe]
        %v1768 = vld [vmem:[#allocation2 + $0x2f0] sm:$0x1]
        %v1769 = vld [vmem:[#allocation2 + $0x2f8] sm:$0x1]
        %v1770 = vld [vmem:[#allocation2 + $0x310] sm:$0xfe]
        %v1771 = vld [vmem:[#allocation2 + $0x318] sm:$0xfe]
        %v1772 = vld [vmem:[#allocation2 + $0x330] sm:$0x1]
        %v1773 = vld [vmem:[#allocation2 + $0x338] sm:$0x1]
        %v1774 = vld [vmem:[#allocation2 + $0x350] sm:$0xfe]
        %v1775 = vld [vmem:[#allocation2 + $0x358] sm:$0xfe]
        %v1776 = vld [vmem:[#allocation2 + $0x370] sm:$0x1]
        %v1777 = vld [vmem:[#allocation2 + $0x378] sm:$0x1]
        %v1778 = vld [vmem:[#allocation2 + $0x390] sm:$0xfe]
        %v1779 = vld [vmem:[#allocation2 + $0x398] sm:$0xfe]
        %v1780 = vld [vmem:[#allocation2 + $0x3b0] sm:$0x1]
        %v1781 = vld [vmem:[#allocation2 + $0x3b8] sm:$0x1]
        %v1782 = vld [vmem:[#allocation2 + $0x3d0] sm:$0xfe]
        %v1783 = vld [vmem:[#allocation2 + $0x3d8] sm:$0xfe]
        %v1784 = vld [vmem:[#allocation2 + $0x3f0] sm:$0x1]
        %v1785 = vld [vmem:[#allocation2 + $0x3f8] sm:$0x1]
        %v1786 = vlaneseq
        %v1787 = vshrl.u32 %v1786, 7
        %v1788 = vsub.s32 2, %v1787
        %v1789 = vrot.slane %v342, %v1788
        %v1790 = vlaneseq
        %v1791 = vshrl.u32 %v1790, 7
        %v1792 = vsub.s32 2, %v1791
        %v1793 = vrot.slane %v343, %v1792
        %v1794 = vmul.f32 %v1722, %v1789
        %v1795 = vmul.f32 %v1723, %v1793
        %v1796 = vmul.f32 %v1265, %v1789
        %v1797 = vmul.f32 %v1266, %v1793
        %v1798 = vmul.f32 %v1724, %v1789
        %v1799 = vmul.f32 %v1725, %v1793
        %v1800 = vmul.f32 %v1726, %v1789
        %v1801 = vmul.f32 %v1727, %v1793
        %v1802 = vmul.f32 %v1267, %v1789
        %v1803 = vmul.f32 %v1268, %v1793
        %v1804 = vmul.f32 %v1728, %v1789
        %v1805 = vmul.f32 %v1729, %v1793
        %v1806 = vmul.f32 %v1730, %v1789
        %v1807 = vmul.f32 %v1731, %v1793
        %v1808 = vmul.f32 %v1269, %v1789
        %v1809 = vmul.f32 %v1270, %v1793
        %v1810 = vmul.f32 %v1732, %v1789
        %v1811 = vmul.f32 %v1733, %v1793
        %v1812 = vmul.f32 %v1734, %v1789
        %v1813 = vmul.f32 %v1735, %v1793
        %v1814 = vmul.f32 %v1271, %v1789
        %v1815 = vmul.f32 %v1272, %v1793
        %v1816 = vmul.f32 %v1736, %v1789
        %v1817 = vmul.f32 %v1737, %v1793
        %v1818 = vmul.f32 %v1738, %v1789
        %v1819 = vmul.f32 %v1739, %v1793
        %v1820 = vmul.f32 %v1273, %v1789
        %v1821 = vmul.f32 %v1274, %v1793
        %v1822 = vmul.f32 %v1740, %v1789
        %v1823 = vmul.f32 %v1741, %v1793
        %v1824 = vmul.f32 %v1742, %v1789
        %v1825 = vmul.f32 %v1743, %v1793
        %v1826 = vmul.f32 %v1275, %v1789
        %v1827 = vmul.f32 %v1276, %v1793
        %v1828 = vmul.f32 %v1744, %v1789
        %v1829 = vmul.f32 %v1745, %v1793
        %v1830 = vmul.f32 %v1746, %v1789
        %v1831 = vmul.f32 %v1747, %v1793
        %v1832 = vmul.f32 %v1277, %v1789
        %v1833 = vmul.f32 %v1278, %v1793
        %v1834 = vmul.f32 %v1748, %v1789
        %v1835 = vmul.f32 %v1749, %v1793
        %v1836 = vmul.f32 %v1750, %v1789
        %v1837 = vmul.f32 %v1751, %v1793
        %v1838 = vmul.f32 %v1279, %v1789
        %v1839 = vmul.f32 %v1280, %v1793
        %v1840 = vmul.f32 %v1752, %v1789
        %v1841 = vmul.f32 %v1753, %v1793
        %v1842 = vmul.f32 %v1754, %v1789
        %v1843 = vmul.f32 %v1755, %v1793
        %v1844 = vmul.f32 %v1281, %v1789
        %v1845 = vmul.f32 %v1282, %v1793
        %v1846 = vmul.f32 %v1756, %v1789
        %v1847 = vmul.f32 %v1757, %v1793
        %v1848 = vmul.f32 %v1758, %v1789
        %v1849 = vmul.f32 %v1759, %v1793
        %v1850 = vmul.f32 %v1283, %v1789
        %v1851 = vmul.f32 %v1284, %v1793
        %v1852 = vmul.f32 %v1760, %v1789
        %v1853 = vmul.f32 %v1761, %v1793
        %v1854 = vmul.f32 %v1762, %v1789
        %v1855 = vmul.f32 %v1763, %v1793
        %v1856 = vmul.f32 %v1285, %v1789
        %v1857 = vmul.f32 %v1286, %v1793
        %v1858 = vmul.f32 %v1764, %v1789
        %v1859 = vmul.f32 %v1765, %v1793
        %v1860 = vmul.f32 %v1766, %v1789
        %v1861 = vmul.f32 %v1767, %v1793
        %v1862 = vmul.f32 %v1287, %v1789
        %v1863 = vmul.f32 %v1288, %v1793
        %v1864 = vmul.f32 %v1768, %v1789
        %v1865 = vmul.f32 %v1769, %v1793
        %v1866 = vmul.f32 %v1770, %v1789
        %v1867 = vmul.f32 %v1771, %v1793
        %v1868 = vmul.f32 %v1289, %v1789
        %v1869 = vmul.f32 %v1290, %v1793
        %v1870 = vmul.f32 %v1772, %v1789
        %v1871 = vmul.f32 %v1773, %v1793
        %v1872 = vmul.f32 %v1774, %v1789
        %v1873 = vmul.f32 %v1775, %v1793
        %v1874 = vmul.f32 %v1291, %v1789
        %v1875 = vmul.f32 %v1292, %v1793
        %v1876 = vmul.f32 %v1776, %v1789
        %v1877 = vmul.f32 %v1777, %v1793
        %v1878 = vmul.f32 %v1778, %v1789
        %v1879 = vmul.f32 %v1779, %v1793
        %v1880 = vmul.f32 %v1293, %v1789
        %v1881 = vmul.f32 %v1294, %v1793
        %v1882 = vmul.f32 %v1780, %v1789
        %v1883 = vmul.f32 %v1781, %v1793
        %v1884 = vmul.f32 %v1782, %v1789
        %v1885 = vmul.f32 %v1783, %v1793
        %v1886 = vmul.f32 %v1295, %v1789
        %v1887 = vmul.f32 %v1296, %v1793
        %v1888 = vmul.f32 %v1784, %v1789
        %v1889 = vmul.f32 %v1785, %v1793
        %vm1986 = vcmask 1045504
        %v1987 = vrot.slane %v1794, 2
        %v1988 = vrot.slane %v1795, 2
        %v1989 = vrot.slane %v1796, 2
        %v1990 = vsel %vm1986, %v1987, %v1989
        %v1991 = vrot.slane %v1797, 2
        %v1992 = vsel %vm1986, %v1988, %v1991
        %v1993 = vrot.slane %v1798, 2
        %v1994 = vsel %vm1986, %v1989, %v1993
        %v1995 = vrot.slane %v1799, 2
        %v1996 = vsel %vm1986, %v1991, %v1995
        %v1997 = vrot.slane %v1800, 2
        %v1998 = vrot.slane %v1801, 2
        %v1999 = vrot.slane %v1802, 2
        %v2000 = vsel %vm1986, %v1997, %v1999
        %v2001 = vrot.slane %v1803, 2
        %v2002 = vsel %vm1986, %v1998, %v2001
        %v2003 = vrot.slane %v1804, 2
        %v2004 = vsel %vm1986, %v1999, %v2003
        %v2005 = vrot.slane %v1805, 2
        %v2006 = vsel %vm1986, %v2001, %v2005
        %v2007 = vrot.slane %v1806, 2
        %v2008 = vrot.slane %v1807, 2
        %v2009 = vrot.slane %v1808, 2
        %v2010 = vsel %vm1986, %v2007, %v2009
        %v2011 = vrot.slane %v1809, 2
        %v2012 = vsel %vm1986, %v2008, %v2011
        %v2013 = vrot.slane %v1810, 2
        %v2014 = vsel %vm1986, %v2009, %v2013
        %v2015 = vrot.slane %v1811, 2
        %v2016 = vsel %vm1986, %v2011, %v2015
        %v2017 = vrot.slane %v1812, 2
        %v2018 = vrot.slane %v1813, 2
        %v2019 = vrot.slane %v1814, 2
        %v2020 = vsel %vm1986, %v2017, %v2019
        %v2021 = vrot.slane %v1815, 2
        %v2022 = vsel %vm1986, %v2018, %v2021
        %v2023 = vrot.slane %v1816, 2
        %v2024 = vsel %vm1986, %v2019, %v2023
        %v2025 = vrot.slane %v1817, 2
        %v2026 = vsel %vm1986, %v2021, %v2025
        %v2027 = vrot.slane %v1818, 2
        %v2028 = vrot.slane %v1819, 2
        %v2029 = vrot.slane %v1820, 2
        %v2030 = vsel %vm1986, %v2027, %v2029
        %v2031 = vrot.slane %v1821, 2
        %v2032 = vsel %vm1986, %v2028, %v2031
        %v2033 = vrot.slane %v1822, 2
        %v2034 = vsel %vm1986, %v2029, %v2033
        %v2035 = vrot.slane %v1823, 2
        %v2036 = vsel %vm1986, %v2031, %v2035
        %v2037 = vrot.slane %v1824, 2
        %v2038 = vrot.slane %v1825, 2
        %v2039 = vrot.slane %v1826, 2
        %v2040 = vsel %vm1986, %v2037, %v2039
        %v2041 = vrot.slane %v1827, 2
        %v2042 = vsel %vm1986, %v2038, %v2041
        %v2043 = vrot.slane %v1828, 2
        %v2044 = vsel %vm1986, %v2039, %v2043
        %v2045 = vrot.slane %v1829, 2
        %v2046 = vsel %vm1986, %v2041, %v2045
        %v2047 = vrot.slane %v1830, 2
        %v2048 = vrot.slane %v1831, 2
        %v2049 = vrot.slane %v1832, 2
        %v2050 = vsel %vm1986, %v2047, %v2049
        %v2051 = vrot.slane %v1833, 2
        %v2052 = vsel %vm1986, %v2048, %v2051
        %v2053 = vrot.slane %v1834, 2
        %v2054 = vsel %vm1986, %v2049, %v2053
        %v2055 = vrot.slane %v1835, 2
        %v2056 = vsel %vm1986, %v2051, %v2055
        %v2057 = vrot.slane %v1836, 2
        %v2058 = vrot.slane %v1837, 2
        %v2059 = vrot.slane %v1838, 2
        %v2060 = vsel %vm1986, %v2057, %v2059
        %v2061 = vrot.slane %v1839, 2
        %v2062 = vsel %vm1986, %v2058, %v2061
        %v2063 = vrot.slane %v1840, 2
        %v2064 = vsel %vm1986, %v2059, %v2063
        %v2065 = vrot.slane %v1841, 2
        %v2066 = vsel %vm1986, %v2061, %v2065
        %v2067 = vrot.slane %v1842, 2
        %v2068 = vrot.slane %v1843, 2
        %v2069 = vrot.slane %v1844, 2
        %v2070 = vsel %vm1986, %v2067, %v2069
        %v2071 = vrot.slane %v1845, 2
        %v2072 = vsel %vm1986, %v2068, %v2071
        %v2073 = vrot.slane %v1846, 2
        %v2074 = vsel %vm1986, %v2069, %v2073
        %v2075 = vrot.slane %v1847, 2
        %v2076 = vsel %vm1986, %v2071, %v2075
        %v2077 = vrot.slane %v1848, 2
        %v2078 = vrot.slane %v1849, 2
        %v2079 = vrot.slane %v1850, 2
        %v2080 = vsel %vm1986, %v2077, %v2079
        %v2081 = vrot.slane %v1851, 2
        %v2082 = vsel %vm1986, %v2078, %v2081
        %v2083 = vrot.slane %v1852, 2
        %v2084 = vsel %vm1986, %v2079, %v2083
        %v2085 = vrot.slane %v1853, 2
        %v2086 = vsel %vm1986, %v2081, %v2085
        %v2087 = vrot.slane %v1854, 2
        %v2088 = vrot.slane %v1855, 2
        %v2089 = vrot.slane %v1856, 2
        %v2090 = vsel %vm1986, %v2087, %v2089
        %v2091 = vrot.slane %v1857, 2
        %v2092 = vsel %vm1986, %v2088, %v2091
        %v2093 = vrot.slane %v1858, 2
        %v2094 = vsel %vm1986, %v2089, %v2093
        %v2095 = vrot.slane %v1859, 2
        %v2096 = vsel %vm1986, %v2091, %v2095
        %v2097 = vrot.slane %v1860, 2
        %v2098 = vrot.slane %v1861, 2
        %v2099 = vrot.slane %v1862, 2
        %v2100 = vsel %vm1986, %v2097, %v2099
        %v2101 = vrot.slane %v1863, 2
        %v2102 = vsel %vm1986, %v2098, %v2101
        %v2103 = vrot.slane %v1864, 2
        %v2104 = vsel %vm1986, %v2099, %v2103
        %v2105 = vrot.slane %v1865, 2
        %v2106 = vsel %vm1986, %v2101, %v2105
        %v2107 = vrot.slane %v1866, 2
        %v2108 = vrot.slane %v1867, 2
        %v2109 = vrot.slane %v1868, 2
        %v2110 = vsel %vm1986, %v2107, %v2109
        %v2111 = vrot.slane %v1869, 2
        %v2112 = vsel %vm1986, %v2108, %v2111
        %v2113 = vrot.slane %v1870, 2
        %v2114 = vsel %vm1986, %v2109, %v2113
        %v2115 = vrot.slane %v1871, 2
        %v2116 = vsel %vm1986, %v2111, %v2115
        %v2117 = vrot.slane %v1872, 2
        %v2118 = vrot.slane %v1873, 2
        %v2119 = vrot.slane %v1874, 2
        %v2120 = vsel %vm1986, %v2117, %v2119
        %v2121 = vrot.slane %v1875, 2
        %v2122 = vsel %vm1986, %v2118, %v2121
        %v2123 = vrot.slane %v1876, 2
        %v2124 = vsel %vm1986, %v2119, %v2123
        %v2125 = vrot.slane %v1877, 2
        %v2126 = vsel %vm1986, %v2121, %v2125
        %v2127 = vrot.slane %v1878, 2
        %v2128 = vrot.slane %v1879, 2
        %v2129 = vrot.slane %v1880, 2
        %v2130 = vsel %vm1986, %v2127, %v2129
        %v2131 = vrot.slane %v1881, 2
        %v2132 = vsel %vm1986, %v2128, %v2131
        %v2133 = vrot.slane %v1882, 2
        %v2134 = vsel %vm1986, %v2129, %v2133
        %v2135 = vrot.slane %v1883, 2
        %v2136 = vsel %vm1986, %v2131, %v2135
        %v2137 = vrot.slane %v1884, 2
        %v2138 = vrot.slane %v1885, 2
        %v2139 = vrot.slane %v1886, 2
        %v2140 = vsel %vm1986, %v2137, %v2139
        %v2141 = vrot.slane %v1887, 2
        %v2142 = vsel %vm1986, %v2138, %v2141
        %v2143 = vrot.slane %v1888, 2
        %v2144 = vsel %vm1986, %v2139, %v2143
        %v2145 = vrot.slane %v1889, 2
        %v2146 = vsel %vm1986, %v2141, %v2145
        %v2243 = vadd.f32 %v1626, %v1987
        %v2244 = vadd.f32 %v1627, %v1988
        %v2245 = vadd.f32 %v1628, %v1990
        %v2246 = vadd.f32 %v1629, %v1992
        %v2247 = vadd.f32 %v1630, %v1994
        %v2248 = vadd.f32 %v1631, %v1996
        %v2249 = vadd.f32 %v1632, %v1997
        %v2250 = vadd.f32 %v1633, %v1998
        %v2251 = vadd.f32 %v1634, %v2000
        %v2252 = vadd.f32 %v1635, %v2002
        %v2253 = vadd.f32 %v1636, %v2004
        %v2254 = vadd.f32 %v1637, %v2006
        %v2255 = vadd.f32 %v1638, %v2007
        %v2256 = vadd.f32 %v1639, %v2008
        %v2257 = vadd.f32 %v1640, %v2010
        %v2258 = vadd.f32 %v1641, %v2012
        %v2259 = vadd.f32 %v1642, %v2014
        %v2260 = vadd.f32 %v1643, %v2016
        %v2261 = vadd.f32 %v1644, %v2017
        %v2262 = vadd.f32 %v1645, %v2018
        %v2263 = vadd.f32 %v1646, %v2020
        %v2264 = vadd.f32 %v1647, %v2022
        %v2265 = vadd.f32 %v1648, %v2024
        %v2266 = vadd.f32 %v1649, %v2026
        %v2267 = vadd.f32 %v1650, %v2027
        %v2268 = vadd.f32 %v1651, %v2028
        %v2269 = vadd.f32 %v1652, %v2030
        %v2270 = vadd.f32 %v1653, %v2032
        %v2271 = vadd.f32 %v1654, %v2034
        %v2272 = vadd.f32 %v1655, %v2036
        %v2273 = vadd.f32 %v1656, %v2037
        %v2274 = vadd.f32 %v1657, %v2038
        %v2275 = vadd.f32 %v1658, %v2040
        %v2276 = vadd.f32 %v1659, %v2042
        %v2277 = vadd.f32 %v1660, %v2044
        %v2278 = vadd.f32 %v1661, %v2046
        %v2279 = vadd.f32 %v1662, %v2047
        %v2280 = vadd.f32 %v1663, %v2048
        %v2281 = vadd.f32 %v1664, %v2050
        %v2282 = vadd.f32 %v1665, %v2052
        %v2283 = vadd.f32 %v1666, %v2054
        %v2284 = vadd.f32 %v1667, %v2056
        %v2285 = vadd.f32 %v1668, %v2057
        %v2286 = vadd.f32 %v1669, %v2058
        %v2287 = vadd.f32 %v1670, %v2060
        %v2288 = vadd.f32 %v1671, %v2062
        %v2289 = vadd.f32 %v1672, %v2064
        %v2290 = vadd.f32 %v1673, %v2066
        %v2291 = vadd.f32 %v1674, %v2067
        %v2292 = vadd.f32 %v1675, %v2068
        %v2293 = vadd.f32 %v1676, %v2070
        %v2294 = vadd.f32 %v1677, %v2072
        %v2295 = vadd.f32 %v1678, %v2074
        %v2296 = vadd.f32 %v1679, %v2076
        %v2297 = vadd.f32 %v1680, %v2077
        %v2298 = vadd.f32 %v1681, %v2078
        %v2299 = vadd.f32 %v1682, %v2080
        %v2300 = vadd.f32 %v1683, %v2082
        %v2301 = vadd.f32 %v1684, %v2084
        %v2302 = vadd.f32 %v1685, %v2086
        %v2303 = vadd.f32 %v1686, %v2087
        %v2304 = vadd.f32 %v1687, %v2088
        %v2305 = vadd.f32 %v1688, %v2090
        %v2306 = vadd.f32 %v1689, %v2092
        %v2307 = vadd.f32 %v1690, %v2094
        %v2308 = vadd.f32 %v1691, %v2096
        %v2309 = vadd.f32 %v1692, %v2097
        %v2310 = vadd.f32 %v1693, %v2098
        %v2311 = vadd.f32 %v1694, %v2100
        %v2312 = vadd.f32 %v1695, %v2102
        %v2313 = vadd.f32 %v1696, %v2104
        %v2314 = vadd.f32 %v1697, %v2106
        %v2315 = vadd.f32 %v1698, %v2107
        %v2316 = vadd.f32 %v1699, %v2108
        %v2317 = vadd.f32 %v1700, %v2110
        %v2318 = vadd.f32 %v1701, %v2112
        %v2319 = vadd.f32 %v1702, %v2114
        %v2320 = vadd.f32 %v1703, %v2116
        %v2321 = vadd.f32 %v1704, %v2117
        %v2322 = vadd.f32 %v1705, %v2118
        %v2323 = vadd.f32 %v1706, %v2120
        %v2324 = vadd.f32 %v1707, %v2122
        %v2325 = vadd.f32 %v1708, %v2124
        %v2326 = vadd.f32 %v1709, %v2126
        %v2327 = vadd.f32 %v1710, %v2127
        %v2328 = vadd.f32 %v1711, %v2128
        %v2329 = vadd.f32 %v1712, %v2130
        %v2330 = vadd.f32 %v1713, %v2132
        %v2331 = vadd.f32 %v1714, %v2134
        %v2332 = vadd.f32 %v1715, %v2136
        %v2333 = vadd.f32 %v1716, %v2137
        %v2334 = vadd.f32 %v1717, %v2138
        %v2335 = vadd.f32 %v1718, %v2140
        %v2336 = vadd.f32 %v1719, %v2142
        %v2337 = vadd.f32 %v1720, %v2144
        %v2338 = vadd.f32 %v1721, %v2146
        %v2339 = vld [vmem:[%s1000] sm:$0x80]
        %v2340 = vld [vmem:[%s1000 + $0x8] sm:$0x80]
        %v2341 = vld [vmem:[%s1000 + $0x10] sm:$0xff]
        %v2342 = vld [vmem:[%s1000 + $0x18] sm:$0xff]
        %v2343 = vld [vmem:[%s1000 + $0x20] sm:$0x7f]
        %v2344 = vld [vmem:[%s1000 + $0x28] sm:$0x7f]
        %v2345 = vld [vmem:[%s1000 + $0x40] sm:$0x80]
        %v2346 = vld [vmem:[%s1000 + $0x48] sm:$0x80]
        %v2347 = vld [vmem:[%s1000 + $0x50] sm:$0xff]
        %v2348 = vld [vmem:[%s1000 + $0x58] sm:$0xff]
        %v2349 = vld [vmem:[%s1000 + $0x60] sm:$0x7f]
        %v2350 = vld [vmem:[%s1000 + $0x68] sm:$0x7f]
        %v2351 = vld [vmem:[%s1000 + $0x80] sm:$0x80]
        %v2352 = vld [vmem:[%s1000 + $0x88] sm:$0x80]
        %v2353 = vld [vmem:[%s1000 + $0x90] sm:$0xff]
        %v2354 = vld [vmem:[%s1000 + $0x98] sm:$0xff]
        %v2355 = vld [vmem:[%s1000 + $0xa0] sm:$0x7f]
        %v2356 = vld [vmem:[%s1000 + $0xa8] sm:$0x7f]
        %v2357 = vld [vmem:[%s1000 + $0xc0] sm:$0x80]
        %v2358 = vld [vmem:[%s1000 + $0xc8] sm:$0x80]
        %v2359 = vld [vmem:[%s1000 + $0xd0] sm:$0xff]
        %v2360 = vld [vmem:[%s1000 + $0xd8] sm:$0xff]
        %v2361 = vld [vmem:[%s1000 + $0xe0] sm:$0x7f]
        %v2362 = vld [vmem:[%s1000 + $0xe8] sm:$0x7f]
        %v2363 = vld [vmem:[%s1000 + $0x100] sm:$0x80]
        %v2364 = vld [vmem:[%s1000 + $0x108] sm:$0x80]
        %v2365 = vld [vmem:[%s1000 + $0x110] sm:$0xff]
        %v2366 = vld [vmem:[%s1000 + $0x118] sm:$0xff]
        %v2367 = vld [vmem:[%s1000 + $0x120] sm:$0x7f]
        %v2368 = vld [vmem:[%s1000 + $0x128] sm:$0x7f]
        %v2369 = vld [vmem:[%s1000 + $0x140] sm:$0x80]
        %v2370 = vld [vmem:[%s1000 + $0x148] sm:$0x80]
        %v2371 = vld [vmem:[%s1000 + $0x150] sm:$0xff]
        %v2372 = vld [vmem:[%s1000 + $0x158] sm:$0xff]
        %v2373 = vld [vmem:[%s1000 + $0x160] sm:$0x7f]
        %v2374 = vld [vmem:[%s1000 + $0x168] sm:$0x7f]
        %v2375 = vld [vmem:[%s1000 + $0x180] sm:$0x80]
        %v2376 = vld [vmem:[%s1000 + $0x188] sm:$0x80]
        %v2377 = vld [vmem:[%s1000 + $0x190] sm:$0xff]
        %v2378 = vld [vmem:[%s1000 + $0x198] sm:$0xff]
        %v2379 = vld [vmem:[%s1000 + $0x1a0] sm:$0x7f]
        %v2380 = vld [vmem:[%s1000 + $0x1a8] sm:$0x7f]
        %v2381 = vld [vmem:[%s1000 + $0x1c0] sm:$0x80]
        %v2382 = vld [vmem:[%s1000 + $0x1c8] sm:$0x80]
        %v2383 = vld [vmem:[%s1000 + $0x1d0] sm:$0xff]
        %v2384 = vld [vmem:[%s1000 + $0x1d8] sm:$0xff]
        %v2385 = vld [vmem:[%s1000 + $0x1e0] sm:$0x7f]
        %v2386 = vld [vmem:[%s1000 + $0x1e8] sm:$0x7f]
        %v2387 = vld [vmem:[%s1000 + $0x200] sm:$0x80]
        %v2388 = vld [vmem:[%s1000 + $0x208] sm:$0x80]
        %v2389 = vld [vmem:[%s1000 + $0x210] sm:$0xff]
        %v2390 = vld [vmem:[%s1000 + $0x218] sm:$0xff]
        %v2391 = vld [vmem:[%s1000 + $0x220] sm:$0x7f]
        %v2392 = vld [vmem:[%s1000 + $0x228] sm:$0x7f]
        %v2393 = vld [vmem:[%s1000 + $0x240] sm:$0x80]
        %v2394 = vld [vmem:[%s1000 + $0x248] sm:$0x80]
        %v2395 = vld [vmem:[%s1000 + $0x250] sm:$0xff]
        %v2396 = vld [vmem:[%s1000 + $0x258] sm:$0xff]
        %v2397 = vld [vmem:[%s1000 + $0x260] sm:$0x7f]
        %v2398 = vld [vmem:[%s1000 + $0x268] sm:$0x7f]
        %v2399 = vld [vmem:[%s1000 + $0x280] sm:$0x80]
        %v2400 = vld [vmem:[%s1000 + $0x288] sm:$0x80]
        %v2401 = vld [vmem:[%s1000 + $0x290] sm:$0xff]
        %v2402 = vld [vmem:[%s1000 + $0x298] sm:$0xff]
        %v2403 = vld [vmem:[%s1000 + $0x2a0] sm:$0x7f]
        %v2404 = vld [vmem:[%s1000 + $0x2a8] sm:$0x7f]
        %v2405 = vld [vmem:[%s1000 + $0x2c0] sm:$0x80]
        %v2406 = vld [vmem:[%s1000 + $0x2c8] sm:$0x80]
        %v2407 = vld [vmem:[%s1000 + $0x2d0] sm:$0xff]
        %v2408 = vld [vmem:[%s1000 + $0x2d8] sm:$0xff]
        %v2409 = vld [vmem:[%s1000 + $0x2e0] sm:$0x7f]
        %v2410 = vld [vmem:[%s1000 + $0x2e8] sm:$0x7f]
        %v2411 = vld [vmem:[%s1000 + $0x300] sm:$0x80]
        %v2412 = vld [vmem:[%s1000 + $0x308] sm:$0x80]
        %v2413 = vld [vmem:[%s1000 + $0x310] sm:$0xff]
        %v2414 = vld [vmem:[%s1000 + $0x318] sm:$0xff]
        %v2415 = vld [vmem:[%s1000 + $0x320] sm:$0x7f]
        %v2416 = vld [vmem:[%s1000 + $0x328] sm:$0x7f]
        %v2417 = vld [vmem:[%s1000 + $0x340] sm:$0x80]
        %v2418 = vld [vmem:[%s1000 + $0x348] sm:$0x80]
        %v2419 = vld [vmem:[%s1000 + $0x350] sm:$0xff]
        %v2420 = vld [vmem:[%s1000 + $0x358] sm:$0xff]
        %v2421 = vld [vmem:[%s1000 + $0x360] sm:$0x7f]
        %v2422 = vld [vmem:[%s1000 + $0x368] sm:$0x7f]
        %v2423 = vld [vmem:[%s1000 + $0x380] sm:$0x80]
        %v2424 = vld [vmem:[%s1000 + $0x388] sm:$0x80]
        %v2425 = vld [vmem:[%s1000 + $0x390] sm:$0xff]
        %v2426 = vld [vmem:[%s1000 + $0x398] sm:$0xff]
        %v2427 = vld [vmem:[%s1000 + $0x3a0] sm:$0x7f]
        %v2428 = vld [vmem:[%s1000 + $0x3a8] sm:$0x7f]
        %v2429 = vld [vmem:[%s1000 + $0x3c0] sm:$0x80]
        %v2430 = vld [vmem:[%s1000 + $0x3c8] sm:$0x80]
        %v2431 = vld [vmem:[%s1000 + $0x3d0] sm:$0xff]
        %v2432 = vld [vmem:[%s1000 + $0x3d8] sm:$0xff]
        %v2433 = vld [vmem:[%s1000 + $0x3e0] sm:$0x7f]
        %v2434 = vld [vmem:[%s1000 + $0x3e8] sm:$0x7f]
        %v2435 = vlaneseq
        %v2436 = vshrl.u32 %v2435, 7
        %v2437 = vsub.s32 3, %v2436
        %v2438 = vrot.slane %v342, %v2437
        %v2439 = vlaneseq
        %v2440 = vshrl.u32 %v2439, 7
        %v2441 = vsub.s32 3, %v2440
        %v2442 = vrot.slane %v343, %v2441
        %v2443 = vmul.f32 %v2339, %v2438
        %v2444 = vmul.f32 %v2340, %v2442
        %v2445 = vmul.f32 %v2341, %v2438
        %v2446 = vmul.f32 %v2342, %v2442
        %v2447 = vmul.f32 %v2343, %v2438
        %v2448 = vmul.f32 %v2344, %v2442
        %v2449 = vmul.f32 %v2345, %v2438
        %v2450 = vmul.f32 %v2346, %v2442
        %v2451 = vmul.f32 %v2347, %v2438
        %v2452 = vmul.f32 %v2348, %v2442
        %v2453 = vmul.f32 %v2349, %v2438
        %v2454 = vmul.f32 %v2350, %v2442
        %v2455 = vmul.f32 %v2351, %v2438
        %v2456 = vmul.f32 %v2352, %v2442
        %v2457 = vmul.f32 %v2353, %v2438
        %v2458 = vmul.f32 %v2354, %v2442
        %v2459 = vmul.f32 %v2355, %v2438
        %v2460 = vmul.f32 %v2356, %v2442
        %v2461 = vmul.f32 %v2357, %v2438
        %v2462 = vmul.f32 %v2358, %v2442
        %v2463 = vmul.f32 %v2359, %v2438
        %v2464 = vmul.f32 %v2360, %v2442
        %v2465 = vmul.f32 %v2361, %v2438
        %v2466 = vmul.f32 %v2362, %v2442
        %v2467 = vmul.f32 %v2363, %v2438
        %v2468 = vmul.f32 %v2364, %v2442
        %v2469 = vmul.f32 %v2365, %v2438
        %v2470 = vmul.f32 %v2366, %v2442
        %v2471 = vmul.f32 %v2367, %v2438
        %v2472 = vmul.f32 %v2368, %v2442
        %v2473 = vmul.f32 %v2369, %v2438
        %v2474 = vmul.f32 %v2370, %v2442
        %v2475 = vmul.f32 %v2371, %v2438
        %v2476 = vmul.f32 %v2372, %v2442
        %v2477 = vmul.f32 %v2373, %v2438
        %v2478 = vmul.f32 %v2374, %v2442
        %v2479 = vmul.f32 %v2375, %v2438
        %v2480 = vmul.f32 %v2376, %v2442
        %v2481 = vmul.f32 %v2377, %v2438
        %v2482 = vmul.f32 %v2378, %v2442
        %v2483 = vmul.f32 %v2379, %v2438
        %v2484 = vmul.f32 %v2380, %v2442
        %v2485 = vmul.f32 %v2381, %v2438
        %v2486 = vmul.f32 %v2382, %v2442
        %v2487 = vmul.f32 %v2383, %v2438
        %v2488 = vmul.f32 %v2384, %v2442
        %v2489 = vmul.f32 %v2385, %v2438
        %v2490 = vmul.f32 %v2386, %v2442
        %v2491 = vmul.f32 %v2387, %v2438
        %v2492 = vmul.f32 %v2388, %v2442
        %v2493 = vmul.f32 %v2389, %v2438
        %v2494 = vmul.f32 %v2390, %v2442
        %v2495 = vmul.f32 %v2391, %v2438
        %v2496 = vmul.f32 %v2392, %v2442
        %v2497 = vmul.f32 %v2393, %v2438
        %v2498 = vmul.f32 %v2394, %v2442
        %v2499 = vmul.f32 %v2395, %v2438
        %v2500 = vmul.f32 %v2396, %v2442
        %v2501 = vmul.f32 %v2397, %v2438
        %v2502 = vmul.f32 %v2398, %v2442
        %v2503 = vmul.f32 %v2399, %v2438
        %v2504 = vmul.f32 %v2400, %v2442
        %v2505 = vmul.f32 %v2401, %v2438
        %v2506 = vmul.f32 %v2402, %v2442
        %v2507 = vmul.f32 %v2403, %v2438
        %v2508 = vmul.f32 %v2404, %v2442
        %v2509 = vmul.f32 %v2405, %v2438
        %v2510 = vmul.f32 %v2406, %v2442
        %v2511 = vmul.f32 %v2407, %v2438
        %v2512 = vmul.f32 %v2408, %v2442
        %v2513 = vmul.f32 %v2409, %v2438
        %v2514 = vmul.f32 %v2410, %v2442
        %v2515 = vmul.f32 %v2411, %v2438
        %v2516 = vmul.f32 %v2412, %v2442
        %v2517 = vmul.f32 %v2413, %v2438
        %v2518 = vmul.f32 %v2414, %v2442
        %v2519 = vmul.f32 %v2415, %v2438
        %v2520 = vmul.f32 %v2416, %v2442
        %v2521 = vmul.f32 %v2417, %v2438
        %v2522 = vmul.f32 %v2418, %v2442
        %v2523 = vmul.f32 %v2419, %v2438
        %v2524 = vmul.f32 %v2420, %v2442
        %v2525 = vmul.f32 %v2421, %v2438
        %v2526 = vmul.f32 %v2422, %v2442
        %v2527 = vmul.f32 %v2423, %v2438
        %v2528 = vmul.f32 %v2424, %v2442
        %v2529 = vmul.f32 %v2425, %v2438
        %v2530 = vmul.f32 %v2426, %v2442
        %v2531 = vmul.f32 %v2427, %v2438
        %v2532 = vmul.f32 %v2428, %v2442
        %v2533 = vmul.f32 %v2429, %v2438
        %v2534 = vmul.f32 %v2430, %v2442
        %v2535 = vmul.f32 %v2431, %v2438
        %v2536 = vmul.f32 %v2432, %v2442
        %v2537 = vmul.f32 %v2433, %v2438
        %v2538 = vmul.f32 %v2434, %v2442
        %v2539 = vadd.f32 %v2243, %v2443
        %v2540 = vadd.f32 %v2244, %v2444
        %v2541 = vadd.f32 %v2245, %v2445
        %v2542 = vadd.f32 %v2246, %v2446
        %v2543 = vadd.f32 %v2247, %v2447
        %v2544 = vadd.f32 %v2248, %v2448
        %v2545 = vadd.f32 %v2249, %v2449
        %v2546 = vadd.f32 %v2250, %v2450
        %v2547 = vadd.f32 %v2251, %v2451
        %v2548 = vadd.f32 %v2252, %v2452
        %v2549 = vadd.f32 %v2253, %v2453
        %v2550 = vadd.f32 %v2254, %v2454
        %v2551 = vadd.f32 %v2255, %v2455
        %v2552 = vadd.f32 %v2256, %v2456
        %v2553 = vadd.f32 %v2257, %v2457
        %v2554 = vadd.f32 %v2258, %v2458
        %v2555 = vadd.f32 %v2259, %v2459
        %v2556 = vadd.f32 %v2260, %v2460
        %v2557 = vadd.f32 %v2261, %v2461
        %v2558 = vadd.f32 %v2262, %v2462
        %v2559 = vadd.f32 %v2263, %v2463
        %v2560 = vadd.f32 %v2264, %v2464
        %v2561 = vadd.f32 %v2265, %v2465
        %v2562 = vadd.f32 %v2266, %v2466
        %v2563 = vadd.f32 %v2267, %v2467
        %v2564 = vadd.f32 %v2268, %v2468
        %v2565 = vadd.f32 %v2269, %v2469
        %v2566 = vadd.f32 %v2270, %v2470
        %v2567 = vadd.f32 %v2271, %v2471
        %v2568 = vadd.f32 %v2272, %v2472
        %v2569 = vadd.f32 %v2273, %v2473
        %v2570 = vadd.f32 %v2274, %v2474
        %v2571 = vadd.f32 %v2275, %v2475
        %v2572 = vadd.f32 %v2276, %v2476
        %v2573 = vadd.f32 %v2277, %v2477
        %v2574 = vadd.f32 %v2278, %v2478
        %v2575 = vadd.f32 %v2279, %v2479
        %v2576 = vadd.f32 %v2280, %v2480
        %v2577 = vadd.f32 %v2281, %v2481
        %v2578 = vadd.f32 %v2282, %v2482
        %v2579 = vadd.f32 %v2283, %v2483
        %v2580 = vadd.f32 %v2284, %v2484
        %v2581 = vadd.f32 %v2285, %v2485
        %v2582 = vadd.f32 %v2286, %v2486
        %v2583 = vadd.f32 %v2287, %v2487
        %v2584 = vadd.f32 %v2288, %v2488
        %v2585 = vadd.f32 %v2289, %v2489
        %v2586 = vadd.f32 %v2290, %v2490
        %v2587 = vadd.f32 %v2291, %v2491
        %v2588 = vadd.f32 %v2292, %v2492
        %v2589 = vadd.f32 %v2293, %v2493
        %v2590 = vadd.f32 %v2294, %v2494
        %v2591 = vadd.f32 %v2295, %v2495
        %v2592 = vadd.f32 %v2296, %v2496
        %v2593 = vadd.f32 %v2297, %v2497
        %v2594 = vadd.f32 %v2298, %v2498
        %v2595 = vadd.f32 %v2299, %v2499
        %v2596 = vadd.f32 %v2300, %v2500
        %v2597 = vadd.f32 %v2301, %v2501
        %v2598 = vadd.f32 %v2302, %v2502
        %v2599 = vadd.f32 %v2303, %v2503
        %v2600 = vadd.f32 %v2304, %v2504
        %v2601 = vadd.f32 %v2305, %v2505
        %v2602 = vadd.f32 %v2306, %v2506
        %v2603 = vadd.f32 %v2307, %v2507
        %v2604 = vadd.f32 %v2308, %v2508
        %v2605 = vadd.f32 %v2309, %v2509
        %v2606 = vadd.f32 %v2310, %v2510
        %v2607 = vadd.f32 %v2311, %v2511
        %v2608 = vadd.f32 %v2312, %v2512
        %v2609 = vadd.f32 %v2313, %v2513
        %v2610 = vadd.f32 %v2314, %v2514
        %v2611 = vadd.f32 %v2315, %v2515
        %v2612 = vadd.f32 %v2316, %v2516
        %v2613 = vadd.f32 %v2317, %v2517
        %v2614 = vadd.f32 %v2318, %v2518
        %v2615 = vadd.f32 %v2319, %v2519
        %v2616 = vadd.f32 %v2320, %v2520
        %v2617 = vadd.f32 %v2321, %v2521
        %v2618 = vadd.f32 %v2322, %v2522
        %v2619 = vadd.f32 %v2323, %v2523
        %v2620 = vadd.f32 %v2324, %v2524
        %v2621 = vadd.f32 %v2325, %v2525
        %v2622 = vadd.f32 %v2326, %v2526
        %v2623 = vadd.f32 %v2327, %v2527
        %v2624 = vadd.f32 %v2328, %v2528
        %v2625 = vadd.f32 %v2329, %v2529
        %v2626 = vadd.f32 %v2330, %v2530
        %v2627 = vadd.f32 %v2331, %v2531
        %v2628 = vadd.f32 %v2332, %v2532
        %v2629 = vadd.f32 %v2333, %v2533
        %v2630 = vadd.f32 %v2334, %v2534
        %v2631 = vadd.f32 %v2335, %v2535
        %v2632 = vadd.f32 %v2336, %v2536
        %v2633 = vadd.f32 %v2337, %v2537
        %v2634 = vadd.f32 %v2338, %v2538
        %v2635 = vld [vmem:[%s1000 + $0x20] sm:$0xff]
        %v2636 = vld [vmem:[%s1000 + $0x28] sm:$0xff]
        %v2637 = vld [vmem:[%s1000 + $0x60] sm:$0xff]
        %v2638 = vld [vmem:[%s1000 + $0x68] sm:$0xff]
        %v2639 = vld [vmem:[%s1000 + $0xa0] sm:$0xff]
        %v2640 = vld [vmem:[%s1000 + $0xa8] sm:$0xff]
        %v2641 = vld [vmem:[%s1000 + $0xe0] sm:$0xff]
        %v2642 = vld [vmem:[%s1000 + $0xe8] sm:$0xff]
        %v2643 = vld [vmem:[%s1000 + $0x120] sm:$0xff]
        %v2644 = vld [vmem:[%s1000 + $0x128] sm:$0xff]
        %v2645 = vld [vmem:[%s1000 + $0x160] sm:$0xff]
        %v2646 = vld [vmem:[%s1000 + $0x168] sm:$0xff]
        %v2647 = vld [vmem:[%s1000 + $0x1a0] sm:$0xff]
        %v2648 = vld [vmem:[%s1000 + $0x1a8] sm:$0xff]
        %v2649 = vld [vmem:[%s1000 + $0x1e0] sm:$0xff]
        %v2650 = vld [vmem:[%s1000 + $0x1e8] sm:$0xff]
        %v2651 = vld [vmem:[%s1000 + $0x220] sm:$0xff]
        %v2652 = vld [vmem:[%s1000 + $0x228] sm:$0xff]
        %v2653 = vld [vmem:[%s1000 + $0x260] sm:$0xff]
        %v2654 = vld [vmem:[%s1000 + $0x268] sm:$0xff]
        %v2655 = vld [vmem:[%s1000 + $0x2a0] sm:$0xff]
        %v2656 = vld [vmem:[%s1000 + $0x2a8] sm:$0xff]
        %v2657 = vld [vmem:[%s1000 + $0x2e0] sm:$0xff]
        %v2658 = vld [vmem:[%s1000 + $0x2e8] sm:$0xff]
        %v2659 = vld [vmem:[%s1000 + $0x320] sm:$0xff]
        %v2660 = vld [vmem:[%s1000 + $0x328] sm:$0xff]
        %v2661 = vld [vmem:[%s1000 + $0x360] sm:$0xff]
        %v2662 = vld [vmem:[%s1000 + $0x368] sm:$0xff]
        %v2663 = vld [vmem:[%s1000 + $0x3a0] sm:$0xff]
        %v2664 = vld [vmem:[%s1000 + $0x3a8] sm:$0xff]
        %v2665 = vld [vmem:[%s1000 + $0x3e0] sm:$0xff]
        %v2666 = vld [vmem:[%s1000 + $0x3e8] sm:$0xff]
        %v2667 = vlaneseq
        %v2668 = vshrl.u32 %v2667, 7
        %v2669 = vsub.s32 4, %v2668
        %v2670 = vrot.slane %v342, %v2669
        %v2671 = vlaneseq
        %v2672 = vshrl.u32 %v2671, 7
        %v2673 = vsub.s32 4, %v2672
        %v2674 = vrot.slane %v343, %v2673
        %v2675 = vmul.f32 %v2341, %v2670
        %v2676 = vmul.f32 %v2342, %v2674
        %v2677 = vmul.f32 %v2635, %v2670
        %v2678 = vmul.f32 %v2636, %v2674
        %v2679 = vmul.f32 %v2347, %v2670
        %v2680 = vmul.f32 %v2348, %v2674
        %v2681 = vmul.f32 %v2637, %v2670
        %v2682 = vmul.f32 %v2638, %v2674
        %v2683 = vmul.f32 %v2353, %v2670
        %v2684 = vmul.f32 %v2354, %v2674
        %v2685 = vmul.f32 %v2639, %v2670
        %v2686 = vmul.f32 %v2640, %v2674
        %v2687 = vmul.f32 %v2359, %v2670
        %v2688 = vmul.f32 %v2360, %v2674
        %v2689 = vmul.f32 %v2641, %v2670
        %v2690 = vmul.f32 %v2642, %v2674
        %v2691 = vmul.f32 %v2365, %v2670
        %v2692 = vmul.f32 %v2366, %v2674
        %v2693 = vmul.f32 %v2643, %v2670
        %v2694 = vmul.f32 %v2644, %v2674
        %v2695 = vmul.f32 %v2371, %v2670
        %v2696 = vmul.f32 %v2372, %v2674
        %v2697 = vmul.f32 %v2645, %v2670
        %v2698 = vmul.f32 %v2646, %v2674
        %v2699 = vmul.f32 %v2377, %v2670
        %v2700 = vmul.f32 %v2378, %v2674
        %v2701 = vmul.f32 %v2647, %v2670
        %v2702 = vmul.f32 %v2648, %v2674
        %v2703 = vmul.f32 %v2383, %v2670
        %v2704 = vmul.f32 %v2384, %v2674
        %v2705 = vmul.f32 %v2649, %v2670
        %v2706 = vmul.f32 %v2650, %v2674
        %v2707 = vmul.f32 %v2389, %v2670
        %v2708 = vmul.f32 %v2390, %v2674
        %v2709 = vmul.f32 %v2651, %v2670
        %v2710 = vmul.f32 %v2652, %v2674
        %v2711 = vmul.f32 %v2395, %v2670
        %v2712 = vmul.f32 %v2396, %v2674
        %v2713 = vmul.f32 %v2653, %v2670
        %v2714 = vmul.f32 %v2654, %v2674
        %v2715 = vmul.f32 %v2401, %v2670
        %v2716 = vmul.f32 %v2402, %v2674
        %v2717 = vmul.f32 %v2655, %v2670
        %v2718 = vmul.f32 %v2656, %v2674
        %v2719 = vmul.f32 %v2407, %v2670
        %v2720 = vmul.f32 %v2408, %v2674
        %v2721 = vmul.f32 %v2657, %v2670
        %v2722 = vmul.f32 %v2658, %v2674
        %v2723 = vmul.f32 %v2413, %v2670
        %v2724 = vmul.f32 %v2414, %v2674
        %v2725 = vmul.f32 %v2659, %v2670
        %v2726 = vmul.f32 %v2660, %v2674
        %v2727 = vmul.f32 %v2419, %v2670
        %v2728 = vmul.f32 %v2420, %v2674
        %v2729 = vmul.f32 %v2661, %v2670
        %v2730 = vmul.f32 %v2662, %v2674
        %v2731 = vmul.f32 %v2425, %v2670
        %v2732 = vmul.f32 %v2426, %v2674
        %v2733 = vmul.f32 %v2663, %v2670
        %v2734 = vmul.f32 %v2664, %v2674
        %v2735 = vmul.f32 %v2431, %v2670
        %v2736 = vmul.f32 %v2432, %v2674
        %v2737 = vmul.f32 %v2665, %v2670
        %v2738 = vmul.f32 %v2666, %v2674
        %v2803 = vrot.slane %v2675, 1
        %v2804 = vrot.slane %v2676, 1
        %v2805 = vrot.slane %v2677, 1
        %v2806 = vsel %vm1433, %v2803, %v2805
        %v2807 = vrot.slane %v2678, 1
        %v2808 = vsel %vm1433, %v2804, %v2807
        %v2809 = vrot.slane %v2679, 1
        %v2810 = vrot.slane %v2680, 1
        %v2811 = vrot.slane %v2681, 1
        %v2812 = vsel %vm1433, %v2809, %v2811
        %v2813 = vrot.slane %v2682, 1
        %v2814 = vsel %vm1433, %v2810, %v2813
        %v2815 = vrot.slane %v2683, 1
        %v2816 = vrot.slane %v2684, 1
        %v2817 = vrot.slane %v2685, 1
        %v2818 = vsel %vm1433, %v2815, %v2817
        %v2819 = vrot.slane %v2686, 1
        %v2820 = vsel %vm1433, %v2816, %v2819
        %v2821 = vrot.slane %v2687, 1
        %v2822 = vrot.slane %v2688, 1
        %v2823 = vrot.slane %v2689, 1
        %v2824 = vsel %vm1433, %v2821, %v2823
        %v2825 = vrot.slane %v2690, 1
        %v2826 = vsel %vm1433, %v2822, %v2825
        %v2827 = vrot.slane %v2691, 1
        %v2828 = vrot.slane %v2692, 1
        %v2829 = vrot.slane %v2693, 1
        %v2830 = vsel %vm1433, %v2827, %v2829
        %v2831 = vrot.slane %v2694, 1
        %v2832 = vsel %vm1433, %v2828, %v2831
        %v2833 = vrot.slane %v2695, 1
        %v2834 = vrot.slane %v2696, 1
        %v2835 = vrot.slane %v2697, 1
        %v2836 = vsel %vm1433, %v2833, %v2835
        %v2837 = vrot.slane %v2698, 1
        %v2838 = vsel %vm1433, %v2834, %v2837
        %v2839 = vrot.slane %v2699, 1
        %v2840 = vrot.slane %v2700, 1
        %v2841 = vrot.slane %v2701, 1
        %v2842 = vsel %vm1433, %v2839, %v2841
        %v2843 = vrot.slane %v2702, 1
        %v2844 = vsel %vm1433, %v2840, %v2843
        %v2845 = vrot.slane %v2703, 1
        %v2846 = vrot.slane %v2704, 1
        %v2847 = vrot.slane %v2705, 1
        %v2848 = vsel %vm1433, %v2845, %v2847
        %v2849 = vrot.slane %v2706, 1
        %v2850 = vsel %vm1433, %v2846, %v2849
        %v2851 = vrot.slane %v2707, 1
        %v2852 = vrot.slane %v2708, 1
        %v2853 = vrot.slane %v2709, 1
        %v2854 = vsel %vm1433, %v2851, %v2853
        %v2855 = vrot.slane %v2710, 1
        %v2856 = vsel %vm1433, %v2852, %v2855
        %v2857 = vrot.slane %v2711, 1
        %v2858 = vrot.slane %v2712, 1
        %v2859 = vrot.slane %v2713, 1
        %v2860 = vsel %vm1433, %v2857, %v2859
        %v2861 = vrot.slane %v2714, 1
        %v2862 = vsel %vm1433, %v2858, %v2861
        %v2863 = vrot.slane %v2715, 1
        %v2864 = vrot.slane %v2716, 1
        %v2865 = vrot.slane %v2717, 1
        %v2866 = vsel %vm1433, %v2863, %v2865
        %v2867 = vrot.slane %v2718, 1
        %v2868 = vsel %vm1433, %v2864, %v2867
        %v2869 = vrot.slane %v2719, 1
        %v2870 = vrot.slane %v2720, 1
        %v2871 = vrot.slane %v2721, 1
        %v2872 = vsel %vm1433, %v2869, %v2871
        %v2873 = vrot.slane %v2722, 1
        %v2874 = vsel %vm1433, %v2870, %v2873
        %v2875 = vrot.slane %v2723, 1
        %v2876 = vrot.slane %v2724, 1
        %v2877 = vrot.slane %v2725, 1
        %v2878 = vsel %vm1433, %v2875, %v2877
        %v2879 = vrot.slane %v2726, 1
        %v2880 = vsel %vm1433, %v2876, %v2879
        %v2881 = vrot.slane %v2727, 1
        %v2882 = vrot.slane %v2728, 1
        %v2883 = vrot.slane %v2729, 1
        %v2884 = vsel %vm1433, %v2881, %v2883
        %v2885 = vrot.slane %v2730, 1
        %v2886 = vsel %vm1433, %v2882, %v2885
        %v2887 = vrot.slane %v2731, 1
        %v2888 = vrot.slane %v2732, 1
        %v2889 = vrot.slane %v2733, 1
        %v2890 = vsel %vm1433, %v2887, %v2889
        %v2891 = vrot.slane %v2734, 1
        %v2892 = vsel %vm1433, %v2888, %v2891
        %v2893 = vrot.slane %v2735, 1
        %v2894 = vrot.slane %v2736, 1
        %v2895 = vrot.slane %v2737, 1
        %v2896 = vsel %vm1433, %v2893, %v2895
        %v2897 = vrot.slane %v2738, 1
        %v2898 = vsel %vm1433, %v2894, %v2897
        %v2995 = vadd.f32 %v2539, %v2803
        %v2996 = vadd.f32 %v2540, %v2804
        %v2997 = vadd.f32 %v2541, %v2806
        %v2998 = vadd.f32 %v2542, %v2808
        %v2999 = vadd.f32 %v2543, %v2805
        %v3000 = vadd.f32 %v2544, %v2807
        %v3001 = vadd.f32 %v2545, %v2809
        %v3002 = vadd.f32 %v2546, %v2810
        %v3003 = vadd.f32 %v2547, %v2812
        %v3004 = vadd.f32 %v2548, %v2814
        %v3005 = vadd.f32 %v2549, %v2811
        %v3006 = vadd.f32 %v2550, %v2813
        %v3007 = vadd.f32 %v2551, %v2815
        %v3008 = vadd.f32 %v2552, %v2816
        %v3009 = vadd.f32 %v2553, %v2818
        %v3010 = vadd.f32 %v2554, %v2820
        %v3011 = vadd.f32 %v2555, %v2817
        %v3012 = vadd.f32 %v2556, %v2819
        %v3013 = vadd.f32 %v2557, %v2821
        %v3014 = vadd.f32 %v2558, %v2822
        %v3015 = vadd.f32 %v2559, %v2824
        %v3016 = vadd.f32 %v2560, %v2826
        %v3017 = vadd.f32 %v2561, %v2823
        %v3018 = vadd.f32 %v2562, %v2825
        %v3019 = vadd.f32 %v2563, %v2827
        %v3020 = vadd.f32 %v2564, %v2828
        %v3021 = vadd.f32 %v2565, %v2830
        %v3022 = vadd.f32 %v2566, %v2832
        %v3023 = vadd.f32 %v2567, %v2829
        %v3024 = vadd.f32 %v2568, %v2831
        %v3025 = vadd.f32 %v2569, %v2833
        %v3026 = vadd.f32 %v2570, %v2834
        %v3027 = vadd.f32 %v2571, %v2836
        %v3028 = vadd.f32 %v2572, %v2838
        %v3029 = vadd.f32 %v2573, %v2835
        %v3030 = vadd.f32 %v2574, %v2837
        %v3031 = vadd.f32 %v2575, %v2839
        %v3032 = vadd.f32 %v2576, %v2840
        %v3033 = vadd.f32 %v2577, %v2842
        %v3034 = vadd.f32 %v2578, %v2844
        %v3035 = vadd.f32 %v2579, %v2841
        %v3036 = vadd.f32 %v2580, %v2843
        %v3037 = vadd.f32 %v2581, %v2845
        %v3038 = vadd.f32 %v2582, %v2846
        %v3039 = vadd.f32 %v2583, %v2848
        %v3040 = vadd.f32 %v2584, %v2850
        %v3041 = vadd.f32 %v2585, %v2847
        %v3042 = vadd.f32 %v2586, %v2849
        %v3043 = vadd.f32 %v2587, %v2851
        %v3044 = vadd.f32 %v2588, %v2852
        %v3045 = vadd.f32 %v2589, %v2854
        %v3046 = vadd.f32 %v2590, %v2856
        %v3047 = vadd.f32 %v2591, %v2853
        %v3048 = vadd.f32 %v2592, %v2855
        %v3049 = vadd.f32 %v2593, %v2857
        %v3050 = vadd.f32 %v2594, %v2858
        %v3051 = vadd.f32 %v2595, %v2860
        %v3052 = vadd.f32 %v2596, %v2862
        %v3053 = vadd.f32 %v2597, %v2859
        %v3054 = vadd.f32 %v2598, %v2861
        %v3055 = vadd.f32 %v2599, %v2863
        %v3056 = vadd.f32 %v2600, %v2864
        %v3057 = vadd.f32 %v2601, %v2866
        %v3058 = vadd.f32 %v2602, %v2868
        %v3059 = vadd.f32 %v2603, %v2865
        %v3060 = vadd.f32 %v2604, %v2867
        %v3061 = vadd.f32 %v2605, %v2869
        %v3062 = vadd.f32 %v2606, %v2870
        %v3063 = vadd.f32 %v2607, %v2872
        %v3064 = vadd.f32 %v2608, %v2874
        %v3065 = vadd.f32 %v2609, %v2871
        %v3066 = vadd.f32 %v2610, %v2873
        %v3067 = vadd.f32 %v2611, %v2875
        %v3068 = vadd.f32 %v2612, %v2876
        %v3069 = vadd.f32 %v2613, %v2878
        %v3070 = vadd.f32 %v2614, %v2880
        %v3071 = vadd.f32 %v2615, %v2877
        %v3072 = vadd.f32 %v2616, %v2879
        %v3073 = vadd.f32 %v2617, %v2881
        %v3074 = vadd.f32 %v2618, %v2882
        %v3075 = vadd.f32 %v2619, %v2884
        %v3076 = vadd.f32 %v2620, %v2886
        %v3077 = vadd.f32 %v2621, %v2883
        %v3078 = vadd.f32 %v2622, %v2885
        %v3079 = vadd.f32 %v2623, %v2887
        %v3080 = vadd.f32 %v2624, %v2888
        %v3081 = vadd.f32 %v2625, %v2890
        %v3082 = vadd.f32 %v2626, %v2892
        %v3083 = vadd.f32 %v2627, %v2889
        %v3084 = vadd.f32 %v2628, %v2891
        %v3085 = vadd.f32 %v2629, %v2893
        %v3086 = vadd.f32 %v2630, %v2894
        %v3087 = vadd.f32 %v2631, %v2896
        %v3088 = vadd.f32 %v2632, %v2898
        %v3089 = vadd.f32 %v2633, %v2895
        %v3090 = vadd.f32 %v2634, %v2897
        %v3091 = vld [vmem:[%s1000 + $0x10] sm:$0xfe]
        %v3092 = vld [vmem:[%s1000 + $0x18] sm:$0xfe]
        %v3093 = vld [vmem:[%s1000 + $0x30] sm:$0x1]
        %v3094 = vld [vmem:[%s1000 + $0x38] sm:$0x1]
        %v3095 = vld [vmem:[%s1000 + $0x50] sm:$0xfe]
        %v3096 = vld [vmem:[%s1000 + $0x58] sm:$0xfe]
        %v3097 = vld [vmem:[%s1000 + $0x70] sm:$0x1]
        %v3098 = vld [vmem:[%s1000 + $0x78] sm:$0x1]
        %v3099 = vld [vmem:[%s1000 + $0x90] sm:$0xfe]
        %v3100 = vld [vmem:[%s1000 + $0x98] sm:$0xfe]
        %v3101 = vld [vmem:[%s1000 + $0xb0] sm:$0x1]
        %v3102 = vld [vmem:[%s1000 + $0xb8] sm:$0x1]
        %v3103 = vld [vmem:[%s1000 + $0xd0] sm:$0xfe]
        %v3104 = vld [vmem:[%s1000 + $0xd8] sm:$0xfe]
        %v3105 = vld [vmem:[%s1000 + $0xf0] sm:$0x1]
        %v3106 = vld [vmem:[%s1000 + $0xf8] sm:$0x1]
        %v3107 = vld [vmem:[%s1000 + $0x110] sm:$0xfe]
        %v3108 = vld [vmem:[%s1000 + $0x118] sm:$0xfe]
        %v3109 = vld [vmem:[%s1000 + $0x130] sm:$0x1]
        %v3110 = vld [vmem:[%s1000 + $0x138] sm:$0x1]
        %v3111 = vld [vmem:[%s1000 + $0x150] sm:$0xfe]
        %v3112 = vld [vmem:[%s1000 + $0x158] sm:$0xfe]
        %v3113 = vld [vmem:[%s1000 + $0x170] sm:$0x1]
        %v3114 = vld [vmem:[%s1000 + $0x178] sm:$0x1]
        %v3115 = vld [vmem:[%s1000 + $0x190] sm:$0xfe]
        %v3116 = vld [vmem:[%s1000 + $0x198] sm:$0xfe]
        %v3117 = vld [vmem:[%s1000 + $0x1b0] sm:$0x1]
        %v3118 = vld [vmem:[%s1000 + $0x1b8] sm:$0x1]
        %v3119 = vld [vmem:[%s1000 + $0x1d0] sm:$0xfe]
        %v3120 = vld [vmem:[%s1000 + $0x1d8] sm:$0xfe]
        %v3121 = vld [vmem:[%s1000 + $0x1f0] sm:$0x1]
        %v3122 = vld [vmem:[%s1000 + $0x1f8] sm:$0x1]
        %v3123 = vld [vmem:[%s1000 + $0x210] sm:$0xfe]
        %v3124 = vld [vmem:[%s1000 + $0x218] sm:$0xfe]
        %v3125 = vld [vmem:[%s1000 + $0x230] sm:$0x1]
        %v3126 = vld [vmem:[%s1000 + $0x238] sm:$0x1]
        %v3127 = vld [vmem:[%s1000 + $0x250] sm:$0xfe]
        %v3128 = vld [vmem:[%s1000 + $0x258] sm:$0xfe]
        %v3129 = vld [vmem:[%s1000 + $0x270] sm:$0x1]
        %v3130 = vld [vmem:[%s1000 + $0x278] sm:$0x1]
        %v3131 = vld [vmem:[%s1000 + $0x290] sm:$0xfe]
        %v3132 = vld [vmem:[%s1000 + $0x298] sm:$0xfe]
        %v3133 = vld [vmem:[%s1000 + $0x2b0] sm:$0x1]
        %v3134 = vld [vmem:[%s1000 + $0x2b8] sm:$0x1]
        %v3135 = vld [vmem:[%s1000 + $0x2d0] sm:$0xfe]
        %v3136 = vld [vmem:[%s1000 + $0x2d8] sm:$0xfe]
        %v3137 = vld [vmem:[%s1000 + $0x2f0] sm:$0x1]
        %v3138 = vld [vmem:[%s1000 + $0x2f8] sm:$0x1]
        %v3139 = vld [vmem:[%s1000 + $0x310] sm:$0xfe]
        %v3140 = vld [vmem:[%s1000 + $0x318] sm:$0xfe]
        %v3141 = vld [vmem:[%s1000 + $0x330] sm:$0x1]
        %v3142 = vld [vmem:[%s1000 + $0x338] sm:$0x1]
        %v3143 = vld [vmem:[%s1000 + $0x350] sm:$0xfe]
        %v3144 = vld [vmem:[%s1000 + $0x358] sm:$0xfe]
        %v3145 = vld [vmem:[%s1000 + $0x370] sm:$0x1]
        %v3146 = vld [vmem:[%s1000 + $0x378] sm:$0x1]
        %v3147 = vld [vmem:[%s1000 + $0x390] sm:$0xfe]
        %v3148 = vld [vmem:[%s1000 + $0x398] sm:$0xfe]
        %v3149 = vld [vmem:[%s1000 + $0x3b0] sm:$0x1]
        %v3150 = vld [vmem:[%s1000 + $0x3b8] sm:$0x1]
        %v3151 = vld [vmem:[%s1000 + $0x3d0] sm:$0xfe]
        %v3152 = vld [vmem:[%s1000 + $0x3d8] sm:$0xfe]
        %v3153 = vld [vmem:[%s1000 + $0x3f0] sm:$0x1]
        %v3154 = vld [vmem:[%s1000 + $0x3f8] sm:$0x1]
        %v3155 = vlaneseq
        %v3156 = vshrl.u32 %v3155, 7
        %v3157 = vsub.s32 5, %v3156
        %v3158 = vrot.slane %v342, %v3157
        %v3159 = vlaneseq
        %v3160 = vshrl.u32 %v3159, 7
        %v3161 = vsub.s32 5, %v3160
        %v3162 = vrot.slane %v343, %v3161
        %v3163 = vmul.f32 %v3091, %v3158
        %v3164 = vmul.f32 %v3092, %v3162
        %v3165 = vmul.f32 %v2635, %v3158
        %v3166 = vmul.f32 %v2636, %v3162
        %v3167 = vmul.f32 %v3093, %v3158
        %v3168 = vmul.f32 %v3094, %v3162
        %v3169 = vmul.f32 %v3095, %v3158
        %v3170 = vmul.f32 %v3096, %v3162
        %v3171 = vmul.f32 %v2637, %v3158
        %v3172 = vmul.f32 %v2638, %v3162
        %v3173 = vmul.f32 %v3097, %v3158
        %v3174 = vmul.f32 %v3098, %v3162
        %v3175 = vmul.f32 %v3099, %v3158
        %v3176 = vmul.f32 %v3100, %v3162
        %v3177 = vmul.f32 %v2639, %v3158
        %v3178 = vmul.f32 %v2640, %v3162
        %v3179 = vmul.f32 %v3101, %v3158
        %v3180 = vmul.f32 %v3102, %v3162
        %v3181 = vmul.f32 %v3103, %v3158
        %v3182 = vmul.f32 %v3104, %v3162
        %v3183 = vmul.f32 %v2641, %v3158
        %v3184 = vmul.f32 %v2642, %v3162
        %v3185 = vmul.f32 %v3105, %v3158
        %v3186 = vmul.f32 %v3106, %v3162
        %v3187 = vmul.f32 %v3107, %v3158
        %v3188 = vmul.f32 %v3108, %v3162
        %v3189 = vmul.f32 %v2643, %v3158
        %v3190 = vmul.f32 %v2644, %v3162
        %v3191 = vmul.f32 %v3109, %v3158
        %v3192 = vmul.f32 %v3110, %v3162
        %v3193 = vmul.f32 %v3111, %v3158
        %v3194 = vmul.f32 %v3112, %v3162
        %v3195 = vmul.f32 %v2645, %v3158
        %v3196 = vmul.f32 %v2646, %v3162
        %v3197 = vmul.f32 %v3113, %v3158
        %v3198 = vmul.f32 %v3114, %v3162
        %v3199 = vmul.f32 %v3115, %v3158
        %v3200 = vmul.f32 %v3116, %v3162
        %v3201 = vmul.f32 %v2647, %v3158
        %v3202 = vmul.f32 %v2648, %v3162
        %v3203 = vmul.f32 %v3117, %v3158
        %v3204 = vmul.f32 %v3118, %v3162
        %v3205 = vmul.f32 %v3119, %v3158
        %v3206 = vmul.f32 %v3120, %v3162
        %v3207 = vmul.f32 %v2649, %v3158
        %v3208 = vmul.f32 %v2650, %v3162
        %v3209 = vmul.f32 %v3121, %v3158
        %v3210 = vmul.f32 %v3122, %v3162
        %v3211 = vmul.f32 %v3123, %v3158
        %v3212 = vmul.f32 %v3124, %v3162
        %v3213 = vmul.f32 %v2651, %v3158
        %v3214 = vmul.f32 %v2652, %v3162
        %v3215 = vmul.f32 %v3125, %v3158
        %v3216 = vmul.f32 %v3126, %v3162
        %v3217 = vmul.f32 %v3127, %v3158
        %v3218 = vmul.f32 %v3128, %v3162
        %v3219 = vmul.f32 %v2653, %v3158
        %v3220 = vmul.f32 %v2654, %v3162
        %v3221 = vmul.f32 %v3129, %v3158
        %v3222 = vmul.f32 %v3130, %v3162
        %v3223 = vmul.f32 %v3131, %v3158
        %v3224 = vmul.f32 %v3132, %v3162
        %v3225 = vmul.f32 %v2655, %v3158
        %v3226 = vmul.f32 %v2656, %v3162
        %v3227 = vmul.f32 %v3133, %v3158
        %v3228 = vmul.f32 %v3134, %v3162
        %v3229 = vmul.f32 %v3135, %v3158
        %v3230 = vmul.f32 %v3136, %v3162
        %v3231 = vmul.f32 %v2657, %v3158
        %v3232 = vmul.f32 %v2658, %v3162
        %v3233 = vmul.f32 %v3137, %v3158
        %v3234 = vmul.f32 %v3138, %v3162
        %v3235 = vmul.f32 %v3139, %v3158
        %v3236 = vmul.f32 %v3140, %v3162
        %v3237 = vmul.f32 %v2659, %v3158
        %v3238 = vmul.f32 %v2660, %v3162
        %v3239 = vmul.f32 %v3141, %v3158
        %v3240 = vmul.f32 %v3142, %v3162
        %v3241 = vmul.f32 %v3143, %v3158
        %v3242 = vmul.f32 %v3144, %v3162
        %v3243 = vmul.f32 %v2661, %v3158
        %v3244 = vmul.f32 %v2662, %v3162
        %v3245 = vmul.f32 %v3145, %v3158
        %v3246 = vmul.f32 %v3146, %v3162
        %v3247 = vmul.f32 %v3147, %v3158
        %v3248 = vmul.f32 %v3148, %v3162
        %v3249 = vmul.f32 %v2663, %v3158
        %v3250 = vmul.f32 %v2664, %v3162
        %v3251 = vmul.f32 %v3149, %v3158
        %v3252 = vmul.f32 %v3150, %v3162
        %v3253 = vmul.f32 %v3151, %v3158
        %v3254 = vmul.f32 %v3152, %v3162
        %v3255 = vmul.f32 %v2665, %v3158
        %v3256 = vmul.f32 %v2666, %v3162
        %v3257 = vmul.f32 %v3153, %v3158
        %v3258 = vmul.f32 %v3154, %v3162
        %v3355 = vrot.slane %v3163, 2
        %v3356 = vrot.slane %v3164, 2
        %v3357 = vrot.slane %v3165, 2
        %v3358 = vsel %vm1986, %v3355, %v3357
        %v3359 = vrot.slane %v3166, 2
        %v3360 = vsel %vm1986, %v3356, %v3359
        %v3361 = vrot.slane %v3167, 2
        %v3362 = vsel %vm1986, %v3357, %v3361
        %v3363 = vrot.slane %v3168, 2
        %v3364 = vsel %vm1986, %v3359, %v3363
        %v3365 = vrot.slane %v3169, 2
        %v3366 = vrot.slane %v3170, 2
        %v3367 = vrot.slane %v3171, 2
        %v3368 = vsel %vm1986, %v3365, %v3367
        %v3369 = vrot.slane %v3172, 2
        %v3370 = vsel %vm1986, %v3366, %v3369
        %v3371 = vrot.slane %v3173, 2
        %v3372 = vsel %vm1986, %v3367, %v3371
        %v3373 = vrot.slane %v3174, 2
        %v3374 = vsel %vm1986, %v3369, %v3373
        %v3375 = vrot.slane %v3175, 2
        %v3376 = vrot.slane %v3176, 2
        %v3377 = vrot.slane %v3177, 2
        %v3378 = vsel %vm1986, %v3375, %v3377
        %v3379 = vrot.slane %v3178, 2
        %v3380 = vsel %vm1986, %v3376, %v3379
        %v3381 = vrot.slane %v3179, 2
        %v3382 = vsel %vm1986, %v3377, %v3381
        %v3383 = vrot.slane %v3180, 2
        %v3384 = vsel %vm1986, %v3379, %v3383
        %v3385 = vrot.slane %v3181, 2
        %v3386 = vrot.slane %v3182, 2
        %v3387 = vrot.slane %v3183, 2
        %v3388 = vsel %vm1986, %v3385, %v3387
        %v3389 = vrot.slane %v3184, 2
        %v3390 = vsel %vm1986, %v3386, %v3389
        %v3391 = vrot.slane %v3185, 2
        %v3392 = vsel %vm1986, %v3387, %v3391
        %v3393 = vrot.slane %v3186, 2
        %v3394 = vsel %vm1986, %v3389, %v3393
        %v3395 = vrot.slane %v3187, 2
        %v3396 = vrot.slane %v3188, 2
        %v3397 = vrot.slane %v3189, 2
        %v3398 = vsel %vm1986, %v3395, %v3397
        %v3399 = vrot.slane %v3190, 2
        %v3400 = vsel %vm1986, %v3396, %v3399
        %v3401 = vrot.slane %v3191, 2
        %v3402 = vsel %vm1986, %v3397, %v3401
        %v3403 = vrot.slane %v3192, 2
        %v3404 = vsel %vm1986, %v3399, %v3403
        %v3405 = vrot.slane %v3193, 2
        %v3406 = vrot.slane %v3194, 2
        %v3407 = vrot.slane %v3195, 2
        %v3408 = vsel %vm1986, %v3405, %v3407
        %v3409 = vrot.slane %v3196, 2
        %v3410 = vsel %vm1986, %v3406, %v3409
        %v3411 = vrot.slane %v3197, 2
        %v3412 = vsel %vm1986, %v3407, %v3411
        %v3413 = vrot.slane %v3198, 2
        %v3414 = vsel %vm1986, %v3409, %v3413
        %v3415 = vrot.slane %v3199, 2
        %v3416 = vrot.slane %v3200, 2
        %v3417 = vrot.slane %v3201, 2
        %v3418 = vsel %vm1986, %v3415, %v3417
        %v3419 = vrot.slane %v3202, 2
        %v3420 = vsel %vm1986, %v3416, %v3419
        %v3421 = vrot.slane %v3203, 2
        %v3422 = vsel %vm1986, %v3417, %v3421
        %v3423 = vrot.slane %v3204, 2
        %v3424 = vsel %vm1986, %v3419, %v3423
        %v3425 = vrot.slane %v3205, 2
        %v3426 = vrot.slane %v3206, 2
        %v3427 = vrot.slane %v3207, 2
        %v3428 = vsel %vm1986, %v3425, %v3427
        %v3429 = vrot.slane %v3208, 2
        %v3430 = vsel %vm1986, %v3426, %v3429
        %v3431 = vrot.slane %v3209, 2
        %v3432 = vsel %vm1986, %v3427, %v3431
        %v3433 = vrot.slane %v3210, 2
        %v3434 = vsel %vm1986, %v3429, %v3433
        %v3435 = vrot.slane %v3211, 2
        %v3436 = vrot.slane %v3212, 2
        %v3437 = vrot.slane %v3213, 2
        %v3438 = vsel %vm1986, %v3435, %v3437
        %v3439 = vrot.slane %v3214, 2
        %v3440 = vsel %vm1986, %v3436, %v3439
        %v3441 = vrot.slane %v3215, 2
        %v3442 = vsel %vm1986, %v3437, %v3441
        %v3443 = vrot.slane %v3216, 2
        %v3444 = vsel %vm1986, %v3439, %v3443
        %v3445 = vrot.slane %v3217, 2
        %v3446 = vrot.slane %v3218, 2
        %v3447 = vrot.slane %v3219, 2
        %v3448 = vsel %vm1986, %v3445, %v3447
        %v3449 = vrot.slane %v3220, 2
        %v3450 = vsel %vm1986, %v3446, %v3449
        %v3451 = vrot.slane %v3221, 2
        %v3452 = vsel %vm1986, %v3447, %v3451
        %v3453 = vrot.slane %v3222, 2
        %v3454 = vsel %vm1986, %v3449, %v3453
        %v3455 = vrot.slane %v3223, 2
        %v3456 = vrot.slane %v3224, 2
        %v3457 = vrot.slane %v3225, 2
        %v3458 = vsel %vm1986, %v3455, %v3457
        %v3459 = vrot.slane %v3226, 2
        %v3460 = vsel %vm1986, %v3456, %v3459
        %v3461 = vrot.slane %v3227, 2
        %v3462 = vsel %vm1986, %v3457, %v3461
        %v3463 = vrot.slane %v3228, 2
        %v3464 = vsel %vm1986, %v3459, %v3463
        %v3465 = vrot.slane %v3229, 2
        %v3466 = vrot.slane %v3230, 2
        %v3467 = vrot.slane %v3231, 2
        %v3468 = vsel %vm1986, %v3465, %v3467
        %v3469 = vrot.slane %v3232, 2
        %v3470 = vsel %vm1986, %v3466, %v3469
        %v3471 = vrot.slane %v3233, 2
        %v3472 = vsel %vm1986, %v3467, %v3471
        %v3473 = vrot.slane %v3234, 2
        %v3474 = vsel %vm1986, %v3469, %v3473
        %v3475 = vrot.slane %v3235, 2
        %v3476 = vrot.slane %v3236, 2
        %v3477 = vrot.slane %v3237, 2
        %v3478 = vsel %vm1986, %v3475, %v3477
        %v3479 = vrot.slane %v3238, 2
        %v3480 = vsel %vm1986, %v3476, %v3479
        %v3481 = vrot.slane %v3239, 2
        %v3482 = vsel %vm1986, %v3477, %v3481
        %v3483 = vrot.slane %v3240, 2
        %v3484 = vsel %vm1986, %v3479, %v3483
        %v3485 = vrot.slane %v3241, 2
        %v3486 = vrot.slane %v3242, 2
        %v3487 = vrot.slane %v3243, 2
        %v3488 = vsel %vm1986, %v3485, %v3487
        %v3489 = vrot.slane %v3244, 2
        %v3490 = vsel %vm1986, %v3486, %v3489
        %v3491 = vrot.slane %v3245, 2
        %v3492 = vsel %vm1986, %v3487, %v3491
        %v3493 = vrot.slane %v3246, 2
        %v3494 = vsel %vm1986, %v3489, %v3493
        %v3495 = vrot.slane %v3247, 2
        %v3496 = vrot.slane %v3248, 2
        %v3497 = vrot.slane %v3249, 2
        %v3498 = vsel %vm1986, %v3495, %v3497
        %v3499 = vrot.slane %v3250, 2
        %v3500 = vsel %vm1986, %v3496, %v3499
        %v3501 = vrot.slane %v3251, 2
        %v3502 = vsel %vm1986, %v3497, %v3501
        %v3503 = vrot.slane %v3252, 2
        %v3504 = vsel %vm1986, %v3499, %v3503
        %v3505 = vrot.slane %v3253, 2
        %v3506 = vrot.slane %v3254, 2
        %v3507 = vrot.slane %v3255, 2
        %v3508 = vsel %vm1986, %v3505, %v3507
        %v3509 = vrot.slane %v3256, 2
        %v3510 = vsel %vm1986, %v3506, %v3509
        %v3511 = vrot.slane %v3257, 2
        %v3512 = vsel %vm1986, %v3507, %v3511
        %v3513 = vrot.slane %v3258, 2
        %v3514 = vsel %vm1986, %v3509, %v3513
        %v3611 = vadd.f32 %v2995, %v3355
        %v3612 = vadd.f32 %v2996, %v3356
        %v3613 = vadd.f32 %v2997, %v3358
        %v3614 = vadd.f32 %v2998, %v3360
        %v3615 = vadd.f32 %v2999, %v3362
        %v3616 = vadd.f32 %v3000, %v3364
        %v3617 = vadd.f32 %v3001, %v3365
        %v3618 = vadd.f32 %v3002, %v3366
        %v3619 = vadd.f32 %v3003, %v3368
        %v3620 = vadd.f32 %v3004, %v3370
        %v3621 = vadd.f32 %v3005, %v3372
        %v3622 = vadd.f32 %v3006, %v3374
        %v3623 = vadd.f32 %v3007, %v3375
        %v3624 = vadd.f32 %v3008, %v3376
        %v3625 = vadd.f32 %v3009, %v3378
        %v3626 = vadd.f32 %v3010, %v3380
        %v3627 = vadd.f32 %v3011, %v3382
        %v3628 = vadd.f32 %v3012, %v3384
        %v3629 = vadd.f32 %v3013, %v3385
        %v3630 = vadd.f32 %v3014, %v3386
        %v3631 = vadd.f32 %v3015, %v3388
        %v3632 = vadd.f32 %v3016, %v3390
        %v3633 = vadd.f32 %v3017, %v3392
        %v3634 = vadd.f32 %v3018, %v3394
        %v3635 = vadd.f32 %v3019, %v3395
        %v3636 = vadd.f32 %v3020, %v3396
        %v3637 = vadd.f32 %v3021, %v3398
        %v3638 = vadd.f32 %v3022, %v3400
        %v3639 = vadd.f32 %v3023, %v3402
        %v3640 = vadd.f32 %v3024, %v3404
        %v3641 = vadd.f32 %v3025, %v3405
        %v3642 = vadd.f32 %v3026, %v3406
        %v3643 = vadd.f32 %v3027, %v3408
        %v3644 = vadd.f32 %v3028, %v3410
        %v3645 = vadd.f32 %v3029, %v3412
        %v3646 = vadd.f32 %v3030, %v3414
        %v3647 = vadd.f32 %v3031, %v3415
        %v3648 = vadd.f32 %v3032, %v3416
        %v3649 = vadd.f32 %v3033, %v3418
        %v3650 = vadd.f32 %v3034, %v3420
        %v3651 = vadd.f32 %v3035, %v3422
        %v3652 = vadd.f32 %v3036, %v3424
        %v3653 = vadd.f32 %v3037, %v3425
        %v3654 = vadd.f32 %v3038, %v3426
        %v3655 = vadd.f32 %v3039, %v3428
        %v3656 = vadd.f32 %v3040, %v3430
        %v3657 = vadd.f32 %v3041, %v3432
        %v3658 = vadd.f32 %v3042, %v3434
        %v3659 = vadd.f32 %v3043, %v3435
        %v3660 = vadd.f32 %v3044, %v3436
        %v3661 = vadd.f32 %v3045, %v3438
        %v3662 = vadd.f32 %v3046, %v3440
        %v3663 = vadd.f32 %v3047, %v3442
        %v3664 = vadd.f32 %v3048, %v3444
        %v3665 = vadd.f32 %v3049, %v3445
        %v3666 = vadd.f32 %v3050, %v3446
        %v3667 = vadd.f32 %v3051, %v3448
        %v3668 = vadd.f32 %v3052, %v3450
        %v3669 = vadd.f32 %v3053, %v3452
        %v3670 = vadd.f32 %v3054, %v3454
        %v3671 = vadd.f32 %v3055, %v3455
        %v3672 = vadd.f32 %v3056, %v3456
        %v3673 = vadd.f32 %v3057, %v3458
        %v3674 = vadd.f32 %v3058, %v3460
        %v3675 = vadd.f32 %v3059, %v3462
        %v3676 = vadd.f32 %v3060, %v3464
        %v3677 = vadd.f32 %v3061, %v3465
        %v3678 = vadd.f32 %v3062, %v3466
        %v3679 = vadd.f32 %v3063, %v3468
        %v3680 = vadd.f32 %v3064, %v3470
        %v3681 = vadd.f32 %v3065, %v3472
        %v3682 = vadd.f32 %v3066, %v3474
        %v3683 = vadd.f32 %v3067, %v3475
        %v3684 = vadd.f32 %v3068, %v3476
        %v3685 = vadd.f32 %v3069, %v3478
        %v3686 = vadd.f32 %v3070, %v3480
        %v3687 = vadd.f32 %v3071, %v3482
        %v3688 = vadd.f32 %v3072, %v3484
        %v3689 = vadd.f32 %v3073, %v3485
        %v3690 = vadd.f32 %v3074, %v3486
        %v3691 = vadd.f32 %v3075, %v3488
        %v3692 = vadd.f32 %v3076, %v3490
        %v3693 = vadd.f32 %v3077, %v3492
        %v3694 = vadd.f32 %v3078, %v3494
        %v3695 = vadd.f32 %v3079, %v3495
        %v3696 = vadd.f32 %v3080, %v3496
        %v3697 = vadd.f32 %v3081, %v3498
        %v3698 = vadd.f32 %v3082, %v3500
        %v3699 = vadd.f32 %v3083, %v3502
        %v3700 = vadd.f32 %v3084, %v3504
        %v3701 = vadd.f32 %v3085, %v3505
        %v3702 = vadd.f32 %v3086, %v3506
        %v3703 = vadd.f32 %v3087, %v3508
        %v3704 = vadd.f32 %v3088, %v3510
        %v3705 = vadd.f32 %v3089, %v3512
        %v3706 = vadd.f32 %v3090, %v3514
        %s3707 = scalar_lea.vmem [#allocation2], 128
        %v3708 = vld [vmem:[%s3707] sm:$0x80]
        %v3709 = vld [vmem:[%s3707 + $0x8] sm:$0x80]
        %v3710 = vld [vmem:[%s3707 + $0x10] sm:$0xff]
        %v3711 = vld [vmem:[%s3707 + $0x18] sm:$0xff]
        %v3712 = vld [vmem:[%s3707 + $0x20] sm:$0x7f]
        %v3713 = vld [vmem:[%s3707 + $0x28] sm:$0x7f]
        %v3714 = vld [vmem:[%s3707 + $0x40] sm:$0x80]
        %v3715 = vld [vmem:[%s3707 + $0x48] sm:$0x80]
        %v3716 = vld [vmem:[%s3707 + $0x50] sm:$0xff]
        %v3717 = vld [vmem:[%s3707 + $0x58] sm:$0xff]
        %v3718 = vld [vmem:[%s3707 + $0x60] sm:$0x7f]
        %v3719 = vld [vmem:[%s3707 + $0x68] sm:$0x7f]
        %v3720 = vld [vmem:[%s3707 + $0x80] sm:$0x80]
        %v3721 = vld [vmem:[%s3707 + $0x88] sm:$0x80]
        %v3722 = vld [vmem:[%s3707 + $0x90] sm:$0xff]
        %v3723 = vld [vmem:[%s3707 + $0x98] sm:$0xff]
        %v3724 = vld [vmem:[%s3707 + $0xa0] sm:$0x7f]
        %v3725 = vld [vmem:[%s3707 + $0xa8] sm:$0x7f]
        %v3726 = vld [vmem:[%s3707 + $0xc0] sm:$0x80]
        %v3727 = vld [vmem:[%s3707 + $0xc8] sm:$0x80]
        %v3728 = vld [vmem:[%s3707 + $0xd0] sm:$0xff]
        %v3729 = vld [vmem:[%s3707 + $0xd8] sm:$0xff]
        %v3730 = vld [vmem:[%s3707 + $0xe0] sm:$0x7f]
        %v3731 = vld [vmem:[%s3707 + $0xe8] sm:$0x7f]
        %v3732 = vld [vmem:[%s3707 + $0x100] sm:$0x80]
        %v3733 = vld [vmem:[%s3707 + $0x108] sm:$0x80]
        %v3734 = vld [vmem:[%s3707 + $0x110] sm:$0xff]
        %v3735 = vld [vmem:[%s3707 + $0x118] sm:$0xff]
        %v3736 = vld [vmem:[%s3707 + $0x120] sm:$0x7f]
        %v3737 = vld [vmem:[%s3707 + $0x128] sm:$0x7f]
        %v3738 = vld [vmem:[%s3707 + $0x140] sm:$0x80]
        %v3739 = vld [vmem:[%s3707 + $0x148] sm:$0x80]
        %v3740 = vld [vmem:[%s3707 + $0x150] sm:$0xff]
        %v3741 = vld [vmem:[%s3707 + $0x158] sm:$0xff]
        %v3742 = vld [vmem:[%s3707 + $0x160] sm:$0x7f]
        %v3743 = vld [vmem:[%s3707 + $0x168] sm:$0x7f]
        %v3744 = vld [vmem:[%s3707 + $0x180] sm:$0x80]
        %v3745 = vld [vmem:[%s3707 + $0x188] sm:$0x80]
        %v3746 = vld [vmem:[%s3707 + $0x190] sm:$0xff]
        %v3747 = vld [vmem:[%s3707 + $0x198] sm:$0xff]
        %v3748 = vld [vmem:[%s3707 + $0x1a0] sm:$0x7f]
        %v3749 = vld [vmem:[%s3707 + $0x1a8] sm:$0x7f]
        %v3750 = vld [vmem:[%s3707 + $0x1c0] sm:$0x80]
        %v3751 = vld [vmem:[%s3707 + $0x1c8] sm:$0x80]
        %v3752 = vld [vmem:[%s3707 + $0x1d0] sm:$0xff]
        %v3753 = vld [vmem:[%s3707 + $0x1d8] sm:$0xff]
        %v3754 = vld [vmem:[%s3707 + $0x1e0] sm:$0x7f]
        %v3755 = vld [vmem:[%s3707 + $0x1e8] sm:$0x7f]
        %v3756 = vld [vmem:[%s3707 + $0x200] sm:$0x80]
        %v3757 = vld [vmem:[%s3707 + $0x208] sm:$0x80]
        %v3758 = vld [vmem:[%s3707 + $0x210] sm:$0xff]
        %v3759 = vld [vmem:[%s3707 + $0x218] sm:$0xff]
        %v3760 = vld [vmem:[%s3707 + $0x220] sm:$0x7f]
        %v3761 = vld [vmem:[%s3707 + $0x228] sm:$0x7f]
        %v3762 = vld [vmem:[%s3707 + $0x240] sm:$0x80]
        %v3763 = vld [vmem:[%s3707 + $0x248] sm:$0x80]
        %v3764 = vld [vmem:[%s3707 + $0x250] sm:$0xff]
        %v3765 = vld [vmem:[%s3707 + $0x258] sm:$0xff]
        %v3766 = vld [vmem:[%s3707 + $0x260] sm:$0x7f]
        %v3767 = vld [vmem:[%s3707 + $0x268] sm:$0x7f]
        %v3768 = vld [vmem:[%s3707 + $0x280] sm:$0x80]
        %v3769 = vld [vmem:[%s3707 + $0x288] sm:$0x80]
        %v3770 = vld [vmem:[%s3707 + $0x290] sm:$0xff]
        %v3771 = vld [vmem:[%s3707 + $0x298] sm:$0xff]
        %v3772 = vld [vmem:[%s3707 + $0x2a0] sm:$0x7f]
        %v3773 = vld [vmem:[%s3707 + $0x2a8] sm:$0x7f]
        %v3774 = vld [vmem:[%s3707 + $0x2c0] sm:$0x80]
        %v3775 = vld [vmem:[%s3707 + $0x2c8] sm:$0x80]
        %v3776 = vld [vmem:[%s3707 + $0x2d0] sm:$0xff]
        %v3777 = vld [vmem:[%s3707 + $0x2d8] sm:$0xff]
        %v3778 = vld [vmem:[%s3707 + $0x2e0] sm:$0x7f]
        %v3779 = vld [vmem:[%s3707 + $0x2e8] sm:$0x7f]
        %v3780 = vld [vmem:[%s3707 + $0x300] sm:$0x80]
        %v3781 = vld [vmem:[%s3707 + $0x308] sm:$0x80]
        %v3782 = vld [vmem:[%s3707 + $0x310] sm:$0xff]
        %v3783 = vld [vmem:[%s3707 + $0x318] sm:$0xff]
        %v3784 = vld [vmem:[%s3707 + $0x320] sm:$0x7f]
        %v3785 = vld [vmem:[%s3707 + $0x328] sm:$0x7f]
        %v3786 = vld [vmem:[%s3707 + $0x340] sm:$0x80]
        %v3787 = vld [vmem:[%s3707 + $0x348] sm:$0x80]
        %v3788 = vld [vmem:[%s3707 + $0x350] sm:$0xff]
        %v3789 = vld [vmem:[%s3707 + $0x358] sm:$0xff]
        %v3790 = vld [vmem:[%s3707 + $0x360] sm:$0x7f]
        %v3791 = vld [vmem:[%s3707 + $0x368] sm:$0x7f]
        %v3792 = vld [vmem:[%s3707 + $0x380] sm:$0x80]
        %v3793 = vld [vmem:[%s3707 + $0x388] sm:$0x80]
        %v3794 = vld [vmem:[%s3707 + $0x390] sm:$0xff]
        %v3795 = vld [vmem:[%s3707 + $0x398] sm:$0xff]
        %v3796 = vld [vmem:[%s3707 + $0x3a0] sm:$0x7f]
        %v3797 = vld [vmem:[%s3707 + $0x3a8] sm:$0x7f]
        %v3798 = vld [vmem:[%s3707 + $0x3c0] sm:$0x80]
        %v3799 = vld [vmem:[%s3707 + $0x3c8] sm:$0x80]
        %v3800 = vld [vmem:[%s3707 + $0x3d0] sm:$0xff]
        %v3801 = vld [vmem:[%s3707 + $0x3d8] sm:$0xff]
        %v3802 = vld [vmem:[%s3707 + $0x3e0] sm:$0x7f]
        %v3803 = vld [vmem:[%s3707 + $0x3e8] sm:$0x7f]
        %v3804 = vlaneseq
        %v3805 = vshrl.u32 %v3804, 7
        %v3806 = vsub.s32 6, %v3805
        %v3807 = vrot.slane %v342, %v3806
        %v3808 = vlaneseq
        %v3809 = vshrl.u32 %v3808, 7
        %v3810 = vsub.s32 6, %v3809
        %v3811 = vrot.slane %v343, %v3810
        %v3812 = vmul.f32 %v3708, %v3807
        %v3813 = vmul.f32 %v3709, %v3811
        %v3814 = vmul.f32 %v3710, %v3807
        %v3815 = vmul.f32 %v3711, %v3811
        %v3816 = vmul.f32 %v3712, %v3807
        %v3817 = vmul.f32 %v3713, %v3811
        %v3818 = vmul.f32 %v3714, %v3807
        %v3819 = vmul.f32 %v3715, %v3811
        %v3820 = vmul.f32 %v3716, %v3807
        %v3821 = vmul.f32 %v3717, %v3811
        %v3822 = vmul.f32 %v3718, %v3807
        %v3823 = vmul.f32 %v3719, %v3811
        %v3824 = vmul.f32 %v3720, %v3807
        %v3825 = vmul.f32 %v3721, %v3811
        %v3826 = vmul.f32 %v3722, %v3807
        %v3827 = vmul.f32 %v3723, %v3811
        %v3828 = vmul.f32 %v3724, %v3807
        %v3829 = vmul.f32 %v3725, %v3811
        %v3830 = vmul.f32 %v3726, %v3807
        %v3831 = vmul.f32 %v3727, %v3811
        %v3832 = vmul.f32 %v3728, %v3807
        %v3833 = vmul.f32 %v3729, %v3811
        %v3834 = vmul.f32 %v3730, %v3807
        %v3835 = vmul.f32 %v3731, %v3811
        %v3836 = vmul.f32 %v3732, %v3807
        %v3837 = vmul.f32 %v3733, %v3811
        %v3838 = vmul.f32 %v3734, %v3807
        %v3839 = vmul.f32 %v3735, %v3811
        %v3840 = vmul.f32 %v3736, %v3807
        %v3841 = vmul.f32 %v3737, %v3811
        %v3842 = vmul.f32 %v3738, %v3807
        %v3843 = vmul.f32 %v3739, %v3811
        %v3844 = vmul.f32 %v3740, %v3807
        %v3845 = vmul.f32 %v3741, %v3811
        %v3846 = vmul.f32 %v3742, %v3807
        %v3847 = vmul.f32 %v3743, %v3811
        %v3848 = vmul.f32 %v3744, %v3807
        %v3849 = vmul.f32 %v3745, %v3811
        %v3850 = vmul.f32 %v3746, %v3807
        %v3851 = vmul.f32 %v3747, %v3811
        %v3852 = vmul.f32 %v3748, %v3807
        %v3853 = vmul.f32 %v3749, %v3811
        %v3854 = vmul.f32 %v3750, %v3807
        %v3855 = vmul.f32 %v3751, %v3811
        %v3856 = vmul.f32 %v3752, %v3807
        %v3857 = vmul.f32 %v3753, %v3811
        %v3858 = vmul.f32 %v3754, %v3807
        %v3859 = vmul.f32 %v3755, %v3811
        %v3860 = vmul.f32 %v3756, %v3807
        %v3861 = vmul.f32 %v3757, %v3811
        %v3862 = vmul.f32 %v3758, %v3807
        %v3863 = vmul.f32 %v3759, %v3811
        %v3864 = vmul.f32 %v3760, %v3807
        %v3865 = vmul.f32 %v3761, %v3811
        %v3866 = vmul.f32 %v3762, %v3807
        %v3867 = vmul.f32 %v3763, %v3811
        %v3868 = vmul.f32 %v3764, %v3807
        %v3869 = vmul.f32 %v3765, %v3811
        %v3870 = vmul.f32 %v3766, %v3807
        %v3871 = vmul.f32 %v3767, %v3811
        %v3872 = vmul.f32 %v3768, %v3807
        %v3873 = vmul.f32 %v3769, %v3811
        %v3874 = vmul.f32 %v3770, %v3807
        %v3875 = vmul.f32 %v3771, %v3811
        %v3876 = vmul.f32 %v3772, %v3807
        %v3877 = vmul.f32 %v3773, %v3811
        %v3878 = vmul.f32 %v3774, %v3807
        %v3879 = vmul.f32 %v3775, %v3811
        %v3880 = vmul.f32 %v3776, %v3807
        %v3881 = vmul.f32 %v3777, %v3811
        %v3882 = vmul.f32 %v3778, %v3807
        %v3883 = vmul.f32 %v3779, %v3811
        %v3884 = vmul.f32 %v3780, %v3807
        %v3885 = vmul.f32 %v3781, %v3811
        %v3886 = vmul.f32 %v3782, %v3807
        %v3887 = vmul.f32 %v3783, %v3811
        %v3888 = vmul.f32 %v3784, %v3807
        %v3889 = vmul.f32 %v3785, %v3811
        %v3890 = vmul.f32 %v3786, %v3807
        %v3891 = vmul.f32 %v3787, %v3811
        %v3892 = vmul.f32 %v3788, %v3807
        %v3893 = vmul.f32 %v3789, %v3811
        %v3894 = vmul.f32 %v3790, %v3807
        %v3895 = vmul.f32 %v3791, %v3811
        %v3896 = vmul.f32 %v3792, %v3807
        %v3897 = vmul.f32 %v3793, %v3811
        %v3898 = vmul.f32 %v3794, %v3807
        %v3899 = vmul.f32 %v3795, %v3811
        %v3900 = vmul.f32 %v3796, %v3807
        %v3901 = vmul.f32 %v3797, %v3811
        %v3902 = vmul.f32 %v3798, %v3807
        %v3903 = vmul.f32 %v3799, %v3811
        %v3904 = vmul.f32 %v3800, %v3807
        %v3905 = vmul.f32 %v3801, %v3811
        %v3906 = vmul.f32 %v3802, %v3807
        %v3907 = vmul.f32 %v3803, %v3811
        %v3908 = vadd.f32 %v3611, %v3812
        %v3909 = vadd.f32 %v3612, %v3813
        %v3910 = vadd.f32 %v3613, %v3814
        %v3911 = vadd.f32 %v3614, %v3815
        %v3912 = vadd.f32 %v3615, %v3816
        %v3913 = vadd.f32 %v3616, %v3817
        %v3914 = vadd.f32 %v3617, %v3818
        %v3915 = vadd.f32 %v3618, %v3819
        %v3916 = vadd.f32 %v3619, %v3820
        %v3917 = vadd.f32 %v3620, %v3821
        %v3918 = vadd.f32 %v3621, %v3822
        %v3919 = vadd.f32 %v3622, %v3823
        %v3920 = vadd.f32 %v3623, %v3824
        %v3921 = vadd.f32 %v3624, %v3825
        %v3922 = vadd.f32 %v3625, %v3826
        %v3923 = vadd.f32 %v3626, %v3827
        %v3924 = vadd.f32 %v3627, %v3828
        %v3925 = vadd.f32 %v3628, %v3829
        %v3926 = vadd.f32 %v3629, %v3830
        %v3927 = vadd.f32 %v3630, %v3831
        %v3928 = vadd.f32 %v3631, %v3832
        %v3929 = vadd.f32 %v3632, %v3833
        %v3930 = vadd.f32 %v3633, %v3834
        %v3931 = vadd.f32 %v3634, %v3835
        %v3932 = vadd.f32 %v3635, %v3836
        %v3933 = vadd.f32 %v3636, %v3837
        %v3934 = vadd.f32 %v3637, %v3838
        %v3935 = vadd.f32 %v3638, %v3839
        %v3936 = vadd.f32 %v3639, %v3840
        %v3937 = vadd.f32 %v3640, %v3841
        %v3938 = vadd.f32 %v3641, %v3842
        %v3939 = vadd.f32 %v3642, %v3843
        %v3940 = vadd.f32 %v3643, %v3844
        %v3941 = vadd.f32 %v3644, %v3845
        %v3942 = vadd.f32 %v3645, %v3846
        %v3943 = vadd.f32 %v3646, %v3847
        %v3944 = vadd.f32 %v3647, %v3848
        %v3945 = vadd.f32 %v3648, %v3849
        %v3946 = vadd.f32 %v3649, %v3850
        %v3947 = vadd.f32 %v3650, %v3851
        %v3948 = vadd.f32 %v3651, %v3852
        %v3949 = vadd.f32 %v3652, %v3853
        %v3950 = vadd.f32 %v3653, %v3854
        %v3951 = vadd.f32 %v3654, %v3855
        %v3952 = vadd.f32 %v3655, %v3856
        %v3953 = vadd.f32 %v3656, %v3857
        %v3954 = vadd.f32 %v3657, %v3858
        %v3955 = vadd.f32 %v3658, %v3859
        %v3956 = vadd.f32 %v3659, %v3860
        %v3957 = vadd.f32 %v3660, %v3861
        %v3958 = vadd.f32 %v3661, %v3862
        %v3959 = vadd.f32 %v3662, %v3863
        %v3960 = vadd.f32 %v3663, %v3864
        %v3961 = vadd.f32 %v3664, %v3865
        %v3962 = vadd.f32 %v3665, %v3866
        %v3963 = vadd.f32 %v3666, %v3867
        %v3964 = vadd.f32 %v3667, %v3868
        %v3965 = vadd.f32 %v3668, %v3869
        %v3966 = vadd.f32 %v3669, %v3870
        %v3967 = vadd.f32 %v3670, %v3871
        %v3968 = vadd.f32 %v3671, %v3872
        %v3969 = vadd.f32 %v3672, %v3873
        %v3970 = vadd.f32 %v3673, %v3874
        %v3971 = vadd.f32 %v3674, %v3875
        %v3972 = vadd.f32 %v3675, %v3876
        %v3973 = vadd.f32 %v3676, %v3877
        %v3974 = vadd.f32 %v3677, %v3878
        %v3975 = vadd.f32 %v3678, %v3879
        %v3976 = vadd.f32 %v3679, %v3880
        %v3977 = vadd.f32 %v3680, %v3881
        %v3978 = vadd.f32 %v3681, %v3882
        %v3979 = vadd.f32 %v3682, %v3883
        %v3980 = vadd.f32 %v3683, %v3884
        %v3981 = vadd.f32 %v3684, %v3885
        %v3982 = vadd.f32 %v3685, %v3886
        %v3983 = vadd.f32 %v3686, %v3887
        %v3984 = vadd.f32 %v3687, %v3888
        %v3985 = vadd.f32 %v3688, %v3889
        %v3986 = vadd.f32 %v3689, %v3890
        %v3987 = vadd.f32 %v3690, %v3891
        %v3988 = vadd.f32 %v3691, %v3892
        %v3989 = vadd.f32 %v3692, %v3893
        %v3990 = vadd.f32 %v3693, %v3894
        %v3991 = vadd.f32 %v3694, %v3895
        %v3992 = vadd.f32 %v3695, %v3896
        %v3993 = vadd.f32 %v3696, %v3897
        %v3994 = vadd.f32 %v3697, %v3898
        %v3995 = vadd.f32 %v3698, %v3899
        %v3996 = vadd.f32 %v3699, %v3900
        %v3997 = vadd.f32 %v3700, %v3901
        %v3998 = vadd.f32 %v3701, %v3902
        %v3999 = vadd.f32 %v3702, %v3903
        %v4000 = vadd.f32 %v3703, %v3904
        %v4001 = vadd.f32 %v3704, %v3905
        %v4002 = vadd.f32 %v3705, %v3906
        %v4003 = vadd.f32 %v3706, %v3907
        %v4004 = vld [vmem:[%s3707 + $0x20] sm:$0xff]
        %v4005 = vld [vmem:[%s3707 + $0x28] sm:$0xff]
        %v4006 = vld [vmem:[%s3707 + $0x60] sm:$0xff]
        %v4007 = vld [vmem:[%s3707 + $0x68] sm:$0xff]
        %v4008 = vld [vmem:[%s3707 + $0xa0] sm:$0xff]
        %v4009 = vld [vmem:[%s3707 + $0xa8] sm:$0xff]
        %v4010 = vld [vmem:[%s3707 + $0xe0] sm:$0xff]
        %v4011 = vld [vmem:[%s3707 + $0xe8] sm:$0xff]
        %v4012 = vld [vmem:[%s3707 + $0x120] sm:$0xff]
        %v4013 = vld [vmem:[%s3707 + $0x128] sm:$0xff]
        %v4014 = vld [vmem:[%s3707 + $0x160] sm:$0xff]
        %v4015 = vld [vmem:[%s3707 + $0x168] sm:$0xff]
        %v4016 = vld [vmem:[%s3707 + $0x1a0] sm:$0xff]
        %v4017 = vld [vmem:[%s3707 + $0x1a8] sm:$0xff]
        %v4018 = vld [vmem:[%s3707 + $0x1e0] sm:$0xff]
        %v4019 = vld [vmem:[%s3707 + $0x1e8] sm:$0xff]
        %v4020 = vld [vmem:[%s3707 + $0x220] sm:$0xff]
        %v4021 = vld [vmem:[%s3707 + $0x228] sm:$0xff]
        %v4022 = vld [vmem:[%s3707 + $0x260] sm:$0xff]
        %v4023 = vld [vmem:[%s3707 + $0x268] sm:$0xff]
        %v4024 = vld [vmem:[%s3707 + $0x2a0] sm:$0xff]
        %v4025 = vld [vmem:[%s3707 + $0x2a8] sm:$0xff]
        %v4026 = vld [vmem:[%s3707 + $0x2e0] sm:$0xff]
        %v4027 = vld [vmem:[%s3707 + $0x2e8] sm:$0xff]
        %v4028 = vld [vmem:[%s3707 + $0x320] sm:$0xff]
        %v4029 = vld [vmem:[%s3707 + $0x328] sm:$0xff]
        %v4030 = vld [vmem:[%s3707 + $0x360] sm:$0xff]
        %v4031 = vld [vmem:[%s3707 + $0x368] sm:$0xff]
        %v4032 = vld [vmem:[%s3707 + $0x3a0] sm:$0xff]
        %v4033 = vld [vmem:[%s3707 + $0x3a8] sm:$0xff]
        %v4034 = vld [vmem:[%s3707 + $0x3e0] sm:$0xff]
        %v4035 = vld [vmem:[%s3707 + $0x3e8] sm:$0xff]
        %v4036 = vlaneseq
        %v4037 = vshrl.u32 %v4036, 7
        %v4038 = vsub.s32 7, %v4037
        %v4039 = vrot.slane %v342, %v4038
        %v4040 = vlaneseq
        %v4041 = vshrl.u32 %v4040, 7
        %v4042 = vsub.s32 7, %v4041
        %v4043 = vrot.slane %v343, %v4042
        %v4044 = vmul.f32 %v3710, %v4039
        %v4045 = vmul.f32 %v3711, %v4043
        %v4046 = vmul.f32 %v4004, %v4039
        %v4047 = vmul.f32 %v4005, %v4043
        %v4048 = vmul.f32 %v3716, %v4039
        %v4049 = vmul.f32 %v3717, %v4043
        %v4050 = vmul.f32 %v4006, %v4039
        %v4051 = vmul.f32 %v4007, %v4043
        %v4052 = vmul.f32 %v3722, %v4039
        %v4053 = vmul.f32 %v3723, %v4043
        %v4054 = vmul.f32 %v4008, %v4039
        %v4055 = vmul.f32 %v4009, %v4043
        %v4056 = vmul.f32 %v3728, %v4039
        %v4057 = vmul.f32 %v3729, %v4043
        %v4058 = vmul.f32 %v4010, %v4039
        %v4059 = vmul.f32 %v4011, %v4043
        %v4060 = vmul.f32 %v3734, %v4039
        %v4061 = vmul.f32 %v3735, %v4043
        %v4062 = vmul.f32 %v4012, %v4039
        %v4063 = vmul.f32 %v4013, %v4043
        %v4064 = vmul.f32 %v3740, %v4039
        %v4065 = vmul.f32 %v3741, %v4043
        %v4066 = vmul.f32 %v4014, %v4039
        %v4067 = vmul.f32 %v4015, %v4043
        %v4068 = vmul.f32 %v3746, %v4039
        %v4069 = vmul.f32 %v3747, %v4043
        %v4070 = vmul.f32 %v4016, %v4039
        %v4071 = vmul.f32 %v4017, %v4043
        %v4072 = vmul.f32 %v3752, %v4039
        %v4073 = vmul.f32 %v3753, %v4043
        %v4074 = vmul.f32 %v4018, %v4039
        %v4075 = vmul.f32 %v4019, %v4043
        %v4076 = vmul.f32 %v3758, %v4039
        %v4077 = vmul.f32 %v3759, %v4043
        %v4078 = vmul.f32 %v4020, %v4039
        %v4079 = vmul.f32 %v4021, %v4043
        %v4080 = vmul.f32 %v3764, %v4039
        %v4081 = vmul.f32 %v3765, %v4043
        %v4082 = vmul.f32 %v4022, %v4039
        %v4083 = vmul.f32 %v4023, %v4043
        %v4084 = vmul.f32 %v3770, %v4039
        %v4085 = vmul.f32 %v3771, %v4043
        %v4086 = vmul.f32 %v4024, %v4039
        %v4087 = vmul.f32 %v4025, %v4043
        %v4088 = vmul.f32 %v3776, %v4039
        %v4089 = vmul.f32 %v3777, %v4043
        %v4090 = vmul.f32 %v4026, %v4039
        %v4091 = vmul.f32 %v4027, %v4043
        %v4092 = vmul.f32 %v3782, %v4039
        %v4093 = vmul.f32 %v3783, %v4043
        %v4094 = vmul.f32 %v4028, %v4039
        %v4095 = vmul.f32 %v4029, %v4043
        %v4096 = vmul.f32 %v3788, %v4039
        %v4097 = vmul.f32 %v3789, %v4043
        %v4098 = vmul.f32 %v4030, %v4039
        %v4099 = vmul.f32 %v4031, %v4043
        %v4100 = vmul.f32 %v3794, %v4039
        %v4101 = vmul.f32 %v3795, %v4043
        %v4102 = vmul.f32 %v4032, %v4039
        %v4103 = vmul.f32 %v4033, %v4043
        %v4104 = vmul.f32 %v3800, %v4039
        %v4105 = vmul.f32 %v3801, %v4043
        %v4106 = vmul.f32 %v4034, %v4039
        %v4107 = vmul.f32 %v4035, %v4043
        %v4172 = vrot.slane %v4044, 1
        %v4173 = vrot.slane %v4045, 1
        %v4174 = vrot.slane %v4046, 1
        %v4175 = vsel %vm1433, %v4172, %v4174
        %v4176 = vrot.slane %v4047, 1
        %v4177 = vsel %vm1433, %v4173, %v4176
        %v4178 = vrot.slane %v4048, 1
        %v4179 = vrot.slane %v4049, 1
        %v4180 = vrot.slane %v4050, 1
        %v4181 = vsel %vm1433, %v4178, %v4180
        %v4182 = vrot.slane %v4051, 1
        %v4183 = vsel %vm1433, %v4179, %v4182
        %v4184 = vrot.slane %v4052, 1
        %v4185 = vrot.slane %v4053, 1
        %v4186 = vrot.slane %v4054, 1
        %v4187 = vsel %vm1433, %v4184, %v4186
        %v4188 = vrot.slane %v4055, 1
        %v4189 = vsel %vm1433, %v4185, %v4188
        %v4190 = vrot.slane %v4056, 1
        %v4191 = vrot.slane %v4057, 1
        %v4192 = vrot.slane %v4058, 1
        %v4193 = vsel %vm1433, %v4190, %v4192
        %v4194 = vrot.slane %v4059, 1
        %v4195 = vsel %vm1433, %v4191, %v4194
        %v4196 = vrot.slane %v4060, 1
        %v4197 = vrot.slane %v4061, 1
        %v4198 = vrot.slane %v4062, 1
        %v4199 = vsel %vm1433, %v4196, %v4198
        %v4200 = vrot.slane %v4063, 1
        %v4201 = vsel %vm1433, %v4197, %v4200
        %v4202 = vrot.slane %v4064, 1
        %v4203 = vrot.slane %v4065, 1
        %v4204 = vrot.slane %v4066, 1
        %v4205 = vsel %vm1433, %v4202, %v4204
        %v4206 = vrot.slane %v4067, 1
        %v4207 = vsel %vm1433, %v4203, %v4206
        %v4208 = vrot.slane %v4068, 1
        %v4209 = vrot.slane %v4069, 1
        %v4210 = vrot.slane %v4070, 1
        %v4211 = vsel %vm1433, %v4208, %v4210
        %v4212 = vrot.slane %v4071, 1
        %v4213 = vsel %vm1433, %v4209, %v4212
        %v4214 = vrot.slane %v4072, 1
        %v4215 = vrot.slane %v4073, 1
        %v4216 = vrot.slane %v4074, 1
        %v4217 = vsel %vm1433, %v4214, %v4216
        %v4218 = vrot.slane %v4075, 1
        %v4219 = vsel %vm1433, %v4215, %v4218
        %v4220 = vrot.slane %v4076, 1
        %v4221 = vrot.slane %v4077, 1
        %v4222 = vrot.slane %v4078, 1
        %v4223 = vsel %vm1433, %v4220, %v4222
        %v4224 = vrot.slane %v4079, 1
        %v4225 = vsel %vm1433, %v4221, %v4224
        %v4226 = vrot.slane %v4080, 1
        %v4227 = vrot.slane %v4081, 1
        %v4228 = vrot.slane %v4082, 1
        %v4229 = vsel %vm1433, %v4226, %v4228
        %v4230 = vrot.slane %v4083, 1
        %v4231 = vsel %vm1433, %v4227, %v4230
        %v4232 = vrot.slane %v4084, 1
        %v4233 = vrot.slane %v4085, 1
        %v4234 = vrot.slane %v4086, 1
        %v4235 = vsel %vm1433, %v4232, %v4234
        %v4236 = vrot.slane %v4087, 1
        %v4237 = vsel %vm1433, %v4233, %v4236
        %v4238 = vrot.slane %v4088, 1
        %v4239 = vrot.slane %v4089, 1
        %v4240 = vrot.slane %v4090, 1
        %v4241 = vsel %vm1433, %v4238, %v4240
        %v4242 = vrot.slane %v4091, 1
        %v4243 = vsel %vm1433, %v4239, %v4242
        %v4244 = vrot.slane %v4092, 1
        %v4245 = vrot.slane %v4093, 1
        %v4246 = vrot.slane %v4094, 1
        %v4247 = vsel %vm1433, %v4244, %v4246
        %v4248 = vrot.slane %v4095, 1
        %v4249 = vsel %vm1433, %v4245, %v4248
        %v4250 = vrot.slane %v4096, 1
        %v4251 = vrot.slane %v4097, 1
        %v4252 = vrot.slane %v4098, 1
        %v4253 = vsel %vm1433, %v4250, %v4252
        %v4254 = vrot.slane %v4099, 1
        %v4255 = vsel %vm1433, %v4251, %v4254
        %v4256 = vrot.slane %v4100, 1
        %v4257 = vrot.slane %v4101, 1
        %v4258 = vrot.slane %v4102, 1
        %v4259 = vsel %vm1433, %v4256, %v4258
        %v4260 = vrot.slane %v4103, 1
        %v4261 = vsel %vm1433, %v4257, %v4260
        %v4262 = vrot.slane %v4104, 1
        %v4263 = vrot.slane %v4105, 1
        %v4264 = vrot.slane %v4106, 1
        %v4265 = vsel %vm1433, %v4262, %v4264
        %v4266 = vrot.slane %v4107, 1
        %v4267 = vsel %vm1433, %v4263, %v4266
        %v4364 = vadd.f32 %v3908, %v4172
        %v4365 = vadd.f32 %v3909, %v4173
        %v4366 = vadd.f32 %v3910, %v4175
        %v4367 = vadd.f32 %v3911, %v4177
        %v4368 = vadd.f32 %v3912, %v4174
        %v4369 = vadd.f32 %v3913, %v4176
        %v4370 = vadd.f32 %v3914, %v4178
        %v4371 = vadd.f32 %v3915, %v4179
        %v4372 = vadd.f32 %v3916, %v4181
        %v4373 = vadd.f32 %v3917, %v4183
        %v4374 = vadd.f32 %v3918, %v4180
        %v4375 = vadd.f32 %v3919, %v4182
        %v4376 = vadd.f32 %v3920, %v4184
        %v4377 = vadd.f32 %v3921, %v4185
        %v4378 = vadd.f32 %v3922, %v4187
        %v4379 = vadd.f32 %v3923, %v4189
        %v4380 = vadd.f32 %v3924, %v4186
        %v4381 = vadd.f32 %v3925, %v4188
        %v4382 = vadd.f32 %v3926, %v4190
        %v4383 = vadd.f32 %v3927, %v4191
        %v4384 = vadd.f32 %v3928, %v4193
        %v4385 = vadd.f32 %v3929, %v4195
        %v4386 = vadd.f32 %v3930, %v4192
        %v4387 = vadd.f32 %v3931, %v4194
        %v4388 = vadd.f32 %v3932, %v4196
        %v4389 = vadd.f32 %v3933, %v4197
        %v4390 = vadd.f32 %v3934, %v4199
        %v4391 = vadd.f32 %v3935, %v4201
        %v4392 = vadd.f32 %v3936, %v4198
        %v4393 = vadd.f32 %v3937, %v4200
        %v4394 = vadd.f32 %v3938, %v4202
        %v4395 = vadd.f32 %v3939, %v4203
        %v4396 = vadd.f32 %v3940, %v4205
        %v4397 = vadd.f32 %v3941, %v4207
        %v4398 = vadd.f32 %v3942, %v4204
        %v4399 = vadd.f32 %v3943, %v4206
        %v4400 = vadd.f32 %v3944, %v4208
        %v4401 = vadd.f32 %v3945, %v4209
        %v4402 = vadd.f32 %v3946, %v4211
        %v4403 = vadd.f32 %v3947, %v4213
        %v4404 = vadd.f32 %v3948, %v4210
        %v4405 = vadd.f32 %v3949, %v4212
        %v4406 = vadd.f32 %v3950, %v4214
        %v4407 = vadd.f32 %v3951, %v4215
        %v4408 = vadd.f32 %v3952, %v4217
        %v4409 = vadd.f32 %v3953, %v4219
        %v4410 = vadd.f32 %v3954, %v4216
        %v4411 = vadd.f32 %v3955, %v4218
        %v4412 = vadd.f32 %v3956, %v4220
        %v4413 = vadd.f32 %v3957, %v4221
        %v4414 = vadd.f32 %v3958, %v4223
        %v4415 = vadd.f32 %v3959, %v4225
        %v4416 = vadd.f32 %v3960, %v4222
        %v4417 = vadd.f32 %v3961, %v4224
        %v4418 = vadd.f32 %v3962, %v4226
        %v4419 = vadd.f32 %v3963, %v4227
        %v4420 = vadd.f32 %v3964, %v4229
        %v4421 = vadd.f32 %v3965, %v4231
        %v4422 = vadd.f32 %v3966, %v4228
        %v4423 = vadd.f32 %v3967, %v4230
        %v4424 = vadd.f32 %v3968, %v4232
        %v4425 = vadd.f32 %v3969, %v4233
        %v4426 = vadd.f32 %v3970, %v4235
        %v4427 = vadd.f32 %v3971, %v4237
        %v4428 = vadd.f32 %v3972, %v4234
        %v4429 = vadd.f32 %v3973, %v4236
        %v4430 = vadd.f32 %v3974, %v4238
        %v4431 = vadd.f32 %v3975, %v4239
        %v4432 = vadd.f32 %v3976, %v4241
        %v4433 = vadd.f32 %v3977, %v4243
        %v4434 = vadd.f32 %v3978, %v4240
        %v4435 = vadd.f32 %v3979, %v4242
        %v4436 = vadd.f32 %v3980, %v4244
        %v4437 = vadd.f32 %v3981, %v4245
        %v4438 = vadd.f32 %v3982, %v4247
        %v4439 = vadd.f32 %v3983, %v4249
        %v4440 = vadd.f32 %v3984, %v4246
        %v4441 = vadd.f32 %v3985, %v4248
        %v4442 = vadd.f32 %v3986, %v4250
        %v4443 = vadd.f32 %v3987, %v4251
        %v4444 = vadd.f32 %v3988, %v4253
        %v4445 = vadd.f32 %v3989, %v4255
        %v4446 = vadd.f32 %v3990, %v4252
        %v4447 = vadd.f32 %v3991, %v4254
        %v4448 = vadd.f32 %v3992, %v4256
        %v4449 = vadd.f32 %v3993, %v4257
        %v4450 = vadd.f32 %v3994, %v4259
        %v4451 = vadd.f32 %v3995, %v4261
        %v4452 = vadd.f32 %v3996, %v4258
        %v4453 = vadd.f32 %v3997, %v4260
        %v4454 = vadd.f32 %v3998, %v4262
        %v4455 = vadd.f32 %v3999, %v4263
        %v4456 = vadd.f32 %v4000, %v4265
        %v4457 = vadd.f32 %v4001, %v4267
        %v4458 = vadd.f32 %v4002, %v4264
        %v4459 = vadd.f32 %v4003, %v4266
        %v4460 = vld [vmem:[%s3707 + $0x10] sm:$0xfe]
        %v4461 = vld [vmem:[%s3707 + $0x18] sm:$0xfe]
        %v4462 = vld [vmem:[%s3707 + $0x30] sm:$0x1]
        %v4463 = vld [vmem:[%s3707 + $0x38] sm:$0x1]
        %v4464 = vld [vmem:[%s3707 + $0x50] sm:$0xfe]
        %v4465 = vld [vmem:[%s3707 + $0x58] sm:$0xfe]
        %v4466 = vld [vmem:[%s3707 + $0x70] sm:$0x1]
        %v4467 = vld [vmem:[%s3707 + $0x78] sm:$0x1]
        %v4468 = vld [vmem:[%s3707 + $0x90] sm:$0xfe]
        %v4469 = vld [vmem:[%s3707 + $0x98] sm:$0xfe]
        %v4470 = vld [vmem:[%s3707 + $0xb0] sm:$0x1]
        %v4471 = vld [vmem:[%s3707 + $0xb8] sm:$0x1]
        %v4472 = vld [vmem:[%s3707 + $0xd0] sm:$0xfe]
        %v4473 = vld [vmem:[%s3707 + $0xd8] sm:$0xfe]
        %v4474 = vld [vmem:[%s3707 + $0xf0] sm:$0x1]
        %v4475 = vld [vmem:[%s3707 + $0xf8] sm:$0x1]
        %v4476 = vld [vmem:[%s3707 + $0x110] sm:$0xfe]
        %v4477 = vld [vmem:[%s3707 + $0x118] sm:$0xfe]
        %v4478 = vld [vmem:[%s3707 + $0x130] sm:$0x1]
        %v4479 = vld [vmem:[%s3707 + $0x138] sm:$0x1]
        %v4480 = vld [vmem:[%s3707 + $0x150] sm:$0xfe]
        %v4481 = vld [vmem:[%s3707 + $0x158] sm:$0xfe]
        %v4482 = vld [vmem:[%s3707 + $0x170] sm:$0x1]
        %v4483 = vld [vmem:[%s3707 + $0x178] sm:$0x1]
        %v4484 = vld [vmem:[%s3707 + $0x190] sm:$0xfe]
        %v4485 = vld [vmem:[%s3707 + $0x198] sm:$0xfe]
        %v4486 = vld [vmem:[%s3707 + $0x1b0] sm:$0x1]
        %v4487 = vld [vmem:[%s3707 + $0x1b8] sm:$0x1]
        %v4488 = vld [vmem:[%s3707 + $0x1d0] sm:$0xfe]
        %v4489 = vld [vmem:[%s3707 + $0x1d8] sm:$0xfe]
        %v4490 = vld [vmem:[%s3707 + $0x1f0] sm:$0x1]
        %v4491 = vld [vmem:[%s3707 + $0x1f8] sm:$0x1]
        %v4492 = vld [vmem:[%s3707 + $0x210] sm:$0xfe]
        %v4493 = vld [vmem:[%s3707 + $0x218] sm:$0xfe]
        %v4494 = vld [vmem:[%s3707 + $0x230] sm:$0x1]
        %v4495 = vld [vmem:[%s3707 + $0x238] sm:$0x1]
        %v4496 = vld [vmem:[%s3707 + $0x250] sm:$0xfe]
        %v4497 = vld [vmem:[%s3707 + $0x258] sm:$0xfe]
        %v4498 = vld [vmem:[%s3707 + $0x270] sm:$0x1]
        %v4499 = vld [vmem:[%s3707 + $0x278] sm:$0x1]
        %v4500 = vld [vmem:[%s3707 + $0x290] sm:$0xfe]
        %v4501 = vld [vmem:[%s3707 + $0x298] sm:$0xfe]
        %v4502 = vld [vmem:[%s3707 + $0x2b0] sm:$0x1]
        %v4503 = vld [vmem:[%s3707 + $0x2b8] sm:$0x1]
        %v4504 = vld [vmem:[%s3707 + $0x2d0] sm:$0xfe]
        %v4505 = vld [vmem:[%s3707 + $0x2d8] sm:$0xfe]
        %v4506 = vld [vmem:[%s3707 + $0x2f0] sm:$0x1]
        %v4507 = vld [vmem:[%s3707 + $0x2f8] sm:$0x1]
        %v4508 = vld [vmem:[%s3707 + $0x310] sm:$0xfe]
        %v4509 = vld [vmem:[%s3707 + $0x318] sm:$0xfe]
        %v4510 = vld [vmem:[%s3707 + $0x330] sm:$0x1]
        %v4511 = vld [vmem:[%s3707 + $0x338] sm:$0x1]
        %v4512 = vld [vmem:[%s3707 + $0x350] sm:$0xfe]
        %v4513 = vld [vmem:[%s3707 + $0x358] sm:$0xfe]
        %v4514 = vld [vmem:[%s3707 + $0x370] sm:$0x1]
        %v4515 = vld [vmem:[%s3707 + $0x378] sm:$0x1]
        %v4516 = vld [vmem:[%s3707 + $0x390] sm:$0xfe]
        %v4517 = vld [vmem:[%s3707 + $0x398] sm:$0xfe]
        %v4518 = vld [vmem:[%s3707 + $0x3b0] sm:$0x1]
        %v4519 = vld [vmem:[%s3707 + $0x3b8] sm:$0x1]
        %v4520 = vld [vmem:[%s3707 + $0x3d0] sm:$0xfe]
        %v4521 = vld [vmem:[%s3707 + $0x3d8] sm:$0xfe]
        %v4522 = vld [vmem:[%s3707 + $0x3f0] sm:$0x1]
        %v4523 = vld [vmem:[%s3707 + $0x3f8] sm:$0x1]
        %v4524 = vlaneseq
        %v4525 = vshrl.u32 %v4524, 7
        %v4526 = vsub.s32 0, %v4525
        %v4527 = vrot.slane %v344, %v4526
        %v4528 = vlaneseq
        %v4529 = vshrl.u32 %v4528, 7
        %v4530 = vsub.s32 0, %v4529
        %v4531 = vrot.slane %v345, %v4530
        %v4532 = vmul.f32 %v4460, %v4527
        %v4533 = vmul.f32 %v4461, %v4531
        %v4534 = vmul.f32 %v4004, %v4527
        %v4535 = vmul.f32 %v4005, %v4531
        %v4536 = vmul.f32 %v4462, %v4527
        %v4537 = vmul.f32 %v4463, %v4531
        %v4538 = vmul.f32 %v4464, %v4527
        %v4539 = vmul.f32 %v4465, %v4531
        %v4540 = vmul.f32 %v4006, %v4527
        %v4541 = vmul.f32 %v4007, %v4531
        %v4542 = vmul.f32 %v4466, %v4527
        %v4543 = vmul.f32 %v4467, %v4531
        %v4544 = vmul.f32 %v4468, %v4527
        %v4545 = vmul.f32 %v4469, %v4531
        %v4546 = vmul.f32 %v4008, %v4527
        %v4547 = vmul.f32 %v4009, %v4531
        %v4548 = vmul.f32 %v4470, %v4527
        %v4549 = vmul.f32 %v4471, %v4531
        %v4550 = vmul.f32 %v4472, %v4527
        %v4551 = vmul.f32 %v4473, %v4531
        %v4552 = vmul.f32 %v4010, %v4527
        %v4553 = vmul.f32 %v4011, %v4531
        %v4554 = vmul.f32 %v4474, %v4527
        %v4555 = vmul.f32 %v4475, %v4531
        %v4556 = vmul.f32 %v4476, %v4527
        %v4557 = vmul.f32 %v4477, %v4531
        %v4558 = vmul.f32 %v4012, %v4527
        %v4559 = vmul.f32 %v4013, %v4531
        %v4560 = vmul.f32 %v4478, %v4527
        %v4561 = vmul.f32 %v4479, %v4531
        %v4562 = vmul.f32 %v4480, %v4527
        %v4563 = vmul.f32 %v4481, %v4531
        %v4564 = vmul.f32 %v4014, %v4527
        %v4565 = vmul.f32 %v4015, %v4531
        %v4566 = vmul.f32 %v4482, %v4527
        %v4567 = vmul.f32 %v4483, %v4531
        %v4568 = vmul.f32 %v4484, %v4527
        %v4569 = vmul.f32 %v4485, %v4531
        %v4570 = vmul.f32 %v4016, %v4527
        %v4571 = vmul.f32 %v4017, %v4531
        %v4572 = vmul.f32 %v4486, %v4527
        %v4573 = vmul.f32 %v4487, %v4531
        %v4574 = vmul.f32 %v4488, %v4527
        %v4575 = vmul.f32 %v4489, %v4531
        %v4576 = vmul.f32 %v4018, %v4527
        %v4577 = vmul.f32 %v4019, %v4531
        %v4578 = vmul.f32 %v4490, %v4527
        %v4579 = vmul.f32 %v4491, %v4531
        %v4580 = vmul.f32 %v4492, %v4527
        %v4581 = vmul.f32 %v4493, %v4531
        %v4582 = vmul.f32 %v4020, %v4527
        %v4583 = vmul.f32 %v4021, %v4531
        %v4584 = vmul.f32 %v4494, %v4527
        %v4585 = vmul.f32 %v4495, %v4531
        %v4586 = vmul.f32 %v4496, %v4527
        %v4587 = vmul.f32 %v4497, %v4531
        %v4588 = vmul.f32 %v4022, %v4527
        %v4589 = vmul.f32 %v4023, %v4531
        %v4590 = vmul.f32 %v4498, %v4527
        %v4591 = vmul.f32 %v4499, %v4531
        %v4592 = vmul.f32 %v4500, %v4527
        %v4593 = vmul.f32 %v4501, %v4531
        %v4594 = vmul.f32 %v4024, %v4527
        %v4595 = vmul.f32 %v4025, %v4531
        %v4596 = vmul.f32 %v4502, %v4527
        %v4597 = vmul.f32 %v4503, %v4531
        %v4598 = vmul.f32 %v4504, %v4527
        %v4599 = vmul.f32 %v4505, %v4531
        %v4600 = vmul.f32 %v4026, %v4527
        %v4601 = vmul.f32 %v4027, %v4531
        %v4602 = vmul.f32 %v4506, %v4527
        %v4603 = vmul.f32 %v4507, %v4531
        %v4604 = vmul.f32 %v4508, %v4527
        %v4605 = vmul.f32 %v4509, %v4531
        %v4606 = vmul.f32 %v4028, %v4527
        %v4607 = vmul.f32 %v4029, %v4531
        %v4608 = vmul.f32 %v4510, %v4527
        %v4609 = vmul.f32 %v4511, %v4531
        %v4610 = vmul.f32 %v4512, %v4527
        %v4611 = vmul.f32 %v4513, %v4531
        %v4612 = vmul.f32 %v4030, %v4527
        %v4613 = vmul.f32 %v4031, %v4531
        %v4614 = vmul.f32 %v4514, %v4527
        %v4615 = vmul.f32 %v4515, %v4531
        %v4616 = vmul.f32 %v4516, %v4527
        %v4617 = vmul.f32 %v4517, %v4531
        %v4618 = vmul.f32 %v4032, %v4527
        %v4619 = vmul.f32 %v4033, %v4531
        %v4620 = vmul.f32 %v4518, %v4527
        %v4621 = vmul.f32 %v4519, %v4531
        %v4622 = vmul.f32 %v4520, %v4527
        %v4623 = vmul.f32 %v4521, %v4531
        %v4624 = vmul.f32 %v4034, %v4527
        %v4625 = vmul.f32 %v4035, %v4531
        %v4626 = vmul.f32 %v4522, %v4527
        %v4627 = vmul.f32 %v4523, %v4531
        %v4724 = vrot.slane %v4532, 2
        %v4725 = vrot.slane %v4533, 2
        %v4726 = vrot.slane %v4534, 2
        %v4727 = vsel %vm1986, %v4724, %v4726
        %v4728 = vrot.slane %v4535, 2
        %v4729 = vsel %vm1986, %v4725, %v4728
        %v4730 = vrot.slane %v4536, 2
        %v4731 = vsel %vm1986, %v4726, %v4730
        %v4732 = vrot.slane %v4537, 2
        %v4733 = vsel %vm1986, %v4728, %v4732
        %v4734 = vrot.slane %v4538, 2
        %v4735 = vrot.slane %v4539, 2
        %v4736 = vrot.slane %v4540, 2
        %v4737 = vsel %vm1986, %v4734, %v4736
        %v4738 = vrot.slane %v4541, 2
        %v4739 = vsel %vm1986, %v4735, %v4738
        %v4740 = vrot.slane %v4542, 2
        %v4741 = vsel %vm1986, %v4736, %v4740
        %v4742 = vrot.slane %v4543, 2
        %v4743 = vsel %vm1986, %v4738, %v4742
        %v4744 = vrot.slane %v4544, 2
        %v4745 = vrot.slane %v4545, 2
        %v4746 = vrot.slane %v4546, 2
        %v4747 = vsel %vm1986, %v4744, %v4746
        %v4748 = vrot.slane %v4547, 2
        %v4749 = vsel %vm1986, %v4745, %v4748
        %v4750 = vrot.slane %v4548, 2
        %v4751 = vsel %vm1986, %v4746, %v4750
        %v4752 = vrot.slane %v4549, 2
        %v4753 = vsel %vm1986, %v4748, %v4752
        %v4754 = vrot.slane %v4550, 2
        %v4755 = vrot.slane %v4551, 2
        %v4756 = vrot.slane %v4552, 2
        %v4757 = vsel %vm1986, %v4754, %v4756
        %v4758 = vrot.slane %v4553, 2
        %v4759 = vsel %vm1986, %v4755, %v4758
        %v4760 = vrot.slane %v4554, 2
        %v4761 = vsel %vm1986, %v4756, %v4760
        %v4762 = vrot.slane %v4555, 2
        %v4763 = vsel %vm1986, %v4758, %v4762
        %v4764 = vrot.slane %v4556, 2
        %v4765 = vrot.slane %v4557, 2
        %v4766 = vrot.slane %v4558, 2
        %v4767 = vsel %vm1986, %v4764, %v4766
        %v4768 = vrot.slane %v4559, 2
        %v4769 = vsel %vm1986, %v4765, %v4768
        %v4770 = vrot.slane %v4560, 2
        %v4771 = vsel %vm1986, %v4766, %v4770
        %v4772 = vrot.slane %v4561, 2
        %v4773 = vsel %vm1986, %v4768, %v4772
        %v4774 = vrot.slane %v4562, 2
        %v4775 = vrot.slane %v4563, 2
        %v4776 = vrot.slane %v4564, 2
        %v4777 = vsel %vm1986, %v4774, %v4776
        %v4778 = vrot.slane %v4565, 2
        %v4779 = vsel %vm1986, %v4775, %v4778
        %v4780 = vrot.slane %v4566, 2
        %v4781 = vsel %vm1986, %v4776, %v4780
        %v4782 = vrot.slane %v4567, 2
        %v4783 = vsel %vm1986, %v4778, %v4782
        %v4784 = vrot.slane %v4568, 2
        %v4785 = vrot.slane %v4569, 2
        %v4786 = vrot.slane %v4570, 2
        %v4787 = vsel %vm1986, %v4784, %v4786
        %v4788 = vrot.slane %v4571, 2
        %v4789 = vsel %vm1986, %v4785, %v4788
        %v4790 = vrot.slane %v4572, 2
        %v4791 = vsel %vm1986, %v4786, %v4790
        %v4792 = vrot.slane %v4573, 2
        %v4793 = vsel %vm1986, %v4788, %v4792
        %v4794 = vrot.slane %v4574, 2
        %v4795 = vrot.slane %v4575, 2
        %v4796 = vrot.slane %v4576, 2
        %v4797 = vsel %vm1986, %v4794, %v4796
        %v4798 = vrot.slane %v4577, 2
        %v4799 = vsel %vm1986, %v4795, %v4798
        %v4800 = vrot.slane %v4578, 2
        %v4801 = vsel %vm1986, %v4796, %v4800
        %v4802 = vrot.slane %v4579, 2
        %v4803 = vsel %vm1986, %v4798, %v4802
        %v4804 = vrot.slane %v4580, 2
        %v4805 = vrot.slane %v4581, 2
        %v4806 = vrot.slane %v4582, 2
        %v4807 = vsel %vm1986, %v4804, %v4806
        %v4808 = vrot.slane %v4583, 2
        %v4809 = vsel %vm1986, %v4805, %v4808
        %v4810 = vrot.slane %v4584, 2
        %v4811 = vsel %vm1986, %v4806, %v4810
        %v4812 = vrot.slane %v4585, 2
        %v4813 = vsel %vm1986, %v4808, %v4812
        %v4814 = vrot.slane %v4586, 2
        %v4815 = vrot.slane %v4587, 2
        %v4816 = vrot.slane %v4588, 2
        %v4817 = vsel %vm1986, %v4814, %v4816
        %v4818 = vrot.slane %v4589, 2
        %v4819 = vsel %vm1986, %v4815, %v4818
        %v4820 = vrot.slane %v4590, 2
        %v4821 = vsel %vm1986, %v4816, %v4820
        %v4822 = vrot.slane %v4591, 2
        %v4823 = vsel %vm1986, %v4818, %v4822
        %v4824 = vrot.slane %v4592, 2
        %v4825 = vrot.slane %v4593, 2
        %v4826 = vrot.slane %v4594, 2
        %v4827 = vsel %vm1986, %v4824, %v4826
        %v4828 = vrot.slane %v4595, 2
        %v4829 = vsel %vm1986, %v4825, %v4828
        %v4830 = vrot.slane %v4596, 2
        %v4831 = vsel %vm1986, %v4826, %v4830
        %v4832 = vrot.slane %v4597, 2
        %v4833 = vsel %vm1986, %v4828, %v4832
        %v4834 = vrot.slane %v4598, 2
        %v4835 = vrot.slane %v4599, 2
        %v4836 = vrot.slane %v4600, 2
        %v4837 = vsel %vm1986, %v4834, %v4836
        %v4838 = vrot.slane %v4601, 2
        %v4839 = vsel %vm1986, %v4835, %v4838
        %v4840 = vrot.slane %v4602, 2
        %v4841 = vsel %vm1986, %v4836, %v4840
        %v4842 = vrot.slane %v4603, 2
        %v4843 = vsel %vm1986, %v4838, %v4842
        %v4844 = vrot.slane %v4604, 2
        %v4845 = vrot.slane %v4605, 2
        %v4846 = vrot.slane %v4606, 2
        %v4847 = vsel %vm1986, %v4844, %v4846
        %v4848 = vrot.slane %v4607, 2
        %v4849 = vsel %vm1986, %v4845, %v4848
        %v4850 = vrot.slane %v4608, 2
        %v4851 = vsel %vm1986, %v4846, %v4850
        %v4852 = vrot.slane %v4609, 2
        %v4853 = vsel %vm1986, %v4848, %v4852
        %v4854 = vrot.slane %v4610, 2
        %v4855 = vrot.slane %v4611, 2
        %v4856 = vrot.slane %v4612, 2
        %v4857 = vsel %vm1986, %v4854, %v4856
        %v4858 = vrot.slane %v4613, 2
        %v4859 = vsel %vm1986, %v4855, %v4858
        %v4860 = vrot.slane %v4614, 2
        %v4861 = vsel %vm1986, %v4856, %v4860
        %v4862 = vrot.slane %v4615, 2
        %v4863 = vsel %vm1986, %v4858, %v4862
        %v4864 = vrot.slane %v4616, 2
        %v4865 = vrot.slane %v4617, 2
        %v4866 = vrot.slane %v4618, 2
        %v4867 = vsel %vm1986, %v4864, %v4866
        %v4868 = vrot.slane %v4619, 2
        %v4869 = vsel %vm1986, %v4865, %v4868
        %v4870 = vrot.slane %v4620, 2
        %v4871 = vsel %vm1986, %v4866, %v4870
        %v4872 = vrot.slane %v4621, 2
        %v4873 = vsel %vm1986, %v4868, %v4872
        %v4874 = vrot.slane %v4622, 2
        %v4875 = vrot.slane %v4623, 2
        %v4876 = vrot.slane %v4624, 2
        %v4877 = vsel %vm1986, %v4874, %v4876
        %v4878 = vrot.slane %v4625, 2
        %v4879 = vsel %vm1986, %v4875, %v4878
        %v4880 = vrot.slane %v4626, 2
        %v4881 = vsel %vm1986, %v4876, %v4880
        %v4882 = vrot.slane %v4627, 2
        %v4883 = vsel %vm1986, %v4878, %v4882
        %v4980 = vadd.f32 %v4364, %v4724
        %v4981 = vadd.f32 %v4365, %v4725
        %v4982 = vadd.f32 %v4366, %v4727
        %v4983 = vadd.f32 %v4367, %v4729
        %v4984 = vadd.f32 %v4368, %v4731
        %v4985 = vadd.f32 %v4369, %v4733
        %v4986 = vadd.f32 %v4370, %v4734
        %v4987 = vadd.f32 %v4371, %v4735
        %v4988 = vadd.f32 %v4372, %v4737
        %v4989 = vadd.f32 %v4373, %v4739
        %v4990 = vadd.f32 %v4374, %v4741
        %v4991 = vadd.f32 %v4375, %v4743
        %v4992 = vadd.f32 %v4376, %v4744
        %v4993 = vadd.f32 %v4377, %v4745
        %v4994 = vadd.f32 %v4378, %v4747
        %v4995 = vadd.f32 %v4379, %v4749
        %v4996 = vadd.f32 %v4380, %v4751
        %v4997 = vadd.f32 %v4381, %v4753
        %v4998 = vadd.f32 %v4382, %v4754
        %v4999 = vadd.f32 %v4383, %v4755
        %v5000 = vadd.f32 %v4384, %v4757
        %v5001 = vadd.f32 %v4385, %v4759
        %v5002 = vadd.f32 %v4386, %v4761
        %v5003 = vadd.f32 %v4387, %v4763
        %v5004 = vadd.f32 %v4388, %v4764
        %v5005 = vadd.f32 %v4389, %v4765
        %v5006 = vadd.f32 %v4390, %v4767
        %v5007 = vadd.f32 %v4391, %v4769
        %v5008 = vadd.f32 %v4392, %v4771
        %v5009 = vadd.f32 %v4393, %v4773
        %v5010 = vadd.f32 %v4394, %v4774
        %v5011 = vadd.f32 %v4395, %v4775
        %v5012 = vadd.f32 %v4396, %v4777
        %v5013 = vadd.f32 %v4397, %v4779
        %v5014 = vadd.f32 %v4398, %v4781
        %v5015 = vadd.f32 %v4399, %v4783
        %v5016 = vadd.f32 %v4400, %v4784
        %v5017 = vadd.f32 %v4401, %v4785
        %v5018 = vadd.f32 %v4402, %v4787
        %v5019 = vadd.f32 %v4403, %v4789
        %v5020 = vadd.f32 %v4404, %v4791
        %v5021 = vadd.f32 %v4405, %v4793
        %v5022 = vadd.f32 %v4406, %v4794
        %v5023 = vadd.f32 %v4407, %v4795
        %v5024 = vadd.f32 %v4408, %v4797
        %v5025 = vadd.f32 %v4409, %v4799
        %v5026 = vadd.f32 %v4410, %v4801
        %v5027 = vadd.f32 %v4411, %v4803
        %v5028 = vadd.f32 %v4412, %v4804
        %v5029 = vadd.f32 %v4413, %v4805
        %v5030 = vadd.f32 %v4414, %v4807
        %v5031 = vadd.f32 %v4415, %v4809
        %v5032 = vadd.f32 %v4416, %v4811
        %v5033 = vadd.f32 %v4417, %v4813
        %v5034 = vadd.f32 %v4418, %v4814
        %v5035 = vadd.f32 %v4419, %v4815
        %v5036 = vadd.f32 %v4420, %v4817
        %v5037 = vadd.f32 %v4421, %v4819
        %v5038 = vadd.f32 %v4422, %v4821
        %v5039 = vadd.f32 %v4423, %v4823
        %v5040 = vadd.f32 %v4424, %v4824
        %v5041 = vadd.f32 %v4425, %v4825
        %v5042 = vadd.f32 %v4426, %v4827
        %v5043 = vadd.f32 %v4427, %v4829
        %v5044 = vadd.f32 %v4428, %v4831
        %v5045 = vadd.f32 %v4429, %v4833
        %v5046 = vadd.f32 %v4430, %v4834
        %v5047 = vadd.f32 %v4431, %v4835
        %v5048 = vadd.f32 %v4432, %v4837
        %v5049 = vadd.f32 %v4433, %v4839
        %v5050 = vadd.f32 %v4434, %v4841
        %v5051 = vadd.f32 %v4435, %v4843
        %v5052 = vadd.f32 %v4436, %v4844
        %v5053 = vadd.f32 %v4437, %v4845
        %v5054 = vadd.f32 %v4438, %v4847
        %v5055 = vadd.f32 %v4439, %v4849
        %v5056 = vadd.f32 %v4440, %v4851
        %v5057 = vadd.f32 %v4441, %v4853
        %v5058 = vadd.f32 %v4442, %v4854
        %v5059 = vadd.f32 %v4443, %v4855
        %v5060 = vadd.f32 %v4444, %v4857
        %v5061 = vadd.f32 %v4445, %v4859
        %v5062 = vadd.f32 %v4446, %v4861
        %v5063 = vadd.f32 %v4447, %v4863
        %v5064 = vadd.f32 %v4448, %v4864
        %v5065 = vadd.f32 %v4449, %v4865
        %v5066 = vadd.f32 %v4450, %v4867
        %v5067 = vadd.f32 %v4451, %v4869
        %v5068 = vadd.f32 %v4452, %v4871
        %v5069 = vadd.f32 %v4453, %v4873
        %v5070 = vadd.f32 %v4454, %v4874
        %v5071 = vadd.f32 %v4455, %v4875
        %v5072 = vadd.f32 %v4456, %v4877
        %v5073 = vadd.f32 %v4457, %v4879
        %v5074 = vadd.f32 %v4458, %v4881
        %v5075 = vadd.f32 %v4459, %v4883
        %v5077 = vlaneseq
        %v5078 = vshrl.u32 %v5077, 7
        %v5079 = vsub.s32 0, %v5078
        %v5080 = vrot.slane %v347, %v5079
        %v5081 = vlaneseq
        %v5082 = vshrl.u32 %v5081, 7
        %v5083 = vsub.s32 1, %v5082
        %v5084 = vrot.slane %v347, %v5083
        %v5087 = vadd.f32 %v4980, %v5080
        %v5088 = vadd.f32 %v4981, %v5084
        %v5089 = vadd.f32 %v4982, %v5080
        %v5090 = vadd.f32 %v4983, %v5084
        %v5091 = vadd.f32 %v4984, %v5080
        %v5092 = vadd.f32 %v4985, %v5084
        %v5093 = vadd.f32 %v4986, %v5080
        %v5094 = vadd.f32 %v4987, %v5084
        %v5095 = vadd.f32 %v4988, %v5080
        %v5096 = vadd.f32 %v4989, %v5084
        %v5097 = vadd.f32 %v4990, %v5080
        %v5098 = vadd.f32 %v4991, %v5084
        %v5099 = vadd.f32 %v4992, %v5080
        %v5100 = vadd.f32 %v4993, %v5084
        %v5101 = vadd.f32 %v4994, %v5080
        %v5102 = vadd.f32 %v4995, %v5084
        %v5103 = vadd.f32 %v4996, %v5080
        %v5104 = vadd.f32 %v4997, %v5084
        %v5105 = vadd.f32 %v4998, %v5080
        %v5106 = vadd.f32 %v4999, %v5084
        %v5107 = vadd.f32 %v5000, %v5080
        %v5108 = vadd.f32 %v5001, %v5084
        %v5109 = vadd.f32 %v5002, %v5080
        %v5110 = vadd.f32 %v5003, %v5084
        %v5111 = vadd.f32 %v5004, %v5080
        %v5112 = vadd.f32 %v5005, %v5084
        %v5113 = vadd.f32 %v5006, %v5080
        %v5114 = vadd.f32 %v5007, %v5084
        %v5115 = vadd.f32 %v5008, %v5080
        %v5116 = vadd.f32 %v5009, %v5084
        %v5117 = vadd.f32 %v5010, %v5080
        %v5118 = vadd.f32 %v5011, %v5084
        %v5119 = vadd.f32 %v5012, %v5080
        %v5120 = vadd.f32 %v5013, %v5084
        %v5121 = vadd.f32 %v5014, %v5080
        %v5122 = vadd.f32 %v5015, %v5084
        %v5123 = vadd.f32 %v5016, %v5080
        %v5124 = vadd.f32 %v5017, %v5084
        %v5125 = vadd.f32 %v5018, %v5080
        %v5126 = vadd.f32 %v5019, %v5084
        %v5127 = vadd.f32 %v5020, %v5080
        %v5128 = vadd.f32 %v5021, %v5084
        %v5129 = vadd.f32 %v5022, %v5080
        %v5130 = vadd.f32 %v5023, %v5084
        %v5131 = vadd.f32 %v5024, %v5080
        %v5132 = vadd.f32 %v5025, %v5084
        %v5133 = vadd.f32 %v5026, %v5080
        %v5134 = vadd.f32 %v5027, %v5084
        %v5135 = vadd.f32 %v5028, %v5080
        %v5136 = vadd.f32 %v5029, %v5084
        %v5137 = vadd.f32 %v5030, %v5080
        %v5138 = vadd.f32 %v5031, %v5084
        %v5139 = vadd.f32 %v5032, %v5080
        %v5140 = vadd.f32 %v5033, %v5084
        %v5141 = vadd.f32 %v5034, %v5080
        %v5142 = vadd.f32 %v5035, %v5084
        %v5143 = vadd.f32 %v5036, %v5080
        %v5144 = vadd.f32 %v5037, %v5084
        %v5145 = vadd.f32 %v5038, %v5080
        %v5146 = vadd.f32 %v5039, %v5084
        %v5147 = vadd.f32 %v5040, %v5080
        %v5148 = vadd.f32 %v5041, %v5084
        %v5149 = vadd.f32 %v5042, %v5080
        %v5150 = vadd.f32 %v5043, %v5084
        %v5151 = vadd.f32 %v5044, %v5080
        %v5152 = vadd.f32 %v5045, %v5084
        %v5153 = vadd.f32 %v5046, %v5080
        %v5154 = vadd.f32 %v5047, %v5084
        %v5155 = vadd.f32 %v5048, %v5080
        %v5156 = vadd.f32 %v5049, %v5084
        %v5157 = vadd.f32 %v5050, %v5080
        %v5158 = vadd.f32 %v5051, %v5084
        %v5159 = vadd.f32 %v5052, %v5080
        %v5160 = vadd.f32 %v5053, %v5084
        %v5161 = vadd.f32 %v5054, %v5080
        %v5162 = vadd.f32 %v5055, %v5084
        %v5163 = vadd.f32 %v5056, %v5080
        %v5164 = vadd.f32 %v5057, %v5084
        %v5165 = vadd.f32 %v5058, %v5080
        %v5166 = vadd.f32 %v5059, %v5084
        %v5167 = vadd.f32 %v5060, %v5080
        %v5168 = vadd.f32 %v5061, %v5084
        %v5169 = vadd.f32 %v5062, %v5080
        %v5170 = vadd.f32 %v5063, %v5084
        %v5171 = vadd.f32 %v5064, %v5080
        %v5172 = vadd.f32 %v5065, %v5084
        %v5173 = vadd.f32 %v5066, %v5080
        %v5174 = vadd.f32 %v5067, %v5084
        %v5175 = vadd.f32 %v5068, %v5080
        %v5176 = vadd.f32 %v5069, %v5084
        %v5177 = vadd.f32 %v5070, %v5080
        %v5178 = vadd.f32 %v5071, %v5084
        %v5179 = vadd.f32 %v5072, %v5080
        %v5180 = vadd.f32 %v5073, %v5084
        %v5181 = vadd.f32 %v5074, %v5080
        %v5182 = vadd.f32 %v5075, %v5084
        %v5184 = vlaneseq
        %v5185 = vshrl.u32 %v5184, 7
        %v5186 = vsub.s32 0, %v5185
        %v5187 = vrot.slane %v349, %v5186
        %v5188 = vlaneseq
        %v5189 = vshrl.u32 %v5188, 7
        %v5190 = vsub.s32 1, %v5189
        %v5191 = vrot.slane %v349, %v5190
        %v5194 = vmul.f32 %v5087, %v5187
        %v5195 = vmul.f32 %v5088, %v5191
        %v5196 = vmul.f32 %v5089, %v5187
        %v5197 = vmul.f32 %v5090, %v5191
        %v5198 = vmul.f32 %v5091, %v5187
        %v5199 = vmul.f32 %v5092, %v5191
        %v5200 = vmul.f32 %v5093, %v5187
        %v5201 = vmul.f32 %v5094, %v5191
        %v5202 = vmul.f32 %v5095, %v5187
        %v5203 = vmul.f32 %v5096, %v5191
        %v5204 = vmul.f32 %v5097, %v5187
        %v5205 = vmul.f32 %v5098, %v5191
        %v5206 = vmul.f32 %v5099, %v5187
        %v5207 = vmul.f32 %v5100, %v5191
        %v5208 = vmul.f32 %v5101, %v5187
        %v5209 = vmul.f32 %v5102, %v5191
        %v5210 = vmul.f32 %v5103, %v5187
        %v5211 = vmul.f32 %v5104, %v5191
        %v5212 = vmul.f32 %v5105, %v5187
        %v5213 = vmul.f32 %v5106, %v5191
        %v5214 = vmul.f32 %v5107, %v5187
        %v5215 = vmul.f32 %v5108, %v5191
        %v5216 = vmul.f32 %v5109, %v5187
        %v5217 = vmul.f32 %v5110, %v5191
        %v5218 = vmul.f32 %v5111, %v5187
        %v5219 = vmul.f32 %v5112, %v5191
        %v5220 = vmul.f32 %v5113, %v5187
        %v5221 = vmul.f32 %v5114, %v5191
        %v5222 = vmul.f32 %v5115, %v5187
        %v5223 = vmul.f32 %v5116, %v5191
        %v5224 = vmul.f32 %v5117, %v5187
        %v5225 = vmul.f32 %v5118, %v5191
        %v5226 = vmul.f32 %v5119, %v5187
        %v5227 = vmul.f32 %v5120, %v5191
        %v5228 = vmul.f32 %v5121, %v5187
        %v5229 = vmul.f32 %v5122, %v5191
        %v5230 = vmul.f32 %v5123, %v5187
        %v5231 = vmul.f32 %v5124, %v5191
        %v5232 = vmul.f32 %v5125, %v5187
        %v5233 = vmul.f32 %v5126, %v5191
        %v5234 = vmul.f32 %v5127, %v5187
        %v5235 = vmul.f32 %v5128, %v5191
        %v5236 = vmul.f32 %v5129, %v5187
        %v5237 = vmul.f32 %v5130, %v5191
        %v5238 = vmul.f32 %v5131, %v5187
        %v5239 = vmul.f32 %v5132, %v5191
        %v5240 = vmul.f32 %v5133, %v5187
        %v5241 = vmul.f32 %v5134, %v5191
        %v5242 = vmul.f32 %v5135, %v5187
        %v5243 = vmul.f32 %v5136, %v5191
        %v5244 = vmul.f32 %v5137, %v5187
        %v5245 = vmul.f32 %v5138, %v5191
        %v5246 = vmul.f32 %v5139, %v5187
        %v5247 = vmul.f32 %v5140, %v5191
        %v5248 = vmul.f32 %v5141, %v5187
        %v5249 = vmul.f32 %v5142, %v5191
        %v5250 = vmul.f32 %v5143, %v5187
        %v5251 = vmul.f32 %v5144, %v5191
        %v5252 = vmul.f32 %v5145, %v5187
        %v5253 = vmul.f32 %v5146, %v5191
        %v5254 = vmul.f32 %v5147, %v5187
        %v5255 = vmul.f32 %v5148, %v5191
        %v5256 = vmul.f32 %v5149, %v5187
        %v5257 = vmul.f32 %v5150, %v5191
        %v5258 = vmul.f32 %v5151, %v5187
        %v5259 = vmul.f32 %v5152, %v5191
        %v5260 = vmul.f32 %v5153, %v5187
        %v5261 = vmul.f32 %v5154, %v5191
        %v5262 = vmul.f32 %v5155, %v5187
        %v5263 = vmul.f32 %v5156, %v5191
        %v5264 = vmul.f32 %v5157, %v5187
        %v5265 = vmul.f32 %v5158, %v5191
        %v5266 = vmul.f32 %v5159, %v5187
        %v5267 = vmul.f32 %v5160, %v5191
        %v5268 = vmul.f32 %v5161, %v5187
        %v5269 = vmul.f32 %v5162, %v5191
        %v5270 = vmul.f32 %v5163, %v5187
        %v5271 = vmul.f32 %v5164, %v5191
        %v5272 = vmul.f32 %v5165, %v5187
        %v5273 = vmul.f32 %v5166, %v5191
        %v5274 = vmul.f32 %v5167, %v5187
        %v5275 = vmul.f32 %v5168, %v5191
        %v5276 = vmul.f32 %v5169, %v5187
        %v5277 = vmul.f32 %v5170, %v5191
        %v5278 = vmul.f32 %v5171, %v5187
        %v5279 = vmul.f32 %v5172, %v5191
        %v5280 = vmul.f32 %v5173, %v5187
        %v5281 = vmul.f32 %v5174, %v5191
        %v5282 = vmul.f32 %v5175, %v5187
        %v5283 = vmul.f32 %v5176, %v5191
        %v5284 = vmul.f32 %v5177, %v5187
        %v5285 = vmul.f32 %v5178, %v5191
        %v5286 = vmul.f32 %v5179, %v5187
        %v5287 = vmul.f32 %v5180, %v5191
        %v5288 = vmul.f32 %v5181, %v5187
        %v5289 = vmul.f32 %v5182, %v5191
        %v5291 = vlaneseq
        %v5292 = vshrl.u32 %v5291, 7
        %v5293 = vsub.s32 0, %v5292
        %v5294 = vrot.slane %v351, %v5293
        %v5295 = vlaneseq
        %v5296 = vshrl.u32 %v5295, 7
        %v5297 = vsub.s32 1, %v5296
        %v5298 = vrot.slane %v351, %v5297
        %v5301 = vadd.f32 %v5194, %v5294
        %v5302 = vadd.f32 %v5195, %v5298
        %v5303 = vadd.f32 %v5196, %v5294
        %v5304 = vadd.f32 %v5197, %v5298
        %v5305 = vadd.f32 %v5198, %v5294
        %v5306 = vadd.f32 %v5199, %v5298
        %v5307 = vadd.f32 %v5200, %v5294
        %v5308 = vadd.f32 %v5201, %v5298
        %v5309 = vadd.f32 %v5202, %v5294
        %v5310 = vadd.f32 %v5203, %v5298
        %v5311 = vadd.f32 %v5204, %v5294
        %v5312 = vadd.f32 %v5205, %v5298
        %v5313 = vadd.f32 %v5206, %v5294
        %v5314 = vadd.f32 %v5207, %v5298
        %v5315 = vadd.f32 %v5208, %v5294
        %v5316 = vadd.f32 %v5209, %v5298
        %v5317 = vadd.f32 %v5210, %v5294
        %v5318 = vadd.f32 %v5211, %v5298
        %v5319 = vadd.f32 %v5212, %v5294
        %v5320 = vadd.f32 %v5213, %v5298
        %v5321 = vadd.f32 %v5214, %v5294
        %v5322 = vadd.f32 %v5215, %v5298
        %v5323 = vadd.f32 %v5216, %v5294
        %v5324 = vadd.f32 %v5217, %v5298
        %v5325 = vadd.f32 %v5218, %v5294
        %v5326 = vadd.f32 %v5219, %v5298
        %v5327 = vadd.f32 %v5220, %v5294
        %v5328 = vadd.f32 %v5221, %v5298
        %v5329 = vadd.f32 %v5222, %v5294
        %v5330 = vadd.f32 %v5223, %v5298
        %v5331 = vadd.f32 %v5224, %v5294
        %v5332 = vadd.f32 %v5225, %v5298
        %v5333 = vadd.f32 %v5226, %v5294
        %v5334 = vadd.f32 %v5227, %v5298
        %v5335 = vadd.f32 %v5228, %v5294
        %v5336 = vadd.f32 %v5229, %v5298
        %v5337 = vadd.f32 %v5230, %v5294
        %v5338 = vadd.f32 %v5231, %v5298
        %v5339 = vadd.f32 %v5232, %v5294
        %v5340 = vadd.f32 %v5233, %v5298
        %v5341 = vadd.f32 %v5234, %v5294
        %v5342 = vadd.f32 %v5235, %v5298
        %v5343 = vadd.f32 %v5236, %v5294
        %v5344 = vadd.f32 %v5237, %v5298
        %v5345 = vadd.f32 %v5238, %v5294
        %v5346 = vadd.f32 %v5239, %v5298
        %v5347 = vadd.f32 %v5240, %v5294
        %v5348 = vadd.f32 %v5241, %v5298
        %v5349 = vadd.f32 %v5242, %v5294
        %v5350 = vadd.f32 %v5243, %v5298
        %v5351 = vadd.f32 %v5244, %v5294
        %v5352 = vadd.f32 %v5245, %v5298
        %v5353 = vadd.f32 %v5246, %v5294
        %v5354 = vadd.f32 %v5247, %v5298
        %v5355 = vadd.f32 %v5248, %v5294
        %v5356 = vadd.f32 %v5249, %v5298
        %v5357 = vadd.f32 %v5250, %v5294
        %v5358 = vadd.f32 %v5251, %v5298
        %v5359 = vadd.f32 %v5252, %v5294
        %v5360 = vadd.f32 %v5253, %v5298
        %v5361 = vadd.f32 %v5254, %v5294
        %v5362 = vadd.f32 %v5255, %v5298
        %v5363 = vadd.f32 %v5256, %v5294
        %v5364 = vadd.f32 %v5257, %v5298
        %v5365 = vadd.f32 %v5258, %v5294
        %v5366 = vadd.f32 %v5259, %v5298
        %v5367 = vadd.f32 %v5260, %v5294
        %v5368 = vadd.f32 %v5261, %v5298
        %v5369 = vadd.f32 %v5262, %v5294
        %v5370 = vadd.f32 %v5263, %v5298
        %v5371 = vadd.f32 %v5264, %v5294
        %v5372 = vadd.f32 %v5265, %v5298
        %v5373 = vadd.f32 %v5266, %v5294
        %v5374 = vadd.f32 %v5267, %v5298
        %v5375 = vadd.f32 %v5268, %v5294
        %v5376 = vadd.f32 %v5269, %v5298
        %v5377 = vadd.f32 %v5270, %v5294
        %v5378 = vadd.f32 %v5271, %v5298
        %v5379 = vadd.f32 %v5272, %v5294
        %v5380 = vadd.f32 %v5273, %v5298
        %v5381 = vadd.f32 %v5274, %v5294
        %v5382 = vadd.f32 %v5275, %v5298
        %v5383 = vadd.f32 %v5276, %v5294
        %v5384 = vadd.f32 %v5277, %v5298
        %v5385 = vadd.f32 %v5278, %v5294
        %v5386 = vadd.f32 %v5279, %v5298
        %v5387 = vadd.f32 %v5280, %v5294
        %v5388 = vadd.f32 %v5281, %v5298
        %v5389 = vadd.f32 %v5282, %v5294
        %v5390 = vadd.f32 %v5283, %v5298
        %v5391 = vadd.f32 %v5284, %v5294
        %v5392 = vadd.f32 %v5285, %v5298
        %v5393 = vadd.f32 %v5286, %v5294
        %v5394 = vadd.f32 %v5287, %v5298
        %v5395 = vadd.f32 %v5288, %v5294
        %v5396 = vadd.f32 %v5289, %v5298
        %v5397 = vmax.f32 %v5301, 0.0
        %v5398 = vmax.f32 %v5302, 0.0
        %v5399 = vmax.f32 %v5303, 0.0
        %v5400 = vmax.f32 %v5304, 0.0
        %v5401 = vmax.f32 %v5305, 0.0
        %v5402 = vmax.f32 %v5306, 0.0
        %v5403 = vmax.f32 %v5307, 0.0
        %v5404 = vmax.f32 %v5308, 0.0
        %v5405 = vmax.f32 %v5309, 0.0
        %v5406 = vmax.f32 %v5310, 0.0
        %v5407 = vmax.f32 %v5311, 0.0
        %v5408 = vmax.f32 %v5312, 0.0
        %v5409 = vmax.f32 %v5313, 0.0
        %v5410 = vmax.f32 %v5314, 0.0
        %v5411 = vmax.f32 %v5315, 0.0
        %v5412 = vmax.f32 %v5316, 0.0
        %v5413 = vmax.f32 %v5317, 0.0
        %v5414 = vmax.f32 %v5318, 0.0
        %v5415 = vmax.f32 %v5319, 0.0
        %v5416 = vmax.f32 %v5320, 0.0
        %v5417 = vmax.f32 %v5321, 0.0
        %v5418 = vmax.f32 %v5322, 0.0
        %v5419 = vmax.f32 %v5323, 0.0
        %v5420 = vmax.f32 %v5324, 0.0
        %v5421 = vmax.f32 %v5325, 0.0
        %v5422 = vmax.f32 %v5326, 0.0
        %v5423 = vmax.f32 %v5327, 0.0
        %v5424 = vmax.f32 %v5328, 0.0
        %v5425 = vmax.f32 %v5329, 0.0
        %v5426 = vmax.f32 %v5330, 0.0
        %v5427 = vmax.f32 %v5331, 0.0
        %v5428 = vmax.f32 %v5332, 0.0
        %v5429 = vmax.f32 %v5333, 0.0
        %v5430 = vmax.f32 %v5334, 0.0
        %v5431 = vmax.f32 %v5335, 0.0
        %v5432 = vmax.f32 %v5336, 0.0
        %v5433 = vmax.f32 %v5337, 0.0
        %v5434 = vmax.f32 %v5338, 0.0
        %v5435 = vmax.f32 %v5339, 0.0
        %v5436 = vmax.f32 %v5340, 0.0
        %v5437 = vmax.f32 %v5341, 0.0
        %v5438 = vmax.f32 %v5342, 0.0
        %v5439 = vmax.f32 %v5343, 0.0
        %v5440 = vmax.f32 %v5344, 0.0
        %v5441 = vmax.f32 %v5345, 0.0
        %v5442 = vmax.f32 %v5346, 0.0
        %v5443 = vmax.f32 %v5347, 0.0
        %v5444 = vmax.f32 %v5348, 0.0
        %v5445 = vmax.f32 %v5349, 0.0
        %v5446 = vmax.f32 %v5350, 0.0
        %v5447 = vmax.f32 %v5351, 0.0
        %v5448 = vmax.f32 %v5352, 0.0
        %v5449 = vmax.f32 %v5353, 0.0
        %v5450 = vmax.f32 %v5354, 0.0
        %v5451 = vmax.f32 %v5355, 0.0
        %v5452 = vmax.f32 %v5356, 0.0
        %v5453 = vmax.f32 %v5357, 0.0
        %v5454 = vmax.f32 %v5358, 0.0
        %v5455 = vmax.f32 %v5359, 0.0
        %v5456 = vmax.f32 %v5360, 0.0
        %v5457 = vmax.f32 %v5361, 0.0
        %v5458 = vmax.f32 %v5362, 0.0
        %v5459 = vmax.f32 %v5363, 0.0
        %v5460 = vmax.f32 %v5364, 0.0
        %v5461 = vmax.f32 %v5365, 0.0
        %v5462 = vmax.f32 %v5366, 0.0
        %v5463 = vmax.f32 %v5367, 0.0
        %v5464 = vmax.f32 %v5368, 0.0
        %v5465 = vmax.f32 %v5369, 0.0
        %v5466 = vmax.f32 %v5370, 0.0
        %v5467 = vmax.f32 %v5371, 0.0
        %v5468 = vmax.f32 %v5372, 0.0
        %v5469 = vmax.f32 %v5373, 0.0
        %v5470 = vmax.f32 %v5374, 0.0
        %v5471 = vmax.f32 %v5375, 0.0
        %v5472 = vmax.f32 %v5376, 0.0
        %v5473 = vmax.f32 %v5377, 0.0
        %v5474 = vmax.f32 %v5378, 0.0
        %v5475 = vmax.f32 %v5379, 0.0
        %v5476 = vmax.f32 %v5380, 0.0
        %v5477 = vmax.f32 %v5381, 0.0
        %v5478 = vmax.f32 %v5382, 0.0
        %v5479 = vmax.f32 %v5383, 0.0
        %v5480 = vmax.f32 %v5384, 0.0
        %v5481 = vmax.f32 %v5385, 0.0
        %v5482 = vmax.f32 %v5386, 0.0
        %v5483 = vmax.f32 %v5387, 0.0
        %v5484 = vmax.f32 %v5388, 0.0
        %v5485 = vmax.f32 %v5389, 0.0
        %v5486 = vmax.f32 %v5390, 0.0
        %v5487 = vmax.f32 %v5391, 0.0
        %v5488 = vmax.f32 %v5392, 0.0
        %v5489 = vmax.f32 %v5393, 0.0
        %v5490 = vmax.f32 %v5394, 0.0
        %v5491 = vmax.f32 %v5395, 0.0
        %v5492 = vmax.f32 %v5396, 0.0
        %vm5589 = vcmask 1040384
        %v5590 = vrot.slane %v5397, 7
        %v5591 = vrot.slane %v5399, 7
        %v5592 = vsel %vm5589, %v5590, %v5591
        %v5593 = vrot.slane %v5398, 7
        %v5594 = vrot.slane %v5400, 7
        %v5595 = vsel %vm5589, %v5593, %v5594
        %v5596 = vrot.slane %v5401, 7
        %v5597 = vsel %vm5589, %v5591, %v5596
        %v5598 = vrot.slane %v5402, 7
        %v5599 = vsel %vm5589, %v5594, %v5598
        %v5600 = vrot.slane %v5403, 7
        %v5601 = vrot.slane %v5405, 7
        %v5602 = vsel %vm5589, %v5600, %v5601
        %v5603 = vrot.slane %v5404, 7
        %v5604 = vrot.slane %v5406, 7
        %v5605 = vsel %vm5589, %v5603, %v5604
        %v5606 = vrot.slane %v5407, 7
        %v5607 = vsel %vm5589, %v5601, %v5606
        %v5608 = vrot.slane %v5408, 7
        %v5609 = vsel %vm5589, %v5604, %v5608
        %v5610 = vrot.slane %v5409, 7
        %v5611 = vrot.slane %v5411, 7
        %v5612 = vsel %vm5589, %v5610, %v5611
        %v5613 = vrot.slane %v5410, 7
        %v5614 = vrot.slane %v5412, 7
        %v5615 = vsel %vm5589, %v5613, %v5614
        %v5616 = vrot.slane %v5413, 7
        %v5617 = vsel %vm5589, %v5611, %v5616
        %v5618 = vrot.slane %v5414, 7
        %v5619 = vsel %vm5589, %v5614, %v5618
        %v5620 = vrot.slane %v5415, 7
        %v5621 = vrot.slane %v5417, 7
        %v5622 = vsel %vm5589, %v5620, %v5621
        %v5623 = vrot.slane %v5416, 7
        %v5624 = vrot.slane %v5418, 7
        %v5625 = vsel %vm5589, %v5623, %v5624
        %v5626 = vrot.slane %v5419, 7
        %v5627 = vsel %vm5589, %v5621, %v5626
        %v5628 = vrot.slane %v5420, 7
        %v5629 = vsel %vm5589, %v5624, %v5628
        %v5630 = vrot.slane %v5421, 7
        %v5631 = vrot.slane %v5423, 7
        %v5632 = vsel %vm5589, %v5630, %v5631
        %v5633 = vrot.slane %v5422, 7
        %v5634 = vrot.slane %v5424, 7
        %v5635 = vsel %vm5589, %v5633, %v5634
        %v5636 = vrot.slane %v5425, 7
        %v5637 = vsel %vm5589, %v5631, %v5636
        %v5638 = vrot.slane %v5426, 7
        %v5639 = vsel %vm5589, %v5634, %v5638
        %v5640 = vrot.slane %v5427, 7
        %v5641 = vrot.slane %v5429, 7
        %v5642 = vsel %vm5589, %v5640, %v5641
        %v5643 = vrot.slane %v5428, 7
        %v5644 = vrot.slane %v5430, 7
        %v5645 = vsel %vm5589, %v5643, %v5644
        %v5646 = vrot.slane %v5431, 7
        %v5647 = vsel %vm5589, %v5641, %v5646
        %v5648 = vrot.slane %v5432, 7
        %v5649 = vsel %vm5589, %v5644, %v5648
        %v5650 = vrot.slane %v5433, 7
        %v5651 = vrot.slane %v5435, 7
        %v5652 = vsel %vm5589, %v5650, %v5651
        %v5653 = vrot.slane %v5434, 7
        %v5654 = vrot.slane %v5436, 7
        %v5655 = vsel %vm5589, %v5653, %v5654
        %v5656 = vrot.slane %v5437, 7
        %v5657 = vsel %vm5589, %v5651, %v5656
        %v5658 = vrot.slane %v5438, 7
        %v5659 = vsel %vm5589, %v5654, %v5658
        %v5660 = vrot.slane %v5439, 7
        %v5661 = vrot.slane %v5441, 7
        %v5662 = vsel %vm5589, %v5660, %v5661
        %v5663 = vrot.slane %v5440, 7
        %v5664 = vrot.slane %v5442, 7
        %v5665 = vsel %vm5589, %v5663, %v5664
        %v5666 = vrot.slane %v5443, 7
        %v5667 = vsel %vm5589, %v5661, %v5666
        %v5668 = vrot.slane %v5444, 7
        %v5669 = vsel %vm5589, %v5664, %v5668
        %v5670 = vrot.slane %v5445, 7
        %v5671 = vrot.slane %v5447, 7
        %v5672 = vsel %vm5589, %v5670, %v5671
        %v5673 = vrot.slane %v5446, 7
        %v5674 = vrot.slane %v5448, 7
        %v5675 = vsel %vm5589, %v5673, %v5674
        %v5676 = vrot.slane %v5449, 7
        %v5677 = vsel %vm5589, %v5671, %v5676
        %v5678 = vrot.slane %v5450, 7
        %v5679 = vsel %vm5589, %v5674, %v5678
        %v5680 = vrot.slane %v5451, 7
        %v5681 = vrot.slane %v5453, 7
        %v5682 = vsel %vm5589, %v5680, %v5681
        %v5683 = vrot.slane %v5452, 7
        %v5684 = vrot.slane %v5454, 7
        %v5685 = vsel %vm5589, %v5683, %v5684
        %v5686 = vrot.slane %v5455, 7
        %v5687 = vsel %vm5589, %v5681, %v5686
        %v5688 = vrot.slane %v5456, 7
        %v5689 = vsel %vm5589, %v5684, %v5688
        %v5690 = vrot.slane %v5457, 7
        %v5691 = vrot.slane %v5459, 7
        %v5692 = vsel %vm5589, %v5690, %v5691
        %v5693 = vrot.slane %v5458, 7
        %v5694 = vrot.slane %v5460, 7
        %v5695 = vsel %vm5589, %v5693, %v5694
        %v5696 = vrot.slane %v5461, 7
        %v5697 = vsel %vm5589, %v5691, %v5696
        %v5698 = vrot.slane %v5462, 7
        %v5699 = vsel %vm5589, %v5694, %v5698
        %v5700 = vrot.slane %v5463, 7
        %v5701 = vrot.slane %v5465, 7
        %v5702 = vsel %vm5589, %v5700, %v5701
        %v5703 = vrot.slane %v5464, 7
        %v5704 = vrot.slane %v5466, 7
        %v5705 = vsel %vm5589, %v5703, %v5704
        %v5706 = vrot.slane %v5467, 7
        %v5707 = vsel %vm5589, %v5701, %v5706
        %v5708 = vrot.slane %v5468, 7
        %v5709 = vsel %vm5589, %v5704, %v5708
        %v5710 = vrot.slane %v5469, 7
        %v5711 = vrot.slane %v5471, 7
        %v5712 = vsel %vm5589, %v5710, %v5711
        %v5713 = vrot.slane %v5470, 7
        %v5714 = vrot.slane %v5472, 7
        %v5715 = vsel %vm5589, %v5713, %v5714
        %v5716 = vrot.slane %v5473, 7
        %v5717 = vsel %vm5589, %v5711, %v5716
        %v5718 = vrot.slane %v5474, 7
        %v5719 = vsel %vm5589, %v5714, %v5718
        %v5720 = vrot.slane %v5475, 7
        %v5721 = vrot.slane %v5477, 7
        %v5722 = vsel %vm5589, %v5720, %v5721
        %v5723 = vrot.slane %v5476, 7
        %v5724 = vrot.slane %v5478, 7
        %v5725 = vsel %vm5589, %v5723, %v5724
        %v5726 = vrot.slane %v5479, 7
        %v5727 = vsel %vm5589, %v5721, %v5726
        %v5728 = vrot.slane %v5480, 7
        %v5729 = vsel %vm5589, %v5724, %v5728
        %v5730 = vrot.slane %v5481, 7
        %v5731 = vrot.slane %v5483, 7
        %v5732 = vsel %vm5589, %v5730, %v5731
        %v5733 = vrot.slane %v5482, 7
        %v5734 = vrot.slane %v5484, 7
        %v5735 = vsel %vm5589, %v5733, %v5734
        %v5736 = vrot.slane %v5485, 7
        %v5737 = vsel %vm5589, %v5731, %v5736
        %v5738 = vrot.slane %v5486, 7
        %v5739 = vsel %vm5589, %v5734, %v5738
        %v5740 = vrot.slane %v5487, 7
        %v5741 = vrot.slane %v5489, 7
        %v5742 = vsel %vm5589, %v5740, %v5741
        %v5743 = vrot.slane %v5488, 7
        %v5744 = vrot.slane %v5490, 7
        %v5745 = vsel %vm5589, %v5743, %v5744
        %v5746 = vrot.slane %v5491, 7
        %v5747 = vsel %vm5589, %v5741, %v5746
        %v5748 = vrot.slane %v5492, 7
        %v5749 = vsel %vm5589, %v5744, %v5748
        %v5814 = vpack.c.bf16 %v5597, %v5592
        %v5815 = vpack.c.bf16 %v5599, %v5595
        %v5816 = vpack.c.bf16 %v5607, %v5602
        %v5817 = vpack.c.bf16 %v5609, %v5605
        %v5818 = vpack.c.bf16 %v5617, %v5612
        %v5819 = vpack.c.bf16 %v5619, %v5615
        %v5820 = vpack.c.bf16 %v5627, %v5622
        %v5821 = vpack.c.bf16 %v5629, %v5625
        %v5822 = vpack.c.bf16 %v5637, %v5632
        %v5823 = vpack.c.bf16 %v5639, %v5635
        %v5824 = vpack.c.bf16 %v5647, %v5642
        %v5825 = vpack.c.bf16 %v5649, %v5645
        %v5826 = vpack.c.bf16 %v5657, %v5652
        %v5827 = vpack.c.bf16 %v5659, %v5655
        %v5828 = vpack.c.bf16 %v5667, %v5662
        %v5829 = vpack.c.bf16 %v5669, %v5665
        %v5830 = vpack.c.bf16 %v5677, %v5672
        %v5831 = vpack.c.bf16 %v5679, %v5675
        %v5832 = vpack.c.bf16 %v5687, %v5682
        %v5833 = vpack.c.bf16 %v5689, %v5685
        %v5834 = vpack.c.bf16 %v5697, %v5692
        %v5835 = vpack.c.bf16 %v5699, %v5695
        %v5836 = vpack.c.bf16 %v5707, %v5702
        %v5837 = vpack.c.bf16 %v5709, %v5705
        %v5838 = vpack.c.bf16 %v5717, %v5712
        %v5839 = vpack.c.bf16 %v5719, %v5715
        %v5840 = vpack.c.bf16 %v5727, %v5722
        %v5841 = vpack.c.bf16 %v5729, %v5725
        %v5842 = vpack.c.bf16 %v5737, %v5732
        %v5843 = vpack.c.bf16 %v5739, %v5735
        %v5844 = vpack.c.bf16 %v5747, %v5742
        %v5845 = vpack.c.bf16 %v5749, %v5745
        %v5846 = vld [vmem:[#allocation9] sm:$0xff]
        %v5847 = vld [vmem:[#allocation9 + $0x10] sm:$0xff]
        %v5848 = vld [vmem:[#allocation9 + $0x20] sm:$0xff]
        %v5849 = vld [vmem:[#allocation9 + $0x30] sm:$0xff]
        %v5850 = vld [vmem:[#allocation9 + $0x40] sm:$0xff]
        %v5851 = vld [vmem:[#allocation9 + $0x50] sm:$0xff]
        %v5852 = vld [vmem:[#allocation9 + $0x60] sm:$0xff]
        %v5853 = vld [vmem:[#allocation9 + $0x70] sm:$0xff]
        %v5854 = vld [vmem:[#allocation9 + $0x80] sm:$0xff]
        %v5855 = vld [vmem:[#allocation9 + $0x90] sm:$0xff]
        %v5856 = vld [vmem:[#allocation9 + $0xa0] sm:$0xff]
        %v5857 = vld [vmem:[#allocation9 + $0xb0] sm:$0xff]
        %v5858 = vld [vmem:[#allocation9 + $0xc0] sm:$0xff]
        %v5859 = vld [vmem:[#allocation9 + $0xd0] sm:$0xff]
        %v5860 = vld [vmem:[#allocation9 + $0xe0] sm:$0xff]
        %v5861 = vld [vmem:[#allocation9 + $0xf0] sm:$0xff]
        %v5862 = vld [vmem:[#allocation9 + $0x100] sm:$0xff]
        %v5863 = vld [vmem:[#allocation9 + $0x110] sm:$0xff]
        %v5864 = vld [vmem:[#allocation9 + $0x120] sm:$0xff]
        %v5865 = vld [vmem:[#allocation9 + $0x130] sm:$0xff]
        %v5866 = vld [vmem:[#allocation9 + $0x140] sm:$0xff]
        %v5867 = vld [vmem:[#allocation9 + $0x150] sm:$0xff]
        %v5868 = vld [vmem:[#allocation9 + $0x160] sm:$0xff]
        %v5869 = vld [vmem:[#allocation9 + $0x170] sm:$0xff]
        %v5870 = vld [vmem:[#allocation9 + $0x180] sm:$0xff]
        %v5871 = vld [vmem:[#allocation9 + $0x190] sm:$0xff]
        %v5872 = vld [vmem:[#allocation9 + $0x1a0] sm:$0xff]
        %v5873 = vld [vmem:[#allocation9 + $0x1b0] sm:$0xff]
        %v5874 = vld [vmem:[#allocation9 + $0x1c0] sm:$0xff]
        %v5875 = vld [vmem:[#allocation9 + $0x1d0] sm:$0xff]
        %v5876 = vld [vmem:[#allocation9 + $0x1e0] sm:$0xff]
        %v5877 = vld [vmem:[#allocation9 + $0x1f0] sm:$0xff]
        %v5910 = vunpack.c.l.b16 %v5846
        %v5911 = vunpack.c.h.b16 %v5846
        %v5912 = vunpack.c.l.b16 %v5847
        %v5913 = vunpack.c.h.b16 %v5847
        %v5914 = vunpack.c.l.b16 %v5848
        %v5915 = vunpack.c.h.b16 %v5848
        %v5916 = vunpack.c.l.b16 %v5849
        %v5917 = vunpack.c.h.b16 %v5849
        %v5918 = vunpack.c.l.b16 %v5850
        %v5919 = vunpack.c.h.b16 %v5850
        %v5920 = vunpack.c.l.b16 %v5851
        %v5921 = vunpack.c.h.b16 %v5851
        %v5922 = vunpack.c.l.b16 %v5852
        %v5923 = vunpack.c.h.b16 %v5852
        %v5924 = vunpack.c.l.b16 %v5853
        %v5925 = vunpack.c.h.b16 %v5853
        %v5926 = vunpack.c.l.b16 %v5854
        %v5927 = vunpack.c.h.b16 %v5854
        %v5928 = vunpack.c.l.b16 %v5855
        %v5929 = vunpack.c.h.b16 %v5855
        %v5930 = vunpack.c.l.b16 %v5856
        %v5931 = vunpack.c.h.b16 %v5856
        %v5932 = vunpack.c.l.b16 %v5857
        %v5933 = vunpack.c.h.b16 %v5857
        %v5934 = vunpack.c.l.b16 %v5858
        %v5935 = vunpack.c.h.b16 %v5858
        %v5936 = vunpack.c.l.b16 %v5859
        %v5937 = vunpack.c.h.b16 %v5859
        %v5938 = vunpack.c.l.b16 %v5860
        %v5939 = vunpack.c.h.b16 %v5860
        %v5940 = vunpack.c.l.b16 %v5861
        %v5941 = vunpack.c.h.b16 %v5861
        %v5942 = vunpack.c.l.b16 %v5862
        %v5943 = vunpack.c.h.b16 %v5862
        %v5944 = vunpack.c.l.b16 %v5863
        %v5945 = vunpack.c.h.b16 %v5863
        %v5946 = vunpack.c.l.b16 %v5864
        %v5947 = vunpack.c.h.b16 %v5864
        %v5948 = vunpack.c.l.b16 %v5865
        %v5949 = vunpack.c.h.b16 %v5865
        %v5950 = vunpack.c.l.b16 %v5866
        %v5951 = vunpack.c.h.b16 %v5866
        %v5952 = vunpack.c.l.b16 %v5867
        %v5953 = vunpack.c.h.b16 %v5867
        %v5954 = vunpack.c.l.b16 %v5868
        %v5955 = vunpack.c.h.b16 %v5868
        %v5956 = vunpack.c.l.b16 %v5869
        %v5957 = vunpack.c.h.b16 %v5869
        %v5958 = vunpack.c.l.b16 %v5870
        %v5959 = vunpack.c.h.b16 %v5870
        %v5960 = vunpack.c.l.b16 %v5871
        %v5961 = vunpack.c.h.b16 %v5871
        %v5962 = vunpack.c.l.b16 %v5872
        %v5963 = vunpack.c.h.b16 %v5872
        %v5964 = vunpack.c.l.b16 %v5873
        %v5965 = vunpack.c.h.b16 %v5873
        %v5966 = vunpack.c.l.b16 %v5874
        %v5967 = vunpack.c.h.b16 %v5874
        %v5968 = vunpack.c.l.b16 %v5875
        %v5969 = vunpack.c.h.b16 %v5875
        %v5970 = vunpack.c.l.b16 %v5876
        %v5971 = vunpack.c.h.b16 %v5876
        %v5972 = vunpack.c.l.b16 %v5877
        %v5973 = vunpack.c.h.b16 %v5877
        %v5974 = vpack.c.b16 %v5912, %v5910
        %v5975 = vpack.c.b16 %v5913, %v5911
        %v5976 = vpack.c.b16 %v5916, %v5914
        %v5977 = vpack.c.b16 %v5917, %v5915
        %v5978 = vpack.c.b16 %v5920, %v5918
        %v5979 = vpack.c.b16 %v5921, %v5919
        %v5980 = vpack.c.b16 %v5924, %v5922
        %v5981 = vpack.c.b16 %v5925, %v5923
        %v5982 = vpack.c.b16 %v5928, %v5926
        %v5983 = vpack.c.b16 %v5929, %v5927
        %v5984 = vpack.c.b16 %v5932, %v5930
        %v5985 = vpack.c.b16 %v5933, %v5931
        %v5986 = vpack.c.b16 %v5936, %v5934
        %v5987 = vpack.c.b16 %v5937, %v5935
        %v5988 = vpack.c.b16 %v5940, %v5938
        %v5989 = vpack.c.b16 %v5941, %v5939
        %v5990 = vpack.c.b16 %v5944, %v5942
        %v5991 = vpack.c.b16 %v5945, %v5943
        %v5992 = vpack.c.b16 %v5948, %v5946
        %v5993 = vpack.c.b16 %v5949, %v5947
        %v5994 = vpack.c.b16 %v5952, %v5950
        %v5995 = vpack.c.b16 %v5953, %v5951
        %v5996 = vpack.c.b16 %v5956, %v5954
        %v5997 = vpack.c.b16 %v5957, %v5955
        %v5998 = vpack.c.b16 %v5960, %v5958
        %v5999 = vpack.c.b16 %v5961, %v5959
        %v6000 = vpack.c.b16 %v5964, %v5962
        %v6001 = vpack.c.b16 %v5965, %v5963
        %v6002 = vpack.c.b16 %v5968, %v5966
        %v6003 = vpack.c.b16 %v5969, %v5967
        %v6004 = vpack.c.b16 %v5972, %v5970
        %v6005 = vpack.c.b16 %v5973, %v5971
        %6038 = vmatprep.subr.bf16.mxu0 %v5975
        %6039 = vmatpush1.bf16.msra.mxu0 %v5974
        %6040 = vmatprep.subr.bf16.mxu0 %v5977
        %6041 = vmatpush1.bf16.msra.mxu0 %v5976
        %6042 = vmatprep.subr.bf16.mxu0 %v5979
        %6043 = vmatpush1.bf16.msra.mxu0 %v5978
        %6044 = vmatprep.subr.bf16.mxu0 %v5981
        %6045 = vmatpush1.bf16.msra.mxu0 %v5980
        %6046 = vmatprep.subr.bf16.mxu0 %v5983
        %6047 = vmatpush1.bf16.msra.mxu0 %v5982
        %6048 = vmatprep.subr.bf16.mxu0 %v5985
        %6049 = vmatpush1.bf16.msra.mxu0 %v5984
        %6050 = vmatprep.subr.bf16.mxu0 %v5987
        %6051 = vmatpush1.bf16.msra.mxu0 %v5986
        %6052 = vmatprep.subr.bf16.mxu0 %v5989
        %6053 = vmatpush1.bf16.msra.mxu0 %v5988
        %6054 = vmatprep.subr.bf16.mxu0 %v5991
        %6055 = vmatpush1.bf16.msra.mxu0 %v5990
        %6056 = vmatprep.subr.bf16.mxu0 %v5993
        %6057 = vmatpush1.bf16.msra.mxu0 %v5992
        %6058 = vmatprep.subr.bf16.mxu0 %v5995
        %6059 = vmatpush1.bf16.msra.mxu0 %v5994
        %6060 = vmatprep.subr.bf16.mxu0 %v5997
        %6061 = vmatpush1.bf16.msra.mxu0 %v5996
        %6062 = vmatprep.subr.bf16.mxu0 %v5999
        %6063 = vmatpush1.bf16.msra.mxu0 %v5998
        %6064 = vmatprep.subr.bf16.mxu0 %v6001
        %6065 = vmatpush1.bf16.msra.mxu0 %v6000
        %6066 = vmatprep.subr.bf16.mxu0 %v6003
        %6067 = vmatpush1.bf16.msra.mxu0 %v6002
        %6068 = vmatprep.subr.bf16.mxu0 %v6005
        %6069 = vmatpush1.bf16.msra.mxu0 %v6004
        %6070 = vmatprep.mubr.bf16.mxu0 %v5815
        %6071 = vmatmul.mubr.bf16.gmra.mrb[0].mxu0 %v5814
        %v6072 = vpop.f32.mrb[0].mxu0
        %v6073 = vadd.f32 0.0, %v6072
        %v6074 = vpop.f32.mrb[0].mxu0
        %v6075 = vadd.f32 0.0, %v6074
        %v6076 = vpop.f32.mrb[0].mxu0
        %v6077 = vadd.f32 0.0, %v6076
        %v6078 = vpop.f32.mrb[0].mxu0
        %v6079 = vadd.f32 0.0, %v6078
        %6080 = vmatprep.mubr.bf16.mxu0 %v5817
        %6081 = vmatmul.mubr.bf16.gmra.mrb[0].mxu0 %v5816
        %v6082 = vpop.f32.mrb[0].mxu0
        %v6083 = vadd.f32 0.0, %v6082
        %v6084 = vpop.f32.mrb[0].mxu0
        %v6085 = vadd.f32 0.0, %v6084
        %v6086 = vpop.f32.mrb[0].mxu0
        %v6087 = vadd.f32 0.0, %v6086
        %v6088 = vpop.f32.mrb[0].mxu0
        %v6089 = vadd.f32 0.0, %v6088
        %6090 = vmatprep.mubr.bf16.mxu0 %v5819
        %6091 = vmatmul.mubr.bf16.gmra.mrb[0].mxu0 %v5818
        %v6092 = vpop.f32.mrb[0].mxu0
        %v6093 = vadd.f32 0.0, %v6092
        %v6094 = vpop.f32.mrb[0].mxu0
        %v6095 = vadd.f32 0.0, %v6094
        %v6096 = vpop.f32.mrb[0].mxu0
        %v6097 = vadd.f32 0.0, %v6096
        %v6098 = vpop.f32.mrb[0].mxu0
        %v6099 = vadd.f32 0.0, %v6098
        %6100 = vmatprep.mubr.bf16.mxu0 %v5821
        %6101 = vmatmul.mubr.bf16.gmra.mrb[0].mxu0 %v5820
        %v6102 = vpop.f32.mrb[0].mxu0
        %v6103 = vadd.f32 0.0, %v6102
        %v6104 = vpop.f32.mrb[0].mxu0
        %v6105 = vadd.f32 0.0, %v6104
        %v6106 = vpop.f32.mrb[0].mxu0
        %v6107 = vadd.f32 0.0, %v6106
        %v6108 = vpop.f32.mrb[0].mxu0
        %v6109 = vadd.f32 0.0, %v6108
        %6110 = vmatprep.mubr.bf16.mxu0 %v5823
        %6111 = vmatmul.mubr.bf16.gmra.mrb[0].mxu0 %v5822
        %v6112 = vpop.f32.mrb[0].mxu0
        %v6113 = vadd.f32 0.0, %v6112
        %v6114 = vpop.f32.mrb[0].mxu0
        %v6115 = vadd.f32 0.0, %v6114
        %v6116 = vpop.f32.mrb[0].mxu0
        %v6117 = vadd.f32 0.0, %v6116
        %v6118 = vpop.f32.mrb[0].mxu0
        %v6119 = vadd.f32 0.0, %v6118
        %6120 = vmatprep.mubr.bf16.mxu0 %v5825
        %6121 = vmatmul.mubr.bf16.gmra.mrb[0].mxu0 %v5824
        %v6122 = vpop.f32.mrb[0].mxu0
        %v6123 = vadd.f32 0.0, %v6122
        %v6124 = vpop.f32.mrb[0].mxu0
        %v6125 = vadd.f32 0.0, %v6124
        %v6126 = vpop.f32.mrb[0].mxu0
        %v6127 = vadd.f32 0.0, %v6126
        %v6128 = vpop.f32.mrb[0].mxu0
        %v6129 = vadd.f32 0.0, %v6128
        %6130 = vmatprep.mubr.bf16.mxu0 %v5827
        %6131 = vmatmul.mubr.bf16.gmra.mrb[0].mxu0 %v5826
        %v6132 = vpop.f32.mrb[0].mxu0
        %v6133 = vadd.f32 0.0, %v6132
        %v6134 = vpop.f32.mrb[0].mxu0
        %v6135 = vadd.f32 0.0, %v6134
        %v6136 = vpop.f32.mrb[0].mxu0
        %v6137 = vadd.f32 0.0, %v6136
        %v6138 = vpop.f32.mrb[0].mxu0
        %v6139 = vadd.f32 0.0, %v6138
        %6140 = vmatprep.mubr.bf16.mxu0 %v5829
        %6141 = vmatmul.mubr.bf16.gmra.mrb[0].mxu0 %v5828
        %v6142 = vpop.f32.mrb[0].mxu0
        %v6143 = vadd.f32 0.0, %v6142
        %v6144 = vpop.f32.mrb[0].mxu0
        %v6145 = vadd.f32 0.0, %v6144
        %v6146 = vpop.f32.mrb[0].mxu0
        %v6147 = vadd.f32 0.0, %v6146
        %v6148 = vpop.f32.mrb[0].mxu0
        %v6149 = vadd.f32 0.0, %v6148
        %6150 = vmatprep.mubr.bf16.mxu0 %v5831
        %6151 = vmatmul.mubr.bf16.gmra.mrb[0].mxu0 %v5830
        %v6152 = vpop.f32.mrb[0].mxu0
        %v6153 = vadd.f32 0.0, %v6152
        %v6154 = vpop.f32.mrb[0].mxu0
        %v6155 = vadd.f32 0.0, %v6154
        %v6156 = vpop.f32.mrb[0].mxu0
        %v6157 = vadd.f32 0.0, %v6156
        %v6158 = vpop.f32.mrb[0].mxu0
        %v6159 = vadd.f32 0.0, %v6158
        %6160 = vmatprep.mubr.bf16.mxu0 %v5833
        %6161 = vmatmul.mubr.bf16.gmra.mrb[0].mxu0 %v5832
        %v6162 = vpop.f32.mrb[0].mxu0
        %v6163 = vadd.f32 0.0, %v6162
        %v6164 = vpop.f32.mrb[0].mxu0
        %v6165 = vadd.f32 0.0, %v6164
        %v6166 = vpop.f32.mrb[0].mxu0
        %v6167 = vadd.f32 0.0, %v6166
        %v6168 = vpop.f32.mrb[0].mxu0
        %v6169 = vadd.f32 0.0, %v6168
        %6170 = vmatprep.mubr.bf16.mxu0 %v5835
        %6171 = vmatmul.mubr.bf16.gmra.mrb[0].mxu0 %v5834
        %v6172 = vpop.f32.mrb[0].mxu0
        %v6173 = vadd.f32 0.0, %v6172
        %v6174 = vpop.f32.mrb[0].mxu0
        %v6175 = vadd.f32 0.0, %v6174
        %v6176 = vpop.f32.mrb[0].mxu0
        %v6177 = vadd.f32 0.0, %v6176
        %v6178 = vpop.f32.mrb[0].mxu0
        %v6179 = vadd.f32 0.0, %v6178
        %6180 = vmatprep.mubr.bf16.mxu0 %v5837
        %6181 = vmatmul.mubr.bf16.gmra.mrb[0].mxu0 %v5836
        %v6182 = vpop.f32.mrb[0].mxu0
        %v6183 = vadd.f32 0.0, %v6182
        %v6184 = vpop.f32.mrb[0].mxu0
        %v6185 = vadd.f32 0.0, %v6184
        %v6186 = vpop.f32.mrb[0].mxu0
        %v6187 = vadd.f32 0.0, %v6186
        %v6188 = vpop.f32.mrb[0].mxu0
        %v6189 = vadd.f32 0.0, %v6188
        %6190 = vmatprep.mubr.bf16.mxu0 %v5839
        %6191 = vmatmul.mubr.bf16.gmra.mrb[0].mxu0 %v5838
        %v6192 = vpop.f32.mrb[0].mxu0
        %v6193 = vadd.f32 0.0, %v6192
        %v6194 = vpop.f32.mrb[0].mxu0
        %v6195 = vadd.f32 0.0, %v6194
        %v6196 = vpop.f32.mrb[0].mxu0
        %v6197 = vadd.f32 0.0, %v6196
        %v6198 = vpop.f32.mrb[0].mxu0
        %v6199 = vadd.f32 0.0, %v6198
        %6200 = vmatprep.mubr.bf16.mxu0 %v5841
        %6201 = vmatmul.mubr.bf16.gmra.mrb[0].mxu0 %v5840
        %v6202 = vpop.f32.mrb[0].mxu0
        %v6203 = vadd.f32 0.0, %v6202
        %v6204 = vpop.f32.mrb[0].mxu0
        %v6205 = vadd.f32 0.0, %v6204
        %v6206 = vpop.f32.mrb[0].mxu0
        %v6207 = vadd.f32 0.0, %v6206
        %v6208 = vpop.f32.mrb[0].mxu0
        %v6209 = vadd.f32 0.0, %v6208
        %6210 = vmatprep.mubr.bf16.mxu0 %v5843
        %6211 = vmatmul.mubr.bf16.gmra.mrb[0].mxu0 %v5842
        %v6212 = vpop.f32.mrb[0].mxu0
        %v6213 = vadd.f32 0.0, %v6212
        %v6214 = vpop.f32.mrb[0].mxu0
        %v6215 = vadd.f32 0.0, %v6214
        %v6216 = vpop.f32.mrb[0].mxu0
        %v6217 = vadd.f32 0.0, %v6216
        %v6218 = vpop.f32.mrb[0].mxu0
        %v6219 = vadd.f32 0.0, %v6218
        %6220 = vmatprep.mubr.bf16.mxu0 %v5845
        %6221 = vmatmul.mubr.bf16.gmra.mrb[0].mxu0 %v5844
        %v6222 = vpop.f32.mrb[0].mxu0
        %v6223 = vadd.f32 0.0, %v6222
        %v6224 = vpop.f32.mrb[0].mxu0
        %v6225 = vadd.f32 0.0, %v6224
        %v6226 = vpop.f32.mrb[0].mxu0
        %v6227 = vadd.f32 0.0, %v6226
        %v6228 = vpop.f32.mrb[0].mxu0
        %v6229 = vadd.f32 0.0, %v6228
        %6230 = vdwg.mxu0
        %v6231 = vmul.f32 %v6073, 0.5
        %v6232 = vmul.f32 %v6075, 0.5
        %v6233 = vmul.f32 %v6077, 0.5
        %v6234 = vmul.f32 %v6079, 0.5
        %v6235 = vmul.f32 %v6083, 0.5
        %v6236 = vmul.f32 %v6085, 0.5
        %v6237 = vmul.f32 %v6087, 0.5
        %v6238 = vmul.f32 %v6089, 0.5
        %v6239 = vmul.f32 %v6093, 0.5
        %v6240 = vmul.f32 %v6095, 0.5
        %v6241 = vmul.f32 %v6097, 0.5
        %v6242 = vmul.f32 %v6099, 0.5
        %v6243 = vmul.f32 %v6103, 0.5
        %v6244 = vmul.f32 %v6105, 0.5
        %v6245 = vmul.f32 %v6107, 0.5
        %v6246 = vmul.f32 %v6109, 0.5
        %v6247 = vmul.f32 %v6113, 0.5
        %v6248 = vmul.f32 %v6115, 0.5
        %v6249 = vmul.f32 %v6117, 0.5
        %v6250 = vmul.f32 %v6119, 0.5
        %v6251 = vmul.f32 %v6123, 0.5
        %v6252 = vmul.f32 %v6125, 0.5
        %v6253 = vmul.f32 %v6127, 0.5
        %v6254 = vmul.f32 %v6129, 0.5
        %v6255 = vmul.f32 %v6133, 0.5
        %v6256 = vmul.f32 %v6135, 0.5
        %v6257 = vmul.f32 %v6137, 0.5
        %v6258 = vmul.f32 %v6139, 0.5
        %v6259 = vmul.f32 %v6143, 0.5
        %v6260 = vmul.f32 %v6145, 0.5
        %v6261 = vmul.f32 %v6147, 0.5
        %v6262 = vmul.f32 %v6149, 0.5
        %v6263 = vmul.f32 %v6153, 0.5
        %v6264 = vmul.f32 %v6155, 0.5
        %v6265 = vmul.f32 %v6157, 0.5
        %v6266 = vmul.f32 %v6159, 0.5
        %v6267 = vmul.f32 %v6163, 0.5
        %v6268 = vmul.f32 %v6165, 0.5
        %v6269 = vmul.f32 %v6167, 0.5
        %v6270 = vmul.f32 %v6169, 0.5
        %v6271 = vmul.f32 %v6173, 0.5
        %v6272 = vmul.f32 %v6175, 0.5
        %v6273 = vmul.f32 %v6177, 0.5
        %v6274 = vmul.f32 %v6179, 0.5
        %v6275 = vmul.f32 %v6183, 0.5
        %v6276 = vmul.f32 %v6185, 0.5
        %v6277 = vmul.f32 %v6187, 0.5
        %v6278 = vmul.f32 %v6189, 0.5
        %v6279 = vmul.f32 %v6193, 0.5
        %v6280 = vmul.f32 %v6195, 0.5
        %v6281 = vmul.f32 %v6197, 0.5
        %v6282 = vmul.f32 %v6199, 0.5
        %v6283 = vmul.f32 %v6203, 0.5
        %v6284 = vmul.f32 %v6205, 0.5
        %v6285 = vmul.f32 %v6207, 0.5
        %v6286 = vmul.f32 %v6209, 0.5
        %v6287 = vmul.f32 %v6213, 0.5
        %v6288 = vmul.f32 %v6215, 0.5
        %v6289 = vmul.f32 %v6217, 0.5
        %v6290 = vmul.f32 %v6219, 0.5
        %v6291 = vmul.f32 %v6223, 0.5
        %v6292 = vmul.f32 %v6225, 0.5
        %v6293 = vmul.f32 %v6227, 0.5
        %v6294 = vmul.f32 %v6229, 0.5
        %v6295 = vtanh.pop %v6231
        %v6296 = vtanh.pop %v6232
        %v6297 = vtanh.pop %v6233
        %v6298 = vtanh.pop %v6234
        %v6299 = vtanh.pop %v6235
        %v6300 = vtanh.pop %v6236
        %v6301 = vtanh.pop %v6237
        %v6302 = vtanh.pop %v6238
        %v6303 = vtanh.pop %v6239
        %v6304 = vtanh.pop %v6240
        %v6305 = vtanh.pop %v6241
        %v6306 = vtanh.pop %v6242
        %v6307 = vtanh.pop %v6243
        %v6308 = vtanh.pop %v6244
        %v6309 = vtanh.pop %v6245
        %v6310 = vtanh.pop %v6246
        %v6311 = vtanh.pop %v6247
        %v6312 = vtanh.pop %v6248
        %v6313 = vtanh.pop %v6249
        %v6314 = vtanh.pop %v6250
        %v6315 = vtanh.pop %v6251
        %v6316 = vtanh.pop %v6252
        %v6317 = vtanh.pop %v6253
        %v6318 = vtanh.pop %v6254
        %v6319 = vtanh.pop %v6255
        %v6320 = vtanh.pop %v6256
        %v6321 = vtanh.pop %v6257
        %v6322 = vtanh.pop %v6258
        %v6323 = vtanh.pop %v6259
        %v6324 = vtanh.pop %v6260
        %v6325 = vtanh.pop %v6261
        %v6326 = vtanh.pop %v6262
        %v6327 = vtanh.pop %v6263
        %v6328 = vtanh.pop %v6264
        %v6329 = vtanh.pop %v6265
        %v6330 = vtanh.pop %v6266
        %v6331 = vtanh.pop %v6267
        %v6332 = vtanh.pop %v6268
        %v6333 = vtanh.pop %v6269
        %v6334 = vtanh.pop %v6270
        %v6335 = vtanh.pop %v6271
        %v6336 = vtanh.pop %v6272
        %v6337 = vtanh.pop %v6273
        %v6338 = vtanh.pop %v6274
        %v6339 = vtanh.pop %v6275
        %v6340 = vtanh.pop %v6276
        %v6341 = vtanh.pop %v6277
        %v6342 = vtanh.pop %v6278
        %v6343 = vtanh.pop %v6279
        %v6344 = vtanh.pop %v6280
        %v6345 = vtanh.pop %v6281
        %v6346 = vtanh.pop %v6282
        %v6347 = vtanh.pop %v6283
        %v6348 = vtanh.pop %v6284
        %v6349 = vtanh.pop %v6285
        %v6350 = vtanh.pop %v6286
        %v6351 = vtanh.pop %v6287
        %v6352 = vtanh.pop %v6288
        %v6353 = vtanh.pop %v6289
        %v6354 = vtanh.pop %v6290
        %v6355 = vtanh.pop %v6291
        %v6356 = vtanh.pop %v6292
        %v6357 = vtanh.pop %v6293
        %v6358 = vtanh.pop %v6294
        %v6359 = vadd.f32 %v6295, 1.0
        %v6360 = vadd.f32 %v6296, 1.0
        %v6361 = vadd.f32 %v6297, 1.0
        %v6362 = vadd.f32 %v6298, 1.0
        %v6363 = vadd.f32 %v6299, 1.0
        %v6364 = vadd.f32 %v6300, 1.0
        %v6365 = vadd.f32 %v6301, 1.0
        %v6366 = vadd.f32 %v6302, 1.0
        %v6367 = vadd.f32 %v6303, 1.0
        %v6368 = vadd.f32 %v6304, 1.0
        %v6369 = vadd.f32 %v6305, 1.0
        %v6370 = vadd.f32 %v6306, 1.0
        %v6371 = vadd.f32 %v6307, 1.0
        %v6372 = vadd.f32 %v6308, 1.0
        %v6373 = vadd.f32 %v6309, 1.0
        %v6374 = vadd.f32 %v6310, 1.0
        %v6375 = vadd.f32 %v6311, 1.0
        %v6376 = vadd.f32 %v6312, 1.0
        %v6377 = vadd.f32 %v6313, 1.0
        %v6378 = vadd.f32 %v6314, 1.0
        %v6379 = vadd.f32 %v6315, 1.0
        %v6380 = vadd.f32 %v6316, 1.0
        %v6381 = vadd.f32 %v6317, 1.0
        %v6382 = vadd.f32 %v6318, 1.0
        %v6383 = vadd.f32 %v6319, 1.0
        %v6384 = vadd.f32 %v6320, 1.0
        %v6385 = vadd.f32 %v6321, 1.0
        %v6386 = vadd.f32 %v6322, 1.0
        %v6387 = vadd.f32 %v6323, 1.0
        %v6388 = vadd.f32 %v6324, 1.0
        %v6389 = vadd.f32 %v6325, 1.0
        %v6390 = vadd.f32 %v6326, 1.0
        %v6391 = vadd.f32 %v6327, 1.0
        %v6392 = vadd.f32 %v6328, 1.0
        %v6393 = vadd.f32 %v6329, 1.0
        %v6394 = vadd.f32 %v6330, 1.0
        %v6395 = vadd.f32 %v6331, 1.0
        %v6396 = vadd.f32 %v6332, 1.0
        %v6397 = vadd.f32 %v6333, 1.0
        %v6398 = vadd.f32 %v6334, 1.0
        %v6399 = vadd.f32 %v6335, 1.0
        %v6400 = vadd.f32 %v6336, 1.0
        %v6401 = vadd.f32 %v6337, 1.0
        %v6402 = vadd.f32 %v6338, 1.0
        %v6403 = vadd.f32 %v6339, 1.0
        %v6404 = vadd.f32 %v6340, 1.0
        %v6405 = vadd.f32 %v6341, 1.0
        %v6406 = vadd.f32 %v6342, 1.0
        %v6407 = vadd.f32 %v6343, 1.0
        %v6408 = vadd.f32 %v6344, 1.0
        %v6409 = vadd.f32 %v6345, 1.0
        %v6410 = vadd.f32 %v6346, 1.0
        %v6411 = vadd.f32 %v6347, 1.0
        %v6412 = vadd.f32 %v6348, 1.0
        %v6413 = vadd.f32 %v6349, 1.0
        %v6414 = vadd.f32 %v6350, 1.0
        %v6415 = vadd.f32 %v6351, 1.0
        %v6416 = vadd.f32 %v6352, 1.0
        %v6417 = vadd.f32 %v6353, 1.0
        %v6418 = vadd.f32 %v6354, 1.0
        %v6419 = vadd.f32 %v6355, 1.0
        %v6420 = vadd.f32 %v6356, 1.0
        %v6421 = vadd.f32 %v6357, 1.0
        %v6422 = vadd.f32 %v6358, 1.0
        %v6423 = vmul.f32 %v6359, 0.5
        %v6424 = vmul.f32 %v6360, 0.5
        %v6425 = vmul.f32 %v6361, 0.5
        %v6426 = vmul.f32 %v6362, 0.5
        %v6427 = vmul.f32 %v6363, 0.5
        %v6428 = vmul.f32 %v6364, 0.5
        %v6429 = vmul.f32 %v6365, 0.5
        %v6430 = vmul.f32 %v6366, 0.5
        %v6431 = vmul.f32 %v6367, 0.5
        %v6432 = vmul.f32 %v6368, 0.5
        %v6433 = vmul.f32 %v6369, 0.5
        %v6434 = vmul.f32 %v6370, 0.5
        %v6435 = vmul.f32 %v6371, 0.5
        %v6436 = vmul.f32 %v6372, 0.5
        %v6437 = vmul.f32 %v6373, 0.5
        %v6438 = vmul.f32 %v6374, 0.5
        %v6439 = vmul.f32 %v6375, 0.5
        %v6440 = vmul.f32 %v6376, 0.5
        %v6441 = vmul.f32 %v6377, 0.5
        %v6442 = vmul.f32 %v6378, 0.5
        %v6443 = vmul.f32 %v6379, 0.5
        %v6444 = vmul.f32 %v6380, 0.5
        %v6445 = vmul.f32 %v6381, 0.5
        %v6446 = vmul.f32 %v6382, 0.5
        %v6447 = vmul.f32 %v6383, 0.5
        %v6448 = vmul.f32 %v6384, 0.5
        %v6449 = vmul.f32 %v6385, 0.5
        %v6450 = vmul.f32 %v6386, 0.5
        %v6451 = vmul.f32 %v6387, 0.5
        %v6452 = vmul.f32 %v6388, 0.5
        %v6453 = vmul.f32 %v6389, 0.5
        %v6454 = vmul.f32 %v6390, 0.5
        %v6455 = vmul.f32 %v6391, 0.5
        %v6456 = vmul.f32 %v6392, 0.5
        %v6457 = vmul.f32 %v6393, 0.5
        %v6458 = vmul.f32 %v6394, 0.5
        %v6459 = vmul.f32 %v6395, 0.5
        %v6460 = vmul.f32 %v6396, 0.5
        %v6461 = vmul.f32 %v6397, 0.5
        %v6462 = vmul.f32 %v6398, 0.5
        %v6463 = vmul.f32 %v6399, 0.5
        %v6464 = vmul.f32 %v6400, 0.5
        %v6465 = vmul.f32 %v6401, 0.5
        %v6466 = vmul.f32 %v6402, 0.5
        %v6467 = vmul.f32 %v6403, 0.5
        %v6468 = vmul.f32 %v6404, 0.5
        %v6469 = vmul.f32 %v6405, 0.5
        %v6470 = vmul.f32 %v6406, 0.5
        %v6471 = vmul.f32 %v6407, 0.5
        %v6472 = vmul.f32 %v6408, 0.5
        %v6473 = vmul.f32 %v6409, 0.5
        %v6474 = vmul.f32 %v6410, 0.5
        %v6475 = vmul.f32 %v6411, 0.5
        %v6476 = vmul.f32 %v6412, 0.5
        %v6477 = vmul.f32 %v6413, 0.5
        %v6478 = vmul.f32 %v6414, 0.5
        %v6479 = vmul.f32 %v6415, 0.5
        %v6480 = vmul.f32 %v6416, 0.5
        %v6481 = vmul.f32 %v6417, 0.5
        %v6482 = vmul.f32 %v6418, 0.5
        %v6483 = vmul.f32 %v6419, 0.5
        %v6484 = vmul.f32 %v6420, 0.5
        %v6485 = vmul.f32 %v6421, 0.5
        %v6486 = vmul.f32 %v6422, 0.5
        %v6487 = vmul.f32 %v681, %v6423
        %v6488 = vmul.f32 %v683, %v6424
        %v6489 = vmul.f32 %v685, %v6425
        %v6490 = vmul.f32 %v687, %v6426
        %v6491 = vmul.f32 %v691, %v6427
        %v6492 = vmul.f32 %v693, %v6428
        %v6493 = vmul.f32 %v695, %v6429
        %v6494 = vmul.f32 %v697, %v6430
        %v6495 = vmul.f32 %v701, %v6431
        %v6496 = vmul.f32 %v703, %v6432
        %v6497 = vmul.f32 %v705, %v6433
        %v6498 = vmul.f32 %v707, %v6434
        %v6499 = vmul.f32 %v711, %v6435
        %v6500 = vmul.f32 %v713, %v6436
        %v6501 = vmul.f32 %v715, %v6437
        %v6502 = vmul.f32 %v717, %v6438
        %v6503 = vmul.f32 %v721, %v6439
        %v6504 = vmul.f32 %v723, %v6440
        %v6505 = vmul.f32 %v725, %v6441
        %v6506 = vmul.f32 %v727, %v6442
        %v6507 = vmul.f32 %v731, %v6443
        %v6508 = vmul.f32 %v733, %v6444
        %v6509 = vmul.f32 %v735, %v6445
        %v6510 = vmul.f32 %v737, %v6446
        %v6511 = vmul.f32 %v741, %v6447
        %v6512 = vmul.f32 %v743, %v6448
        %v6513 = vmul.f32 %v745, %v6449
        %v6514 = vmul.f32 %v747, %v6450
        %v6515 = vmul.f32 %v751, %v6451
        %v6516 = vmul.f32 %v753, %v6452
        %v6517 = vmul.f32 %v755, %v6453
        %v6518 = vmul.f32 %v757, %v6454
        %v6519 = vmul.f32 %v761, %v6455
        %v6520 = vmul.f32 %v763, %v6456
        %v6521 = vmul.f32 %v765, %v6457
        %v6522 = vmul.f32 %v767, %v6458
        %v6523 = vmul.f32 %v771, %v6459
        %v6524 = vmul.f32 %v773, %v6460
        %v6525 = vmul.f32 %v775, %v6461
        %v6526 = vmul.f32 %v777, %v6462
        %v6527 = vmul.f32 %v781, %v6463
        %v6528 = vmul.f32 %v783, %v6464
        %v6529 = vmul.f32 %v785, %v6465
        %v6530 = vmul.f32 %v787, %v6466
        %v6531 = vmul.f32 %v791, %v6467
        %v6532 = vmul.f32 %v793, %v6468
        %v6533 = vmul.f32 %v795, %v6469
        %v6534 = vmul.f32 %v797, %v6470
        %v6535 = vmul.f32 %v801, %v6471
        %v6536 = vmul.f32 %v803, %v6472
        %v6537 = vmul.f32 %v805, %v6473
        %v6538 = vmul.f32 %v807, %v6474
        %v6539 = vmul.f32 %v811, %v6475
        %v6540 = vmul.f32 %v813, %v6476
        %v6541 = vmul.f32 %v815, %v6477
        %v6542 = vmul.f32 %v817, %v6478
        %v6543 = vmul.f32 %v821, %v6479
        %v6544 = vmul.f32 %v823, %v6480
        %v6545 = vmul.f32 %v825, %v6481
        %v6546 = vmul.f32 %v827, %v6482
        %v6547 = vmul.f32 %v831, %v6483
        %v6548 = vmul.f32 %v833, %v6484
        %v6549 = vmul.f32 %v835, %v6485
        %v6550 = vmul.f32 %v837, %v6486
        %v6551 = vadd.f32 %v6487, %v6489
        %v6552 = vadd.f32 %v6551, %v6491
        %v6553 = vadd.f32 %v6552, %v6493
        %v6554 = vadd.f32 %v6553, %v6495
        %v6555 = vadd.f32 %v6554, %v6497
        %v6556 = vadd.f32 %v6555, %v6499
        %v6557 = vadd.f32 %v6556, %v6501
        %v6558 = vadd.f32 %v6557, %v6503
        %v6559 = vadd.f32 %v6558, %v6505
        %v6560 = vadd.f32 %v6559, %v6507
        %v6561 = vadd.f32 %v6560, %v6509
        %v6562 = vadd.f32 %v6561, %v6511
        %v6563 = vadd.f32 %v6562, %v6513
        %v6564 = vadd.f32 %v6563, %v6515
        %v6565 = vadd.f32 %v6564, %v6517
        %v6566 = vadd.f32 %v6565, %v6519
        %v6567 = vadd.f32 %v6566, %v6521
        %v6568 = vadd.f32 %v6567, %v6523
        %v6569 = vadd.f32 %v6568, %v6525
        %v6570 = vadd.f32 %v6569, %v6527
        %v6571 = vadd.f32 %v6570, %v6529
        %v6572 = vadd.f32 %v6571, %v6531
        %v6573 = vadd.f32 %v6572, %v6533
        %v6574 = vadd.f32 %v6573, %v6535
        %v6575 = vadd.f32 %v6574, %v6537
        %v6576 = vadd.f32 %v6575, %v6539
        %v6577 = vadd.f32 %v6576, %v6541
        %v6578 = vadd.f32 %v6577, %v6543
        %v6579 = vadd.f32 %v6578, %v6545
        %v6580 = vadd.f32 %v6579, %v6547
        %v6581 = vadd.f32 %v6580, %v6549
        %v6582 = vrot.slane %v6581, 4
        %v6583 = vadd.f32 %v6581, %v6582
        %v6584 = vrot.slane %v6583, 2
        %v6585 = vadd.f32 %v6583, %v6584
        %v6586 = vrot.slane %v6585, 1
        %v6587 = vadd.f32 %v6585, %v6586
        %v6588 = vadd.f32 %v6488, %v6490
        %v6589 = vadd.f32 %v6588, %v6492
        %v6590 = vadd.f32 %v6589, %v6494
        %v6591 = vadd.f32 %v6590, %v6496
        %v6592 = vadd.f32 %v6591, %v6498
        %v6593 = vadd.f32 %v6592, %v6500
        %v6594 = vadd.f32 %v6593, %v6502
        %v6595 = vadd.f32 %v6594, %v6504
        %v6596 = vadd.f32 %v6595, %v6506
        %v6597 = vadd.f32 %v6596, %v6508
        %v6598 = vadd.f32 %v6597, %v6510
        %v6599 = vadd.f32 %v6598, %v6512
        %v6600 = vadd.f32 %v6599, %v6514
        %v6601 = vadd.f32 %v6600, %v6516
        %v6602 = vadd.f32 %v6601, %v6518
        %v6603 = vadd.f32 %v6602, %v6520
        %v6604 = vadd.f32 %v6603, %v6522
        %v6605 = vadd.f32 %v6604, %v6524
        %v6606 = vadd.f32 %v6605, %v6526
        %v6607 = vadd.f32 %v6606, %v6528
        %v6608 = vadd.f32 %v6607, %v6530
        %v6609 = vadd.f32 %v6608, %v6532
        %v6610 = vadd.f32 %v6609, %v6534
        %v6611 = vadd.f32 %v6610, %v6536
        %v6612 = vadd.f32 %v6611, %v6538
        %v6613 = vadd.f32 %v6612, %v6540
        %v6614 = vadd.f32 %v6613, %v6542
        %v6615 = vadd.f32 %v6614, %v6544
        %v6616 = vadd.f32 %v6615, %v6546
        %v6617 = vadd.f32 %v6616, %v6548
        %v6618 = vadd.f32 %v6617, %v6550
        %v6619 = vrot.slane %v6618, 4
        %v6620 = vadd.f32 %v6618, %v6619
        %v6621 = vrot.slane %v6620, 2
        %v6622 = vadd.f32 %v6620, %v6621
        %v6623 = vrot.slane %v6622, 1
        %v6624 = vadd.f32 %v6622, %v6623
        %v6625 = vrcp.pop 256.0
        %v6626 = vmul.f32 %v6587, %v6625
        %v6627 = vmul.f32 %v6624, %v6625
        %v6628 = vpack.c.bf16 %v6626, %v6626
        %v6629 = vpack.c.bf16 %v6627, %v6627
        %v6630 = vld [vmem:[#allocation9 + $0x8] sm:$0xff]
        %v6631 = vld [vmem:[#allocation9 + $0x18] sm:$0xff]
        %v6632 = vld [vmem:[#allocation9 + $0x28] sm:$0xff]
        %v6633 = vld [vmem:[#allocation9 + $0x38] sm:$0xff]
        %v6634 = vld [vmem:[#allocation9 + $0x48] sm:$0xff]
        %v6635 = vld [vmem:[#allocation9 + $0x58] sm:$0xff]
        %v6636 = vld [vmem:[#allocation9 + $0x68] sm:$0xff]
        %v6637 = vld [vmem:[#allocation9 + $0x78] sm:$0xff]
        %v6638 = vld [vmem:[#allocation9 + $0x88] sm:$0xff]
        %v6639 = vld [vmem:[#allocation9 + $0x98] sm:$0xff]
        %v6640 = vld [vmem:[#allocation9 + $0xa8] sm:$0xff]
        %v6641 = vld [vmem:[#allocation9 + $0xb8] sm:$0xff]
        %v6642 = vld [vmem:[#allocation9 + $0xc8] sm:$0xff]
        %v6643 = vld [vmem:[#allocation9 + $0xd8] sm:$0xff]
        %v6644 = vld [vmem:[#allocation9 + $0xe8] sm:$0xff]
        %v6645 = vld [vmem:[#allocation9 + $0xf8] sm:$0xff]
        %v6646 = vld [vmem:[#allocation9 + $0x108] sm:$0xff]
        %v6647 = vld [vmem:[#allocation9 + $0x118] sm:$0xff]
        %v6648 = vld [vmem:[#allocation9 + $0x128] sm:$0xff]
        %v6649 = vld [vmem:[#allocation9 + $0x138] sm:$0xff]
        %v6650 = vld [vmem:[#allocation9 + $0x148] sm:$0xff]
        %v6651 = vld [vmem:[#allocation9 + $0x158] sm:$0xff]
        %v6652 = vld [vmem:[#allocation9 + $0x168] sm:$0xff]
        %v6653 = vld [vmem:[#allocation9 + $0x178] sm:$0xff]
        %v6654 = vld [vmem:[#allocation9 + $0x188] sm:$0xff]
        %v6655 = vld [vmem:[#allocation9 + $0x198] sm:$0xff]
        %v6656 = vld [vmem:[#allocation9 + $0x1a8] sm:$0xff]
        %v6657 = vld [vmem:[#allocation9 + $0x1b8] sm:$0xff]
        %v6658 = vld [vmem:[#allocation9 + $0x1c8] sm:$0xff]
        %v6659 = vld [vmem:[#allocation9 + $0x1d8] sm:$0xff]
        %v6660 = vld [vmem:[#allocation9 + $0x1e8] sm:$0xff]
        %v6661 = vld [vmem:[#allocation9 + $0x1f8] sm:$0xff]
        %v6694 = vunpack.c.l.b16 %v6630
        %v6695 = vunpack.c.h.b16 %v6630
        %v6696 = vunpack.c.l.b16 %v6631
        %v6697 = vunpack.c.h.b16 %v6631
        %v6698 = vunpack.c.l.b16 %v6632
        %v6699 = vunpack.c.h.b16 %v6632
        %v6700 = vunpack.c.l.b16 %v6633
        %v6701 = vunpack.c.h.b16 %v6633
        %v6702 = vunpack.c.l.b16 %v6634
        %v6703 = vunpack.c.h.b16 %v6634
        %v6704 = vunpack.c.l.b16 %v6635
        %v6705 = vunpack.c.h.b16 %v6635
        %v6706 = vunpack.c.l.b16 %v6636
        %v6707 = vunpack.c.h.b16 %v6636
        %v6708 = vunpack.c.l.b16 %v6637
        %v6709 = vunpack.c.h.b16 %v6637
        %v6710 = vunpack.c.l.b16 %v6638
        %v6711 = vunpack.c.h.b16 %v6638
        %v6712 = vunpack.c.l.b16 %v6639
        %v6713 = vunpack.c.h.b16 %v6639
        %v6714 = vunpack.c.l.b16 %v6640
        %v6715 = vunpack.c.h.b16 %v6640
        %v6716 = vunpack.c.l.b16 %v6641
        %v6717 = vunpack.c.h.b16 %v6641
        %v6718 = vunpack.c.l.b16 %v6642
        %v6719 = vunpack.c.h.b16 %v6642
        %v6720 = vunpack.c.l.b16 %v6643
        %v6721 = vunpack.c.h.b16 %v6643
        %v6722 = vunpack.c.l.b16 %v6644
        %v6723 = vunpack.c.h.b16 %v6644
        %v6724 = vunpack.c.l.b16 %v6645
        %v6725 = vunpack.c.h.b16 %v6645
        %v6726 = vunpack.c.l.b16 %v6646
        %v6727 = vunpack.c.h.b16 %v6646
        %v6728 = vunpack.c.l.b16 %v6647
        %v6729 = vunpack.c.h.b16 %v6647
        %v6730 = vunpack.c.l.b16 %v6648
        %v6731 = vunpack.c.h.b16 %v6648
        %v6732 = vunpack.c.l.b16 %v6649
        %v6733 = vunpack.c.h.b16 %v6649
        %v6734 = vunpack.c.l.b16 %v6650
        %v6735 = vunpack.c.h.b16 %v6650
        %v6736 = vunpack.c.l.b16 %v6651
        %v6737 = vunpack.c.h.b16 %v6651
        %v6738 = vunpack.c.l.b16 %v6652
        %v6739 = vunpack.c.h.b16 %v6652
        %v6740 = vunpack.c.l.b16 %v6653
        %v6741 = vunpack.c.h.b16 %v6653
        %v6742 = vunpack.c.l.b16 %v6654
        %v6743 = vunpack.c.h.b16 %v6654
        %v6744 = vunpack.c.l.b16 %v6655
        %v6745 = vunpack.c.h.b16 %v6655
        %v6746 = vunpack.c.l.b16 %v6656
        %v6747 = vunpack.c.h.b16 %v6656
        %v6748 = vunpack.c.l.b16 %v6657
        %v6749 = vunpack.c.h.b16 %v6657
        %v6750 = vunpack.c.l.b16 %v6658
        %v6751 = vunpack.c.h.b16 %v6658
        %v6752 = vunpack.c.l.b16 %v6659
        %v6753 = vunpack.c.h.b16 %v6659
        %v6754 = vunpack.c.l.b16 %v6660
        %v6755 = vunpack.c.h.b16 %v6660
        %v6756 = vunpack.c.l.b16 %v6661
        %v6757 = vunpack.c.h.b16 %v6661
        %v6758 = vpack.c.b16 %v6696, %v6694
        %v6759 = vpack.c.b16 %v6697, %v6695
        %v6760 = vpack.c.b16 %v6700, %v6698
        %v6761 = vpack.c.b16 %v6701, %v6699
        %v6762 = vpack.c.b16 %v6704, %v6702
        %v6763 = vpack.c.b16 %v6705, %v6703
        %v6764 = vpack.c.b16 %v6708, %v6706
        %v6765 = vpack.c.b16 %v6709, %v6707
        %v6766 = vpack.c.b16 %v6712, %v6710
        %v6767 = vpack.c.b16 %v6713, %v6711
        %v6768 = vpack.c.b16 %v6716, %v6714
        %v6769 = vpack.c.b16 %v6717, %v6715
        %v6770 = vpack.c.b16 %v6720, %v6718
        %v6771 = vpack.c.b16 %v6721, %v6719
        %v6772 = vpack.c.b16 %v6724, %v6722
        %v6773 = vpack.c.b16 %v6725, %v6723
        %v6774 = vpack.c.b16 %v6728, %v6726
        %v6775 = vpack.c.b16 %v6729, %v6727
        %v6776 = vpack.c.b16 %v6732, %v6730
        %v6777 = vpack.c.b16 %v6733, %v6731
        %v6778 = vpack.c.b16 %v6736, %v6734
        %v6779 = vpack.c.b16 %v6737, %v6735
        %v6780 = vpack.c.b16 %v6740, %v6738
        %v6781 = vpack.c.b16 %v6741, %v6739
        %v6782 = vpack.c.b16 %v6744, %v6742
        %v6783 = vpack.c.b16 %v6745, %v6743
        %v6784 = vpack.c.b16 %v6748, %v6746
        %v6785 = vpack.c.b16 %v6749, %v6747
        %v6786 = vpack.c.b16 %v6752, %v6750
        %v6787 = vpack.c.b16 %v6753, %v6751
        %v6788 = vpack.c.b16 %v6756, %v6754
        %v6789 = vpack.c.b16 %v6757, %v6755
        %6822 = vmatprep.subr.bf16.mxu0 %v6759
        %6823 = vmatpush1.bf16.msra.mxu0 %v6758
        %6824 = vmatprep.subr.bf16.mxu0 %v6761
        %6825 = vmatpush1.bf16.msra.mxu0 %v6760
        %6826 = vmatprep.subr.bf16.mxu0 %v6763
        %6827 = vmatpush1.bf16.msra.mxu0 %v6762
        %6828 = vmatprep.subr.bf16.mxu0 %v6765
        %6829 = vmatpush1.bf16.msra.mxu0 %v6764
        %6830 = vmatprep.subr.bf16.mxu0 %v6767
        %6831 = vmatpush1.bf16.msra.mxu0 %v6766
        %6832 = vmatprep.subr.bf16.mxu0 %v6769
        %6833 = vmatpush1.bf16.msra.mxu0 %v6768
        %6834 = vmatprep.subr.bf16.mxu0 %v6771
        %6835 = vmatpush1.bf16.msra.mxu0 %v6770
        %6836 = vmatprep.subr.bf16.mxu0 %v6773
        %6837 = vmatpush1.bf16.msra.mxu0 %v6772
        %6838 = vmatprep.subr.bf16.mxu0 %v6775
        %6839 = vmatpush1.bf16.msra.mxu0 %v6774
        %6840 = vmatprep.subr.bf16.mxu0 %v6777
        %6841 = vmatpush1.bf16.msra.mxu0 %v6776
        %6842 = vmatprep.subr.bf16.mxu0 %v6779
        %6843 = vmatpush1.bf16.msra.mxu0 %v6778
        %6844 = vmatprep.subr.bf16.mxu0 %v6781
        %6845 = vmatpush1.bf16.msra.mxu0 %v6780
        %6846 = vmatprep.subr.bf16.mxu0 %v6783
        %6847 = vmatpush1.bf16.msra.mxu0 %v6782
        %6848 = vmatprep.subr.bf16.mxu0 %v6785
        %6849 = vmatpush1.bf16.msra.mxu0 %v6784
        %6850 = vmatprep.subr.bf16.mxu0 %v6787
        %6851 = vmatpush1.bf16.msra.mxu0 %v6786
        %6852 = vmatprep.subr.bf16.mxu0 %v6789
        %6853 = vmatpush1.bf16.msra.mxu0 %v6788
        %6854 = vmatprep.mubr.bf16.mxu0 %v6629
        %6855 = vmatmul.mubr.bf16.gmra.mrb[0].mxu0 %v6628
        %v6856 = vpop.f32.mrb[0].mxu0
        %v6857 = vadd.f32 0.0, %v6856
        %v6858 = vpop.f32.mrb[0].mxu0
        %v6859 = vadd.f32 0.0, %v6858
        %v6860 = vpop.f32.mrb[0].mxu0
        %v6861 = vpop.f32.mrb[0].mxu0
        %6862 = vdwg.mxu0
        %v6863 = vmul.f32 %v6857, 0.5
        %v6864 = vmul.f32 %v6859, 0.5
        %v6865 = vtanh.pop %v6863
        %v6866 = vtanh.pop %v6864
        %v6867 = vadd.f32 %v6865, 1.0
        %v6868 = vadd.f32 %v6866, 1.0
        %v6869 = vmul.f32 %v6867, 0.5
        %v6870 = vmul.f32 %v6868, 0.5
        %v6871 = vlaneseq
        %v6872 = vshrl.u32 %v6871, 7
        %v6873 = vsub.s32 0, %v6872
        %v6874 = vrot.slane %v6869, %v6873
        %v6875 = vlaneseq
        %v6876 = vshrl.u32 %v6875, 7
        %v6877 = vsub.s32 0, %v6876
        %v6878 = vrot.slane %v6870, %v6877
        %v6879 = vmul.f32 %v6487, %v6874
        %v6880 = vmul.f32 %v6488, %v6878
        %v6881 = vmul.f32 %v6489, %v6874
        %v6882 = vmul.f32 %v6490, %v6878
        %v6883 = vmul.f32 %v6491, %v6874
        %v6884 = vmul.f32 %v6492, %v6878
        %v6885 = vmul.f32 %v6493, %v6874
        %v6886 = vmul.f32 %v6494, %v6878
        %v6887 = vmul.f32 %v6495, %v6874
        %v6888 = vmul.f32 %v6496, %v6878
        %v6889 = vmul.f32 %v6497, %v6874
        %v6890 = vmul.f32 %v6498, %v6878
        %v6891 = vmul.f32 %v6499, %v6874
        %v6892 = vmul.f32 %v6500, %v6878
        %v6893 = vmul.f32 %v6501, %v6874
        %v6894 = vmul.f32 %v6502, %v6878
        %v6895 = vmul.f32 %v6503, %v6874
        %v6896 = vmul.f32 %v6504, %v6878
        %v6897 = vmul.f32 %v6505, %v6874
        %v6898 = vmul.f32 %v6506, %v6878
        %v6899 = vmul.f32 %v6507, %v6874
        %v6900 = vmul.f32 %v6508, %v6878
        %v6901 = vmul.f32 %v6509, %v6874
        %v6902 = vmul.f32 %v6510, %v6878
        %v6903 = vmul.f32 %v6511, %v6874
        %v6904 = vmul.f32 %v6512, %v6878
        %v6905 = vmul.f32 %v6513, %v6874
        %v6906 = vmul.f32 %v6514, %v6878
        %v6907 = vmul.f32 %v6515, %v6874
        %v6908 = vmul.f32 %v6516, %v6878
        %v6909 = vmul.f32 %v6517, %v6874
        %v6910 = vmul.f32 %v6518, %v6878
        %v6911 = vmul.f32 %v6519, %v6874
        %v6912 = vmul.f32 %v6520, %v6878
        %v6913 = vmul.f32 %v6521, %v6874
        %v6914 = vmul.f32 %v6522, %v6878
        %v6915 = vmul.f32 %v6523, %v6874
        %v6916 = vmul.f32 %v6524, %v6878
        %v6917 = vmul.f32 %v6525, %v6874
        %v6918 = vmul.f32 %v6526, %v6878
        %v6919 = vmul.f32 %v6527, %v6874
        %v6920 = vmul.f32 %v6528, %v6878
        %v6921 = vmul.f32 %v6529, %v6874
        %v6922 = vmul.f32 %v6530, %v6878
        %v6923 = vmul.f32 %v6531, %v6874
        %v6924 = vmul.f32 %v6532, %v6878
        %v6925 = vmul.f32 %v6533, %v6874
        %v6926 = vmul.f32 %v6534, %v6878
        %v6927 = vmul.f32 %v6535, %v6874
        %v6928 = vmul.f32 %v6536, %v6878
        %v6929 = vmul.f32 %v6537, %v6874
        %v6930 = vmul.f32 %v6538, %v6878
        %v6931 = vmul.f32 %v6539, %v6874
        %v6932 = vmul.f32 %v6540, %v6878
        %v6933 = vmul.f32 %v6541, %v6874
        %v6934 = vmul.f32 %v6542, %v6878
        %v6935 = vmul.f32 %v6543, %v6874
        %v6936 = vmul.f32 %v6544, %v6878
        %v6937 = vmul.f32 %v6545, %v6874
        %v6938 = vmul.f32 %v6546, %v6878
        %v6939 = vmul.f32 %v6547, %v6874
        %v6940 = vmul.f32 %v6548, %v6878
        %v6941 = vmul.f32 %v6549, %v6874
        %v6942 = vmul.f32 %v6550, %v6878
        %v6943 = vadd.f32 %v6879, %v6880
        %v6944 = vadd.f32 %v6881, %v6882
        %v6945 = vadd.f32 %v6883, %v6884
        %v6946 = vadd.f32 %v6885, %v6886
        %v6947 = vadd.f32 %v6887, %v6888
        %v6948 = vadd.f32 %v6889, %v6890
        %v6949 = vadd.f32 %v6891, %v6892
        %v6950 = vadd.f32 %v6893, %v6894
        %v6951 = vadd.f32 %v6895, %v6896
        %v6952 = vadd.f32 %v6897, %v6898
        %v6953 = vadd.f32 %v6899, %v6900
        %v6954 = vadd.f32 %v6901, %v6902
        %v6955 = vadd.f32 %v6903, %v6904
        %v6956 = vadd.f32 %v6905, %v6906
        %v6957 = vadd.f32 %v6907, %v6908
        %v6958 = vadd.f32 %v6909, %v6910
        %v6959 = vadd.f32 %v6911, %v6912
        %v6960 = vadd.f32 %v6913, %v6914
        %v6961 = vadd.f32 %v6915, %v6916
        %v6962 = vadd.f32 %v6917, %v6918
        %v6963 = vadd.f32 %v6919, %v6920
        %v6964 = vadd.f32 %v6921, %v6922
        %v6965 = vadd.f32 %v6923, %v6924
        %v6966 = vadd.f32 %v6925, %v6926
        %v6967 = vadd.f32 %v6927, %v6928
        %v6968 = vadd.f32 %v6929, %v6930
        %v6969 = vadd.f32 %v6931, %v6932
        %v6970 = vadd.f32 %v6933, %v6934
        %v6971 = vadd.f32 %v6935, %v6936
        %v6972 = vadd.f32 %v6937, %v6938
        %v6973 = vadd.f32 %v6939, %v6940
        %v6974 = vadd.f32 %v6941, %v6942
        %6975 = vst [vmem:[%s1000 + $0x10] sm:$0xff] %v6943
        %6976 = vst [vmem:[%s1000 + $0x20] sm:$0xff] %v6944
        %6977 = vst [vmem:[%s1000 + $0x50] sm:$0xff] %v6945
        %6978 = vst [vmem:[%s1000 + $0x60] sm:$0xff] %v6946
        %6979 = vst [vmem:[%s1000 + $0x90] sm:$0xff] %v6947
        %6980 = vst [vmem:[%s1000 + $0xa0] sm:$0xff] %v6948
        %6981 = vst [vmem:[%s1000 + $0xd0] sm:$0xff] %v6949
        %6982 = vst [vmem:[%s1000 + $0xe0] sm:$0xff] %v6950
        %6983 = vst [vmem:[%s1000 + $0x110] sm:$0xff] %v6951
        %6984 = vst [vmem:[%s1000 + $0x120] sm:$0xff] %v6952
        %6985 = vst [vmem:[%s1000 + $0x150] sm:$0xff] %v6953
        %6986 = vst [vmem:[%s1000 + $0x160] sm:$0xff] %v6954
        %6987 = vst [vmem:[%s1000 + $0x190] sm:$0xff] %v6955
        %6988 = vst [vmem:[%s1000 + $0x1a0] sm:$0xff] %v6956
        %6989 = vst [vmem:[%s1000 + $0x1d0] sm:$0xff] %v6957
        %6990 = vst [vmem:[%s1000 + $0x1e0] sm:$0xff] %v6958
        %6991 = vst [vmem:[%s1000 + $0x210] sm:$0xff] %v6959
        %6992 = vst [vmem:[%s1000 + $0x220] sm:$0xff] %v6960
        %6993 = vst [vmem:[%s1000 + $0x250] sm:$0xff] %v6961
        %6994 = vst [vmem:[%s1000 + $0x260] sm:$0xff] %v6962
        %6995 = vst [vmem:[%s1000 + $0x290] sm:$0xff] %v6963
        %6996 = vst [vmem:[%s1000 + $0x2a0] sm:$0xff] %v6964
        %6997 = vst [vmem:[%s1000 + $0x2d0] sm:$0xff] %v6965
        %6998 = vst [vmem:[%s1000 + $0x2e0] sm:$0xff] %v6966
        %6999 = vst [vmem:[%s1000 + $0x310] sm:$0xff] %v6967
        %7000 = vst [vmem:[%s1000 + $0x320] sm:$0xff] %v6968
        %7001 = vst [vmem:[%s1000 + $0x350] sm:$0xff] %v6969
        %7002 = vst [vmem:[%s1000 + $0x360] sm:$0xff] %v6970
        %7003 = vst [vmem:[%s1000 + $0x390] sm:$0xff] %v6971
        %7004 = vst [vmem:[%s1000 + $0x3a0] sm:$0xff] %v6972
        %7005 = vst [vmem:[%s1000 + $0x3d0] sm:$0xff] %v6973
        %7006 = vst [vmem:[%s1000 + $0x3e0] sm:$0xff] %v6974
        %v7007 = vld [vmem:[#allocation2] sm:$0x80]
        %v7008 = vld [vmem:[#allocation2 + $0x10] sm:$0xff]
        %v7009 = vld [vmem:[#allocation2 + $0x20] sm:$0x7f]
        %v7010 = vld [vmem:[#allocation2 + $0x40] sm:$0x80]
        %v7011 = vld [vmem:[#allocation2 + $0x50] sm:$0xff]
        %v7012 = vld [vmem:[#allocation2 + $0x60] sm:$0x7f]
        %v7013 = vld [vmem:[#allocation2 + $0x80] sm:$0x80]
        %v7014 = vld [vmem:[#allocation2 + $0x90] sm:$0xff]
        %v7015 = vld [vmem:[#allocation2 + $0xa0] sm:$0x7f]
        %v7016 = vld [vmem:[#allocation2 + $0xc0] sm:$0x80]
        %v7017 = vld [vmem:[#allocation2 + $0xd0] sm:$0xff]
        %v7018 = vld [vmem:[#allocation2 + $0xe0] sm:$0x7f]
        %v7019 = vld [vmem:[#allocation2 + $0x100] sm:$0x80]
        %v7020 = vld [vmem:[#allocation2 + $0x110] sm:$0xff]
        %v7021 = vld [vmem:[#allocation2 + $0x120] sm:$0x7f]
        %v7022 = vld [vmem:[#allocation2 + $0x140] sm:$0x80]
        %v7023 = vld [vmem:[#allocation2 + $0x150] sm:$0xff]
        %v7024 = vld [vmem:[#allocation2 + $0x160] sm:$0x7f]
        %v7025 = vld [vmem:[#allocation2 + $0x180] sm:$0x80]
        %v7026 = vld [vmem:[#allocation2 + $0x190] sm:$0xff]
        %v7027 = vld [vmem:[#allocation2 + $0x1a0] sm:$0x7f]
        %v7028 = vld [vmem:[#allocation2 + $0x1c0] sm:$0x80]
        %v7029 = vld [vmem:[#allocation2 + $0x1d0] sm:$0xff]
        %v7030 = vld [vmem:[#allocation2 + $0x1e0] sm:$0x7f]
        %v7031 = vld [vmem:[#allocation2 + $0x200] sm:$0x80]
        %v7032 = vld [vmem:[#allocation2 + $0x210] sm:$0xff]
        %v7033 = vld [vmem:[#allocation2 + $0x220] sm:$0x7f]
        %v7034 = vld [vmem:[#allocation2 + $0x240] sm:$0x80]
        %v7035 = vld [vmem:[#allocation2 + $0x250] sm:$0xff]
        %v7036 = vld [vmem:[#allocation2 + $0x260] sm:$0x7f]
        %v7037 = vld [vmem:[#allocation2 + $0x280] sm:$0x80]
        %v7038 = vld [vmem:[#allocation2 + $0x290] sm:$0xff]
        %v7039 = vld [vmem:[#allocation2 + $0x2a0] sm:$0x7f]
        %v7040 = vld [vmem:[#allocation2 + $0x2c0] sm:$0x80]
        %v7041 = vld [vmem:[#allocation2 + $0x2d0] sm:$0xff]
        %v7042 = vld [vmem:[#allocation2 + $0x2e0] sm:$0x7f]
        %v7043 = vld [vmem:[#allocation2 + $0x300] sm:$0x80]
        %v7044 = vld [vmem:[#allocation2 + $0x310] sm:$0xff]
        %v7045 = vld [vmem:[#allocation2 + $0x320] sm:$0x7f]
        %v7046 = vld [vmem:[#allocation2 + $0x340] sm:$0x80]
        %v7047 = vld [vmem:[#allocation2 + $0x350] sm:$0xff]
        %v7048 = vld [vmem:[#allocation2 + $0x360] sm:$0x7f]
        %v7049 = vld [vmem:[#allocation2 + $0x380] sm:$0x80]
        %v7050 = vld [vmem:[#allocation2 + $0x390] sm:$0xff]
        %v7051 = vld [vmem:[#allocation2 + $0x3a0] sm:$0x7f]
        %v7052 = vld [vmem:[#allocation2 + $0x3c0] sm:$0x80]
        %v7053 = vld [vmem:[#allocation2 + $0x3d0] sm:$0xff]
        %v7054 = vld [vmem:[#allocation2 + $0x3e0] sm:$0x7f]
        %v7055 = vlaneseq
        %v7056 = vshrl.u32 %v7055, 7
        %v7057 = vsub.s32 4, %v7056
        %v7058 = vrot.slane %v352, %v7057
        %v7059 = vmul.f32 %v7007, %v7058
        %v7060 = vmul.f32 %v7008, %v7058
        %v7061 = vmul.f32 %v7009, %v7058
        %v7062 = vmul.f32 %v7010, %v7058
        %v7063 = vmul.f32 %v7011, %v7058
        %v7064 = vmul.f32 %v7012, %v7058
        %v7065 = vmul.f32 %v7013, %v7058
        %v7066 = vmul.f32 %v7014, %v7058
        %v7067 = vmul.f32 %v7015, %v7058
        %v7068 = vmul.f32 %v7016, %v7058
        %v7069 = vmul.f32 %v7017, %v7058
        %v7070 = vmul.f32 %v7018, %v7058
        %v7071 = vmul.f32 %v7019, %v7058
        %v7072 = vmul.f32 %v7020, %v7058
        %v7073 = vmul.f32 %v7021, %v7058
        %v7074 = vmul.f32 %v7022, %v7058
        %v7075 = vmul.f32 %v7023, %v7058
        %v7076 = vmul.f32 %v7024, %v7058
        %v7077 = vmul.f32 %v7025, %v7058
        %v7078 = vmul.f32 %v7026, %v7058
        %v7079 = vmul.f32 %v7027, %v7058
        %v7080 = vmul.f32 %v7028, %v7058
        %v7081 = vmul.f32 %v7029, %v7058
        %v7082 = vmul.f32 %v7030, %v7058
        %v7083 = vmul.f32 %v7031, %v7058
        %v7084 = vmul.f32 %v7032, %v7058
        %v7085 = vmul.f32 %v7033, %v7058
        %v7086 = vmul.f32 %v7034, %v7058
        %v7087 = vmul.f32 %v7035, %v7058
        %v7088 = vmul.f32 %v7036, %v7058
        %v7089 = vmul.f32 %v7037, %v7058
        %v7090 = vmul.f32 %v7038, %v7058
        %v7091 = vmul.f32 %v7039, %v7058
        %v7092 = vmul.f32 %v7040, %v7058
        %v7093 = vmul.f32 %v7041, %v7058
        %v7094 = vmul.f32 %v7042, %v7058
        %v7095 = vmul.f32 %v7043, %v7058
        %v7096 = vmul.f32 %v7044, %v7058
        %v7097 = vmul.f32 %v7045, %v7058
        %v7098 = vmul.f32 %v7046, %v7058
        %v7099 = vmul.f32 %v7047, %v7058
        %v7100 = vmul.f32 %v7048, %v7058
        %v7101 = vmul.f32 %v7049, %v7058
        %v7102 = vmul.f32 %v7050, %v7058
        %v7103 = vmul.f32 %v7051, %v7058
        %v7104 = vmul.f32 %v7052, %v7058
        %v7105 = vmul.f32 %v7053, %v7058
        %v7106 = vmul.f32 %v7054, %v7058
        %v7107 = vld [vmem:[#allocation2 + $0x20] sm:$0xff]
        %v7108 = vld [vmem:[#allocation2 + $0x60] sm:$0xff]
        %v7109 = vld [vmem:[#allocation2 + $0xa0] sm:$0xff]
        %v7110 = vld [vmem:[#allocation2 + $0xe0] sm:$0xff]
        %v7111 = vld [vmem:[#allocation2 + $0x120] sm:$0xff]
        %v7112 = vld [vmem:[#allocation2 + $0x160] sm:$0xff]
        %v7113 = vld [vmem:[#allocation2 + $0x1a0] sm:$0xff]
        %v7114 = vld [vmem:[#allocation2 + $0x1e0] sm:$0xff]
        %v7115 = vld [vmem:[#allocation2 + $0x220] sm:$0xff]
        %v7116 = vld [vmem:[#allocation2 + $0x260] sm:$0xff]
        %v7117 = vld [vmem:[#allocation2 + $0x2a0] sm:$0xff]
        %v7118 = vld [vmem:[#allocation2 + $0x2e0] sm:$0xff]
        %v7119 = vld [vmem:[#allocation2 + $0x320] sm:$0xff]
        %v7120 = vld [vmem:[#allocation2 + $0x360] sm:$0xff]
        %v7121 = vld [vmem:[#allocation2 + $0x3a0] sm:$0xff]
        %v7122 = vld [vmem:[#allocation2 + $0x3e0] sm:$0xff]
        %v7123 = vlaneseq
        %v7124 = vshrl.u32 %v7123, 7
        %v7125 = vsub.s32 5, %v7124
        %v7126 = vrot.slane %v352, %v7125
        %v7127 = vmul.f32 %v7008, %v7126
        %v7128 = vmul.f32 %v7107, %v7126
        %v7129 = vmul.f32 %v7011, %v7126
        %v7130 = vmul.f32 %v7108, %v7126
        %v7131 = vmul.f32 %v7014, %v7126
        %v7132 = vmul.f32 %v7109, %v7126
        %v7133 = vmul.f32 %v7017, %v7126
        %v7134 = vmul.f32 %v7110, %v7126
        %v7135 = vmul.f32 %v7020, %v7126
        %v7136 = vmul.f32 %v7111, %v7126
        %v7137 = vmul.f32 %v7023, %v7126
        %v7138 = vmul.f32 %v7112, %v7126
        %v7139 = vmul.f32 %v7026, %v7126
        %v7140 = vmul.f32 %v7113, %v7126
        %v7141 = vmul.f32 %v7029, %v7126
        %v7142 = vmul.f32 %v7114, %v7126
        %v7143 = vmul.f32 %v7032, %v7126
        %v7144 = vmul.f32 %v7115, %v7126
        %v7145 = vmul.f32 %v7035, %v7126
        %v7146 = vmul.f32 %v7116, %v7126
        %v7147 = vmul.f32 %v7038, %v7126
        %v7148 = vmul.f32 %v7117, %v7126
        %v7149 = vmul.f32 %v7041, %v7126
        %v7150 = vmul.f32 %v7118, %v7126
        %v7151 = vmul.f32 %v7044, %v7126
        %v7152 = vmul.f32 %v7119, %v7126
        %v7153 = vmul.f32 %v7047, %v7126
        %v7154 = vmul.f32 %v7120, %v7126
        %v7155 = vmul.f32 %v7050, %v7126
        %v7156 = vmul.f32 %v7121, %v7126
        %v7157 = vmul.f32 %v7053, %v7126
        %v7158 = vmul.f32 %v7122, %v7126
        %v7191 = vrot.slane %v7127, 1
        %v7192 = vrot.slane %v7128, 1
        %v7193 = vsel %vm1433, %v7191, %v7192
        %v7194 = vrot.slane %v7129, 1
        %v7195 = vrot.slane %v7130, 1
        %v7196 = vsel %vm1433, %v7194, %v7195
        %v7197 = vrot.slane %v7131, 1
        %v7198 = vrot.slane %v7132, 1
        %v7199 = vsel %vm1433, %v7197, %v7198
        %v7200 = vrot.slane %v7133, 1
        %v7201 = vrot.slane %v7134, 1
        %v7202 = vsel %vm1433, %v7200, %v7201
        %v7203 = vrot.slane %v7135, 1
        %v7204 = vrot.slane %v7136, 1
        %v7205 = vsel %vm1433, %v7203, %v7204
        %v7206 = vrot.slane %v7137, 1
        %v7207 = vrot.slane %v7138, 1
        %v7208 = vsel %vm1433, %v7206, %v7207
        %v7209 = vrot.slane %v7139, 1
        %v7210 = vrot.slane %v7140, 1
        %v7211 = vsel %vm1433, %v7209, %v7210
        %v7212 = vrot.slane %v7141, 1
        %v7213 = vrot.slane %v7142, 1
        %v7214 = vsel %vm1433, %v7212, %v7213
        %v7215 = vrot.slane %v7143, 1
        %v7216 = vrot.slane %v7144, 1
        %v7217 = vsel %vm1433, %v7215, %v7216
        %v7218 = vrot.slane %v7145, 1
        %v7219 = vrot.slane %v7146, 1
        %v7220 = vsel %vm1433, %v7218, %v7219
        %v7221 = vrot.slane %v7147, 1
        %v7222 = vrot.slane %v7148, 1
        %v7223 = vsel %vm1433, %v7221, %v7222
        %v7224 = vrot.slane %v7149, 1
        %v7225 = vrot.slane %v7150, 1
        %v7226 = vsel %vm1433, %v7224, %v7225
        %v7227 = vrot.slane %v7151, 1
        %v7228 = vrot.slane %v7152, 1
        %v7229 = vsel %vm1433, %v7227, %v7228
        %v7230 = vrot.slane %v7153, 1
        %v7231 = vrot.slane %v7154, 1
        %v7232 = vsel %vm1433, %v7230, %v7231
        %v7233 = vrot.slane %v7155, 1
        %v7234 = vrot.slane %v7156, 1
        %v7235 = vsel %vm1433, %v7233, %v7234
        %v7236 = vrot.slane %v7157, 1
        %v7237 = vrot.slane %v7158, 1
        %v7238 = vsel %vm1433, %v7236, %v7237
        %v7287 = vadd.f32 %v7059, %v7191
        %v7288 = vadd.f32 %v7060, %v7193
        %v7289 = vadd.f32 %v7061, %v7192
        %v7290 = vadd.f32 %v7062, %v7194
        %v7291 = vadd.f32 %v7063, %v7196
        %v7292 = vadd.f32 %v7064, %v7195
        %v7293 = vadd.f32 %v7065, %v7197
        %v7294 = vadd.f32 %v7066, %v7199
        %v7295 = vadd.f32 %v7067, %v7198
        %v7296 = vadd.f32 %v7068, %v7200
        %v7297 = vadd.f32 %v7069, %v7202
        %v7298 = vadd.f32 %v7070, %v7201
        %v7299 = vadd.f32 %v7071, %v7203
        %v7300 = vadd.f32 %v7072, %v7205
        %v7301 = vadd.f32 %v7073, %v7204
        %v7302 = vadd.f32 %v7074, %v7206
        %v7303 = vadd.f32 %v7075, %v7208
        %v7304 = vadd.f32 %v7076, %v7207
        %v7305 = vadd.f32 %v7077, %v7209
        %v7306 = vadd.f32 %v7078, %v7211
        %v7307 = vadd.f32 %v7079, %v7210
        %v7308 = vadd.f32 %v7080, %v7212
        %v7309 = vadd.f32 %v7081, %v7214
        %v7310 = vadd.f32 %v7082, %v7213
        %v7311 = vadd.f32 %v7083, %v7215
        %v7312 = vadd.f32 %v7084, %v7217
        %v7313 = vadd.f32 %v7085, %v7216
        %v7314 = vadd.f32 %v7086, %v7218
        %v7315 = vadd.f32 %v7087, %v7220
        %v7316 = vadd.f32 %v7088, %v7219
        %v7317 = vadd.f32 %v7089, %v7221
        %v7318 = vadd.f32 %v7090, %v7223
        %v7319 = vadd.f32 %v7091, %v7222
        %v7320 = vadd.f32 %v7092, %v7224
        %v7321 = vadd.f32 %v7093, %v7226
        %v7322 = vadd.f32 %v7094, %v7225
        %v7323 = vadd.f32 %v7095, %v7227
        %v7324 = vadd.f32 %v7096, %v7229
        %v7325 = vadd.f32 %v7097, %v7228
        %v7326 = vadd.f32 %v7098, %v7230
        %v7327 = vadd.f32 %v7099, %v7232
        %v7328 = vadd.f32 %v7100, %v7231
        %v7329 = vadd.f32 %v7101, %v7233
        %v7330 = vadd.f32 %v7102, %v7235
        %v7331 = vadd.f32 %v7103, %v7234
        %v7332 = vadd.f32 %v7104, %v7236
        %v7333 = vadd.f32 %v7105, %v7238
        %v7334 = vadd.f32 %v7106, %v7237
        %v7335 = vld [vmem:[#allocation2 + $0x10] sm:$0xfe]
        %v7336 = vld [vmem:[#allocation2 + $0x30] sm:$0x1]
        %v7337 = vld [vmem:[#allocation2 + $0x50] sm:$0xfe]
        %v7338 = vld [vmem:[#allocation2 + $0x70] sm:$0x1]
        %v7339 = vld [vmem:[#allocation2 + $0x90] sm:$0xfe]
        %v7340 = vld [vmem:[#allocation2 + $0xb0] sm:$0x1]
        %v7341 = vld [vmem:[#allocation2 + $0xd0] sm:$0xfe]
        %v7342 = vld [vmem:[#allocation2 + $0xf0] sm:$0x1]
        %v7343 = vld [vmem:[#allocation2 + $0x110] sm:$0xfe]
        %v7344 = vld [vmem:[#allocation2 + $0x130] sm:$0x1]
        %v7345 = vld [vmem:[#allocation2 + $0x150] sm:$0xfe]
        %v7346 = vld [vmem:[#allocation2 + $0x170] sm:$0x1]
        %v7347 = vld [vmem:[#allocation2 + $0x190] sm:$0xfe]
        %v7348 = vld [vmem:[#allocation2 + $0x1b0] sm:$0x1]
        %v7349 = vld [vmem:[#allocation2 + $0x1d0] sm:$0xfe]
        %v7350 = vld [vmem:[#allocation2 + $0x1f0] sm:$0x1]
        %v7351 = vld [vmem:[#allocation2 + $0x210] sm:$0xfe]
        %v7352 = vld [vmem:[#allocation2 + $0x230] sm:$0x1]
        %v7353 = vld [vmem:[#allocation2 + $0x250] sm:$0xfe]
        %v7354 = vld [vmem:[#allocation2 + $0x270] sm:$0x1]
        %v7355 = vld [vmem:[#allocation2 + $0x290] sm:$0xfe]
        %v7356 = vld [vmem:[#allocation2 + $0x2b0] sm:$0x1]
        %v7357 = vld [vmem:[#allocation2 + $0x2d0] sm:$0xfe]
        %v7358 = vld [vmem:[#allocation2 + $0x2f0] sm:$0x1]
        %v7359 = vld [vmem:[#allocation2 + $0x310] sm:$0xfe]
        %v7360 = vld [vmem:[#allocation2 + $0x330] sm:$0x1]
        %v7361 = vld [vmem:[#allocation2 + $0x350] sm:$0xfe]
        %v7362 = vld [vmem:[#allocation2 + $0x370] sm:$0x1]
        %v7363 = vld [vmem:[#allocation2 + $0x390] sm:$0xfe]
        %v7364 = vld [vmem:[#allocation2 + $0x3b0] sm:$0x1]
        %v7365 = vld [vmem:[#allocation2 + $0x3d0] sm:$0xfe]
        %v7366 = vld [vmem:[#allocation2 + $0x3f0] sm:$0x1]
        %v7367 = vlaneseq
        %v7368 = vshrl.u32 %v7367, 7
        %v7369 = vsub.s32 6, %v7368
        %v7370 = vrot.slane %v352, %v7369
        %v7371 = vmul.f32 %v7335, %v7370
        %v7372 = vmul.f32 %v7107, %v7370
        %v7373 = vmul.f32 %v7336, %v7370
        %v7374 = vmul.f32 %v7337, %v7370
        %v7375 = vmul.f32 %v7108, %v7370
        %v7376 = vmul.f32 %v7338, %v7370
        %v7377 = vmul.f32 %v7339, %v7370
        %v7378 = vmul.f32 %v7109, %v7370
        %v7379 = vmul.f32 %v7340, %v7370
        %v7380 = vmul.f32 %v7341, %v7370
        %v7381 = vmul.f32 %v7110, %v7370
        %v7382 = vmul.f32 %v7342, %v7370
        %v7383 = vmul.f32 %v7343, %v7370
        %v7384 = vmul.f32 %v7111, %v7370
        %v7385 = vmul.f32 %v7344, %v7370
        %v7386 = vmul.f32 %v7345, %v7370
        %v7387 = vmul.f32 %v7112, %v7370
        %v7388 = vmul.f32 %v7346, %v7370
        %v7389 = vmul.f32 %v7347, %v7370
        %v7390 = vmul.f32 %v7113, %v7370
        %v7391 = vmul.f32 %v7348, %v7370
        %v7392 = vmul.f32 %v7349, %v7370
        %v7393 = vmul.f32 %v7114, %v7370
        %v7394 = vmul.f32 %v7350, %v7370
        %v7395 = vmul.f32 %v7351, %v7370
        %v7396 = vmul.f32 %v7115, %v7370
        %v7397 = vmul.f32 %v7352, %v7370
        %v7398 = vmul.f32 %v7353, %v7370
        %v7399 = vmul.f32 %v7116, %v7370
        %v7400 = vmul.f32 %v7354, %v7370
        %v7401 = vmul.f32 %v7355, %v7370
        %v7402 = vmul.f32 %v7117, %v7370
        %v7403 = vmul.f32 %v7356, %v7370
        %v7404 = vmul.f32 %v7357, %v7370
        %v7405 = vmul.f32 %v7118, %v7370
        %v7406 = vmul.f32 %v7358, %v7370
        %v7407 = vmul.f32 %v7359, %v7370
        %v7408 = vmul.f32 %v7119, %v7370
        %v7409 = vmul.f32 %v7360, %v7370
        %v7410 = vmul.f32 %v7361, %v7370
        %v7411 = vmul.f32 %v7120, %v7370
        %v7412 = vmul.f32 %v7362, %v7370
        %v7413 = vmul.f32 %v7363, %v7370
        %v7414 = vmul.f32 %v7121, %v7370
        %v7415 = vmul.f32 %v7364, %v7370
        %v7416 = vmul.f32 %v7365, %v7370
        %v7417 = vmul.f32 %v7122, %v7370
        %v7418 = vmul.f32 %v7366, %v7370
        %v7467 = vrot.slane %v7371, 2
        %v7468 = vrot.slane %v7372, 2
        %v7469 = vsel %vm1986, %v7467, %v7468
        %v7470 = vrot.slane %v7373, 2
        %v7471 = vsel %vm1986, %v7468, %v7470
        %v7472 = vrot.slane %v7374, 2
        %v7473 = vrot.slane %v7375, 2
        %v7474 = vsel %vm1986, %v7472, %v7473
        %v7475 = vrot.slane %v7376, 2
        %v7476 = vsel %vm1986, %v7473, %v7475
        %v7477 = vrot.slane %v7377, 2
        %v7478 = vrot.slane %v7378, 2
        %v7479 = vsel %vm1986, %v7477, %v7478
        %v7480 = vrot.slane %v7379, 2
        %v7481 = vsel %vm1986, %v7478, %v7480
        %v7482 = vrot.slane %v7380, 2
        %v7483 = vrot.slane %v7381, 2
        %v7484 = vsel %vm1986, %v7482, %v7483
        %v7485 = vrot.slane %v7382, 2
        %v7486 = vsel %vm1986, %v7483, %v7485
        %v7487 = vrot.slane %v7383, 2
        %v7488 = vrot.slane %v7384, 2
        %v7489 = vsel %vm1986, %v7487, %v7488
        %v7490 = vrot.slane %v7385, 2
        %v7491 = vsel %vm1986, %v7488, %v7490
        %v7492 = vrot.slane %v7386, 2
        %v7493 = vrot.slane %v7387, 2
        %v7494 = vsel %vm1986, %v7492, %v7493
        %v7495 = vrot.slane %v7388, 2
        %v7496 = vsel %vm1986, %v7493, %v7495
        %v7497 = vrot.slane %v7389, 2
        %v7498 = vrot.slane %v7390, 2
        %v7499 = vsel %vm1986, %v7497, %v7498
        %v7500 = vrot.slane %v7391, 2
        %v7501 = vsel %vm1986, %v7498, %v7500
        %v7502 = vrot.slane %v7392, 2
        %v7503 = vrot.slane %v7393, 2
        %v7504 = vsel %vm1986, %v7502, %v7503
        %v7505 = vrot.slane %v7394, 2
        %v7506 = vsel %vm1986, %v7503, %v7505
        %v7507 = vrot.slane %v7395, 2
        %v7508 = vrot.slane %v7396, 2
        %v7509 = vsel %vm1986, %v7507, %v7508
        %v7510 = vrot.slane %v7397, 2
        %v7511 = vsel %vm1986, %v7508, %v7510
        %v7512 = vrot.slane %v7398, 2
        %v7513 = vrot.slane %v7399, 2
        %v7514 = vsel %vm1986, %v7512, %v7513
        %v7515 = vrot.slane %v7400, 2
        %v7516 = vsel %vm1986, %v7513, %v7515
        %v7517 = vrot.slane %v7401, 2
        %v7518 = vrot.slane %v7402, 2
        %v7519 = vsel %vm1986, %v7517, %v7518
        %v7520 = vrot.slane %v7403, 2
        %v7521 = vsel %vm1986, %v7518, %v7520
        %v7522 = vrot.slane %v7404, 2
        %v7523 = vrot.slane %v7405, 2
        %v7524 = vsel %vm1986, %v7522, %v7523
        %v7525 = vrot.slane %v7406, 2
        %v7526 = vsel %vm1986, %v7523, %v7525
        %v7527 = vrot.slane %v7407, 2
        %v7528 = vrot.slane %v7408, 2
        %v7529 = vsel %vm1986, %v7527, %v7528
        %v7530 = vrot.slane %v7409, 2
        %v7531 = vsel %vm1986, %v7528, %v7530
        %v7532 = vrot.slane %v7410, 2
        %v7533 = vrot.slane %v7411, 2
        %v7534 = vsel %vm1986, %v7532, %v7533
        %v7535 = vrot.slane %v7412, 2
        %v7536 = vsel %vm1986, %v7533, %v7535
        %v7537 = vrot.slane %v7413, 2
        %v7538 = vrot.slane %v7414, 2
        %v7539 = vsel %vm1986, %v7537, %v7538
        %v7540 = vrot.slane %v7415, 2
        %v7541 = vsel %vm1986, %v7538, %v7540
        %v7542 = vrot.slane %v7416, 2
        %v7543 = vrot.slane %v7417, 2
        %v7544 = vsel %vm1986, %v7542, %v7543
        %v7545 = vrot.slane %v7418, 2
        %v7546 = vsel %vm1986, %v7543, %v7545
        %v7595 = vadd.f32 %v7287, %v7467
        %v7596 = vadd.f32 %v7288, %v7469
        %v7597 = vadd.f32 %v7289, %v7471
        %v7598 = vadd.f32 %v7290, %v7472
        %v7599 = vadd.f32 %v7291, %v7474
        %v7600 = vadd.f32 %v7292, %v7476
        %v7601 = vadd.f32 %v7293, %v7477
        %v7602 = vadd.f32 %v7294, %v7479
        %v7603 = vadd.f32 %v7295, %v7481
        %v7604 = vadd.f32 %v7296, %v7482
        %v7605 = vadd.f32 %v7297, %v7484
        %v7606 = vadd.f32 %v7298, %v7486
        %v7607 = vadd.f32 %v7299, %v7487
        %v7608 = vadd.f32 %v7300, %v7489
        %v7609 = vadd.f32 %v7301, %v7491
        %v7610 = vadd.f32 %v7302, %v7492
        %v7611 = vadd.f32 %v7303, %v7494
        %v7612 = vadd.f32 %v7304, %v7496
        %v7613 = vadd.f32 %v7305, %v7497
        %v7614 = vadd.f32 %v7306, %v7499
        %v7615 = vadd.f32 %v7307, %v7501
        %v7616 = vadd.f32 %v7308, %v7502
        %v7617 = vadd.f32 %v7309, %v7504
        %v7618 = vadd.f32 %v7310, %v7506
        %v7619 = vadd.f32 %v7311, %v7507
        %v7620 = vadd.f32 %v7312, %v7509
        %v7621 = vadd.f32 %v7313, %v7511
        %v7622 = vadd.f32 %v7314, %v7512
        %v7623 = vadd.f32 %v7315, %v7514
        %v7624 = vadd.f32 %v7316, %v7516
        %v7625 = vadd.f32 %v7317, %v7517
        %v7626 = vadd.f32 %v7318, %v7519
        %v7627 = vadd.f32 %v7319, %v7521
        %v7628 = vadd.f32 %v7320, %v7522
        %v7629 = vadd.f32 %v7321, %v7524
        %v7630 = vadd.f32 %v7322, %v7526
        %v7631 = vadd.f32 %v7323, %v7527
        %v7632 = vadd.f32 %v7324, %v7529
        %v7633 = vadd.f32 %v7325, %v7531
        %v7634 = vadd.f32 %v7326, %v7532
        %v7635 = vadd.f32 %v7327, %v7534
        %v7636 = vadd.f32 %v7328, %v7536
        %v7637 = vadd.f32 %v7329, %v7537
        %v7638 = vadd.f32 %v7330, %v7539
        %v7639 = vadd.f32 %v7331, %v7541
        %v7640 = vadd.f32 %v7332, %v7542
        %v7641 = vadd.f32 %v7333, %v7544
        %v7642 = vadd.f32 %v7334, %v7546
        %v7643 = vld [vmem:[%s1000] sm:$0x80]
        %v7644 = vld [vmem:[%s1000 + $0x10] sm:$0xff]
        %v7645 = vld [vmem:[%s1000 + $0x20] sm:$0x7f]
        %v7646 = vld [vmem:[%s1000 + $0x40] sm:$0x80]
        %v7647 = vld [vmem:[%s1000 + $0x50] sm:$0xff]
        %v7648 = vld [vmem:[%s1000 + $0x60] sm:$0x7f]
        %v7649 = vld [vmem:[%s1000 + $0x80] sm:$0x80]
        %v7650 = vld [vmem:[%s1000 + $0x90] sm:$0xff]
        %v7651 = vld [vmem:[%s1000 + $0xa0] sm:$0x7f]
        %v7652 = vld [vmem:[%s1000 + $0xc0] sm:$0x80]
        %v7653 = vld [vmem:[%s1000 + $0xd0] sm:$0xff]
        %v7654 = vld [vmem:[%s1000 + $0xe0] sm:$0x7f]
        %v7655 = vld [vmem:[%s1000 + $0x100] sm:$0x80]
        %v7656 = vld [vmem:[%s1000 + $0x110] sm:$0xff]
        %v7657 = vld [vmem:[%s1000 + $0x120] sm:$0x7f]
        %v7658 = vld [vmem:[%s1000 + $0x140] sm:$0x80]
        %v7659 = vld [vmem:[%s1000 + $0x150] sm:$0xff]
        %v7660 = vld [vmem:[%s1000 + $0x160] sm:$0x7f]
        %v7661 = vld [vmem:[%s1000 + $0x180] sm:$0x80]
        %v7662 = vld [vmem:[%s1000 + $0x190] sm:$0xff]
        %v7663 = vld [vmem:[%s1000 + $0x1a0] sm:$0x7f]
        %v7664 = vld [vmem:[%s1000 + $0x1c0] sm:$0x80]
        %v7665 = vld [vmem:[%s1000 + $0x1d0] sm:$0xff]
        %v7666 = vld [vmem:[%s1000 + $0x1e0] sm:$0x7f]
        %v7667 = vld [vmem:[%s1000 + $0x200] sm:$0x80]
        %v7668 = vld [vmem:[%s1000 + $0x210] sm:$0xff]
        %v7669 = vld [vmem:[%s1000 + $0x220] sm:$0x7f]
        %v7670 = vld [vmem:[%s1000 + $0x240] sm:$0x80]
        %v7671 = vld [vmem:[%s1000 + $0x250] sm:$0xff]
        %v7672 = vld [vmem:[%s1000 + $0x260] sm:$0x7f]
        %v7673 = vld [vmem:[%s1000 + $0x280] sm:$0x80]
        %v7674 = vld [vmem:[%s1000 + $0x290] sm:$0xff]
        %v7675 = vld [vmem:[%s1000 + $0x2a0] sm:$0x7f]
        %v7676 = vld [vmem:[%s1000 + $0x2c0] sm:$0x80]
        %v7677 = vld [vmem:[%s1000 + $0x2d0] sm:$0xff]
        %v7678 = vld [vmem:[%s1000 + $0x2e0] sm:$0x7f]
        %v7679 = vld [vmem:[%s1000 + $0x300] sm:$0x80]
        %v7680 = vld [vmem:[%s1000 + $0x310] sm:$0xff]
        %v7681 = vld [vmem:[%s1000 + $0x320] sm:$0x7f]
        %v7682 = vld [vmem:[%s1000 + $0x340] sm:$0x80]
        %v7683 = vld [vmem:[%s1000 + $0x350] sm:$0xff]
        %v7684 = vld [vmem:[%s1000 + $0x360] sm:$0x7f]
        %v7685 = vld [vmem:[%s1000 + $0x380] sm:$0x80]
        %v7686 = vld [vmem:[%s1000 + $0x390] sm:$0xff]
        %v7687 = vld [vmem:[%s1000 + $0x3a0] sm:$0x7f]
        %v7688 = vld [vmem:[%s1000 + $0x3c0] sm:$0x80]
        %v7689 = vld [vmem:[%s1000 + $0x3d0] sm:$0xff]
        %v7690 = vld [vmem:[%s1000 + $0x3e0] sm:$0x7f]
        %v7691 = vlaneseq
        %v7692 = vshrl.u32 %v7691, 7
        %v7693 = vsub.s32 7, %v7692
        %v7694 = vrot.slane %v352, %v7693
        %v7695 = vmul.f32 %v7643, %v7694
        %v7696 = vmul.f32 %v7644, %v7694
        %v7697 = vmul.f32 %v7645, %v7694
        %v7698 = vmul.f32 %v7646, %v7694
        %v7699 = vmul.f32 %v7647, %v7694
        %v7700 = vmul.f32 %v7648, %v7694
        %v7701 = vmul.f32 %v7649, %v7694
        %v7702 = vmul.f32 %v7650, %v7694
        %v7703 = vmul.f32 %v7651, %v7694
        %v7704 = vmul.f32 %v7652, %v7694
        %v7705 = vmul.f32 %v7653, %v7694
        %v7706 = vmul.f32 %v7654, %v7694
        %v7707 = vmul.f32 %v7655, %v7694
        %v7708 = vmul.f32 %v7656, %v7694
        %v7709 = vmul.f32 %v7657, %v7694
        %v7710 = vmul.f32 %v7658, %v7694
        %v7711 = vmul.f32 %v7659, %v7694
        %v7712 = vmul.f32 %v7660, %v7694
        %v7713 = vmul.f32 %v7661, %v7694
        %v7714 = vmul.f32 %v7662, %v7694
        %v7715 = vmul.f32 %v7663, %v7694
        %v7716 = vmul.f32 %v7664, %v7694
        %v7717 = vmul.f32 %v7665, %v7694
        %v7718 = vmul.f32 %v7666, %v7694
        %v7719 = vmul.f32 %v7667, %v7694
        %v7720 = vmul.f32 %v7668, %v7694
        %v7721 = vmul.f32 %v7669, %v7694
        %v7722 = vmul.f32 %v7670, %v7694
        %v7723 = vmul.f32 %v7671, %v7694
        %v7724 = vmul.f32 %v7672, %v7694
        %v7725 = vmul.f32 %v7673, %v7694
        %v7726 = vmul.f32 %v7674, %v7694
        %v7727 = vmul.f32 %v7675, %v7694
        %v7728 = vmul.f32 %v7676, %v7694
        %v7729 = vmul.f32 %v7677, %v7694
        %v7730 = vmul.f32 %v7678, %v7694
        %v7731 = vmul.f32 %v7679, %v7694
        %v7732 = vmul.f32 %v7680, %v7694
        %v7733 = vmul.f32 %v7681, %v7694
        %v7734 = vmul.f32 %v7682, %v7694
        %v7735 = vmul.f32 %v7683, %v7694
        %v7736 = vmul.f32 %v7684, %v7694
        %v7737 = vmul.f32 %v7685, %v7694
        %v7738 = vmul.f32 %v7686, %v7694
        %v7739 = vmul.f32 %v7687, %v7694
        %v7740 = vmul.f32 %v7688, %v7694
        %v7741 = vmul.f32 %v7689, %v7694
        %v7742 = vmul.f32 %v7690, %v7694
        %v7743 = vadd.f32 %v7595, %v7695
        %v7744 = vadd.f32 %v7596, %v7696
        %v7745 = vadd.f32 %v7597, %v7697
        %v7746 = vadd.f32 %v7598, %v7698
        %v7747 = vadd.f32 %v7599, %v7699
        %v7748 = vadd.f32 %v7600, %v7700
        %v7749 = vadd.f32 %v7601, %v7701
        %v7750 = vadd.f32 %v7602, %v7702
        %v7751 = vadd.f32 %v7603, %v7703
        %v7752 = vadd.f32 %v7604, %v7704
        %v7753 = vadd.f32 %v7605, %v7705
        %v7754 = vadd.f32 %v7606, %v7706
        %v7755 = vadd.f32 %v7607, %v7707
        %v7756 = vadd.f32 %v7608, %v7708
        %v7757 = vadd.f32 %v7609, %v7709
        %v7758 = vadd.f32 %v7610, %v7710
        %v7759 = vadd.f32 %v7611, %v7711
        %v7760 = vadd.f32 %v7612, %v7712
        %v7761 = vadd.f32 %v7613, %v7713
        %v7762 = vadd.f32 %v7614, %v7714
        %v7763 = vadd.f32 %v7615, %v7715
        %v7764 = vadd.f32 %v7616, %v7716
        %v7765 = vadd.f32 %v7617, %v7717
        %v7766 = vadd.f32 %v7618, %v7718
        %v7767 = vadd.f32 %v7619, %v7719
        %v7768 = vadd.f32 %v7620, %v7720
        %v7769 = vadd.f32 %v7621, %v7721
        %v7770 = vadd.f32 %v7622, %v7722
        %v7771 = vadd.f32 %v7623, %v7723
        %v7772 = vadd.f32 %v7624, %v7724
        %v7773 = vadd.f32 %v7625, %v7725
        %v7774 = vadd.f32 %v7626, %v7726
        %v7775 = vadd.f32 %v7627, %v7727
        %v7776 = vadd.f32 %v7628, %v7728
        %v7777 = vadd.f32 %v7629, %v7729
        %v7778 = vadd.f32 %v7630, %v7730
        %v7779 = vadd.f32 %v7631, %v7731
        %v7780 = vadd.f32 %v7632, %v7732
        %v7781 = vadd.f32 %v7633, %v7733
        %v7782 = vadd.f32 %v7634, %v7734
        %v7783 = vadd.f32 %v7635, %v7735
        %v7784 = vadd.f32 %v7636, %v7736
        %v7785 = vadd.f32 %v7637, %v7737
        %v7786 = vadd.f32 %v7638, %v7738
        %v7787 = vadd.f32 %v7639, %v7739
        %v7788 = vadd.f32 %v7640, %v7740
        %v7789 = vadd.f32 %v7641, %v7741
        %v7790 = vadd.f32 %v7642, %v7742
        %v7791 = vld [vmem:[%s1000 + $0x20] sm:$0xff]
        %v7792 = vld [vmem:[%s1000 + $0x60] sm:$0xff]
        %v7793 = vld [vmem:[%s1000 + $0xa0] sm:$0xff]
        %v7794 = vld [vmem:[%s1000 + $0xe0] sm:$0xff]
        %v7795 = vld [vmem:[%s1000 + $0x120] sm:$0xff]
        %v7796 = vld [vmem:[%s1000 + $0x160] sm:$0xff]
        %v7797 = vld [vmem:[%s1000 + $0x1a0] sm:$0xff]
        %v7798 = vld [vmem:[%s1000 + $0x1e0] sm:$0xff]
        %v7799 = vld [vmem:[%s1000 + $0x220] sm:$0xff]
        %v7800 = vld [vmem:[%s1000 + $0x260] sm:$0xff]
        %v7801 = vld [vmem:[%s1000 + $0x2a0] sm:$0xff]
        %v7802 = vld [vmem:[%s1000 + $0x2e0] sm:$0xff]
        %v7803 = vld [vmem:[%s1000 + $0x320] sm:$0xff]
        %v7804 = vld [vmem:[%s1000 + $0x360] sm:$0xff]
        %v7805 = vld [vmem:[%s1000 + $0x3a0] sm:$0xff]
        %v7806 = vld [vmem:[%s1000 + $0x3e0] sm:$0xff]
        %v7807 = vlaneseq
        %v7808 = vshrl.u32 %v7807, 7
        %v7809 = vsub.s32 0, %v7808
        %v7810 = vrot.slane %v353, %v7809
        %v7811 = vmul.f32 %v7644, %v7810
        %v7812 = vmul.f32 %v7791, %v7810
        %v7813 = vmul.f32 %v7647, %v7810
        %v7814 = vmul.f32 %v7792, %v7810
        %v7815 = vmul.f32 %v7650, %v7810
        %v7816 = vmul.f32 %v7793, %v7810
        %v7817 = vmul.f32 %v7653, %v7810
        %v7818 = vmul.f32 %v7794, %v7810
        %v7819 = vmul.f32 %v7656, %v7810
        %v7820 = vmul.f32 %v7795, %v7810
        %v7821 = vmul.f32 %v7659, %v7810
        %v7822 = vmul.f32 %v7796, %v7810
        %v7823 = vmul.f32 %v7662, %v7810
        %v7824 = vmul.f32 %v7797, %v7810
        %v7825 = vmul.f32 %v7665, %v7810
        %v7826 = vmul.f32 %v7798, %v7810
        %v7827 = vmul.f32 %v7668, %v7810
        %v7828 = vmul.f32 %v7799, %v7810
        %v7829 = vmul.f32 %v7671, %v7810
        %v7830 = vmul.f32 %v7800, %v7810
        %v7831 = vmul.f32 %v7674, %v7810
        %v7832 = vmul.f32 %v7801, %v7810
        %v7833 = vmul.f32 %v7677, %v7810
        %v7834 = vmul.f32 %v7802, %v7810
        %v7835 = vmul.f32 %v7680, %v7810
        %v7836 = vmul.f32 %v7803, %v7810
        %v7837 = vmul.f32 %v7683, %v7810
        %v7838 = vmul.f32 %v7804, %v7810
        %v7839 = vmul.f32 %v7686, %v7810
        %v7840 = vmul.f32 %v7805, %v7810
        %v7841 = vmul.f32 %v7689, %v7810
        %v7842 = vmul.f32 %v7806, %v7810
        %v7875 = vrot.slane %v7811, 1
        %v7876 = vrot.slane %v7812, 1
        %v7877 = vsel %vm1433, %v7875, %v7876
        %v7878 = vrot.slane %v7813, 1
        %v7879 = vrot.slane %v7814, 1
        %v7880 = vsel %vm1433, %v7878, %v7879
        %v7881 = vrot.slane %v7815, 1
        %v7882 = vrot.slane %v7816, 1
        %v7883 = vsel %vm1433, %v7881, %v7882
        %v7884 = vrot.slane %v7817, 1
        %v7885 = vrot.slane %v7818, 1
        %v7886 = vsel %vm1433, %v7884, %v7885
        %v7887 = vrot.slane %v7819, 1
        %v7888 = vrot.slane %v7820, 1
        %v7889 = vsel %vm1433, %v7887, %v7888
        %v7890 = vrot.slane %v7821, 1
        %v7891 = vrot.slane %v7822, 1
        %v7892 = vsel %vm1433, %v7890, %v7891
        %v7893 = vrot.slane %v7823, 1
        %v7894 = vrot.slane %v7824, 1
        %v7895 = vsel %vm1433, %v7893, %v7894
        %v7896 = vrot.slane %v7825, 1
        %v7897 = vrot.slane %v7826, 1
        %v7898 = vsel %vm1433, %v7896, %v7897
        %v7899 = vrot.slane %v7827, 1
        %v7900 = vrot.slane %v7828, 1
        %v7901 = vsel %vm1433, %v7899, %v7900
        %v7902 = vrot.slane %v7829, 1
        %v7903 = vrot.slane %v7830, 1
        %v7904 = vsel %vm1433, %v7902, %v7903
        %v7905 = vrot.slane %v7831, 1
        %v7906 = vrot.slane %v7832, 1
        %v7907 = vsel %vm1433, %v7905, %v7906
        %v7908 = vrot.slane %v7833, 1
        %v7909 = vrot.slane %v7834, 1
        %v7910 = vsel %vm1433, %v7908, %v7909
        %v7911 = vrot.slane %v7835, 1
        %v7912 = vrot.slane %v7836, 1
        %v7913 = vsel %vm1433, %v7911, %v7912
        %v7914 = vrot.slane %v7837, 1
        %v7915 = vrot.slane %v7838, 1
        %v7916 = vsel %vm1433, %v7914, %v7915
        %v7917 = vrot.slane %v7839, 1
        %v7918 = vrot.slane %v7840, 1
        %v7919 = vsel %vm1433, %v7917, %v7918
        %v7920 = vrot.slane %v7841, 1
        %v7921 = vrot.slane %v7842, 1
        %v7922 = vsel %vm1433, %v7920, %v7921
        %v7971 = vadd.f32 %v7743, %v7875
        %v7972 = vadd.f32 %v7744, %v7877
        %v7973 = vadd.f32 %v7745, %v7876
        %v7974 = vadd.f32 %v7746, %v7878
        %v7975 = vadd.f32 %v7747, %v7880
        %v7976 = vadd.f32 %v7748, %v7879
        %v7977 = vadd.f32 %v7749, %v7881
        %v7978 = vadd.f32 %v7750, %v7883
        %v7979 = vadd.f32 %v7751, %v7882
        %v7980 = vadd.f32 %v7752, %v7884
        %v7981 = vadd.f32 %v7753, %v7886
        %v7982 = vadd.f32 %v7754, %v7885
        %v7983 = vadd.f32 %v7755, %v7887
        %v7984 = vadd.f32 %v7756, %v7889
        %v7985 = vadd.f32 %v7757, %v7888
        %v7986 = vadd.f32 %v7758, %v7890
        %v7987 = vadd.f32 %v7759, %v7892
        %v7988 = vadd.f32 %v7760, %v7891
        %v7989 = vadd.f32 %v7761, %v7893
        %v7990 = vadd.f32 %v7762, %v7895
        %v7991 = vadd.f32 %v7763, %v7894
        %v7992 = vadd.f32 %v7764, %v7896
        %v7993 = vadd.f32 %v7765, %v7898
        %v7994 = vadd.f32 %v7766, %v7897
        %v7995 = vadd.f32 %v7767, %v7899
        %v7996 = vadd.f32 %v7768, %v7901
        %v7997 = vadd.f32 %v7769, %v7900
        %v7998 = vadd.f32 %v7770, %v7902
        %v7999 = vadd.f32 %v7771, %v7904
        %v8000 = vadd.f32 %v7772, %v7903
        %v8001 = vadd.f32 %v7773, %v7905
        %v8002 = vadd.f32 %v7774, %v7907
        %v8003 = vadd.f32 %v7775, %v7906
        %v8004 = vadd.f32 %v7776, %v7908
        %v8005 = vadd.f32 %v7777, %v7910
        %v8006 = vadd.f32 %v7778, %v7909
        %v8007 = vadd.f32 %v7779, %v7911
        %v8008 = vadd.f32 %v7780, %v7913
        %v8009 = vadd.f32 %v7781, %v7912
        %v8010 = vadd.f32 %v7782, %v7914
        %v8011 = vadd.f32 %v7783, %v7916
        %v8012 = vadd.f32 %v7784, %v7915
        %v8013 = vadd.f32 %v7785, %v7917
        %v8014 = vadd.f32 %v7786, %v7919
        %v8015 = vadd.f32 %v7787, %v7918
        %v8016 = vadd.f32 %v7788, %v7920
        %v8017 = vadd.f32 %v7789, %v7922
        %v8018 = vadd.f32 %v7790, %v7921
        %v8019 = vld [vmem:[%s1000 + $0x10] sm:$0xfe]
        %v8020 = vld [vmem:[%s1000 + $0x30] sm:$0x1]
        %v8021 = vld [vmem:[%s1000 + $0x50] sm:$0xfe]
        %v8022 = vld [vmem:[%s1000 + $0x70] sm:$0x1]
        %v8023 = vld [vmem:[%s1000 + $0x90] sm:$0xfe]
        %v8024 = vld [vmem:[%s1000 + $0xb0] sm:$0x1]
        %v8025 = vld [vmem:[%s1000 + $0xd0] sm:$0xfe]
        %v8026 = vld [vmem:[%s1000 + $0xf0] sm:$0x1]
        %v8027 = vld [vmem:[%s1000 + $0x110] sm:$0xfe]
        %v8028 = vld [vmem:[%s1000 + $0x130] sm:$0x1]
        %v8029 = vld [vmem:[%s1000 + $0x150] sm:$0xfe]
        %v8030 = vld [vmem:[%s1000 + $0x170] sm:$0x1]
        %v8031 = vld [vmem:[%s1000 + $0x190] sm:$0xfe]
        %v8032 = vld [vmem:[%s1000 + $0x1b0] sm:$0x1]
        %v8033 = vld [vmem:[%s1000 + $0x1d0] sm:$0xfe]
        %v8034 = vld [vmem:[%s1000 + $0x1f0] sm:$0x1]
        %v8035 = vld [vmem:[%s1000 + $0x210] sm:$0xfe]
        %v8036 = vld [vmem:[%s1000 + $0x230] sm:$0x1]
        %v8037 = vld [vmem:[%s1000 + $0x250] sm:$0xfe]
        %v8038 = vld [vmem:[%s1000 + $0x270] sm:$0x1]
        %v8039 = vld [vmem:[%s1000 + $0x290] sm:$0xfe]
        %v8040 = vld [vmem:[%s1000 + $0x2b0] sm:$0x1]
        %v8041 = vld [vmem:[%s1000 + $0x2d0] sm:$0xfe]
        %v8042 = vld [vmem:[%s1000 + $0x2f0] sm:$0x1]
        %v8043 = vld [vmem:[%s1000 + $0x310] sm:$0xfe]
        %v8044 = vld [vmem:[%s1000 + $0x330] sm:$0x1]
        %v8045 = vld [vmem:[%s1000 + $0x350] sm:$0xfe]
        %v8046 = vld [vmem:[%s1000 + $0x370] sm:$0x1]
        %v8047 = vld [vmem:[%s1000 + $0x390] sm:$0xfe]
        %v8048 = vld [vmem:[%s1000 + $0x3b0] sm:$0x1]
        %v8049 = vld [vmem:[%s1000 + $0x3d0] sm:$0xfe]
        %v8050 = vld [vmem:[%s1000 + $0x3f0] sm:$0x1]
        %v8051 = vlaneseq
        %v8052 = vshrl.u32 %v8051, 7
        %v8053 = vsub.s32 1, %v8052
        %v8054 = vrot.slane %v353, %v8053
        %v8055 = vmul.f32 %v8019, %v8054
        %v8056 = vmul.f32 %v7791, %v8054
        %v8057 = vmul.f32 %v8020, %v8054
        %v8058 = vmul.f32 %v8021, %v8054
        %v8059 = vmul.f32 %v7792, %v8054
        %v8060 = vmul.f32 %v8022, %v8054
        %v8061 = vmul.f32 %v8023, %v8054
        %v8062 = vmul.f32 %v7793, %v8054
        %v8063 = vmul.f32 %v8024, %v8054
        %v8064 = vmul.f32 %v8025, %v8054
        %v8065 = vmul.f32 %v7794, %v8054
        %v8066 = vmul.f32 %v8026, %v8054
        %v8067 = vmul.f32 %v8027, %v8054
        %v8068 = vmul.f32 %v7795, %v8054
        %v8069 = vmul.f32 %v8028, %v8054
        %v8070 = vmul.f32 %v8029, %v8054
        %v8071 = vmul.f32 %v7796, %v8054
        %v8072 = vmul.f32 %v8030, %v8054
        %v8073 = vmul.f32 %v8031, %v8054
        %v8074 = vmul.f32 %v7797, %v8054
        %v8075 = vmul.f32 %v8032, %v8054
        %v8076 = vmul.f32 %v8033, %v8054
        %v8077 = vmul.f32 %v7798, %v8054
        %v8078 = vmul.f32 %v8034, %v8054
        %v8079 = vmul.f32 %v8035, %v8054
        %v8080 = vmul.f32 %v7799, %v8054
        %v8081 = vmul.f32 %v8036, %v8054
        %v8082 = vmul.f32 %v8037, %v8054
        %v8083 = vmul.f32 %v7800, %v8054
        %v8084 = vmul.f32 %v8038, %v8054
        %v8085 = vmul.f32 %v8039, %v8054
        %v8086 = vmul.f32 %v7801, %v8054
        %v8087 = vmul.f32 %v8040, %v8054
        %v8088 = vmul.f32 %v8041, %v8054
        %v8089 = vmul.f32 %v7802, %v8054
        %v8090 = vmul.f32 %v8042, %v8054
        %v8091 = vmul.f32 %v8043, %v8054
        %v8092 = vmul.f32 %v7803, %v8054
        %v8093 = vmul.f32 %v8044, %v8054
        %v8094 = vmul.f32 %v8045, %v8054
        %v8095 = vmul.f32 %v7804, %v8054
        %v8096 = vmul.f32 %v8046, %v8054
        %v8097 = vmul.f32 %v8047, %v8054
        %v8098 = vmul.f32 %v7805, %v8054
        %v8099 = vmul.f32 %v8048, %v8054
        %v8100 = vmul.f32 %v8049, %v8054
        %v8101 = vmul.f32 %v7806, %v8054
        %v8102 = vmul.f32 %v8050, %v8054
        %v8151 = vrot.slane %v8055, 2
        %v8152 = vrot.slane %v8056, 2
        %v8153 = vsel %vm1986, %v8151, %v8152
        %v8154 = vrot.slane %v8057, 2
        %v8155 = vsel %vm1986, %v8152, %v8154
        %v8156 = vrot.slane %v8058, 2
        %v8157 = vrot.slane %v8059, 2
        %v8158 = vsel %vm1986, %v8156, %v8157
        %v8159 = vrot.slane %v8060, 2
        %v8160 = vsel %vm1986, %v8157, %v8159
        %v8161 = vrot.slane %v8061, 2
        %v8162 = vrot.slane %v8062, 2
        %v8163 = vsel %vm1986, %v8161, %v8162
        %v8164 = vrot.slane %v8063, 2
        %v8165 = vsel %vm1986, %v8162, %v8164
        %v8166 = vrot.slane %v8064, 2
        %v8167 = vrot.slane %v8065, 2
        %v8168 = vsel %vm1986, %v8166, %v8167
        %v8169 = vrot.slane %v8066, 2
        %v8170 = vsel %vm1986, %v8167, %v8169
        %v8171 = vrot.slane %v8067, 2
        %v8172 = vrot.slane %v8068, 2
        %v8173 = vsel %vm1986, %v8171, %v8172
        %v8174 = vrot.slane %v8069, 2
        %v8175 = vsel %vm1986, %v8172, %v8174
        %v8176 = vrot.slane %v8070, 2
        %v8177 = vrot.slane %v8071, 2
        %v8178 = vsel %vm1986, %v8176, %v8177
        %v8179 = vrot.slane %v8072, 2
        %v8180 = vsel %vm1986, %v8177, %v8179
        %v8181 = vrot.slane %v8073, 2
        %v8182 = vrot.slane %v8074, 2
        %v8183 = vsel %vm1986, %v8181, %v8182
        %v8184 = vrot.slane %v8075, 2
        %v8185 = vsel %vm1986, %v8182, %v8184
        %v8186 = vrot.slane %v8076, 2
        %v8187 = vrot.slane %v8077, 2
        %v8188 = vsel %vm1986, %v8186, %v8187
        %v8189 = vrot.slane %v8078, 2
        %v8190 = vsel %vm1986, %v8187, %v8189
        %v8191 = vrot.slane %v8079, 2
        %v8192 = vrot.slane %v8080, 2
        %v8193 = vsel %vm1986, %v8191, %v8192
        %v8194 = vrot.slane %v8081, 2
        %v8195 = vsel %vm1986, %v8192, %v8194
        %v8196 = vrot.slane %v8082, 2
        %v8197 = vrot.slane %v8083, 2
        %v8198 = vsel %vm1986, %v8196, %v8197
        %v8199 = vrot.slane %v8084, 2
        %v8200 = vsel %vm1986, %v8197, %v8199
        %v8201 = vrot.slane %v8085, 2
        %v8202 = vrot.slane %v8086, 2
        %v8203 = vsel %vm1986, %v8201, %v8202
        %v8204 = vrot.slane %v8087, 2
        %v8205 = vsel %vm1986, %v8202, %v8204
        %v8206 = vrot.slane %v8088, 2
        %v8207 = vrot.slane %v8089, 2
        %v8208 = vsel %vm1986, %v8206, %v8207
        %v8209 = vrot.slane %v8090, 2
        %v8210 = vsel %vm1986, %v8207, %v8209
        %v8211 = vrot.slane %v8091, 2
        %v8212 = vrot.slane %v8092, 2
        %v8213 = vsel %vm1986, %v8211, %v8212
        %v8214 = vrot.slane %v8093, 2
        %v8215 = vsel %vm1986, %v8212, %v8214
        %v8216 = vrot.slane %v8094, 2
        %v8217 = vrot.slane %v8095, 2
        %v8218 = vsel %vm1986, %v8216, %v8217
        %v8219 = vrot.slane %v8096, 2
        %v8220 = vsel %vm1986, %v8217, %v8219
        %v8221 = vrot.slane %v8097, 2
        %v8222 = vrot.slane %v8098, 2
        %v8223 = vsel %vm1986, %v8221, %v8222
        %v8224 = vrot.slane %v8099, 2
        %v8225 = vsel %vm1986, %v8222, %v8224
        %v8226 = vrot.slane %v8100, 2
        %v8227 = vrot.slane %v8101, 2
        %v8228 = vsel %vm1986, %v8226, %v8227
        %v8229 = vrot.slane %v8102, 2
        %v8230 = vsel %vm1986, %v8227, %v8229
        %v8279 = vadd.f32 %v7971, %v8151
        %v8280 = vadd.f32 %v7972, %v8153
        %v8281 = vadd.f32 %v7973, %v8155
        %v8282 = vadd.f32 %v7974, %v8156
        %v8283 = vadd.f32 %v7975, %v8158
        %v8284 = vadd.f32 %v7976, %v8160
        %v8285 = vadd.f32 %v7977, %v8161
        %v8286 = vadd.f32 %v7978, %v8163
        %v8287 = vadd.f32 %v7979, %v8165
        %v8288 = vadd.f32 %v7980, %v8166
        %v8289 = vadd.f32 %v7981, %v8168
        %v8290 = vadd.f32 %v7982, %v8170
        %v8291 = vadd.f32 %v7983, %v8171
        %v8292 = vadd.f32 %v7984, %v8173
        %v8293 = vadd.f32 %v7985, %v8175
        %v8294 = vadd.f32 %v7986, %v8176
        %v8295 = vadd.f32 %v7987, %v8178
        %v8296 = vadd.f32 %v7988, %v8180
        %v8297 = vadd.f32 %v7989, %v8181
        %v8298 = vadd.f32 %v7990, %v8183
        %v8299 = vadd.f32 %v7991, %v8185
        %v8300 = vadd.f32 %v7992, %v8186
        %v8301 = vadd.f32 %v7993, %v8188
        %v8302 = vadd.f32 %v7994, %v8190
        %v8303 = vadd.f32 %v7995, %v8191
        %v8304 = vadd.f32 %v7996, %v8193
        %v8305 = vadd.f32 %v7997, %v8195
        %v8306 = vadd.f32 %v7998, %v8196
        %v8307 = vadd.f32 %v7999, %v8198
        %v8308 = vadd.f32 %v8000, %v8200
        %v8309 = vadd.f32 %v8001, %v8201
        %v8310 = vadd.f32 %v8002, %v8203
        %v8311 = vadd.f32 %v8003, %v8205
        %v8312 = vadd.f32 %v8004, %v8206
        %v8313 = vadd.f32 %v8005, %v8208
        %v8314 = vadd.f32 %v8006, %v8210
        %v8315 = vadd.f32 %v8007, %v8211
        %v8316 = vadd.f32 %v8008, %v8213
        %v8317 = vadd.f32 %v8009, %v8215
        %v8318 = vadd.f32 %v8010, %v8216
        %v8319 = vadd.f32 %v8011, %v8218
        %v8320 = vadd.f32 %v8012, %v8220
        %v8321 = vadd.f32 %v8013, %v8221
        %v8322 = vadd.f32 %v8014, %v8223
        %v8323 = vadd.f32 %v8015, %v8225
        %v8324 = vadd.f32 %v8016, %v8226
        %v8325 = vadd.f32 %v8017, %v8228
        %v8326 = vadd.f32 %v8018, %v8230
        %v8327 = vld [vmem:[%s3707] sm:$0x80]
        %v8328 = vld [vmem:[%s3707 + $0x10] sm:$0xff]
        %v8329 = vld [vmem:[%s3707 + $0x20] sm:$0x7f]
        %v8330 = vld [vmem:[%s3707 + $0x40] sm:$0x80]
        %v8331 = vld [vmem:[%s3707 + $0x50] sm:$0xff]
        %v8332 = vld [vmem:[%s3707 + $0x60] sm:$0x7f]
        %v8333 = vld [vmem:[%s3707 + $0x80] sm:$0x80]
        %v8334 = vld [vmem:[%s3707 + $0x90] sm:$0xff]
        %v8335 = vld [vmem:[%s3707 + $0xa0] sm:$0x7f]
        %v8336 = vld [vmem:[%s3707 + $0xc0] sm:$0x80]
        %v8337 = vld [vmem:[%s3707 + $0xd0] sm:$0xff]
        %v8338 = vld [vmem:[%s3707 + $0xe0] sm:$0x7f]
        %v8339 = vld [vmem:[%s3707 + $0x100] sm:$0x80]
        %v8340 = vld [vmem:[%s3707 + $0x110] sm:$0xff]
        %v8341 = vld [vmem:[%s3707 + $0x120] sm:$0x7f]
        %v8342 = vld [vmem:[%s3707 + $0x140] sm:$0x80]
        %v8343 = vld [vmem:[%s3707 + $0x150] sm:$0xff]
        %v8344 = vld [vmem:[%s3707 + $0x160] sm:$0x7f]
        %v8345 = vld [vmem:[%s3707 + $0x180] sm:$0x80]
        %v8346 = vld [vmem:[%s3707 + $0x190] sm:$0xff]
        %v8347 = vld [vmem:[%s3707 + $0x1a0] sm:$0x7f]
        %v8348 = vld [vmem:[%s3707 + $0x1c0] sm:$0x80]
        %v8349 = vld [vmem:[%s3707 + $0x1d0] sm:$0xff]
        %v8350 = vld [vmem:[%s3707 + $0x1e0] sm:$0x7f]
        %v8351 = vld [vmem:[%s3707 + $0x200] sm:$0x80]
        %v8352 = vld [vmem:[%s3707 + $0x210] sm:$0xff]
        %v8353 = vld [vmem:[%s3707 + $0x220] sm:$0x7f]
        %v8354 = vld [vmem:[%s3707 + $0x240] sm:$0x80]
        %v8355 = vld [vmem:[%s3707 + $0x250] sm:$0xff]
        %v8356 = vld [vmem:[%s3707 + $0x260] sm:$0x7f]
        %v8357 = vld [vmem:[%s3707 + $0x280] sm:$0x80]
        %v8358 = vld [vmem:[%s3707 + $0x290] sm:$0xff]
        %v8359 = vld [vmem:[%s3707 + $0x2a0] sm:$0x7f]
        %v8360 = vld [vmem:[%s3707 + $0x2c0] sm:$0x80]
        %v8361 = vld [vmem:[%s3707 + $0x2d0] sm:$0xff]
        %v8362 = vld [vmem:[%s3707 + $0x2e0] sm:$0x7f]
        %v8363 = vld [vmem:[%s3707 + $0x300] sm:$0x80]
        %v8364 = vld [vmem:[%s3707 + $0x310] sm:$0xff]
        %v8365 = vld [vmem:[%s3707 + $0x320] sm:$0x7f]
        %v8366 = vld [vmem:[%s3707 + $0x340] sm:$0x80]
        %v8367 = vld [vmem:[%s3707 + $0x350] sm:$0xff]
        %v8368 = vld [vmem:[%s3707 + $0x360] sm:$0x7f]
        %v8369 = vld [vmem:[%s3707 + $0x380] sm:$0x80]
        %v8370 = vld [vmem:[%s3707 + $0x390] sm:$0xff]
        %v8371 = vld [vmem:[%s3707 + $0x3a0] sm:$0x7f]
        %v8372 = vld [vmem:[%s3707 + $0x3c0] sm:$0x80]
        %v8373 = vld [vmem:[%s3707 + $0x3d0] sm:$0xff]
        %v8374 = vld [vmem:[%s3707 + $0x3e0] sm:$0x7f]
        %v8375 = vlaneseq
        %v8376 = vshrl.u32 %v8375, 7
        %v8377 = vsub.s32 2, %v8376
        %v8378 = vrot.slane %v353, %v8377
        %v8379 = vmul.f32 %v8327, %v8378
        %v8380 = vmul.f32 %v8328, %v8378
        %v8381 = vmul.f32 %v8329, %v8378
        %v8382 = vmul.f32 %v8330, %v8378
        %v8383 = vmul.f32 %v8331, %v8378
        %v8384 = vmul.f32 %v8332, %v8378
        %v8385 = vmul.f32 %v8333, %v8378
        %v8386 = vmul.f32 %v8334, %v8378
        %v8387 = vmul.f32 %v8335, %v8378
        %v8388 = vmul.f32 %v8336, %v8378
        %v8389 = vmul.f32 %v8337, %v8378
        %v8390 = vmul.f32 %v8338, %v8378
        %v8391 = vmul.f32 %v8339, %v8378
        %v8392 = vmul.f32 %v8340, %v8378
        %v8393 = vmul.f32 %v8341, %v8378
        %v8394 = vmul.f32 %v8342, %v8378
        %v8395 = vmul.f32 %v8343, %v8378
        %v8396 = vmul.f32 %v8344, %v8378
        %v8397 = vmul.f32 %v8345, %v8378
        %v8398 = vmul.f32 %v8346, %v8378
        %v8399 = vmul.f32 %v8347, %v8378
        %v8400 = vmul.f32 %v8348, %v8378
        %v8401 = vmul.f32 %v8349, %v8378
        %v8402 = vmul.f32 %v8350, %v8378
        %v8403 = vmul.f32 %v8351, %v8378
        %v8404 = vmul.f32 %v8352, %v8378
        %v8405 = vmul.f32 %v8353, %v8378
        %v8406 = vmul.f32 %v8354, %v8378
        %v8407 = vmul.f32 %v8355, %v8378
        %v8408 = vmul.f32 %v8356, %v8378
        %v8409 = vmul.f32 %v8357, %v8378
        %v8410 = vmul.f32 %v8358, %v8378
        %v8411 = vmul.f32 %v8359, %v8378
        %v8412 = vmul.f32 %v8360, %v8378
        %v8413 = vmul.f32 %v8361, %v8378
        %v8414 = vmul.f32 %v8362, %v8378
        %v8415 = vmul.f32 %v8363, %v8378
        %v8416 = vmul.f32 %v8364, %v8378
        %v8417 = vmul.f32 %v8365, %v8378
        %v8418 = vmul.f32 %v8366, %v8378
        %v8419 = vmul.f32 %v8367, %v8378
        %v8420 = vmul.f32 %v8368, %v8378
        %v8421 = vmul.f32 %v8369, %v8378
        %v8422 = vmul.f32 %v8370, %v8378
        %v8423 = vmul.f32 %v8371, %v8378
        %v8424 = vmul.f32 %v8372, %v8378
        %v8425 = vmul.f32 %v8373, %v8378
        %v8426 = vmul.f32 %v8374, %v8378
        %v8427 = vadd.f32 %v8279, %v8379
        %v8428 = vadd.f32 %v8280, %v8380
        %v8429 = vadd.f32 %v8281, %v8381
        %v8430 = vadd.f32 %v8282, %v8382
        %v8431 = vadd.f32 %v8283, %v8383
        %v8432 = vadd.f32 %v8284, %v8384
        %v8433 = vadd.f32 %v8285, %v8385
        %v8434 = vadd.f32 %v8286, %v8386
        %v8435 = vadd.f32 %v8287, %v8387
        %v8436 = vadd.f32 %v8288, %v8388
        %v8437 = vadd.f32 %v8289, %v8389
        %v8438 = vadd.f32 %v8290, %v8390
        %v8439 = vadd.f32 %v8291, %v8391
        %v8440 = vadd.f32 %v8292, %v8392
        %v8441 = vadd.f32 %v8293, %v8393
        %v8442 = vadd.f32 %v8294, %v8394
        %v8443 = vadd.f32 %v8295, %v8395
        %v8444 = vadd.f32 %v8296, %v8396
        %v8445 = vadd.f32 %v8297, %v8397
        %v8446 = vadd.f32 %v8298, %v8398
        %v8447 = vadd.f32 %v8299, %v8399
        %v8448 = vadd.f32 %v8300, %v8400
        %v8449 = vadd.f32 %v8301, %v8401
        %v8450 = vadd.f32 %v8302, %v8402
        %v8451 = vadd.f32 %v8303, %v8403
        %v8452 = vadd.f32 %v8304, %v8404
        %v8453 = vadd.f32 %v8305, %v8405
        %v8454 = vadd.f32 %v8306, %v8406
        %v8455 = vadd.f32 %v8307, %v8407
        %v8456 = vadd.f32 %v8308, %v8408
        %v8457 = vadd.f32 %v8309, %v8409
        %v8458 = vadd.f32 %v8310, %v8410
        %v8459 = vadd.f32 %v8311, %v8411
        %v8460 = vadd.f32 %v8312, %v8412
        %v8461 = vadd.f32 %v8313, %v8413
        %v8462 = vadd.f32 %v8314, %v8414
        %v8463 = vadd.f32 %v8315, %v8415
        %v8464 = vadd.f32 %v8316, %v8416
        %v8465 = vadd.f32 %v8317, %v8417
        %v8466 = vadd.f32 %v8318, %v8418
        %v8467 = vadd.f32 %v8319, %v8419
        %v8468 = vadd.f32 %v8320, %v8420
        %v8469 = vadd.f32 %v8321, %v8421
        %v8470 = vadd.f32 %v8322, %v8422
        %v8471 = vadd.f32 %v8323, %v8423
        %v8472 = vadd.f32 %v8324, %v8424
        %v8473 = vadd.f32 %v8325, %v8425
        %v8474 = vadd.f32 %v8326, %v8426
        %v8475 = vld [vmem:[%s3707 + $0x20] sm:$0xff]
        %v8476 = vld [vmem:[%s3707 + $0x60] sm:$0xff]
        %v8477 = vld [vmem:[%s3707 + $0xa0] sm:$0xff]
        %v8478 = vld [vmem:[%s3707 + $0xe0] sm:$0xff]
        %v8479 = vld [vmem:[%s3707 + $0x120] sm:$0xff]
        %v8480 = vld [vmem:[%s3707 + $0x160] sm:$0xff]
        %v8481 = vld [vmem:[%s3707 + $0x1a0] sm:$0xff]
        %v8482 = vld [vmem:[%s3707 + $0x1e0] sm:$0xff]
        %v8483 = vld [vmem:[%s3707 + $0x220] sm:$0xff]
        %v8484 = vld [vmem:[%s3707 + $0x260] sm:$0xff]
        %v8485 = vld [vmem:[%s3707 + $0x2a0] sm:$0xff]
        %v8486 = vld [vmem:[%s3707 + $0x2e0] sm:$0xff]
        %v8487 = vld [vmem:[%s3707 + $0x320] sm:$0xff]
        %v8488 = vld [vmem:[%s3707 + $0x360] sm:$0xff]
        %v8489 = vld [vmem:[%s3707 + $0x3a0] sm:$0xff]
        %v8490 = vld [vmem:[%s3707 + $0x3e0] sm:$0xff]
        %v8491 = vlaneseq
        %v8492 = vshrl.u32 %v8491, 7
        %v8493 = vsub.s32 3, %v8492
        %v8494 = vrot.slane %v353, %v8493
        %v8495 = vmul.f32 %v8328, %v8494
        %v8496 = vmul.f32 %v8475, %v8494
        %v8497 = vmul.f32 %v8331, %v8494
        %v8498 = vmul.f32 %v8476, %v8494
        %v8499 = vmul.f32 %v8334, %v8494
        %v8500 = vmul.f32 %v8477, %v8494
        %v8501 = vmul.f32 %v8337, %v8494
        %v8502 = vmul.f32 %v8478, %v8494
        %v8503 = vmul.f32 %v8340, %v8494
        %v8504 = vmul.f32 %v8479, %v8494
        %v8505 = vmul.f32 %v8343, %v8494
        %v8506 = vmul.f32 %v8480, %v8494
        %v8507 = vmul.f32 %v8346, %v8494
        %v8508 = vmul.f32 %v8481, %v8494
        %v8509 = vmul.f32 %v8349, %v8494
        %v8510 = vmul.f32 %v8482, %v8494
        %v8511 = vmul.f32 %v8352, %v8494
        %v8512 = vmul.f32 %v8483, %v8494
        %v8513 = vmul.f32 %v8355, %v8494
        %v8514 = vmul.f32 %v8484, %v8494
        %v8515 = vmul.f32 %v8358, %v8494
        %v8516 = vmul.f32 %v8485, %v8494
        %v8517 = vmul.f32 %v8361, %v8494
        %v8518 = vmul.f32 %v8486, %v8494
        %v8519 = vmul.f32 %v8364, %v8494
        %v8520 = vmul.f32 %v8487, %v8494
        %v8521 = vmul.f32 %v8367, %v8494
        %v8522 = vmul.f32 %v8488, %v8494
        %v8523 = vmul.f32 %v8370, %v8494
        %v8524 = vmul.f32 %v8489, %v8494
        %v8525 = vmul.f32 %v8373, %v8494
        %v8526 = vmul.f32 %v8490, %v8494
        %v8559 = vrot.slane %v8495, 1
        %v8560 = vrot.slane %v8496, 1
        %v8561 = vsel %vm1433, %v8559, %v8560
        %v8562 = vrot.slane %v8497, 1
        %v8563 = vrot.slane %v8498, 1
        %v8564 = vsel %vm1433, %v8562, %v8563
        %v8565 = vrot.slane %v8499, 1
        %v8566 = vrot.slane %v8500, 1
        %v8567 = vsel %vm1433, %v8565, %v8566
        %v8568 = vrot.slane %v8501, 1
        %v8569 = vrot.slane %v8502, 1
        %v8570 = vsel %vm1433, %v8568, %v8569
        %v8571 = vrot.slane %v8503, 1
        %v8572 = vrot.slane %v8504, 1
        %v8573 = vsel %vm1433, %v8571, %v8572
        %v8574 = vrot.slane %v8505, 1
        %v8575 = vrot.slane %v8506, 1
        %v8576 = vsel %vm1433, %v8574, %v8575
        %v8577 = vrot.slane %v8507, 1
        %v8578 = vrot.slane %v8508, 1
        %v8579 = vsel %vm1433, %v8577, %v8578
        %v8580 = vrot.slane %v8509, 1
        %v8581 = vrot.slane %v8510, 1
        %v8582 = vsel %vm1433, %v8580, %v8581
        %v8583 = vrot.slane %v8511, 1
        %v8584 = vrot.slane %v8512, 1
        %v8585 = vsel %vm1433, %v8583, %v8584
        %v8586 = vrot.slane %v8513, 1
        %v8587 = vrot.slane %v8514, 1
        %v8588 = vsel %vm1433, %v8586, %v8587
        %v8589 = vrot.slane %v8515, 1
        %v8590 = vrot.slane %v8516, 1
        %v8591 = vsel %vm1433, %v8589, %v8590
        %v8592 = vrot.slane %v8517, 1
        %v8593 = vrot.slane %v8518, 1
        %v8594 = vsel %vm1433, %v8592, %v8593
        %v8595 = vrot.slane %v8519, 1
        %v8596 = vrot.slane %v8520, 1
        %v8597 = vsel %vm1433, %v8595, %v8596
        %v8598 = vrot.slane %v8521, 1
        %v8599 = vrot.slane %v8522, 1
        %v8600 = vsel %vm1433, %v8598, %v8599
        %v8601 = vrot.slane %v8523, 1
        %v8602 = vrot.slane %v8524, 1
        %v8603 = vsel %vm1433, %v8601, %v8602
        %v8604 = vrot.slane %v8525, 1
        %v8605 = vrot.slane %v8526, 1
        %v8606 = vsel %vm1433, %v8604, %v8605
        %v8655 = vadd.f32 %v8427, %v8559
        %v8656 = vadd.f32 %v8428, %v8561
        %v8657 = vadd.f32 %v8429, %v8560
        %v8658 = vadd.f32 %v8430, %v8562
        %v8659 = vadd.f32 %v8431, %v8564
        %v8660 = vadd.f32 %v8432, %v8563
        %v8661 = vadd.f32 %v8433, %v8565
        %v8662 = vadd.f32 %v8434, %v8567
        %v8663 = vadd.f32 %v8435, %v8566
        %v8664 = vadd.f32 %v8436, %v8568
        %v8665 = vadd.f32 %v8437, %v8570
        %v8666 = vadd.f32 %v8438, %v8569
        %v8667 = vadd.f32 %v8439, %v8571
        %v8668 = vadd.f32 %v8440, %v8573
        %v8669 = vadd.f32 %v8441, %v8572
        %v8670 = vadd.f32 %v8442, %v8574
        %v8671 = vadd.f32 %v8443, %v8576
        %v8672 = vadd.f32 %v8444, %v8575
        %v8673 = vadd.f32 %v8445, %v8577
        %v8674 = vadd.f32 %v8446, %v8579
        %v8675 = vadd.f32 %v8447, %v8578
        %v8676 = vadd.f32 %v8448, %v8580
        %v8677 = vadd.f32 %v8449, %v8582
        %v8678 = vadd.f32 %v8450, %v8581
        %v8679 = vadd.f32 %v8451, %v8583
        %v8680 = vadd.f32 %v8452, %v8585
        %v8681 = vadd.f32 %v8453, %v8584
        %v8682 = vadd.f32 %v8454, %v8586
        %v8683 = vadd.f32 %v8455, %v8588
        %v8684 = vadd.f32 %v8456, %v8587
        %v8685 = vadd.f32 %v8457, %v8589
        %v8686 = vadd.f32 %v8458, %v8591
        %v8687 = vadd.f32 %v8459, %v8590
        %v8688 = vadd.f32 %v8460, %v8592
        %v8689 = vadd.f32 %v8461, %v8594
        %v8690 = vadd.f32 %v8462, %v8593
        %v8691 = vadd.f32 %v8463, %v8595
        %v8692 = vadd.f32 %v8464, %v8597
        %v8693 = vadd.f32 %v8465, %v8596
        %v8694 = vadd.f32 %v8466, %v8598
        %v8695 = vadd.f32 %v8467, %v8600
        %v8696 = vadd.f32 %v8468, %v8599
        %v8697 = vadd.f32 %v8469, %v8601
        %v8698 = vadd.f32 %v8470, %v8603
        %v8699 = vadd.f32 %v8471, %v8602
        %v8700 = vadd.f32 %v8472, %v8604
        %v8701 = vadd.f32 %v8473, %v8606
        %v8702 = vadd.f32 %v8474, %v8605
        %v8703 = vld [vmem:[%s3707 + $0x10] sm:$0xfe]
        %v8704 = vld [vmem:[%s3707 + $0x30] sm:$0x1]
        %v8705 = vld [vmem:[%s3707 + $0x50] sm:$0xfe]
        %v8706 = vld [vmem:[%s3707 + $0x70] sm:$0x1]
        %v8707 = vld [vmem:[%s3707 + $0x90] sm:$0xfe]
        %v8708 = vld [vmem:[%s3707 + $0xb0] sm:$0x1]
        %v8709 = vld [vmem:[%s3707 + $0xd0] sm:$0xfe]
        %v8710 = vld [vmem:[%s3707 + $0xf0] sm:$0x1]
        %v8711 = vld [vmem:[%s3707 + $0x110] sm:$0xfe]
        %v8712 = vld [vmem:[%s3707 + $0x130] sm:$0x1]
        %v8713 = vld [vmem:[%s3707 + $0x150] sm:$0xfe]
        %v8714 = vld [vmem:[%s3707 + $0x170] sm:$0x1]
        %v8715 = vld [vmem:[%s3707 + $0x190] sm:$0xfe]
        %v8716 = vld [vmem:[%s3707 + $0x1b0] sm:$0x1]
        %v8717 = vld [vmem:[%s3707 + $0x1d0] sm:$0xfe]
        %v8718 = vld [vmem:[%s3707 + $0x1f0] sm:$0x1]
        %v8719 = vld [vmem:[%s3707 + $0x210] sm:$0xfe]
        %v8720 = vld [vmem:[%s3707 + $0x230] sm:$0x1]
        %v8721 = vld [vmem:[%s3707 + $0x250] sm:$0xfe]
        %v8722 = vld [vmem:[%s3707 + $0x270] sm:$0x1]
        %v8723 = vld [vmem:[%s3707 + $0x290] sm:$0xfe]
        %v8724 = vld [vmem:[%s3707 + $0x2b0] sm:$0x1]
        %v8725 = vld [vmem:[%s3707 + $0x2d0] sm:$0xfe]
        %v8726 = vld [vmem:[%s3707 + $0x2f0] sm:$0x1]
        %v8727 = vld [vmem:[%s3707 + $0x310] sm:$0xfe]
        %v8728 = vld [vmem:[%s3707 + $0x330] sm:$0x1]
        %v8729 = vld [vmem:[%s3707 + $0x350] sm:$0xfe]
        %v8730 = vld [vmem:[%s3707 + $0x370] sm:$0x1]
        %v8731 = vld [vmem:[%s3707 + $0x390] sm:$0xfe]
        %v8732 = vld [vmem:[%s3707 + $0x3b0] sm:$0x1]
        %v8733 = vld [vmem:[%s3707 + $0x3d0] sm:$0xfe]
        %v8734 = vld [vmem:[%s3707 + $0x3f0] sm:$0x1]
        %v8735 = vlaneseq
        %v8736 = vshrl.u32 %v8735, 7
        %v8737 = vsub.s32 4, %v8736
        %v8738 = vrot.slane %v353, %v8737
        %v8739 = vmul.f32 %v8703, %v8738
        %v8740 = vmul.f32 %v8475, %v8738
        %v8741 = vmul.f32 %v8704, %v8738
        %v8742 = vmul.f32 %v8705, %v8738
        %v8743 = vmul.f32 %v8476, %v8738
        %v8744 = vmul.f32 %v8706, %v8738
        %v8745 = vmul.f32 %v8707, %v8738
        %v8746 = vmul.f32 %v8477, %v8738
        %v8747 = vmul.f32 %v8708, %v8738
        %v8748 = vmul.f32 %v8709, %v8738
        %v8749 = vmul.f32 %v8478, %v8738
        %v8750 = vmul.f32 %v8710, %v8738
        %v8751 = vmul.f32 %v8711, %v8738
        %v8752 = vmul.f32 %v8479, %v8738
        %v8753 = vmul.f32 %v8712, %v8738
        %v8754 = vmul.f32 %v8713, %v8738
        %v8755 = vmul.f32 %v8480, %v8738
        %v8756 = vmul.f32 %v8714, %v8738
        %v8757 = vmul.f32 %v8715, %v8738
        %v8758 = vmul.f32 %v8481, %v8738
        %v8759 = vmul.f32 %v8716, %v8738
        %v8760 = vmul.f32 %v8717, %v8738
        %v8761 = vmul.f32 %v8482, %v8738
        %v8762 = vmul.f32 %v8718, %v8738
        %v8763 = vmul.f32 %v8719, %v8738
        %v8764 = vmul.f32 %v8483, %v8738
        %v8765 = vmul.f32 %v8720, %v8738
        %v8766 = vmul.f32 %v8721, %v8738
        %v8767 = vmul.f32 %v8484, %v8738
        %v8768 = vmul.f32 %v8722, %v8738
        %v8769 = vmul.f32 %v8723, %v8738
        %v8770 = vmul.f32 %v8485, %v8738
        %v8771 = vmul.f32 %v8724, %v8738
        %v8772 = vmul.f32 %v8725, %v8738
        %v8773 = vmul.f32 %v8486, %v8738
        %v8774 = vmul.f32 %v8726, %v8738
        %v8775 = vmul.f32 %v8727, %v8738
        %v8776 = vmul.f32 %v8487, %v8738
        %v8777 = vmul.f32 %v8728, %v8738
        %v8778 = vmul.f32 %v8729, %v8738
        %v8779 = vmul.f32 %v8488, %v8738
        %v8780 = vmul.f32 %v8730, %v8738
        %v8781 = vmul.f32 %v8731, %v8738
        %v8782 = vmul.f32 %v8489, %v8738
        %v8783 = vmul.f32 %v8732, %v8738
        %v8784 = vmul.f32 %v8733, %v8738
        %v8785 = vmul.f32 %v8490, %v8738
        %v8786 = vmul.f32 %v8734, %v8738
        %v8835 = vrot.slane %v8739, 2
        %v8836 = vrot.slane %v8740, 2
        %v8837 = vsel %vm1986, %v8835, %v8836
        %v8838 = vrot.slane %v8741, 2
        %v8839 = vsel %vm1986, %v8836, %v8838
        %v8840 = vrot.slane %v8742, 2
        %v8841 = vrot.slane %v8743, 2
        %v8842 = vsel %vm1986, %v8840, %v8841
        %v8843 = vrot.slane %v8744, 2
        %v8844 = vsel %vm1986, %v8841, %v8843
        %v8845 = vrot.slane %v8745, 2
        %v8846 = vrot.slane %v8746, 2
        %v8847 = vsel %vm1986, %v8845, %v8846
        %v8848 = vrot.slane %v8747, 2
        %v8849 = vsel %vm1986, %v8846, %v8848
        %v8850 = vrot.slane %v8748, 2
        %v8851 = vrot.slane %v8749, 2
        %v8852 = vsel %vm1986, %v8850, %v8851
        %v8853 = vrot.slane %v8750, 2
        %v8854 = vsel %vm1986, %v8851, %v8853
        %v8855 = vrot.slane %v8751, 2
        %v8856 = vrot.slane %v8752, 2
        %v8857 = vsel %vm1986, %v8855, %v8856
        %v8858 = vrot.slane %v8753, 2
        %v8859 = vsel %vm1986, %v8856, %v8858
        %v8860 = vrot.slane %v8754, 2
        %v8861 = vrot.slane %v8755, 2
        %v8862 = vsel %vm1986, %v8860, %v8861
        %v8863 = vrot.slane %v8756, 2
        %v8864 = vsel %vm1986, %v8861, %v8863
        %v8865 = vrot.slane %v8757, 2
        %v8866 = vrot.slane %v8758, 2
        %v8867 = vsel %vm1986, %v8865, %v8866
        %v8868 = vrot.slane %v8759, 2
        %v8869 = vsel %vm1986, %v8866, %v8868
        %v8870 = vrot.slane %v8760, 2
        %v8871 = vrot.slane %v8761, 2
        %v8872 = vsel %vm1986, %v8870, %v8871
        %v8873 = vrot.slane %v8762, 2
        %v8874 = vsel %vm1986, %v8871, %v8873
        %v8875 = vrot.slane %v8763, 2
        %v8876 = vrot.slane %v8764, 2
        %v8877 = vsel %vm1986, %v8875, %v8876
        %v8878 = vrot.slane %v8765, 2
        %v8879 = vsel %vm1986, %v8876, %v8878
        %v8880 = vrot.slane %v8766, 2
        %v8881 = vrot.slane %v8767, 2
        %v8882 = vsel %vm1986, %v8880, %v8881
        %v8883 = vrot.slane %v8768, 2
        %v8884 = vsel %vm1986, %v8881, %v8883
        %v8885 = vrot.slane %v8769, 2
        %v8886 = vrot.slane %v8770, 2
        %v8887 = vsel %vm1986, %v8885, %v8886
        %v8888 = vrot.slane %v8771, 2
        %v8889 = vsel %vm1986, %v8886, %v8888
        %v8890 = vrot.slane %v8772, 2
        %v8891 = vrot.slane %v8773, 2
        %v8892 = vsel %vm1986, %v8890, %v8891
        %v8893 = vrot.slane %v8774, 2
        %v8894 = vsel %vm1986, %v8891, %v8893
        %v8895 = vrot.slane %v8775, 2
        %v8896 = vrot.slane %v8776, 2
        %v8897 = vsel %vm1986, %v8895, %v8896
        %v8898 = vrot.slane %v8777, 2
        %v8899 = vsel %vm1986, %v8896, %v8898
        %v8900 = vrot.slane %v8778, 2
        %v8901 = vrot.slane %v8779, 2
        %v8902 = vsel %vm1986, %v8900, %v8901
        %v8903 = vrot.slane %v8780, 2
        %v8904 = vsel %vm1986, %v8901, %v8903
        %v8905 = vrot.slane %v8781, 2
        %v8906 = vrot.slane %v8782, 2
        %v8907 = vsel %vm1986, %v8905, %v8906
        %v8908 = vrot.slane %v8783, 2
        %v8909 = vsel %vm1986, %v8906, %v8908
        %v8910 = vrot.slane %v8784, 2
        %v8911 = vrot.slane %v8785, 2
        %v8912 = vsel %vm1986, %v8910, %v8911
        %v8913 = vrot.slane %v8786, 2
        %v8914 = vsel %vm1986, %v8911, %v8913
        %v8963 = vadd.f32 %v8655, %v8835
        %v8964 = vadd.f32 %v8656, %v8837
        %v8965 = vadd.f32 %v8657, %v8839
        %v8966 = vadd.f32 %v8658, %v8840
        %v8967 = vadd.f32 %v8659, %v8842
        %v8968 = vadd.f32 %v8660, %v8844
        %v8969 = vadd.f32 %v8661, %v8845
        %v8970 = vadd.f32 %v8662, %v8847
        %v8971 = vadd.f32 %v8663, %v8849
        %v8972 = vadd.f32 %v8664, %v8850
        %v8973 = vadd.f32 %v8665, %v8852
        %v8974 = vadd.f32 %v8666, %v8854
        %v8975 = vadd.f32 %v8667, %v8855
        %v8976 = vadd.f32 %v8668, %v8857
        %v8977 = vadd.f32 %v8669, %v8859
        %v8978 = vadd.f32 %v8670, %v8860
        %v8979 = vadd.f32 %v8671, %v8862
        %v8980 = vadd.f32 %v8672, %v8864
        %v8981 = vadd.f32 %v8673, %v8865
        %v8982 = vadd.f32 %v8674, %v8867
        %v8983 = vadd.f32 %v8675, %v8869
        %v8984 = vadd.f32 %v8676, %v8870
        %v8985 = vadd.f32 %v8677, %v8872
        %v8986 = vadd.f32 %v8678, %v8874
        %v8987 = vadd.f32 %v8679, %v8875
        %v8988 = vadd.f32 %v8680, %v8877
        %v8989 = vadd.f32 %v8681, %v8879
        %v8990 = vadd.f32 %v8682, %v8880
        %v8991 = vadd.f32 %v8683, %v8882
        %v8992 = vadd.f32 %v8684, %v8884
        %v8993 = vadd.f32 %v8685, %v8885
        %v8994 = vadd.f32 %v8686, %v8887
        %v8995 = vadd.f32 %v8687, %v8889
        %v8996 = vadd.f32 %v8688, %v8890
        %v8997 = vadd.f32 %v8689, %v8892
        %v8998 = vadd.f32 %v8690, %v8894
        %v8999 = vadd.f32 %v8691, %v8895
        %v9000 = vadd.f32 %v8692, %v8897
        %v9001 = vadd.f32 %v8693, %v8899
        %v9002 = vadd.f32 %v8694, %v8900
        %v9003 = vadd.f32 %v8695, %v8902
        %v9004 = vadd.f32 %v8696, %v8904
        %v9005 = vadd.f32 %v8697, %v8905
        %v9006 = vadd.f32 %v8698, %v8907
        %v9007 = vadd.f32 %v8699, %v8909
        %v9008 = vadd.f32 %v8700, %v8910
        %v9009 = vadd.f32 %v8701, %v8912
        %v9010 = vadd.f32 %v8702, %v8914
        %v9011 = vadd.f32 %v8963, %v354
        %v9012 = vadd.f32 %v8964, %v354
        %v9013 = vadd.f32 %v8965, %v354
        %v9014 = vadd.f32 %v8966, %v354
        %v9015 = vadd.f32 %v8967, %v354
        %v9016 = vadd.f32 %v8968, %v354
        %v9017 = vadd.f32 %v8969, %v354
        %v9018 = vadd.f32 %v8970, %v354
        %v9019 = vadd.f32 %v8971, %v354
        %v9020 = vadd.f32 %v8972, %v354
        %v9021 = vadd.f32 %v8973, %v354
        %v9022 = vadd.f32 %v8974, %v354
        %v9023 = vadd.f32 %v8975, %v354
        %v9024 = vadd.f32 %v8976, %v354
        %v9025 = vadd.f32 %v8977, %v354
        %v9026 = vadd.f32 %v8978, %v354
        %v9027 = vadd.f32 %v8979, %v354
        %v9028 = vadd.f32 %v8980, %v354
        %v9029 = vadd.f32 %v8981, %v354
        %v9030 = vadd.f32 %v8982, %v354
        %v9031 = vadd.f32 %v8983, %v354
        %v9032 = vadd.f32 %v8984, %v354
        %v9033 = vadd.f32 %v8985, %v354
        %v9034 = vadd.f32 %v8986, %v354
        %v9035 = vadd.f32 %v8987, %v354
        %v9036 = vadd.f32 %v8988, %v354
        %v9037 = vadd.f32 %v8989, %v354
        %v9038 = vadd.f32 %v8990, %v354
        %v9039 = vadd.f32 %v8991, %v354
        %v9040 = vadd.f32 %v8992, %v354
        %v9041 = vadd.f32 %v8993, %v354
        %v9042 = vadd.f32 %v8994, %v354
        %v9043 = vadd.f32 %v8995, %v354
        %v9044 = vadd.f32 %v8996, %v354
        %v9045 = vadd.f32 %v8997, %v354
        %v9046 = vadd.f32 %v8998, %v354
        %v9047 = vadd.f32 %v8999, %v354
        %v9048 = vadd.f32 %v9000, %v354
        %v9049 = vadd.f32 %v9001, %v354
        %v9050 = vadd.f32 %v9002, %v354
        %v9051 = vadd.f32 %v9003, %v354
        %v9052 = vadd.f32 %v9004, %v354
        %v9053 = vadd.f32 %v9005, %v354
        %v9054 = vadd.f32 %v9006, %v354
        %v9055 = vadd.f32 %v9007, %v354
        %v9056 = vadd.f32 %v9008, %v354
        %v9057 = vadd.f32 %v9009, %v354
        %v9058 = vadd.f32 %v9010, %v354
        %v9091 = vrot.slane %v874, 1
        %v9092 = vrot.slane %v877, 1
        %v9093 = vsel %vm1433, %v9091, %v9092
        %v9094 = vrot.slane %v882, 1
        %v9095 = vrot.slane %v885, 1
        %v9096 = vsel %vm1433, %v9094, %v9095
        %v9097 = vrot.slane %v890, 1
        %v9098 = vrot.slane %v893, 1
        %v9099 = vsel %vm1433, %v9097, %v9098
        %v9100 = vrot.slane %v898, 1
        %v9101 = vrot.slane %v901, 1
        %v9102 = vsel %vm1433, %v9100, %v9101
        %v9103 = vrot.slane %v906, 1
        %v9104 = vrot.slane %v909, 1
        %v9105 = vsel %vm1433, %v9103, %v9104
        %v9106 = vrot.slane %v914, 1
        %v9107 = vrot.slane %v917, 1
        %v9108 = vsel %vm1433, %v9106, %v9107
        %v9109 = vrot.slane %v922, 1
        %v9110 = vrot.slane %v925, 1
        %v9111 = vsel %vm1433, %v9109, %v9110
        %v9112 = vrot.slane %v930, 1
        %v9113 = vrot.slane %v933, 1
        %v9114 = vsel %vm1433, %v9112, %v9113
        %v9115 = vrot.slane %v938, 1
        %v9116 = vrot.slane %v941, 1
        %v9117 = vsel %vm1433, %v9115, %v9116
        %v9118 = vrot.slane %v946, 1
        %v9119 = vrot.slane %v949, 1
        %v9120 = vsel %vm1433, %v9118, %v9119
        %v9121 = vrot.slane %v954, 1
        %v9122 = vrot.slane %v957, 1
        %v9123 = vsel %vm1433, %v9121, %v9122
        %v9124 = vrot.slane %v962, 1
        %v9125 = vrot.slane %v965, 1
        %v9126 = vsel %vm1433, %v9124, %v9125
        %v9127 = vrot.slane %v970, 1
        %v9128 = vrot.slane %v973, 1
        %v9129 = vsel %vm1433, %v9127, %v9128
        %v9130 = vrot.slane %v978, 1
        %v9131 = vrot.slane %v981, 1
        %v9132 = vsel %vm1433, %v9130, %v9131
        %v9133 = vrot.slane %v986, 1
        %v9134 = vrot.slane %v989, 1
        %v9135 = vsel %vm1433, %v9133, %v9134
        %v9136 = vrot.slane %v994, 1
        %v9137 = vrot.slane %v997, 1
        %v9138 = vsel %vm1433, %v9136, %v9137
        %v9187 = vmul.f32 %v9011, %v9091
        %v9188 = vmul.f32 %v9012, %v9093
        %v9189 = vmul.f32 %v9013, %v9092
        %v9190 = vmul.f32 %v9014, %v9094
        %v9191 = vmul.f32 %v9015, %v9096
        %v9192 = vmul.f32 %v9016, %v9095
        %v9193 = vmul.f32 %v9017, %v9097
        %v9194 = vmul.f32 %v9018, %v9099
        %v9195 = vmul.f32 %v9019, %v9098
        %v9196 = vmul.f32 %v9020, %v9100
        %v9197 = vmul.f32 %v9021, %v9102
        %v9198 = vmul.f32 %v9022, %v9101
        %v9199 = vmul.f32 %v9023, %v9103
        %v9200 = vmul.f32 %v9024, %v9105
        %v9201 = vmul.f32 %v9025, %v9104
        %v9202 = vmul.f32 %v9026, %v9106
        %v9203 = vmul.f32 %v9027, %v9108
        %v9204 = vmul.f32 %v9028, %v9107
        %v9205 = vmul.f32 %v9029, %v9109
        %v9206 = vmul.f32 %v9030, %v9111
        %v9207 = vmul.f32 %v9031, %v9110
        %v9208 = vmul.f32 %v9032, %v9112
        %v9209 = vmul.f32 %v9033, %v9114
        %v9210 = vmul.f32 %v9034, %v9113
        %v9211 = vmul.f32 %v9035, %v9115
        %v9212 = vmul.f32 %v9036, %v9117
        %v9213 = vmul.f32 %v9037, %v9116
        %v9214 = vmul.f32 %v9038, %v9118
        %v9215 = vmul.f32 %v9039, %v9120
        %v9216 = vmul.f32 %v9040, %v9119
        %v9217 = vmul.f32 %v9041, %v9121
        %v9218 = vmul.f32 %v9042, %v9123
        %v9219 = vmul.f32 %v9043, %v9122
        %v9220 = vmul.f32 %v9044, %v9124
        %v9221 = vmul.f32 %v9045, %v9126
        %v9222 = vmul.f32 %v9046, %v9125
        %v9223 = vmul.f32 %v9047, %v9127
        %v9224 = vmul.f32 %v9048, %v9129
        %v9225 = vmul.f32 %v9049, %v9128
        %v9226 = vmul.f32 %v9050, %v9130
        %v9227 = vmul.f32 %v9051, %v9132
        %v9228 = vmul.f32 %v9052, %v9131
        %v9229 = vmul.f32 %v9053, %v9133
        %v9230 = vmul.f32 %v9054, %v9135
        %v9231 = vmul.f32 %v9055, %v9134
        %v9232 = vmul.f32 %v9056, %v9136
        %v9233 = vmul.f32 %v9057, %v9138
        %v9234 = vmul.f32 %v9058, %v9137
        %v9283 = vrot.slane %v9187, 7
        %v9284 = vrot.slane %v9188, 7
        %v9285 = vsel %vm5589, %v9283, %v9284
        %v9286 = vrot.slane %v9189, 7
        %v9287 = vsel %vm5589, %v9284, %v9286
        %v9288 = vrot.slane %v9190, 7
        %v9289 = vrot.slane %v9191, 7
        %v9290 = vsel %vm5589, %v9288, %v9289
        %v9291 = vrot.slane %v9192, 7
        %v9292 = vsel %vm5589, %v9289, %v9291
        %v9293 = vrot.slane %v9193, 7
        %v9294 = vrot.slane %v9194, 7
        %v9295 = vsel %vm5589, %v9293, %v9294
        %v9296 = vrot.slane %v9195, 7
        %v9297 = vsel %vm5589, %v9294, %v9296
        %v9298 = vrot.slane %v9196, 7
        %v9299 = vrot.slane %v9197, 7
        %v9300 = vsel %vm5589, %v9298, %v9299
        %v9301 = vrot.slane %v9198, 7
        %v9302 = vsel %vm5589, %v9299, %v9301
        %v9303 = vrot.slane %v9199, 7
        %v9304 = vrot.slane %v9200, 7
        %v9305 = vsel %vm5589, %v9303, %v9304
        %v9306 = vrot.slane %v9201, 7
        %v9307 = vsel %vm5589, %v9304, %v9306
        %v9308 = vrot.slane %v9202, 7
        %v9309 = vrot.slane %v9203, 7
        %v9310 = vsel %vm5589, %v9308, %v9309
        %v9311 = vrot.slane %v9204, 7
        %v9312 = vsel %vm5589, %v9309, %v9311
        %v9313 = vrot.slane %v9205, 7
        %v9314 = vrot.slane %v9206, 7
        %v9315 = vsel %vm5589, %v9313, %v9314
        %v9316 = vrot.slane %v9207, 7
        %v9317 = vsel %vm5589, %v9314, %v9316
        %v9318 = vrot.slane %v9208, 7
        %v9319 = vrot.slane %v9209, 7
        %v9320 = vsel %vm5589, %v9318, %v9319
        %v9321 = vrot.slane %v9210, 7
        %v9322 = vsel %vm5589, %v9319, %v9321
        %v9323 = vrot.slane %v9211, 7
        %v9324 = vrot.slane %v9212, 7
        %v9325 = vsel %vm5589, %v9323, %v9324
        %v9326 = vrot.slane %v9213, 7
        %v9327 = vsel %vm5589, %v9324, %v9326
        %v9328 = vrot.slane %v9214, 7
        %v9329 = vrot.slane %v9215, 7
        %v9330 = vsel %vm5589, %v9328, %v9329
        %v9331 = vrot.slane %v9216, 7
        %v9332 = vsel %vm5589, %v9329, %v9331
        %v9333 = vrot.slane %v9217, 7
        %v9334 = vrot.slane %v9218, 7
        %v9335 = vsel %vm5589, %v9333, %v9334
        %v9336 = vrot.slane %v9219, 7
        %v9337 = vsel %vm5589, %v9334, %v9336
        %v9338 = vrot.slane %v9220, 7
        %v9339 = vrot.slane %v9221, 7
        %v9340 = vsel %vm5589, %v9338, %v9339
        %v9341 = vrot.slane %v9222, 7
        %v9342 = vsel %vm5589, %v9339, %v9341
        %v9343 = vrot.slane %v9223, 7
        %v9344 = vrot.slane %v9224, 7
        %v9345 = vsel %vm5589, %v9343, %v9344
        %v9346 = vrot.slane %v9225, 7
        %v9347 = vsel %vm5589, %v9344, %v9346
        %v9348 = vrot.slane %v9226, 7
        %v9349 = vrot.slane %v9227, 7
        %v9350 = vsel %vm5589, %v9348, %v9349
        %v9351 = vrot.slane %v9228, 7
        %v9352 = vsel %vm5589, %v9349, %v9351
        %v9353 = vrot.slane %v9229, 7
        %v9354 = vrot.slane %v9230, 7
        %v9355 = vsel %vm5589, %v9353, %v9354
        %v9356 = vrot.slane %v9231, 7
        %v9357 = vsel %vm5589, %v9354, %v9356
        %v9358 = vrot.slane %v9232, 7
        %v9359 = vrot.slane %v9233, 7
        %v9360 = vsel %vm5589, %v9358, %v9359
        %v9361 = vrot.slane %v9234, 7
        %v9362 = vsel %vm5589, %v9359, %v9361
        %9395 = vst [vmem:[%s1000 + $0x10] sm:$0xff] %v9285
        %9396 = vst [vmem:[%s1000 + $0x20] sm:$0xff] %v9287
        %9397 = vst [vmem:[%s1000 + $0x50] sm:$0xff] %v9290
        %9398 = vst [vmem:[%s1000 + $0x60] sm:$0xff] %v9292
        %9399 = vst [vmem:[%s1000 + $0x90] sm:$0xff] %v9295
        %9400 = vst [vmem:[%s1000 + $0xa0] sm:$0xff] %v9297
        %9401 = vst [vmem:[%s1000 + $0xd0] sm:$0xff] %v9300
        %9402 = vst [vmem:[%s1000 + $0xe0] sm:$0xff] %v9302
        %9403 = vst [vmem:[%s1000 + $0x110] sm:$0xff] %v9305
        %9404 = vst [vmem:[%s1000 + $0x120] sm:$0xff] %v9307
        %9405 = vst [vmem:[%s1000 + $0x150] sm:$0xff] %v9310
        %9406 = vst [vmem:[%s1000 + $0x160] sm:$0xff] %v9312
        %9407 = vst [vmem:[%s1000 + $0x190] sm:$0xff] %v9315
        %9408 = vst [vmem:[%s1000 + $0x1a0] sm:$0xff] %v9317
        %9409 = vst [vmem:[%s1000 + $0x1d0] sm:$0xff] %v9320
        %9410 = vst [vmem:[%s1000 + $0x1e0] sm:$0xff] %v9322
        %9411 = vst [vmem:[%s1000 + $0x210] sm:$0xff] %v9325
        %9412 = vst [vmem:[%s1000 + $0x220] sm:$0xff] %v9327
        %9413 = vst [vmem:[%s1000 + $0x250] sm:$0xff] %v9330
        %9414 = vst [vmem:[%s1000 + $0x260] sm:$0xff] %v9332
        %9415 = vst [vmem:[%s1000 + $0x290] sm:$0xff] %v9335
        %9416 = vst [vmem:[%s1000 + $0x2a0] sm:$0xff] %v9337
        %9417 = vst [vmem:[%s1000 + $0x2d0] sm:$0xff] %v9340
        %9418 = vst [vmem:[%s1000 + $0x2e0] sm:$0xff] %v9342
        %9419 = vst [vmem:[%s1000 + $0x310] sm:$0xff] %v9345
        %9420 = vst [vmem:[%s1000 + $0x320] sm:$0xff] %v9347
        %9421 = vst [vmem:[%s1000 + $0x350] sm:$0xff] %v9350
        %9422 = vst [vmem:[%s1000 + $0x360] sm:$0xff] %v9352
        %9423 = vst [vmem:[%s1000 + $0x390] sm:$0xff] %v9355
        %9424 = vst [vmem:[%s1000 + $0x3a0] sm:$0xff] %v9357
        %9425 = vst [vmem:[%s1000 + $0x3d0] sm:$0xff] %v9360
        %9426 = vst [vmem:[%s1000 + $0x3e0] sm:$0xff] %v9362
        %v9427 = vld [vmem:[#allocation2] sm:$0x80]
        %v9428 = vld [vmem:[#allocation2 + $0x10] sm:$0xff]
        %v9429 = vld [vmem:[#allocation2 + $0x20] sm:$0x7f]
        %v9430 = vld [vmem:[#allocation2 + $0x40] sm:$0x80]
        %v9431 = vld [vmem:[#allocation2 + $0x50] sm:$0xff]
        %v9432 = vld [vmem:[#allocation2 + $0x60] sm:$0x7f]
        %v9433 = vld [vmem:[#allocation2 + $0x80] sm:$0x80]
        %v9434 = vld [vmem:[#allocation2 + $0x90] sm:$0xff]
        %v9435 = vld [vmem:[#allocation2 + $0xa0] sm:$0x7f]
        %v9436 = vld [vmem:[#allocation2 + $0xc0] sm:$0x80]
        %v9437 = vld [vmem:[#allocation2 + $0xd0] sm:$0xff]
        %v9438 = vld [vmem:[#allocation2 + $0xe0] sm:$0x7f]
        %v9439 = vld [vmem:[#allocation2 + $0x100] sm:$0x80]
        %v9440 = vld [vmem:[#allocation2 + $0x110] sm:$0xff]
        %v9441 = vld [vmem:[#allocation2 + $0x120] sm:$0x7f]
        %v9442 = vld [vmem:[#allocation2 + $0x140] sm:$0x80]
        %v9443 = vld [vmem:[#allocation2 + $0x150] sm:$0xff]
        %v9444 = vld [vmem:[#allocation2 + $0x160] sm:$0x7f]
        %v9445 = vld [vmem:[#allocation2 + $0x180] sm:$0x80]
        %v9446 = vld [vmem:[#allocation2 + $0x190] sm:$0xff]
        %v9447 = vld [vmem:[#allocation2 + $0x1a0] sm:$0x7f]
        %v9448 = vld [vmem:[#allocation2 + $0x1c0] sm:$0x80]
        %v9449 = vld [vmem:[#allocation2 + $0x1d0] sm:$0xff]
        %v9450 = vld [vmem:[#allocation2 + $0x1e0] sm:$0x7f]
        %v9451 = vld [vmem:[#allocation2 + $0x200] sm:$0x80]
        %v9452 = vld [vmem:[#allocation2 + $0x210] sm:$0xff]
        %v9453 = vld [vmem:[#allocation2 + $0x220] sm:$0x7f]
        %v9454 = vld [vmem:[#allocation2 + $0x240] sm:$0x80]
        %v9455 = vld [vmem:[#allocation2 + $0x250] sm:$0xff]
        %v9456 = vld [vmem:[#allocation2 + $0x260] sm:$0x7f]
        %v9457 = vld [vmem:[#allocation2 + $0x280] sm:$0x80]
        %v9458 = vld [vmem:[#allocation2 + $0x290] sm:$0xff]
        %v9459 = vld [vmem:[#allocation2 + $0x2a0] sm:$0x7f]
        %v9460 = vld [vmem:[#allocation2 + $0x2c0] sm:$0x80]
        %v9461 = vld [vmem:[#allocation2 + $0x2d0] sm:$0xff]
        %v9462 = vld [vmem:[#allocation2 + $0x2e0] sm:$0x7f]
        %v9463 = vld [vmem:[#allocation2 + $0x300] sm:$0x80]
        %v9464 = vld [vmem:[#allocation2 + $0x310] sm:$0xff]
        %v9465 = vld [vmem:[#allocation2 + $0x320] sm:$0x7f]
        %v9466 = vld [vmem:[#allocation2 + $0x340] sm:$0x80]
        %v9467 = vld [vmem:[#allocation2 + $0x350] sm:$0xff]
        %v9468 = vld [vmem:[#allocation2 + $0x360] sm:$0x7f]
        %v9469 = vld [vmem:[#allocation2 + $0x380] sm:$0x80]
        %v9470 = vld [vmem:[#allocation2 + $0x390] sm:$0xff]
        %v9471 = vld [vmem:[#allocation2 + $0x3a0] sm:$0x7f]
        %v9472 = vld [vmem:[#allocation2 + $0x3c0] sm:$0x80]
        %v9473 = vld [vmem:[#allocation2 + $0x3d0] sm:$0xff]
        %v9474 = vld [vmem:[#allocation2 + $0x3e0] sm:$0x7f]
        %v9475 = vlaneseq
        %v9476 = vshrl.u32 %v9475, 7
        %v9477 = vsub.s32 6, %v9476
        %v9478 = vrot.slane %v355, %v9477
        %v9479 = vmul.f32 %v9427, %v9478
        %v9480 = vmul.f32 %v9428, %v9478
        %v9481 = vmul.f32 %v9429, %v9478
        %v9482 = vmul.f32 %v9430, %v9478
        %v9483 = vmul.f32 %v9431, %v9478
        %v9484 = vmul.f32 %v9432, %v9478
        %v9485 = vmul.f32 %v9433, %v9478
        %v9486 = vmul.f32 %v9434, %v9478
        %v9487 = vmul.f32 %v9435, %v9478
        %v9488 = vmul.f32 %v9436, %v9478
        %v9489 = vmul.f32 %v9437, %v9478
        %v9490 = vmul.f32 %v9438, %v9478
        %v9491 = vmul.f32 %v9439, %v9478
        %v9492 = vmul.f32 %v9440, %v9478
        %v9493 = vmul.f32 %v9441, %v9478
        %v9494 = vmul.f32 %v9442, %v9478
        %v9495 = vmul.f32 %v9443, %v9478
        %v9496 = vmul.f32 %v9444, %v9478
        %v9497 = vmul.f32 %v9445, %v9478
        %v9498 = vmul.f32 %v9446, %v9478
        %v9499 = vmul.f32 %v9447, %v9478
        %v9500 = vmul.f32 %v9448, %v9478
        %v9501 = vmul.f32 %v9449, %v9478
        %v9502 = vmul.f32 %v9450, %v9478
        %v9503 = vmul.f32 %v9451, %v9478
        %v9504 = vmul.f32 %v9452, %v9478
        %v9505 = vmul.f32 %v9453, %v9478
        %v9506 = vmul.f32 %v9454, %v9478
        %v9507 = vmul.f32 %v9455, %v9478
        %v9508 = vmul.f32 %v9456, %v9478
        %v9509 = vmul.f32 %v9457, %v9478
        %v9510 = vmul.f32 %v9458, %v9478
        %v9511 = vmul.f32 %v9459, %v9478
        %v9512 = vmul.f32 %v9460, %v9478
        %v9513 = vmul.f32 %v9461, %v9478
        %v9514 = vmul.f32 %v9462, %v9478
        %v9515 = vmul.f32 %v9463, %v9478
        %v9516 = vmul.f32 %v9464, %v9478
        %v9517 = vmul.f32 %v9465, %v9478
        %v9518 = vmul.f32 %v9466, %v9478
        %v9519 = vmul.f32 %v9467, %v9478
        %v9520 = vmul.f32 %v9468, %v9478
        %v9521 = vmul.f32 %v9469, %v9478
        %v9522 = vmul.f32 %v9470, %v9478
        %v9523 = vmul.f32 %v9471, %v9478
        %v9524 = vmul.f32 %v9472, %v9478
        %v9525 = vmul.f32 %v9473, %v9478
        %v9526 = vmul.f32 %v9474, %v9478
        %v9527 = vld [vmem:[#allocation2 + $0x20] sm:$0xff]
        %v9528 = vld [vmem:[#allocation2 + $0x60] sm:$0xff]
        %v9529 = vld [vmem:[#allocation2 + $0xa0] sm:$0xff]
        %v9530 = vld [vmem:[#allocation2 + $0xe0] sm:$0xff]
        %v9531 = vld [vmem:[#allocation2 + $0x120] sm:$0xff]
        %v9532 = vld [vmem:[#allocation2 + $0x160] sm:$0xff]
        %v9533 = vld [vmem:[#allocation2 + $0x1a0] sm:$0xff]
        %v9534 = vld [vmem:[#allocation2 + $0x1e0] sm:$0xff]
        %v9535 = vld [vmem:[#allocation2 + $0x220] sm:$0xff]
        %v9536 = vld [vmem:[#allocation2 + $0x260] sm:$0xff]
        %v9537 = vld [vmem:[#allocation2 + $0x2a0] sm:$0xff]
        %v9538 = vld [vmem:[#allocation2 + $0x2e0] sm:$0xff]
        %v9539 = vld [vmem:[#allocation2 + $0x320] sm:$0xff]
        %v9540 = vld [vmem:[#allocation2 + $0x360] sm:$0xff]
        %v9541 = vld [vmem:[#allocation2 + $0x3a0] sm:$0xff]
        %v9542 = vld [vmem:[#allocation2 + $0x3e0] sm:$0xff]
        %v9543 = vlaneseq
        %v9544 = vshrl.u32 %v9543, 7
        %v9545 = vsub.s32 7, %v9544
        %v9546 = vrot.slane %v355, %v9545
        %v9547 = vmul.f32 %v9428, %v9546
        %v9548 = vmul.f32 %v9527, %v9546
        %v9549 = vmul.f32 %v9431, %v9546
        %v9550 = vmul.f32 %v9528, %v9546
        %v9551 = vmul.f32 %v9434, %v9546
        %v9552 = vmul.f32 %v9529, %v9546
        %v9553 = vmul.f32 %v9437, %v9546
        %v9554 = vmul.f32 %v9530, %v9546
        %v9555 = vmul.f32 %v9440, %v9546
        %v9556 = vmul.f32 %v9531, %v9546
        %v9557 = vmul.f32 %v9443, %v9546
        %v9558 = vmul.f32 %v9532, %v9546
        %v9559 = vmul.f32 %v9446, %v9546
        %v9560 = vmul.f32 %v9533, %v9546
        %v9561 = vmul.f32 %v9449, %v9546
        %v9562 = vmul.f32 %v9534, %v9546
        %v9563 = vmul.f32 %v9452, %v9546
        %v9564 = vmul.f32 %v9535, %v9546
        %v9565 = vmul.f32 %v9455, %v9546
        %v9566 = vmul.f32 %v9536, %v9546
        %v9567 = vmul.f32 %v9458, %v9546
        %v9568 = vmul.f32 %v9537, %v9546
        %v9569 = vmul.f32 %v9461, %v9546
        %v9570 = vmul.f32 %v9538, %v9546
        %v9571 = vmul.f32 %v9464, %v9546
        %v9572 = vmul.f32 %v9539, %v9546
        %v9573 = vmul.f32 %v9467, %v9546
        %v9574 = vmul.f32 %v9540, %v9546
        %v9575 = vmul.f32 %v9470, %v9546
        %v9576 = vmul.f32 %v9541, %v9546
        %v9577 = vmul.f32 %v9473, %v9546
        %v9578 = vmul.f32 %v9542, %v9546
        %v9611 = vrot.slane %v9547, 1
        %v9612 = vrot.slane %v9548, 1
        %v9613 = vsel %vm1433, %v9611, %v9612
        %v9614 = vrot.slane %v9549, 1
        %v9615 = vrot.slane %v9550, 1
        %v9616 = vsel %vm1433, %v9614, %v9615
        %v9617 = vrot.slane %v9551, 1
        %v9618 = vrot.slane %v9552, 1
        %v9619 = vsel %vm1433, %v9617, %v9618
        %v9620 = vrot.slane %v9553, 1
        %v9621 = vrot.slane %v9554, 1
        %v9622 = vsel %vm1433, %v9620, %v9621
        %v9623 = vrot.slane %v9555, 1
        %v9624 = vrot.slane %v9556, 1
        %v9625 = vsel %vm1433, %v9623, %v9624
        %v9626 = vrot.slane %v9557, 1
        %v9627 = vrot.slane %v9558, 1
        %v9628 = vsel %vm1433, %v9626, %v9627
        %v9629 = vrot.slane %v9559, 1
        %v9630 = vrot.slane %v9560, 1
        %v9631 = vsel %vm1433, %v9629, %v9630
        %v9632 = vrot.slane %v9561, 1
        %v9633 = vrot.slane %v9562, 1
        %v9634 = vsel %vm1433, %v9632, %v9633
        %v9635 = vrot.slane %v9563, 1
        %v9636 = vrot.slane %v9564, 1
        %v9637 = vsel %vm1433, %v9635, %v9636
        %v9638 = vrot.slane %v9565, 1
        %v9639 = vrot.slane %v9566, 1
        %v9640 = vsel %vm1433, %v9638, %v9639
        %v9641 = vrot.slane %v9567, 1
        %v9642 = vrot.slane %v9568, 1
        %v9643 = vsel %vm1433, %v9641, %v9642
        %v9644 = vrot.slane %v9569, 1
        %v9645 = vrot.slane %v9570, 1
        %v9646 = vsel %vm1433, %v9644, %v9645
        %v9647 = vrot.slane %v9571, 1
        %v9648 = vrot.slane %v9572, 1
        %v9649 = vsel %vm1433, %v9647, %v9648
        %v9650 = vrot.slane %v9573, 1
        %v9651 = vrot.slane %v9574, 1
        %v9652 = vsel %vm1433, %v9650, %v9651
        %v9653 = vrot.slane %v9575, 1
        %v9654 = vrot.slane %v9576, 1
        %v9655 = vsel %vm1433, %v9653, %v9654
        %v9656 = vrot.slane %v9577, 1
        %v9657 = vrot.slane %v9578, 1
        %v9658 = vsel %vm1433, %v9656, %v9657
        %v9707 = vadd.f32 %v9479, %v9611
        %v9708 = vadd.f32 %v9480, %v9613
        %v9709 = vadd.f32 %v9481, %v9612
        %v9710 = vadd.f32 %v9482, %v9614
        %v9711 = vadd.f32 %v9483, %v9616
        %v9712 = vadd.f32 %v9484, %v9615
        %v9713 = vadd.f32 %v9485, %v9617
        %v9714 = vadd.f32 %v9486, %v9619
        %v9715 = vadd.f32 %v9487, %v9618
        %v9716 = vadd.f32 %v9488, %v9620
        %v9717 = vadd.f32 %v9489, %v9622
        %v9718 = vadd.f32 %v9490, %v9621
        %v9719 = vadd.f32 %v9491, %v9623
        %v9720 = vadd.f32 %v9492, %v9625
        %v9721 = vadd.f32 %v9493, %v9624
        %v9722 = vadd.f32 %v9494, %v9626
        %v9723 = vadd.f32 %v9495, %v9628
        %v9724 = vadd.f32 %v9496, %v9627
        %v9725 = vadd.f32 %v9497, %v9629
        %v9726 = vadd.f32 %v9498, %v9631
        %v9727 = vadd.f32 %v9499, %v9630
        %v9728 = vadd.f32 %v9500, %v9632
        %v9729 = vadd.f32 %v9501, %v9634
        %v9730 = vadd.f32 %v9502, %v9633
        %v9731 = vadd.f32 %v9503, %v9635
        %v9732 = vadd.f32 %v9504, %v9637
        %v9733 = vadd.f32 %v9505, %v9636
        %v9734 = vadd.f32 %v9506, %v9638
        %v9735 = vadd.f32 %v9507, %v9640
        %v9736 = vadd.f32 %v9508, %v9639
        %v9737 = vadd.f32 %v9509, %v9641
        %v9738 = vadd.f32 %v9510, %v9643
        %v9739 = vadd.f32 %v9511, %v9642
        %v9740 = vadd.f32 %v9512, %v9644
        %v9741 = vadd.f32 %v9513, %v9646
        %v9742 = vadd.f32 %v9514, %v9645
        %v9743 = vadd.f32 %v9515, %v9647
        %v9744 = vadd.f32 %v9516, %v9649
        %v9745 = vadd.f32 %v9517, %v9648
        %v9746 = vadd.f32 %v9518, %v9650
        %v9747 = vadd.f32 %v9519, %v9652
        %v9748 = vadd.f32 %v9520, %v9651
        %v9749 = vadd.f32 %v9521, %v9653
        %v9750 = vadd.f32 %v9522, %v9655
        %v9751 = vadd.f32 %v9523, %v9654
        %v9752 = vadd.f32 %v9524, %v9656
        %v9753 = vadd.f32 %v9525, %v9658
        %v9754 = vadd.f32 %v9526, %v9657
        %v9755 = vld [vmem:[#allocation2 + $0x10] sm:$0xfe]
        %v9756 = vld [vmem:[#allocation2 + $0x30] sm:$0x1]
        %v9757 = vld [vmem:[#allocation2 + $0x50] sm:$0xfe]
        %v9758 = vld [vmem:[#allocation2 + $0x70] sm:$0x1]
        %v9759 = vld [vmem:[#allocation2 + $0x90] sm:$0xfe]
        %v9760 = vld [vmem:[#allocation2 + $0xb0] sm:$0x1]
        %v9761 = vld [vmem:[#allocation2 + $0xd0] sm:$0xfe]
        %v9762 = vld [vmem:[#allocation2 + $0xf0] sm:$0x1]
        %v9763 = vld [vmem:[#allocation2 + $0x110] sm:$0xfe]
        %v9764 = vld [vmem:[#allocation2 + $0x130] sm:$0x1]
        %v9765 = vld [vmem:[#allocation2 + $0x150] sm:$0xfe]
        %v9766 = vld [vmem:[#allocation2 + $0x170] sm:$0x1]
        %v9767 = vld [vmem:[#allocation2 + $0x190] sm:$0xfe]
        %v9768 = vld [vmem:[#allocation2 + $0x1b0] sm:$0x1]
        %v9769 = vld [vmem:[#allocation2 + $0x1d0] sm:$0xfe]
        %v9770 = vld [vmem:[#allocation2 + $0x1f0] sm:$0x1]
        %v9771 = vld [vmem:[#allocation2 + $0x210] sm:$0xfe]
        %v9772 = vld [vmem:[#allocation2 + $0x230] sm:$0x1]
        %v9773 = vld [vmem:[#allocation2 + $0x250] sm:$0xfe]
        %v9774 = vld [vmem:[#allocation2 + $0x270] sm:$0x1]
        %v9775 = vld [vmem:[#allocation2 + $0x290] sm:$0xfe]
        %v9776 = vld [vmem:[#allocation2 + $0x2b0] sm:$0x1]
        %v9777 = vld [vmem:[#allocation2 + $0x2d0] sm:$0xfe]
        %v9778 = vld [vmem:[#allocation2 + $0x2f0] sm:$0x1]
        %v9779 = vld [vmem:[#allocation2 + $0x310] sm:$0xfe]
        %v9780 = vld [vmem:[#allocation2 + $0x330] sm:$0x1]
        %v9781 = vld [vmem:[#allocation2 + $0x350] sm:$0xfe]
        %v9782 = vld [vmem:[#allocation2 + $0x370] sm:$0x1]
        %v9783 = vld [vmem:[#allocation2 + $0x390] sm:$0xfe]
        %v9784 = vld [vmem:[#allocation2 + $0x3b0] sm:$0x1]
        %v9785 = vld [vmem:[#allocation2 + $0x3d0] sm:$0xfe]
        %v9786 = vld [vmem:[#allocation2 + $0x3f0] sm:$0x1]
        %v9787 = vlaneseq
        %v9788 = vshrl.u32 %v9787, 7
        %v9789 = vsub.s32 0, %v9788
        %v9790 = vrot.slane %v356, %v9789
        %v9791 = vmul.f32 %v9755, %v9790
        %v9792 = vmul.f32 %v9527, %v9790
        %v9793 = vmul.f32 %v9756, %v9790
        %v9794 = vmul.f32 %v9757, %v9790
        %v9795 = vmul.f32 %v9528, %v9790
        %v9796 = vmul.f32 %v9758, %v9790
        %v9797 = vmul.f32 %v9759, %v9790
        %v9798 = vmul.f32 %v9529, %v9790
        %v9799 = vmul.f32 %v9760, %v9790
        %v9800 = vmul.f32 %v9761, %v9790
        %v9801 = vmul.f32 %v9530, %v9790
        %v9802 = vmul.f32 %v9762, %v9790
        %v9803 = vmul.f32 %v9763, %v9790
        %v9804 = vmul.f32 %v9531, %v9790
        %v9805 = vmul.f32 %v9764, %v9790
        %v9806 = vmul.f32 %v9765, %v9790
        %v9807 = vmul.f32 %v9532, %v9790
        %v9808 = vmul.f32 %v9766, %v9790
        %v9809 = vmul.f32 %v9767, %v9790
        %v9810 = vmul.f32 %v9533, %v9790
        %v9811 = vmul.f32 %v9768, %v9790
        %v9812 = vmul.f32 %v9769, %v9790
        %v9813 = vmul.f32 %v9534, %v9790
        %v9814 = vmul.f32 %v9770, %v9790
        %v9815 = vmul.f32 %v9771, %v9790
        %v9816 = vmul.f32 %v9535, %v9790
        %v9817 = vmul.f32 %v9772, %v9790
        %v9818 = vmul.f32 %v9773, %v9790
        %v9819 = vmul.f32 %v9536, %v9790
        %v9820 = vmul.f32 %v9774, %v9790
        %v9821 = vmul.f32 %v9775, %v9790
        %v9822 = vmul.f32 %v9537, %v9790
        %v9823 = vmul.f32 %v9776, %v9790
        %v9824 = vmul.f32 %v9777, %v9790
        %v9825 = vmul.f32 %v9538, %v9790
        %v9826 = vmul.f32 %v9778, %v9790
        %v9827 = vmul.f32 %v9779, %v9790
        %v9828 = vmul.f32 %v9539, %v9790
        %v9829 = vmul.f32 %v9780, %v9790
        %v9830 = vmul.f32 %v9781, %v9790
        %v9831 = vmul.f32 %v9540, %v9790
        %v9832 = vmul.f32 %v9782, %v9790
        %v9833 = vmul.f32 %v9783, %v9790
        %v9834 = vmul.f32 %v9541, %v9790
        %v9835 = vmul.f32 %v9784, %v9790
        %v9836 = vmul.f32 %v9785, %v9790
        %v9837 = vmul.f32 %v9542, %v9790
        %v9838 = vmul.f32 %v9786, %v9790
        %v9887 = vrot.slane %v9791, 2
        %v9888 = vrot.slane %v9792, 2
        %v9889 = vsel %vm1986, %v9887, %v9888
        %v9890 = vrot.slane %v9793, 2
        %v9891 = vsel %vm1986, %v9888, %v9890
        %v9892 = vrot.slane %v9794, 2
        %v9893 = vrot.slane %v9795, 2
        %v9894 = vsel %vm1986, %v9892, %v9893
        %v9895 = vrot.slane %v9796, 2
        %v9896 = vsel %vm1986, %v9893, %v9895
        %v9897 = vrot.slane %v9797, 2
        %v9898 = vrot.slane %v9798, 2
        %v9899 = vsel %vm1986, %v9897, %v9898
        %v9900 = vrot.slane %v9799, 2
        %v9901 = vsel %vm1986, %v9898, %v9900
        %v9902 = vrot.slane %v9800, 2
        %v9903 = vrot.slane %v9801, 2
        %v9904 = vsel %vm1986, %v9902, %v9903
        %v9905 = vrot.slane %v9802, 2
        %v9906 = vsel %vm1986, %v9903, %v9905
        %v9907 = vrot.slane %v9803, 2
        %v9908 = vrot.slane %v9804, 2
        %v9909 = vsel %vm1986, %v9907, %v9908
        %v9910 = vrot.slane %v9805, 2
        %v9911 = vsel %vm1986, %v9908, %v9910
        %v9912 = vrot.slane %v9806, 2
        %v9913 = vrot.slane %v9807, 2
        %v9914 = vsel %vm1986, %v9912, %v9913
        %v9915 = vrot.slane %v9808, 2
        %v9916 = vsel %vm1986, %v9913, %v9915
        %v9917 = vrot.slane %v9809, 2
        %v9918 = vrot.slane %v9810, 2
        %v9919 = vsel %vm1986, %v9917, %v9918
        %v9920 = vrot.slane %v9811, 2
        %v9921 = vsel %vm1986, %v9918, %v9920
        %v9922 = vrot.slane %v9812, 2
        %v9923 = vrot.slane %v9813, 2
        %v9924 = vsel %vm1986, %v9922, %v9923
        %v9925 = vrot.slane %v9814, 2
        %v9926 = vsel %vm1986, %v9923, %v9925
        %v9927 = vrot.slane %v9815, 2
        %v9928 = vrot.slane %v9816, 2
        %v9929 = vsel %vm1986, %v9927, %v9928
        %v9930 = vrot.slane %v9817, 2
        %v9931 = vsel %vm1986, %v9928, %v9930
        %v9932 = vrot.slane %v9818, 2
        %v9933 = vrot.slane %v9819, 2
        %v9934 = vsel %vm1986, %v9932, %v9933
        %v9935 = vrot.slane %v9820, 2
        %v9936 = vsel %vm1986, %v9933, %v9935
        %v9937 = vrot.slane %v9821, 2
        %v9938 = vrot.slane %v9822, 2
        %v9939 = vsel %vm1986, %v9937, %v9938
        %v9940 = vrot.slane %v9823, 2
        %v9941 = vsel %vm1986, %v9938, %v9940
        %v9942 = vrot.slane %v9824, 2
        %v9943 = vrot.slane %v9825, 2
        %v9944 = vsel %vm1986, %v9942, %v9943
        %v9945 = vrot.slane %v9826, 2
        %v9946 = vsel %vm1986, %v9943, %v9945
        %v9947 = vrot.slane %v9827, 2
        %v9948 = vrot.slane %v9828, 2
        %v9949 = vsel %vm1986, %v9947, %v9948
        %v9950 = vrot.slane %v9829, 2
        %v9951 = vsel %vm1986, %v9948, %v9950
        %v9952 = vrot.slane %v9830, 2
        %v9953 = vrot.slane %v9831, 2
        %v9954 = vsel %vm1986, %v9952, %v9953
        %v9955 = vrot.slane %v9832, 2
        %v9956 = vsel %vm1986, %v9953, %v9955
        %v9957 = vrot.slane %v9833, 2
        %v9958 = vrot.slane %v9834, 2
        %v9959 = vsel %vm1986, %v9957, %v9958
        %v9960 = vrot.slane %v9835, 2
        %v9961 = vsel %vm1986, %v9958, %v9960
        %v9962 = vrot.slane %v9836, 2
        %v9963 = vrot.slane %v9837, 2
        %v9964 = vsel %vm1986, %v9962, %v9963
        %v9965 = vrot.slane %v9838, 2
        %v9966 = vsel %vm1986, %v9963, %v9965
        %v10015 = vadd.f32 %v9707, %v9887
        %v10016 = vadd.f32 %v9708, %v9889
        %v10017 = vadd.f32 %v9709, %v9891
        %v10018 = vadd.f32 %v9710, %v9892
        %v10019 = vadd.f32 %v9711, %v9894
        %v10020 = vadd.f32 %v9712, %v9896
        %v10021 = vadd.f32 %v9713, %v9897
        %v10022 = vadd.f32 %v9714, %v9899
        %v10023 = vadd.f32 %v9715, %v9901
        %v10024 = vadd.f32 %v9716, %v9902
        %v10025 = vadd.f32 %v9717, %v9904
        %v10026 = vadd.f32 %v9718, %v9906
        %v10027 = vadd.f32 %v9719, %v9907
        %v10028 = vadd.f32 %v9720, %v9909
        %v10029 = vadd.f32 %v9721, %v9911
        %v10030 = vadd.f32 %v9722, %v9912
        %v10031 = vadd.f32 %v9723, %v9914
        %v10032 = vadd.f32 %v9724, %v9916
        %v10033 = vadd.f32 %v9725, %v9917
        %v10034 = vadd.f32 %v9726, %v9919
        %v10035 = vadd.f32 %v9727, %v9921
        %v10036 = vadd.f32 %v9728, %v9922
        %v10037 = vadd.f32 %v9729, %v9924
        %v10038 = vadd.f32 %v9730, %v9926
        %v10039 = vadd.f32 %v9731, %v9927
        %v10040 = vadd.f32 %v9732, %v9929
        %v10041 = vadd.f32 %v9733, %v9931
        %v10042 = vadd.f32 %v9734, %v9932
        %v10043 = vadd.f32 %v9735, %v9934
        %v10044 = vadd.f32 %v9736, %v9936
        %v10045 = vadd.f32 %v9737, %v9937
        %v10046 = vadd.f32 %v9738, %v9939
        %v10047 = vadd.f32 %v9739, %v9941
        %v10048 = vadd.f32 %v9740, %v9942
        %v10049 = vadd.f32 %v9741, %v9944
        %v10050 = vadd.f32 %v9742, %v9946
        %v10051 = vadd.f32 %v9743, %v9947
        %v10052 = vadd.f32 %v9744, %v9949
        %v10053 = vadd.f32 %v9745, %v9951
        %v10054 = vadd.f32 %v9746, %v9952
        %v10055 = vadd.f32 %v9747, %v9954
        %v10056 = vadd.f32 %v9748, %v9956
        %v10057 = vadd.f32 %v9749, %v9957
        %v10058 = vadd.f32 %v9750, %v9959
        %v10059 = vadd.f32 %v9751, %v9961
        %v10060 = vadd.f32 %v9752, %v9962
        %v10061 = vadd.f32 %v9753, %v9964
        %v10062 = vadd.f32 %v9754, %v9966
        %v10063 = vld [vmem:[%s1000] sm:$0x80]
        %v10064 = vld [vmem:[%s1000 + $0x10] sm:$0xff]
        %v10065 = vld [vmem:[%s1000 + $0x20] sm:$0x7f]
        %v10066 = vld [vmem:[%s1000 + $0x40] sm:$0x80]
        %v10067 = vld [vmem:[%s1000 + $0x50] sm:$0xff]
        %v10068 = vld [vmem:[%s1000 + $0x60] sm:$0x7f]
        %v10069 = vld [vmem:[%s1000 + $0x80] sm:$0x80]
        %v10070 = vld [vmem:[%s1000 + $0x90] sm:$0xff]
        %v10071 = vld [vmem:[%s1000 + $0xa0] sm:$0x7f]
        %v10072 = vld [vmem:[%s1000 + $0xc0] sm:$0x80]
        %v10073 = vld [vmem:[%s1000 + $0xd0] sm:$0xff]
        %v10074 = vld [vmem:[%s1000 + $0xe0] sm:$0x7f]
        %v10075 = vld [vmem:[%s1000 + $0x100] sm:$0x80]
        %v10076 = vld [vmem:[%s1000 + $0x110] sm:$0xff]
        %v10077 = vld [vmem:[%s1000 + $0x120] sm:$0x7f]
        %v10078 = vld [vmem:[%s1000 + $0x140] sm:$0x80]
        %v10079 = vld [vmem:[%s1000 + $0x150] sm:$0xff]
        %v10080 = vld [vmem:[%s1000 + $0x160] sm:$0x7f]
        %v10081 = vld [vmem:[%s1000 + $0x180] sm:$0x80]
        %v10082 = vld [vmem:[%s1000 + $0x190] sm:$0xff]
        %v10083 = vld [vmem:[%s1000 + $0x1a0] sm:$0x7f]
        %v10084 = vld [vmem:[%s1000 + $0x1c0] sm:$0x80]
        %v10085 = vld [vmem:[%s1000 + $0x1d0] sm:$0xff]
        %v10086 = vld [vmem:[%s1000 + $0x1e0] sm:$0x7f]
        %v10087 = vld [vmem:[%s1000 + $0x200] sm:$0x80]
        %v10088 = vld [vmem:[%s1000 + $0x210] sm:$0xff]
        %v10089 = vld [vmem:[%s1000 + $0x220] sm:$0x7f]
        %v10090 = vld [vmem:[%s1000 + $0x240] sm:$0x80]
        %v10091 = vld [vmem:[%s1000 + $0x250] sm:$0xff]
        %v10092 = vld [vmem:[%s1000 + $0x260] sm:$0x7f]
        %v10093 = vld [vmem:[%s1000 + $0x280] sm:$0x80]
        %v10094 = vld [vmem:[%s1000 + $0x290] sm:$0xff]
        %v10095 = vld [vmem:[%s1000 + $0x2a0] sm:$0x7f]
        %v10096 = vld [vmem:[%s1000 + $0x2c0] sm:$0x80]
        %v10097 = vld [vmem:[%s1000 + $0x2d0] sm:$0xff]
        %v10098 = vld [vmem:[%s1000 + $0x2e0] sm:$0x7f]
        %v10099 = vld [vmem:[%s1000 + $0x300] sm:$0x80]
        %v10100 = vld [vmem:[%s1000 + $0x310] sm:$0xff]
        %v10101 = vld [vmem:[%s1000 + $0x320] sm:$0x7f]
        %v10102 = vld [vmem:[%s1000 + $0x340] sm:$0x80]
        %v10103 = vld [vmem:[%s1000 + $0x350] sm:$0xff]
        %v10104 = vld [vmem:[%s1000 + $0x360] sm:$0x7f]
        %v10105 = vld [vmem:[%s1000 + $0x380] sm:$0x80]
        %v10106 = vld [vmem:[%s1000 + $0x390] sm:$0xff]
        %v10107 = vld [vmem:[%s1000 + $0x3a0] sm:$0x7f]
        %v10108 = vld [vmem:[%s1000 + $0x3c0] sm:$0x80]
        %v10109 = vld [vmem:[%s1000 + $0x3d0] sm:$0xff]
        %v10110 = vld [vmem:[%s1000 + $0x3e0] sm:$0x7f]
        %v10111 = vlaneseq
        %v10112 = vshrl.u32 %v10111, 7
        %v10113 = vsub.s32 1, %v10112
        %v10114 = vrot.slane %v356, %v10113
        %v10115 = vmul.f32 %v10063, %v10114
        %v10116 = vmul.f32 %v10064, %v10114
        %v10117 = vmul.f32 %v10065, %v10114
        %v10118 = vmul.f32 %v10066, %v10114
        %v10119 = vmul.f32 %v10067, %v10114
        %v10120 = vmul.f32 %v10068, %v10114
        %v10121 = vmul.f32 %v10069, %v10114
        %v10122 = vmul.f32 %v10070, %v10114
        %v10123 = vmul.f32 %v10071, %v10114
        %v10124 = vmul.f32 %v10072, %v10114
        %v10125 = vmul.f32 %v10073, %v10114
        %v10126 = vmul.f32 %v10074, %v10114
        %v10127 = vmul.f32 %v10075, %v10114
        %v10128 = vmul.f32 %v10076, %v10114
        %v10129 = vmul.f32 %v10077, %v10114
        %v10130 = vmul.f32 %v10078, %v10114
        %v10131 = vmul.f32 %v10079, %v10114
        %v10132 = vmul.f32 %v10080, %v10114
        %v10133 = vmul.f32 %v10081, %v10114
        %v10134 = vmul.f32 %v10082, %v10114
        %v10135 = vmul.f32 %v10083, %v10114
        %v10136 = vmul.f32 %v10084, %v10114
        %v10137 = vmul.f32 %v10085, %v10114
        %v10138 = vmul.f32 %v10086, %v10114
        %v10139 = vmul.f32 %v10087, %v10114
        %v10140 = vmul.f32 %v10088, %v10114
        %v10141 = vmul.f32 %v10089, %v10114
        %v10142 = vmul.f32 %v10090, %v10114
        %v10143 = vmul.f32 %v10091, %v10114
        %v10144 = vmul.f32 %v10092, %v10114
        %v10145 = vmul.f32 %v10093, %v10114
        %v10146 = vmul.f32 %v10094, %v10114
        %v10147 = vmul.f32 %v10095, %v10114
        %v10148 = vmul.f32 %v10096, %v10114
        %v10149 = vmul.f32 %v10097, %v10114
        %v10150 = vmul.f32 %v10098, %v10114
        %v10151 = vmul.f32 %v10099, %v10114
        %v10152 = vmul.f32 %v10100, %v10114
        %v10153 = vmul.f32 %v10101, %v10114
        %v10154 = vmul.f32 %v10102, %v10114
        %v10155 = vmul.f32 %v10103, %v10114
        %v10156 = vmul.f32 %v10104, %v10114
        %v10157 = vmul.f32 %v10105, %v10114
        %v10158 = vmul.f32 %v10106, %v10114
        %v10159 = vmul.f32 %v10107, %v10114
        %v10160 = vmul.f32 %v10108, %v10114
        %v10161 = vmul.f32 %v10109, %v10114
        %v10162 = vmul.f32 %v10110, %v10114
        %v10163 = vadd.f32 %v10015, %v10115
        %v10164 = vadd.f32 %v10016, %v10116
        %v10165 = vadd.f32 %v10017, %v10117
        %v10166 = vadd.f32 %v10018, %v10118
        %v10167 = vadd.f32 %v10019, %v10119
        %v10168 = vadd.f32 %v10020, %v10120
        %v10169 = vadd.f32 %v10021, %v10121
        %v10170 = vadd.f32 %v10022, %v10122
        %v10171 = vadd.f32 %v10023, %v10123
        %v10172 = vadd.f32 %v10024, %v10124
        %v10173 = vadd.f32 %v10025, %v10125
        %v10174 = vadd.f32 %v10026, %v10126
        %v10175 = vadd.f32 %v10027, %v10127
        %v10176 = vadd.f32 %v10028, %v10128
        %v10177 = vadd.f32 %v10029, %v10129
        %v10178 = vadd.f32 %v10030, %v10130
        %v10179 = vadd.f32 %v10031, %v10131
        %v10180 = vadd.f32 %v10032, %v10132
        %v10181 = vadd.f32 %v10033, %v10133
        %v10182 = vadd.f32 %v10034, %v10134
        %v10183 = vadd.f32 %v10035, %v10135
        %v10184 = vadd.f32 %v10036, %v10136
        %v10185 = vadd.f32 %v10037, %v10137
        %v10186 = vadd.f32 %v10038, %v10138
        %v10187 = vadd.f32 %v10039, %v10139
        %v10188 = vadd.f32 %v10040, %v10140
        %v10189 = vadd.f32 %v10041, %v10141
        %v10190 = vadd.f32 %v10042, %v10142
        %v10191 = vadd.f32 %v10043, %v10143
        %v10192 = vadd.f32 %v10044, %v10144
        %v10193 = vadd.f32 %v10045, %v10145
        %v10194 = vadd.f32 %v10046, %v10146
        %v10195 = vadd.f32 %v10047, %v10147
        %v10196 = vadd.f32 %v10048, %v10148
        %v10197 = vadd.f32 %v10049, %v10149
        %v10198 = vadd.f32 %v10050, %v10150
        %v10199 = vadd.f32 %v10051, %v10151
        %v10200 = vadd.f32 %v10052, %v10152
        %v10201 = vadd.f32 %v10053, %v10153
        %v10202 = vadd.f32 %v10054, %v10154
        %v10203 = vadd.f32 %v10055, %v10155
        %v10204 = vadd.f32 %v10056, %v10156
        %v10205 = vadd.f32 %v10057, %v10157
        %v10206 = vadd.f32 %v10058, %v10158
        %v10207 = vadd.f32 %v10059, %v10159
        %v10208 = vadd.f32 %v10060, %v10160
        %v10209 = vadd.f32 %v10061, %v10161
        %v10210 = vadd.f32 %v10062, %v10162
        %v10211 = vld [vmem:[%s1000 + $0x20] sm:$0xff]
        %v10212 = vld [vmem:[%s1000 + $0x60] sm:$0xff]
        %v10213 = vld [vmem:[%s1000 + $0xa0] sm:$0xff]
        %v10214 = vld [vmem:[%s1000 + $0xe0] sm:$0xff]
        %v10215 = vld [vmem:[%s1000 + $0x120] sm:$0xff]
        %v10216 = vld [vmem:[%s1000 + $0x160] sm:$0xff]
        %v10217 = vld [vmem:[%s1000 + $0x1a0] sm:$0xff]
        %v10218 = vld [vmem:[%s1000 + $0x1e0] sm:$0xff]
        %v10219 = vld [vmem:[%s1000 + $0x220] sm:$0xff]
        %v10220 = vld [vmem:[%s1000 + $0x260] sm:$0xff]
        %v10221 = vld [vmem:[%s1000 + $0x2a0] sm:$0xff]
        %v10222 = vld [vmem:[%s1000 + $0x2e0] sm:$0xff]
        %v10223 = vld [vmem:[%s1000 + $0x320] sm:$0xff]
        %v10224 = vld [vmem:[%s1000 + $0x360] sm:$0xff]
        %v10225 = vld [vmem:[%s1000 + $0x3a0] sm:$0xff]
        %v10226 = vld [vmem:[%s1000 + $0x3e0] sm:$0xff]
        %v10227 = vlaneseq
        %v10228 = vshrl.u32 %v10227, 7
        %v10229 = vsub.s32 2, %v10228
        %v10230 = vrot.slane %v356, %v10229
        %v10231 = vmul.f32 %v10064, %v10230
        %v10232 = vmul.f32 %v10211, %v10230
        %v10233 = vmul.f32 %v10067, %v10230
        %v10234 = vmul.f32 %v10212, %v10230
        %v10235 = vmul.f32 %v10070, %v10230
        %v10236 = vmul.f32 %v10213, %v10230
        %v10237 = vmul.f32 %v10073, %v10230
        %v10238 = vmul.f32 %v10214, %v10230
        %v10239 = vmul.f32 %v10076, %v10230
        %v10240 = vmul.f32 %v10215, %v10230
        %v10241 = vmul.f32 %v10079, %v10230
        %v10242 = vmul.f32 %v10216, %v10230
        %v10243 = vmul.f32 %v10082, %v10230
        %v10244 = vmul.f32 %v10217, %v10230
        %v10245 = vmul.f32 %v10085, %v10230
        %v10246 = vmul.f32 %v10218, %v10230
        %v10247 = vmul.f32 %v10088, %v10230
        %v10248 = vmul.f32 %v10219, %v10230
        %v10249 = vmul.f32 %v10091, %v10230
        %v10250 = vmul.f32 %v10220, %v10230
        %v10251 = vmul.f32 %v10094, %v10230
        %v10252 = vmul.f32 %v10221, %v10230
        %v10253 = vmul.f32 %v10097, %v10230
        %v10254 = vmul.f32 %v10222, %v10230
        %v10255 = vmul.f32 %v10100, %v10230
        %v10256 = vmul.f32 %v10223, %v10230
        %v10257 = vmul.f32 %v10103, %v10230
        %v10258 = vmul.f32 %v10224, %v10230
        %v10259 = vmul.f32 %v10106, %v10230
        %v10260 = vmul.f32 %v10225, %v10230
        %v10261 = vmul.f32 %v10109, %v10230
        %v10262 = vmul.f32 %v10226, %v10230
        %v10295 = vrot.slane %v10231, 1
        %v10296 = vrot.slane %v10232, 1
        %v10297 = vsel %vm1433, %v10295, %v10296
        %v10298 = vrot.slane %v10233, 1
        %v10299 = vrot.slane %v10234, 1
        %v10300 = vsel %vm1433, %v10298, %v10299
        %v10301 = vrot.slane %v10235, 1
        %v10302 = vrot.slane %v10236, 1
        %v10303 = vsel %vm1433, %v10301, %v10302
        %v10304 = vrot.slane %v10237, 1
        %v10305 = vrot.slane %v10238, 1
        %v10306 = vsel %vm1433, %v10304, %v10305
        %v10307 = vrot.slane %v10239, 1
        %v10308 = vrot.slane %v10240, 1
        %v10309 = vsel %vm1433, %v10307, %v10308
        %v10310 = vrot.slane %v10241, 1
        %v10311 = vrot.slane %v10242, 1
        %v10312 = vsel %vm1433, %v10310, %v10311
        %v10313 = vrot.slane %v10243, 1
        %v10314 = vrot.slane %v10244, 1
        %v10315 = vsel %vm1433, %v10313, %v10314
        %v10316 = vrot.slane %v10245, 1
        %v10317 = vrot.slane %v10246, 1
        %v10318 = vsel %vm1433, %v10316, %v10317
        %v10319 = vrot.slane %v10247, 1
        %v10320 = vrot.slane %v10248, 1
        %v10321 = vsel %vm1433, %v10319, %v10320
        %v10322 = vrot.slane %v10249, 1
        %v10323 = vrot.slane %v10250, 1
        %v10324 = vsel %vm1433, %v10322, %v10323
        %v10325 = vrot.slane %v10251, 1
        %v10326 = vrot.slane %v10252, 1
        %v10327 = vsel %vm1433, %v10325, %v10326
        %v10328 = vrot.slane %v10253, 1
        %v10329 = vrot.slane %v10254, 1
        %v10330 = vsel %vm1433, %v10328, %v10329
        %v10331 = vrot.slane %v10255, 1
        %v10332 = vrot.slane %v10256, 1
        %v10333 = vsel %vm1433, %v10331, %v10332
        %v10334 = vrot.slane %v10257, 1
        %v10335 = vrot.slane %v10258, 1
        %v10336 = vsel %vm1433, %v10334, %v10335
        %v10337 = vrot.slane %v10259, 1
        %v10338 = vrot.slane %v10260, 1
        %v10339 = vsel %vm1433, %v10337, %v10338
        %v10340 = vrot.slane %v10261, 1
        %v10341 = vrot.slane %v10262, 1
        %v10342 = vsel %vm1433, %v10340, %v10341
        %v10391 = vadd.f32 %v10163, %v10295
        %v10392 = vadd.f32 %v10164, %v10297
        %v10393 = vadd.f32 %v10165, %v10296
        %v10394 = vadd.f32 %v10166, %v10298
        %v10395 = vadd.f32 %v10167, %v10300
        %v10396 = vadd.f32 %v10168, %v10299
        %v10397 = vadd.f32 %v10169, %v10301
        %v10398 = vadd.f32 %v10170, %v10303
        %v10399 = vadd.f32 %v10171, %v10302
        %v10400 = vadd.f32 %v10172, %v10304
        %v10401 = vadd.f32 %v10173, %v10306
        %v10402 = vadd.f32 %v10174, %v10305
        %v10403 = vadd.f32 %v10175, %v10307
        %v10404 = vadd.f32 %v10176, %v10309
        %v10405 = vadd.f32 %v10177, %v10308
        %v10406 = vadd.f32 %v10178, %v10310
        %v10407 = vadd.f32 %v10179, %v10312
        %v10408 = vadd.f32 %v10180, %v10311
        %v10409 = vadd.f32 %v10181, %v10313
        %v10410 = vadd.f32 %v10182, %v10315
        %v10411 = vadd.f32 %v10183, %v10314
        %v10412 = vadd.f32 %v10184, %v10316
        %v10413 = vadd.f32 %v10185, %v10318
        %v10414 = vadd.f32 %v10186, %v10317
        %v10415 = vadd.f32 %v10187, %v10319
        %v10416 = vadd.f32 %v10188, %v10321
        %v10417 = vadd.f32 %v10189, %v10320
        %v10418 = vadd.f32 %v10190, %v10322
        %v10419 = vadd.f32 %v10191, %v10324
        %v10420 = vadd.f32 %v10192, %v10323
        %v10421 = vadd.f32 %v10193, %v10325
        %v10422 = vadd.f32 %v10194, %v10327
        %v10423 = vadd.f32 %v10195, %v10326
        %v10424 = vadd.f32 %v10196, %v10328
        %v10425 = vadd.f32 %v10197, %v10330
        %v10426 = vadd.f32 %v10198, %v10329
        %v10427 = vadd.f32 %v10199, %v10331
        %v10428 = vadd.f32 %v10200, %v10333
        %v10429 = vadd.f32 %v10201, %v10332
        %v10430 = vadd.f32 %v10202, %v10334
        %v10431 = vadd.f32 %v10203, %v10336
        %v10432 = vadd.f32 %v10204, %v10335
        %v10433 = vadd.f32 %v10205, %v10337
        %v10434 = vadd.f32 %v10206, %v10339
        %v10435 = vadd.f32 %v10207, %v10338
        %v10436 = vadd.f32 %v10208, %v10340
        %v10437 = vadd.f32 %v10209, %v10342
        %v10438 = vadd.f32 %v10210, %v10341
        %v10439 = vld [vmem:[%s1000 + $0x10] sm:$0xfe]
        %v10440 = vld [vmem:[%s1000 + $0x30] sm:$0x1]
        %v10441 = vld [vmem:[%s1000 + $0x50] sm:$0xfe]
        %v10442 = vld [vmem:[%s1000 + $0x70] sm:$0x1]
        %v10443 = vld [vmem:[%s1000 + $0x90] sm:$0xfe]
        %v10444 = vld [vmem:[%s1000 + $0xb0] sm:$0x1]
        %v10445 = vld [vmem:[%s1000 + $0xd0] sm:$0xfe]
        %v10446 = vld [vmem:[%s1000 + $0xf0] sm:$0x1]
        %v10447 = vld [vmem:[%s1000 + $0x110] sm:$0xfe]
        %v10448 = vld [vmem:[%s1000 + $0x130] sm:$0x1]
        %v10449 = vld [vmem:[%s1000 + $0x150] sm:$0xfe]
        %v10450 = vld [vmem:[%s1000 + $0x170] sm:$0x1]
        %v10451 = vld [vmem:[%s1000 + $0x190] sm:$0xfe]
        %v10452 = vld [vmem:[%s1000 + $0x1b0] sm:$0x1]
        %v10453 = vld [vmem:[%s1000 + $0x1d0] sm:$0xfe]
        %v10454 = vld [vmem:[%s1000 + $0x1f0] sm:$0x1]
        %v10455 = vld [vmem:[%s1000 + $0x210] sm:$0xfe]
        %v10456 = vld [vmem:[%s1000 + $0x230] sm:$0x1]
        %v10457 = vld [vmem:[%s1000 + $0x250] sm:$0xfe]
        %v10458 = vld [vmem:[%s1000 + $0x270] sm:$0x1]
        %v10459 = vld [vmem:[%s1000 + $0x290] sm:$0xfe]
        %v10460 = vld [vmem:[%s1000 + $0x2b0] sm:$0x1]
        %v10461 = vld [vmem:[%s1000 + $0x2d0] sm:$0xfe]
        %v10462 = vld [vmem:[%s1000 + $0x2f0] sm:$0x1]
        %v10463 = vld [vmem:[%s1000 + $0x310] sm:$0xfe]
        %v10464 = vld [vmem:[%s1000 + $0x330] sm:$0x1]
        %v10465 = vld [vmem:[%s1000 + $0x350] sm:$0xfe]
        %v10466 = vld [vmem:[%s1000 + $0x370] sm:$0x1]
        %v10467 = vld [vmem:[%s1000 + $0x390] sm:$0xfe]
        %v10468 = vld [vmem:[%s1000 + $0x3b0] sm:$0x1]
        %v10469 = vld [vmem:[%s1000 + $0x3d0] sm:$0xfe]
        %v10470 = vld [vmem:[%s1000 + $0x3f0] sm:$0x1]
        %v10471 = vlaneseq
        %v10472 = vshrl.u32 %v10471, 7
        %v10473 = vsub.s32 3, %v10472
        %v10474 = vrot.slane %v356, %v10473
        %v10475 = vmul.f32 %v10439, %v10474
        %v10476 = vmul.f32 %v10211, %v10474
        %v10477 = vmul.f32 %v10440, %v10474
        %v10478 = vmul.f32 %v10441, %v10474
        %v10479 = vmul.f32 %v10212, %v10474
        %v10480 = vmul.f32 %v10442, %v10474
        %v10481 = vmul.f32 %v10443, %v10474
        %v10482 = vmul.f32 %v10213, %v10474
        %v10483 = vmul.f32 %v10444, %v10474
        %v10484 = vmul.f32 %v10445, %v10474
        %v10485 = vmul.f32 %v10214, %v10474
        %v10486 = vmul.f32 %v10446, %v10474
        %v10487 = vmul.f32 %v10447, %v10474
        %v10488 = vmul.f32 %v10215, %v10474
        %v10489 = vmul.f32 %v10448, %v10474
        %v10490 = vmul.f32 %v10449, %v10474
        %v10491 = vmul.f32 %v10216, %v10474
        %v10492 = vmul.f32 %v10450, %v10474
        %v10493 = vmul.f32 %v10451, %v10474
        %v10494 = vmul.f32 %v10217, %v10474
        %v10495 = vmul.f32 %v10452, %v10474
        %v10496 = vmul.f32 %v10453, %v10474
        %v10497 = vmul.f32 %v10218, %v10474
        %v10498 = vmul.f32 %v10454, %v10474
        %v10499 = vmul.f32 %v10455, %v10474
        %v10500 = vmul.f32 %v10219, %v10474
        %v10501 = vmul.f32 %v10456, %v10474
        %v10502 = vmul.f32 %v10457, %v10474
        %v10503 = vmul.f32 %v10220, %v10474
        %v10504 = vmul.f32 %v10458, %v10474
        %v10505 = vmul.f32 %v10459, %v10474
        %v10506 = vmul.f32 %v10221, %v10474
        %v10507 = vmul.f32 %v10460, %v10474
        %v10508 = vmul.f32 %v10461, %v10474
        %v10509 = vmul.f32 %v10222, %v10474
        %v10510 = vmul.f32 %v10462, %v10474
        %v10511 = vmul.f32 %v10463, %v10474
        %v10512 = vmul.f32 %v10223, %v10474
        %v10513 = vmul.f32 %v10464, %v10474
        %v10514 = vmul.f32 %v10465, %v10474
        %v10515 = vmul.f32 %v10224, %v10474
        %v10516 = vmul.f32 %v10466, %v10474
        %v10517 = vmul.f32 %v10467, %v10474
        %v10518 = vmul.f32 %v10225, %v10474
        %v10519 = vmul.f32 %v10468, %v10474
        %v10520 = vmul.f32 %v10469, %v10474
        %v10521 = vmul.f32 %v10226, %v10474
        %v10522 = vmul.f32 %v10470, %v10474
        %v10571 = vrot.slane %v10475, 2
        %v10572 = vrot.slane %v10476, 2
        %v10573 = vsel %vm1986, %v10571, %v10572
        %v10574 = vrot.slane %v10477, 2
        %v10575 = vsel %vm1986, %v10572, %v10574
        %v10576 = vrot.slane %v10478, 2
        %v10577 = vrot.slane %v10479, 2
        %v10578 = vsel %vm1986, %v10576, %v10577
        %v10579 = vrot.slane %v10480, 2
        %v10580 = vsel %vm1986, %v10577, %v10579
        %v10581 = vrot.slane %v10481, 2
        %v10582 = vrot.slane %v10482, 2
        %v10583 = vsel %vm1986, %v10581, %v10582
        %v10584 = vrot.slane %v10483, 2
        %v10585 = vsel %vm1986, %v10582, %v10584
        %v10586 = vrot.slane %v10484, 2
        %v10587 = vrot.slane %v10485, 2
        %v10588 = vsel %vm1986, %v10586, %v10587
        %v10589 = vrot.slane %v10486, 2
        %v10590 = vsel %vm1986, %v10587, %v10589
        %v10591 = vrot.slane %v10487, 2
        %v10592 = vrot.slane %v10488, 2
        %v10593 = vsel %vm1986, %v10591, %v10592
        %v10594 = vrot.slane %v10489, 2
        %v10595 = vsel %vm1986, %v10592, %v10594
        %v10596 = vrot.slane %v10490, 2
        %v10597 = vrot.slane %v10491, 2
        %v10598 = vsel %vm1986, %v10596, %v10597
        %v10599 = vrot.slane %v10492, 2
        %v10600 = vsel %vm1986, %v10597, %v10599
        %v10601 = vrot.slane %v10493, 2
        %v10602 = vrot.slane %v10494, 2
        %v10603 = vsel %vm1986, %v10601, %v10602
        %v10604 = vrot.slane %v10495, 2
        %v10605 = vsel %vm1986, %v10602, %v10604
        %v10606 = vrot.slane %v10496, 2
        %v10607 = vrot.slane %v10497, 2
        %v10608 = vsel %vm1986, %v10606, %v10607
        %v10609 = vrot.slane %v10498, 2
        %v10610 = vsel %vm1986, %v10607, %v10609
        %v10611 = vrot.slane %v10499, 2
        %v10612 = vrot.slane %v10500, 2
        %v10613 = vsel %vm1986, %v10611, %v10612
        %v10614 = vrot.slane %v10501, 2
        %v10615 = vsel %vm1986, %v10612, %v10614
        %v10616 = vrot.slane %v10502, 2
        %v10617 = vrot.slane %v10503, 2
        %v10618 = vsel %vm1986, %v10616, %v10617
        %v10619 = vrot.slane %v10504, 2
        %v10620 = vsel %vm1986, %v10617, %v10619
        %v10621 = vrot.slane %v10505, 2
        %v10622 = vrot.slane %v10506, 2
        %v10623 = vsel %vm1986, %v10621, %v10622
        %v10624 = vrot.slane %v10507, 2
        %v10625 = vsel %vm1986, %v10622, %v10624
        %v10626 = vrot.slane %v10508, 2
        %v10627 = vrot.slane %v10509, 2
        %v10628 = vsel %vm1986, %v10626, %v10627
        %v10629 = vrot.slane %v10510, 2
        %v10630 = vsel %vm1986, %v10627, %v10629
        %v10631 = vrot.slane %v10511, 2
        %v10632 = vrot.slane %v10512, 2
        %v10633 = vsel %vm1986, %v10631, %v10632
        %v10634 = vrot.slane %v10513, 2
        %v10635 = vsel %vm1986, %v10632, %v10634
        %v10636 = vrot.slane %v10514, 2
        %v10637 = vrot.slane %v10515, 2
        %v10638 = vsel %vm1986, %v10636, %v10637
        %v10639 = vrot.slane %v10516, 2
        %v10640 = vsel %vm1986, %v10637, %v10639
        %v10641 = vrot.slane %v10517, 2
        %v10642 = vrot.slane %v10518, 2
        %v10643 = vsel %vm1986, %v10641, %v10642
        %v10644 = vrot.slane %v10519, 2
        %v10645 = vsel %vm1986, %v10642, %v10644
        %v10646 = vrot.slane %v10520, 2
        %v10647 = vrot.slane %v10521, 2
        %v10648 = vsel %vm1986, %v10646, %v10647
        %v10649 = vrot.slane %v10522, 2
        %v10650 = vsel %vm1986, %v10647, %v10649
        %v10699 = vadd.f32 %v10391, %v10571
        %v10700 = vadd.f32 %v10392, %v10573
        %v10701 = vadd.f32 %v10393, %v10575
        %v10702 = vadd.f32 %v10394, %v10576
        %v10703 = vadd.f32 %v10395, %v10578
        %v10704 = vadd.f32 %v10396, %v10580
        %v10705 = vadd.f32 %v10397, %v10581
        %v10706 = vadd.f32 %v10398, %v10583
        %v10707 = vadd.f32 %v10399, %v10585
        %v10708 = vadd.f32 %v10400, %v10586
        %v10709 = vadd.f32 %v10401, %v10588
        %v10710 = vadd.f32 %v10402, %v10590
        %v10711 = vadd.f32 %v10403, %v10591
        %v10712 = vadd.f32 %v10404, %v10593
        %v10713 = vadd.f32 %v10405, %v10595
        %v10714 = vadd.f32 %v10406, %v10596
        %v10715 = vadd.f32 %v10407, %v10598
        %v10716 = vadd.f32 %v10408, %v10600
        %v10717 = vadd.f32 %v10409, %v10601
        %v10718 = vadd.f32 %v10410, %v10603
        %v10719 = vadd.f32 %v10411, %v10605
        %v10720 = vadd.f32 %v10412, %v10606
        %v10721 = vadd.f32 %v10413, %v10608
        %v10722 = vadd.f32 %v10414, %v10610
        %v10723 = vadd.f32 %v10415, %v10611
        %v10724 = vadd.f32 %v10416, %v10613
        %v10725 = vadd.f32 %v10417, %v10615
        %v10726 = vadd.f32 %v10418, %v10616
        %v10727 = vadd.f32 %v10419, %v10618
        %v10728 = vadd.f32 %v10420, %v10620
        %v10729 = vadd.f32 %v10421, %v10621
        %v10730 = vadd.f32 %v10422, %v10623
        %v10731 = vadd.f32 %v10423, %v10625
        %v10732 = vadd.f32 %v10424, %v10626
        %v10733 = vadd.f32 %v10425, %v10628
        %v10734 = vadd.f32 %v10426, %v10630
        %v10735 = vadd.f32 %v10427, %v10631
        %v10736 = vadd.f32 %v10428, %v10633
        %v10737 = vadd.f32 %v10429, %v10635
        %v10738 = vadd.f32 %v10430, %v10636
        %v10739 = vadd.f32 %v10431, %v10638
        %v10740 = vadd.f32 %v10432, %v10640
        %v10741 = vadd.f32 %v10433, %v10641
        %v10742 = vadd.f32 %v10434, %v10643
        %v10743 = vadd.f32 %v10435, %v10645
        %v10744 = vadd.f32 %v10436, %v10646
        %v10745 = vadd.f32 %v10437, %v10648
        %v10746 = vadd.f32 %v10438, %v10650
        %v10747 = vld [vmem:[%s3707] sm:$0x80]
        %v10748 = vld [vmem:[%s3707 + $0x10] sm:$0xff]
        %v10749 = vld [vmem:[%s3707 + $0x20] sm:$0x7f]
        %v10750 = vld [vmem:[%s3707 + $0x40] sm:$0x80]
        %v10751 = vld [vmem:[%s3707 + $0x50] sm:$0xff]
        %v10752 = vld [vmem:[%s3707 + $0x60] sm:$0x7f]
        %v10753 = vld [vmem:[%s3707 + $0x80] sm:$0x80]
        %v10754 = vld [vmem:[%s3707 + $0x90] sm:$0xff]
        %v10755 = vld [vmem:[%s3707 + $0xa0] sm:$0x7f]
        %v10756 = vld [vmem:[%s3707 + $0xc0] sm:$0x80]
        %v10757 = vld [vmem:[%s3707 + $0xd0] sm:$0xff]
        %v10758 = vld [vmem:[%s3707 + $0xe0] sm:$0x7f]
        %v10759 = vld [vmem:[%s3707 + $0x100] sm:$0x80]
        %v10760 = vld [vmem:[%s3707 + $0x110] sm:$0xff]
        %v10761 = vld [vmem:[%s3707 + $0x120] sm:$0x7f]
        %v10762 = vld [vmem:[%s3707 + $0x140] sm:$0x80]
        %v10763 = vld [vmem:[%s3707 + $0x150] sm:$0xff]
        %v10764 = vld [vmem:[%s3707 + $0x160] sm:$0x7f]
        %v10765 = vld [vmem:[%s3707 + $0x180] sm:$0x80]
        %v10766 = vld [vmem:[%s3707 + $0x190] sm:$0xff]
        %v10767 = vld [vmem:[%s3707 + $0x1a0] sm:$0x7f]
        %v10768 = vld [vmem:[%s3707 + $0x1c0] sm:$0x80]
        %v10769 = vld [vmem:[%s3707 + $0x1d0] sm:$0xff]
        %v10770 = vld [vmem:[%s3707 + $0x1e0] sm:$0x7f]
        %v10771 = vld [vmem:[%s3707 + $0x200] sm:$0x80]
        %v10772 = vld [vmem:[%s3707 + $0x210] sm:$0xff]
        %v10773 = vld [vmem:[%s3707 + $0x220] sm:$0x7f]
        %v10774 = vld [vmem:[%s3707 + $0x240] sm:$0x80]
        %v10775 = vld [vmem:[%s3707 + $0x250] sm:$0xff]
        %v10776 = vld [vmem:[%s3707 + $0x260] sm:$0x7f]
        %v10777 = vld [vmem:[%s3707 + $0x280] sm:$0x80]
        %v10778 = vld [vmem:[%s3707 + $0x290] sm:$0xff]
        %v10779 = vld [vmem:[%s3707 + $0x2a0] sm:$0x7f]
        %v10780 = vld [vmem:[%s3707 + $0x2c0] sm:$0x80]
        %v10781 = vld [vmem:[%s3707 + $0x2d0] sm:$0xff]
        %v10782 = vld [vmem:[%s3707 + $0x2e0] sm:$0x7f]
        %v10783 = vld [vmem:[%s3707 + $0x300] sm:$0x80]
        %v10784 = vld [vmem:[%s3707 + $0x310] sm:$0xff]
        %v10785 = vld [vmem:[%s3707 + $0x320] sm:$0x7f]
        %v10786 = vld [vmem:[%s3707 + $0x340] sm:$0x80]
        %v10787 = vld [vmem:[%s3707 + $0x350] sm:$0xff]
        %v10788 = vld [vmem:[%s3707 + $0x360] sm:$0x7f]
        %v10789 = vld [vmem:[%s3707 + $0x380] sm:$0x80]
        %v10790 = vld [vmem:[%s3707 + $0x390] sm:$0xff]
        %v10791 = vld [vmem:[%s3707 + $0x3a0] sm:$0x7f]
        %v10792 = vld [vmem:[%s3707 + $0x3c0] sm:$0x80]
        %v10793 = vld [vmem:[%s3707 + $0x3d0] sm:$0xff]
        %v10794 = vld [vmem:[%s3707 + $0x3e0] sm:$0x7f]
        %v10795 = vlaneseq
        %v10796 = vshrl.u32 %v10795, 7
        %v10797 = vsub.s32 4, %v10796
        %v10798 = vrot.slane %v356, %v10797
        %v10799 = vmul.f32 %v10747, %v10798
        %v10800 = vmul.f32 %v10748, %v10798
        %v10801 = vmul.f32 %v10749, %v10798
        %v10802 = vmul.f32 %v10750, %v10798
        %v10803 = vmul.f32 %v10751, %v10798
        %v10804 = vmul.f32 %v10752, %v10798
        %v10805 = vmul.f32 %v10753, %v10798
        %v10806 = vmul.f32 %v10754, %v10798
        %v10807 = vmul.f32 %v10755, %v10798
        %v10808 = vmul.f32 %v10756, %v10798
        %v10809 = vmul.f32 %v10757, %v10798
        %v10810 = vmul.f32 %v10758, %v10798
        %v10811 = vmul.f32 %v10759, %v10798
        %v10812 = vmul.f32 %v10760, %v10798
        %v10813 = vmul.f32 %v10761, %v10798
        %v10814 = vmul.f32 %v10762, %v10798
        %v10815 = vmul.f32 %v10763, %v10798
        %v10816 = vmul.f32 %v10764, %v10798
        %v10817 = vmul.f32 %v10765, %v10798
        %v10818 = vmul.f32 %v10766, %v10798
        %v10819 = vmul.f32 %v10767, %v10798
        %v10820 = vmul.f32 %v10768, %v10798
        %v10821 = vmul.f32 %v10769, %v10798
        %v10822 = vmul.f32 %v10770, %v10798
        %v10823 = vmul.f32 %v10771, %v10798
        %v10824 = vmul.f32 %v10772, %v10798
        %v10825 = vmul.f32 %v10773, %v10798
        %v10826 = vmul.f32 %v10774, %v10798
        %v10827 = vmul.f32 %v10775, %v10798
        %v10828 = vmul.f32 %v10776, %v10798
        %v10829 = vmul.f32 %v10777, %v10798
        %v10830 = vmul.f32 %v10778, %v10798
        %v10831 = vmul.f32 %v10779, %v10798
        %v10832 = vmul.f32 %v10780, %v10798
        %v10833 = vmul.f32 %v10781, %v10798
        %v10834 = vmul.f32 %v10782, %v10798
        %v10835 = vmul.f32 %v10783, %v10798
        %v10836 = vmul.f32 %v10784, %v10798
        %v10837 = vmul.f32 %v10785, %v10798
        %v10838 = vmul.f32 %v10786, %v10798
        %v10839 = vmul.f32 %v10787, %v10798
        %v10840 = vmul.f32 %v10788, %v10798
        %v10841 = vmul.f32 %v10789, %v10798
        %v10842 = vmul.f32 %v10790, %v10798
        %v10843 = vmul.f32 %v10791, %v10798
        %v10844 = vmul.f32 %v10792, %v10798
        %v10845 = vmul.f32 %v10793, %v10798
        %v10846 = vmul.f32 %v10794, %v10798
        %v10847 = vadd.f32 %v10699, %v10799
        %v10848 = vadd.f32 %v10700, %v10800
        %v10849 = vadd.f32 %v10701, %v10801
        %v10850 = vadd.f32 %v10702, %v10802
        %v10851 = vadd.f32 %v10703, %v10803
        %v10852 = vadd.f32 %v10704, %v10804
        %v10853 = vadd.f32 %v10705, %v10805
        %v10854 = vadd.f32 %v10706, %v10806
        %v10855 = vadd.f32 %v10707, %v10807
        %v10856 = vadd.f32 %v10708, %v10808
        %v10857 = vadd.f32 %v10709, %v10809
        %v10858 = vadd.f32 %v10710, %v10810
        %v10859 = vadd.f32 %v10711, %v10811
        %v10860 = vadd.f32 %v10712, %v10812
        %v10861 = vadd.f32 %v10713, %v10813
        %v10862 = vadd.f32 %v10714, %v10814
        %v10863 = vadd.f32 %v10715, %v10815
        %v10864 = vadd.f32 %v10716, %v10816
        %v10865 = vadd.f32 %v10717, %v10817
        %v10866 = vadd.f32 %v10718, %v10818
        %v10867 = vadd.f32 %v10719, %v10819
        %v10868 = vadd.f32 %v10720, %v10820
        %v10869 = vadd.f32 %v10721, %v10821
        %v10870 = vadd.f32 %v10722, %v10822
        %v10871 = vadd.f32 %v10723, %v10823
        %v10872 = vadd.f32 %v10724, %v10824
        %v10873 = vadd.f32 %v10725, %v10825
        %v10874 = vadd.f32 %v10726, %v10826
        %v10875 = vadd.f32 %v10727, %v10827
        %v10876 = vadd.f32 %v10728, %v10828
        %v10877 = vadd.f32 %v10729, %v10829
        %v10878 = vadd.f32 %v10730, %v10830
        %v10879 = vadd.f32 %v10731, %v10831
        %v10880 = vadd.f32 %v10732, %v10832
        %v10881 = vadd.f32 %v10733, %v10833
        %v10882 = vadd.f32 %v10734, %v10834
        %v10883 = vadd.f32 %v10735, %v10835
        %v10884 = vadd.f32 %v10736, %v10836
        %v10885 = vadd.f32 %v10737, %v10837
        %v10886 = vadd.f32 %v10738, %v10838
        %v10887 = vadd.f32 %v10739, %v10839
        %v10888 = vadd.f32 %v10740, %v10840
        %v10889 = vadd.f32 %v10741, %v10841
        %v10890 = vadd.f32 %v10742, %v10842
        %v10891 = vadd.f32 %v10743, %v10843
        %v10892 = vadd.f32 %v10744, %v10844
        %v10893 = vadd.f32 %v10745, %v10845
        %v10894 = vadd.f32 %v10746, %v10846
        %v10895 = vld [vmem:[%s3707 + $0x20] sm:$0xff]
        %v10896 = vld [vmem:[%s3707 + $0x60] sm:$0xff]
        %v10897 = vld [vmem:[%s3707 + $0xa0] sm:$0xff]
        %v10898 = vld [vmem:[%s3707 + $0xe0] sm:$0xff]
        %v10899 = vld [vmem:[%s3707 + $0x120] sm:$0xff]
        %v10900 = vld [vmem:[%s3707 + $0x160] sm:$0xff]
        %v10901 = vld [vmem:[%s3707 + $0x1a0] sm:$0xff]
        %v10902 = vld [vmem:[%s3707 + $0x1e0] sm:$0xff]
        %v10903 = vld [vmem:[%s3707 + $0x220] sm:$0xff]
        %v10904 = vld [vmem:[%s3707 + $0x260] sm:$0xff]
        %v10905 = vld [vmem:[%s3707 + $0x2a0] sm:$0xff]
        %v10906 = vld [vmem:[%s3707 + $0x2e0] sm:$0xff]
        %v10907 = vld [vmem:[%s3707 + $0x320] sm:$0xff]
        %v10908 = vld [vmem:[%s3707 + $0x360] sm:$0xff]
        %v10909 = vld [vmem:[%s3707 + $0x3a0] sm:$0xff]
        %v10910 = vld [vmem:[%s3707 + $0x3e0] sm:$0xff]
        %v10911 = vlaneseq
        %v10912 = vshrl.u32 %v10911, 7
        %v10913 = vsub.s32 5, %v10912
        %v10914 = vrot.slane %v356, %v10913
        %v10915 = vmul.f32 %v10748, %v10914
        %v10916 = vmul.f32 %v10895, %v10914
        %v10917 = vmul.f32 %v10751, %v10914
        %v10918 = vmul.f32 %v10896, %v10914
        %v10919 = vmul.f32 %v10754, %v10914
        %v10920 = vmul.f32 %v10897, %v10914
        %v10921 = vmul.f32 %v10757, %v10914
        %v10922 = vmul.f32 %v10898, %v10914
        %v10923 = vmul.f32 %v10760, %v10914
        %v10924 = vmul.f32 %v10899, %v10914
        %v10925 = vmul.f32 %v10763, %v10914
        %v10926 = vmul.f32 %v10900, %v10914
        %v10927 = vmul.f32 %v10766, %v10914
        %v10928 = vmul.f32 %v10901, %v10914
        %v10929 = vmul.f32 %v10769, %v10914
        %v10930 = vmul.f32 %v10902, %v10914
        %v10931 = vmul.f32 %v10772, %v10914
        %v10932 = vmul.f32 %v10903, %v10914
        %v10933 = vmul.f32 %v10775, %v10914
        %v10934 = vmul.f32 %v10904, %v10914
        %v10935 = vmul.f32 %v10778, %v10914
        %v10936 = vmul.f32 %v10905, %v10914
        %v10937 = vmul.f32 %v10781, %v10914
        %v10938 = vmul.f32 %v10906, %v10914
        %v10939 = vmul.f32 %v10784, %v10914
        %v10940 = vmul.f32 %v10907, %v10914
        %v10941 = vmul.f32 %v10787, %v10914
        %v10942 = vmul.f32 %v10908, %v10914
        %v10943 = vmul.f32 %v10790, %v10914
        %v10944 = vmul.f32 %v10909, %v10914
        %v10945 = vmul.f32 %v10793, %v10914
        %v10946 = vmul.f32 %v10910, %v10914
        %v10979 = vrot.slane %v10915, 1
        %v10980 = vrot.slane %v10916, 1
        %v10981 = vsel %vm1433, %v10979, %v10980
        %v10982 = vrot.slane %v10917, 1
        %v10983 = vrot.slane %v10918, 1
        %v10984 = vsel %vm1433, %v10982, %v10983
        %v10985 = vrot.slane %v10919, 1
        %v10986 = vrot.slane %v10920, 1
        %v10987 = vsel %vm1433, %v10985, %v10986
        %v10988 = vrot.slane %v10921, 1
        %v10989 = vrot.slane %v10922, 1
        %v10990 = vsel %vm1433, %v10988, %v10989
        %v10991 = vrot.slane %v10923, 1
        %v10992 = vrot.slane %v10924, 1
        %v10993 = vsel %vm1433, %v10991, %v10992
        %v10994 = vrot.slane %v10925, 1
        %v10995 = vrot.slane %v10926, 1
        %v10996 = vsel %vm1433, %v10994, %v10995
        %v10997 = vrot.slane %v10927, 1
        %v10998 = vrot.slane %v10928, 1
        %v10999 = vsel %vm1433, %v10997, %v10998
        %v11000 = vrot.slane %v10929, 1
        %v11001 = vrot.slane %v10930, 1
        %v11002 = vsel %vm1433, %v11000, %v11001
        %v11003 = vrot.slane %v10931, 1
        %v11004 = vrot.slane %v10932, 1
        %v11005 = vsel %vm1433, %v11003, %v11004
        %v11006 = vrot.slane %v10933, 1
        %v11007 = vrot.slane %v10934, 1
        %v11008 = vsel %vm1433, %v11006, %v11007
        %v11009 = vrot.slane %v10935, 1
        %v11010 = vrot.slane %v10936, 1
        %v11011 = vsel %vm1433, %v11009, %v11010
        %v11012 = vrot.slane %v10937, 1
        %v11013 = vrot.slane %v10938, 1
        %v11014 = vsel %vm1433, %v11012, %v11013
        %v11015 = vrot.slane %v10939, 1
        %v11016 = vrot.slane %v10940, 1
        %v11017 = vsel %vm1433, %v11015, %v11016
        %v11018 = vrot.slane %v10941, 1
        %v11019 = vrot.slane %v10942, 1
        %v11020 = vsel %vm1433, %v11018, %v11019
        %v11021 = vrot.slane %v10943, 1
        %v11022 = vrot.slane %v10944, 1
        %v11023 = vsel %vm1433, %v11021, %v11022
        %v11024 = vrot.slane %v10945, 1
        %v11025 = vrot.slane %v10946, 1
        %v11026 = vsel %vm1433, %v11024, %v11025
        %v11075 = vadd.f32 %v10847, %v10979
        %v11076 = vadd.f32 %v10848, %v10981
        %v11077 = vadd.f32 %v10849, %v10980
        %v11078 = vadd.f32 %v10850, %v10982
        %v11079 = vadd.f32 %v10851, %v10984
        %v11080 = vadd.f32 %v10852, %v10983
        %v11081 = vadd.f32 %v10853, %v10985
        %v11082 = vadd.f32 %v10854, %v10987
        %v11083 = vadd.f32 %v10855, %v10986
        %v11084 = vadd.f32 %v10856, %v10988
        %v11085 = vadd.f32 %v10857, %v10990
        %v11086 = vadd.f32 %v10858, %v10989
        %v11087 = vadd.f32 %v10859, %v10991
        %v11088 = vadd.f32 %v10860, %v10993
        %v11089 = vadd.f32 %v10861, %v10992
        %v11090 = vadd.f32 %v10862, %v10994
        %v11091 = vadd.f32 %v10863, %v10996
        %v11092 = vadd.f32 %v10864, %v10995
        %v11093 = vadd.f32 %v10865, %v10997
        %v11094 = vadd.f32 %v10866, %v10999
        %v11095 = vadd.f32 %v10867, %v10998
        %v11096 = vadd.f32 %v10868, %v11000
        %v11097 = vadd.f32 %v10869, %v11002
        %v11098 = vadd.f32 %v10870, %v11001
        %v11099 = vadd.f32 %v10871, %v11003
        %v11100 = vadd.f32 %v10872, %v11005
        %v11101 = vadd.f32 %v10873, %v11004
        %v11102 = vadd.f32 %v10874, %v11006
        %v11103 = vadd.f32 %v10875, %v11008
        %v11104 = vadd.f32 %v10876, %v11007
        %v11105 = vadd.f32 %v10877, %v11009
        %v11106 = vadd.f32 %v10878, %v11011
        %v11107 = vadd.f32 %v10879, %v11010
        %v11108 = vadd.f32 %v10880, %v11012
        %v11109 = vadd.f32 %v10881, %v11014
        %v11110 = vadd.f32 %v10882, %v11013
        %v11111 = vadd.f32 %v10883, %v11015
        %v11112 = vadd.f32 %v10884, %v11017
        %v11113 = vadd.f32 %v10885, %v11016
        %v11114 = vadd.f32 %v10886, %v11018
        %v11115 = vadd.f32 %v10887, %v11020
        %v11116 = vadd.f32 %v10888, %v11019
        %v11117 = vadd.f32 %v10889, %v11021
        %v11118 = vadd.f32 %v10890, %v11023
        %v11119 = vadd.f32 %v10891, %v11022
        %v11120 = vadd.f32 %v10892, %v11024
        %v11121 = vadd.f32 %v10893, %v11026
        %v11122 = vadd.f32 %v10894, %v11025
        %v11123 = vld [vmem:[%s3707 + $0x10] sm:$0xfe]
        %v11124 = vld [vmem:[%s3707 + $0x30] sm:$0x1]
        %v11125 = vld [vmem:[%s3707 + $0x50] sm:$0xfe]
        %v11126 = vld [vmem:[%s3707 + $0x70] sm:$0x1]
        %v11127 = vld [vmem:[%s3707 + $0x90] sm:$0xfe]
        %v11128 = vld [vmem:[%s3707 + $0xb0] sm:$0x1]
        %v11129 = vld [vmem:[%s3707 + $0xd0] sm:$0xfe]
        %v11130 = vld [vmem:[%s3707 + $0xf0] sm:$0x1]
        %v11131 = vld [vmem:[%s3707 + $0x110] sm:$0xfe]
        %v11132 = vld [vmem:[%s3707 + $0x130] sm:$0x1]
        %v11133 = vld [vmem:[%s3707 + $0x150] sm:$0xfe]
        %v11134 = vld [vmem:[%s3707 + $0x170] sm:$0x1]
        %v11135 = vld [vmem:[%s3707 + $0x190] sm:$0xfe]
        %v11136 = vld [vmem:[%s3707 + $0x1b0] sm:$0x1]
        %v11137 = vld [vmem:[%s3707 + $0x1d0] sm:$0xfe]
        %v11138 = vld [vmem:[%s3707 + $0x1f0] sm:$0x1]
        %v11139 = vld [vmem:[%s3707 + $0x210] sm:$0xfe]
        %v11140 = vld [vmem:[%s3707 + $0x230] sm:$0x1]
        %v11141 = vld [vmem:[%s3707 + $0x250] sm:$0xfe]
        %v11142 = vld [vmem:[%s3707 + $0x270] sm:$0x1]
        %v11143 = vld [vmem:[%s3707 + $0x290] sm:$0xfe]
        %v11144 = vld [vmem:[%s3707 + $0x2b0] sm:$0x1]
        %v11145 = vld [vmem:[%s3707 + $0x2d0] sm:$0xfe]
        %v11146 = vld [vmem:[%s3707 + $0x2f0] sm:$0x1]
        %v11147 = vld [vmem:[%s3707 + $0x310] sm:$0xfe]
        %v11148 = vld [vmem:[%s3707 + $0x330] sm:$0x1]
        %v11149 = vld [vmem:[%s3707 + $0x350] sm:$0xfe]
        %v11150 = vld [vmem:[%s3707 + $0x370] sm:$0x1]
        %v11151 = vld [vmem:[%s3707 + $0x390] sm:$0xfe]
        %v11152 = vld [vmem:[%s3707 + $0x3b0] sm:$0x1]
        %v11153 = vld [vmem:[%s3707 + $0x3d0] sm:$0xfe]
        %v11154 = vld [vmem:[%s3707 + $0x3f0] sm:$0x1]
        %v11155 = vlaneseq
        %v11156 = vshrl.u32 %v11155, 7
        %v11157 = vsub.s32 6, %v11156
        %v11158 = vrot.slane %v356, %v11157
        %v11159 = vmul.f32 %v11123, %v11158
        %v11160 = vmul.f32 %v10895, %v11158
        %v11161 = vmul.f32 %v11124, %v11158
        %v11162 = vmul.f32 %v11125, %v11158
        %v11163 = vmul.f32 %v10896, %v11158
        %v11164 = vmul.f32 %v11126, %v11158
        %v11165 = vmul.f32 %v11127, %v11158
        %v11166 = vmul.f32 %v10897, %v11158
        %v11167 = vmul.f32 %v11128, %v11158
        %v11168 = vmul.f32 %v11129, %v11158
        %v11169 = vmul.f32 %v10898, %v11158
        %v11170 = vmul.f32 %v11130, %v11158
        %v11171 = vmul.f32 %v11131, %v11158
        %v11172 = vmul.f32 %v10899, %v11158
        %v11173 = vmul.f32 %v11132, %v11158
        %v11174 = vmul.f32 %v11133, %v11158
        %v11175 = vmul.f32 %v10900, %v11158
        %v11176 = vmul.f32 %v11134, %v11158
        %v11177 = vmul.f32 %v11135, %v11158
        %v11178 = vmul.f32 %v10901, %v11158
        %v11179 = vmul.f32 %v11136, %v11158
        %v11180 = vmul.f32 %v11137, %v11158
        %v11181 = vmul.f32 %v10902, %v11158
        %v11182 = vmul.f32 %v11138, %v11158
        %v11183 = vmul.f32 %v11139, %v11158
        %v11184 = vmul.f32 %v10903, %v11158
        %v11185 = vmul.f32 %v11140, %v11158
        %v11186 = vmul.f32 %v11141, %v11158
        %v11187 = vmul.f32 %v10904, %v11158
        %v11188 = vmul.f32 %v11142, %v11158
        %v11189 = vmul.f32 %v11143, %v11158
        %v11190 = vmul.f32 %v10905, %v11158
        %v11191 = vmul.f32 %v11144, %v11158
        %v11192 = vmul.f32 %v11145, %v11158
        %v11193 = vmul.f32 %v10906, %v11158
        %v11194 = vmul.f32 %v11146, %v11158
        %v11195 = vmul.f32 %v11147, %v11158
        %v11196 = vmul.f32 %v10907, %v11158
        %v11197 = vmul.f32 %v11148, %v11158
        %v11198 = vmul.f32 %v11149, %v11158
        %v11199 = vmul.f32 %v10908, %v11158
        %v11200 = vmul.f32 %v11150, %v11158
        %v11201 = vmul.f32 %v11151, %v11158
        %v11202 = vmul.f32 %v10909, %v11158
        %v11203 = vmul.f32 %v11152, %v11158
        %v11204 = vmul.f32 %v11153, %v11158
        %v11205 = vmul.f32 %v10910, %v11158
        %v11206 = vmul.f32 %v11154, %v11158
        %v11255 = vrot.slane %v11159, 2
        %v11256 = vrot.slane %v11160, 2
        %v11257 = vsel %vm1986, %v11255, %v11256
        %v11258 = vrot.slane %v11161, 2
        %v11259 = vsel %vm1986, %v11256, %v11258
        %v11260 = vrot.slane %v11162, 2
        %v11261 = vrot.slane %v11163, 2
        %v11262 = vsel %vm1986, %v11260, %v11261
        %v11263 = vrot.slane %v11164, 2
        %v11264 = vsel %vm1986, %v11261, %v11263
        %v11265 = vrot.slane %v11165, 2
        %v11266 = vrot.slane %v11166, 2
        %v11267 = vsel %vm1986, %v11265, %v11266
        %v11268 = vrot.slane %v11167, 2
        %v11269 = vsel %vm1986, %v11266, %v11268
        %v11270 = vrot.slane %v11168, 2
        %v11271 = vrot.slane %v11169, 2
        %v11272 = vsel %vm1986, %v11270, %v11271
        %v11273 = vrot.slane %v11170, 2
        %v11274 = vsel %vm1986, %v11271, %v11273
        %v11275 = vrot.slane %v11171, 2
        %v11276 = vrot.slane %v11172, 2
        %v11277 = vsel %vm1986, %v11275, %v11276
        %v11278 = vrot.slane %v11173, 2
        %v11279 = vsel %vm1986, %v11276, %v11278
        %v11280 = vrot.slane %v11174, 2
        %v11281 = vrot.slane %v11175, 2
        %v11282 = vsel %vm1986, %v11280, %v11281
        %v11283 = vrot.slane %v11176, 2
        %v11284 = vsel %vm1986, %v11281, %v11283
        %v11285 = vrot.slane %v11177, 2
        %v11286 = vrot.slane %v11178, 2
        %v11287 = vsel %vm1986, %v11285, %v11286
        %v11288 = vrot.slane %v11179, 2
        %v11289 = vsel %vm1986, %v11286, %v11288
        %v11290 = vrot.slane %v11180, 2
        %v11291 = vrot.slane %v11181, 2
        %v11292 = vsel %vm1986, %v11290, %v11291
        %v11293 = vrot.slane %v11182, 2
        %v11294 = vsel %vm1986, %v11291, %v11293
        %v11295 = vrot.slane %v11183, 2
        %v11296 = vrot.slane %v11184, 2
        %v11297 = vsel %vm1986, %v11295, %v11296
        %v11298 = vrot.slane %v11185, 2
        %v11299 = vsel %vm1986, %v11296, %v11298
        %v11300 = vrot.slane %v11186, 2
        %v11301 = vrot.slane %v11187, 2
        %v11302 = vsel %vm1986, %v11300, %v11301
        %v11303 = vrot.slane %v11188, 2
        %v11304 = vsel %vm1986, %v11301, %v11303
        %v11305 = vrot.slane %v11189, 2
        %v11306 = vrot.slane %v11190, 2
        %v11307 = vsel %vm1986, %v11305, %v11306
        %v11308 = vrot.slane %v11191, 2
        %v11309 = vsel %vm1986, %v11306, %v11308
        %v11310 = vrot.slane %v11192, 2
        %v11311 = vrot.slane %v11193, 2
        %v11312 = vsel %vm1986, %v11310, %v11311
        %v11313 = vrot.slane %v11194, 2
        %v11314 = vsel %vm1986, %v11311, %v11313
        %v11315 = vrot.slane %v11195, 2
        %v11316 = vrot.slane %v11196, 2
        %v11317 = vsel %vm1986, %v11315, %v11316
        %v11318 = vrot.slane %v11197, 2
        %v11319 = vsel %vm1986, %v11316, %v11318
        %v11320 = vrot.slane %v11198, 2
        %v11321 = vrot.slane %v11199, 2
        %v11322 = vsel %vm1986, %v11320, %v11321
        %v11323 = vrot.slane %v11200, 2
        %v11324 = vsel %vm1986, %v11321, %v11323
        %v11325 = vrot.slane %v11201, 2
        %v11326 = vrot.slane %v11202, 2
        %v11327 = vsel %vm1986, %v11325, %v11326
        %v11328 = vrot.slane %v11203, 2
        %v11329 = vsel %vm1986, %v11326, %v11328
        %v11330 = vrot.slane %v11204, 2
        %v11331 = vrot.slane %v11205, 2
        %v11332 = vsel %vm1986, %v11330, %v11331
        %v11333 = vrot.slane %v11206, 2
        %v11334 = vsel %vm1986, %v11331, %v11333
        %v11383 = vadd.f32 %v11075, %v11255
        %v11384 = vadd.f32 %v11076, %v11257
        %v11385 = vadd.f32 %v11077, %v11259
        %v11386 = vadd.f32 %v11078, %v11260
        %v11387 = vadd.f32 %v11079, %v11262
        %v11388 = vadd.f32 %v11080, %v11264
        %v11389 = vadd.f32 %v11081, %v11265
        %v11390 = vadd.f32 %v11082, %v11267
        %v11391 = vadd.f32 %v11083, %v11269
        %v11392 = vadd.f32 %v11084, %v11270
        %v11393 = vadd.f32 %v11085, %v11272
        %v11394 = vadd.f32 %v11086, %v11274
        %v11395 = vadd.f32 %v11087, %v11275
        %v11396 = vadd.f32 %v11088, %v11277
        %v11397 = vadd.f32 %v11089, %v11279
        %v11398 = vadd.f32 %v11090, %v11280
        %v11399 = vadd.f32 %v11091, %v11282
        %v11400 = vadd.f32 %v11092, %v11284
        %v11401 = vadd.f32 %v11093, %v11285
        %v11402 = vadd.f32 %v11094, %v11287
        %v11403 = vadd.f32 %v11095, %v11289
        %v11404 = vadd.f32 %v11096, %v11290
        %v11405 = vadd.f32 %v11097, %v11292
        %v11406 = vadd.f32 %v11098, %v11294
        %v11407 = vadd.f32 %v11099, %v11295
        %v11408 = vadd.f32 %v11100, %v11297
        %v11409 = vadd.f32 %v11101, %v11299
        %v11410 = vadd.f32 %v11102, %v11300
        %v11411 = vadd.f32 %v11103, %v11302
        %v11412 = vadd.f32 %v11104, %v11304
        %v11413 = vadd.f32 %v11105, %v11305
        %v11414 = vadd.f32 %v11106, %v11307
        %v11415 = vadd.f32 %v11107, %v11309
        %v11416 = vadd.f32 %v11108, %v11310
        %v11417 = vadd.f32 %v11109, %v11312
        %v11418 = vadd.f32 %v11110, %v11314
        %v11419 = vadd.f32 %v11111, %v11315
        %v11420 = vadd.f32 %v11112, %v11317
        %v11421 = vadd.f32 %v11113, %v11319
        %v11422 = vadd.f32 %v11114, %v11320
        %v11423 = vadd.f32 %v11115, %v11322
        %v11424 = vadd.f32 %v11116, %v11324
        %v11425 = vadd.f32 %v11117, %v11325
        %v11426 = vadd.f32 %v11118, %v11327
        %v11427 = vadd.f32 %v11119, %v11329
        %v11428 = vadd.f32 %v11120, %v11330
        %v11429 = vadd.f32 %v11121, %v11332
        %v11430 = vadd.f32 %v11122, %v11334
        %v11431 = vadd.f32 %v11383, %v357
        %v11432 = vadd.f32 %v11384, %v357
        %v11433 = vadd.f32 %v11385, %v357
        %v11434 = vadd.f32 %v11386, %v357
        %v11435 = vadd.f32 %v11387, %v357
        %v11436 = vadd.f32 %v11388, %v357
        %v11437 = vadd.f32 %v11389, %v357
        %v11438 = vadd.f32 %v11390, %v357
        %v11439 = vadd.f32 %v11391, %v357
        %v11440 = vadd.f32 %v11392, %v357
        %v11441 = vadd.f32 %v11393, %v357
        %v11442 = vadd.f32 %v11394, %v357
        %v11443 = vadd.f32 %v11395, %v357
        %v11444 = vadd.f32 %v11396, %v357
        %v11445 = vadd.f32 %v11397, %v357
        %v11446 = vadd.f32 %v11398, %v357
        %v11447 = vadd.f32 %v11399, %v357
        %v11448 = vadd.f32 %v11400, %v357
        %v11449 = vadd.f32 %v11401, %v357
        %v11450 = vadd.f32 %v11402, %v357
        %v11451 = vadd.f32 %v11403, %v357
        %v11452 = vadd.f32 %v11404, %v357
        %v11453 = vadd.f32 %v11405, %v357
        %v11454 = vadd.f32 %v11406, %v357
        %v11455 = vadd.f32 %v11407, %v357
        %v11456 = vadd.f32 %v11408, %v357
        %v11457 = vadd.f32 %v11409, %v357
        %v11458 = vadd.f32 %v11410, %v357
        %v11459 = vadd.f32 %v11411, %v357
        %v11460 = vadd.f32 %v11412, %v357
        %v11461 = vadd.f32 %v11413, %v357
        %v11462 = vadd.f32 %v11414, %v357
        %v11463 = vadd.f32 %v11415, %v357
        %v11464 = vadd.f32 %v11416, %v357
        %v11465 = vadd.f32 %v11417, %v357
        %v11466 = vadd.f32 %v11418, %v357
        %v11467 = vadd.f32 %v11419, %v357
        %v11468 = vadd.f32 %v11420, %v357
        %v11469 = vadd.f32 %v11421, %v357
        %v11470 = vadd.f32 %v11422, %v357
        %v11471 = vadd.f32 %v11423, %v357
        %v11472 = vadd.f32 %v11424, %v357
        %v11473 = vadd.f32 %v11425, %v357
        %v11474 = vadd.f32 %v11426, %v357
        %v11475 = vadd.f32 %v11427, %v357
        %v11476 = vadd.f32 %v11428, %v357
        %v11477 = vadd.f32 %v11429, %v357
        %v11478 = vadd.f32 %v11430, %v357
        %11479 = vst [vmem:[%s259 - $0x7] sm:$0x80] %v11431
        %11480 = vst [vmem:[%s259 + $0x1] sm:$0xff] %v11432
        %11481 = vst [vmem:[%s259 + $0x9] sm:$0x7f] %v11433
        %11482 = vst [vmem:[%s259 + $0x9] sm:$0x80] %v11434
        %11483 = vst [vmem:[%s259 + $0x11] sm:$0xff] %v11435
        %11484 = vst [vmem:[%s259 + $0x19] sm:$0x7f] %v11436
        %11485 = vst [vmem:[%s259 + $0x19] sm:$0x80] %v11437
        %11486 = vst [vmem:[%s259 + $0x21] sm:$0xff] %v11438
        %11487 = vst [vmem:[%s259 + $0x29] sm:$0x7f] %v11439
        %11488 = vst [vmem:[%s259 + $0x29] sm:$0x80] %v11440
        %11489 = vst [vmem:[%s259 + $0x31] sm:$0xff] %v11441
        %11490 = vst [vmem:[%s259 + $0x39] sm:$0x7f] %v11442
        %11491 = vst [vmem:[%s259 + $0x39] sm:$0x80] %v11443
        %11492 = vst [vmem:[%s259 + $0x41] sm:$0xff] %v11444
        %11493 = vst [vmem:[%s259 + $0x49] sm:$0x7f] %v11445
        %11494 = vst [vmem:[%s259 + $0x49] sm:$0x80] %v11446
        %11495 = vst [vmem:[%s259 + $0x51] sm:$0xff] %v11447
        %11496 = vst [vmem:[%s259 + $0x59] sm:$0x7f] %v11448
        %11497 = vst [vmem:[%s259 + $0x59] sm:$0x80] %v11449
        %11498 = vst [vmem:[%s259 + $0x61] sm:$0xff] %v11450
        %11499 = vst [vmem:[%s259 + $0x69] sm:$0x7f] %v11451
        %11500 = vst [vmem:[%s259 + $0x69] sm:$0x80] %v11452
        %11501 = vst [vmem:[%s259 + $0x71] sm:$0xff] %v11453
        %11502 = vst [vmem:[%s259 + $0x79] sm:$0x7f] %v11454
        %11503 = vst [vmem:[%s259 + $0x79] sm:$0x80] %v11455
        %11504 = vst [vmem:[%s259 + $0x81] sm:$0xff] %v11456
        %11505 = vst [vmem:[%s259 + $0x89] sm:$0x7f] %v11457
        %11506 = vst [vmem:[%s259 + $0x89] sm:$0x80] %v11458
        %11507 = vst [vmem:[%s259 + $0x91] sm:$0xff] %v11459
        %11508 = vst [vmem:[%s259 + $0x99] sm:$0x7f] %v11460
        %11509 = vst [vmem:[%s259 + $0x99] sm:$0x80] %v11461
        %11510 = vst [vmem:[%s259 + $0xa1] sm:$0xff] %v11462
        %11511 = vst [vmem:[%s259 + $0xa9] sm:$0x7f] %v11463
        %11512 = vst [vmem:[%s259 + $0xa9] sm:$0x80] %v11464
        %11513 = vst [vmem:[%s259 + $0xb1] sm:$0xff] %v11465
        %11514 = vst [vmem:[%s259 + $0xb9] sm:$0x7f] %v11466
        %11515 = vst [vmem:[%s259 + $0xb9] sm:$0x80] %v11467
        %11516 = vst [vmem:[%s259 + $0xc1] sm:$0xff] %v11468
        %11517 = vst [vmem:[%s259 + $0xc9] sm:$0x7f] %v11469
        %11518 = vst [vmem:[%s259 + $0xc9] sm:$0x80] %v11470
        %11519 = vst [vmem:[%s259 + $0xd1] sm:$0xff] %v11471
        %11520 = vst [vmem:[%s259 + $0xd9] sm:$0x7f] %v11472
        %11521 = vst [vmem:[%s259 + $0xd9] sm:$0x80] %v11473
        %11522 = vst [vmem:[%s259 + $0xe1] sm:$0xff] %v11474
        %11523 = vst [vmem:[%s259 + $0xe9] sm:$0x7f] %v11475
        %11524 = vst [vmem:[%s259 + $0xe9] sm:$0x80] %v11476
        %11525 = vst [vmem:[%s259 + $0xf1] sm:$0xff] %v11477
        %11526 = vst [vmem:[%s259 + $0xf9] sm:$0x7f] %v11478
        %s11527 = sand.u32 %s120, 1
        %s11528 = scalar_lea.sflag [#allocation5], %s11527
        %s11529 = sand.u32 %s120, 1
        %s11530 = smul.addr %s11529, 256
        %s11531 = scalar_lea.vmem [#allocation11], %s11530
        // Predicated region
        $region53: #{tpu_custom_call.1} parent=35 // pred_check
          %p11532 = pneg %p130
        $region54: #{tpu_custom_call.1} parent=35 // pred_check_branch
          %11534 = sbr.rel (%p11532) target = $region56
        $region55: #{tpu_custom_call.1} parent=35 // pred_region
          %s11536 = ssub.s32 4096, 4096
          %11537 = vsyncadd %s11528, %s11536
          %s11538 = smul.addr %s23, 32
          %s11539 = smul.addr %s11538, 128
          %s11540 = scalar_lea.hbm %s4, %s11539
          %s11541 = sshll.u32 %s11531, 4
          %s11542 = int_to_ptr.vmem [resolvable:$true] %s11541
          %11547 = dma.vmem_to_hbm [thread:$0]  %s11542, 4096, %s11540, %s11528, 128, 128, 8
        $region56: #{tpu_custom_call.1} parent=35 // pred_fallthru
          _
      $region36: #{tpu_custom_call.1} parent=5 // pred_fallthru
        _
      %p11548 = scmp.le.s32.totalorder 2, %s18
      // Predicated region
      $region57: #{tpu_custom_call.1} parent=5 // pred_check
        %p11549 = pneg %p11548
      $region58: #{tpu_custom_call.1} parent=5 // pred_check_branch
        %11551 = sbr.rel (%p11549) target = $region60
      $region59: #{tpu_custom_call.1} parent=5 // pred_region
        %s11552 = ssub.s32 %s18, 2
        // Predicated region
        $region61: #{tpu_custom_call.1} parent=59 // pred_check
          %p11553 = pneg %p136
        $region62: #{tpu_custom_call.1} parent=59 // pred_check_branch
          %11555 = sbr.rel (%p11553) target = $region64
        $region63: #{tpu_custom_call.1} parent=59 // pred_region
          %s11556 = sand.u32 %s121, 1
          %s11557 = scalar_lea.sflag [#allocation5], %s11556
          %s11558 = sand.u32 %s121, 1
          %s11559 = smul.addr %s11558, 256
          %s11560 = scalar_lea.vmem [#allocation11], %s11559
          %11561 = dma.done %s11557, 4096
        $region64: #{tpu_custom_call.1} parent=59 // pred_fallthru
          _
      $region60: #{tpu_custom_call.1} parent=5 // pred_fallthru
        _
    $region6: #{tpu_custom_call.1} parent=1 // loop_footer
      %s22 = sadd.s32 1, %s18
    $region7: #{tpu_custom_call.1} parent=1 // loop_footer_branch
      %17 = sbr.rel target = $region3
    $region8: #{tpu_custom_call.1} parent=1 // loop_exit
      _
    %11562 = vsyncpa [#allocation4], 1
    %s11563 = scalar_lea.sflag [#allocation4], 1
    %11564 = vsyncpa %s11563, 1
    %11565 = vsyncpa [#allocation7], 1
    %11566 = vsyncpa [#allocation10], 1
    %11567 = vsyncpa [#allocation5], 1
    %s11568 = scalar_lea.sflag [#allocation5], 1
    %11569 = vsyncpa %s11568, 1

</llo_original>
